<compile_context>
chip_gen: v7x
topology: tpu7x:2x2x1
jax: 0.10.0
libtpu: 0.0.40
codegen_flags: <defaults>
</compile_context>

<pallas_src>
import functools

import jax
import jax.numpy as jnp
from jax.experimental import pallas as pl
from jax.experimental.pallas import tpu as pltpu


def _round_up(v, m):
    return (v + m - 1) // m * m


# -----------------------------------------------------------------------------
# Fused kernel: one grid step == one image, everything VMEM-resident.
# -----------------------------------------------------------------------------
def _fused_forward_kernel(x_ref, colm_ref, rowm_ref, w0_ref, b0_ref, w1_ref,
                          b1_ref, w2_ref, b2_ref, fcw_ref, fcb_ref,
                          emb_ref, pred_ref, *, H, W, normalize):
    M = x_ref.shape[0]
    Wp = W + 2
    colm = colm_ref[...]                       # (M, 1)  f32, 1.0 on real pixels
    rowm = rowm_ref[...]                       # (8, M)  bf16 interior-row mask

    def conv3x3(x_f32, w_ref, b_ref, residual=None, mask=True):
        """3x3 SAME conv (folded BN) as ONE fat K=9*C MXU dot, then ReLU."""
        pieces = []
        for dh in (-1, 0, 1):
            for dw in (-1, 0, 1):
                s = dh * Wp + dw               # want y[j, :] = x[j + s, :]
                if s == 0:
                    pieces.append(x_f32)
                else:
                    # roll on the XLU; wrapped rows only affect non-interior
                    # output rows, which are re-masked / excluded from the pool.
                    pieces.append(pltpu.roll(x_f32, (-s) % M, axis=0))
        patch = jnp.concatenate(pieces, axis=1).astype(jnp.bfloat16)  # (M, 9C)
        acc = jnp.dot(patch, w_ref[...], preferred_element_type=jnp.float32)
        acc = acc + b_ref[...]                 # folded-BN bias
        if residual is not None:
            acc = acc + residual               # BasicBlock identity add
        acc = jnp.maximum(acc, 0.0)            # ReLU
        if mask:
            acc = acc * colm                   # re-zero halo / padding rows
        return acc

    x0 = x_ref[...]                            # (M, Cin_p) f32
    h = conv3x3(x0, w0_ref, b0_ref)            # stem conv + BN + ReLU
    z = conv3x3(h, w1_ref, b1_ref)             # block conv1 + BN + ReLU
    y = conv3x3(z, w2_ref, b2_ref, residual=h, mask=False)  # conv2+BN+add+ReLU

    # Global average pool as an MXU dot with the interior-row mask (this also
    # excludes y's unmasked halo rows).  All 8 result rows are identical.
    pooled = jnp.dot(rowm, y.astype(jnp.bfloat16),
                     preferred_element_type=jnp.float32) * (1.0 / (H * W))

    if normalize:                              # F.normalize(embedding, dim=1)
        nrm = jnp.sqrt(jnp.sum(pooled * pooled, axis=1, keepdims=True))
        pooled = pooled / jnp.maximum(nrm, 1e-12)

    emb_ref[...] = pooled.astype(emb_ref.dtype)            # dense (8, Cmid_p)

    preds = jnp.dot(pooled.astype(jnp.bfloat16), fcw_ref[...],
                    preferred_element_type=jnp.float32) + fcb_ref[...]
    pred_ref[...] = preds.astype(pred_ref.dtype)            # dense (8, ncls_p)


# -----------------------------------------------------------------------------
# Wrapper: layout prep (halo pad, BN fold, channel padding, bf16 weights) +
# a single pallas_call.
# -----------------------------------------------------------------------------
@functools.partial(jax.jit, static_argnames=("admloss", "return_features"))
def timm_resnet_wrapper_forward(x_nchw, params, *, admloss=True, return_features=True):
    x = jnp.transpose(x_nchw, (0, 2, 3, 1)).astype(jnp.float32)   # NCHW -> NHWC
    N, H, W, Cin = x.shape
    Hp, Wp = H + 2, W + 2
    M = _round_up(Hp * Wp, 16)                 # row count, sublane-aligned

    cmid = params["stem_w"].shape[-1]
    ncls = params["fc_w"].shape[-1]
    Cin_p = _round_up(Cin, 128)                # lane-dense channel padding
    Cmid_p = _round_up(cmid, 128)
    ncls_p = _round_up(ncls, 128)

    # One halo pad of the input (tiny; NOT an im2col expansion), flattened to a
    # (row, channel) layout so in-kernel shifts are plain sublane rotations.
    xp = jnp.pad(x, ((0, 0), (1, 1), (1, 1), (0, Cin_p - Cin)))
    xp = xp.reshape(N, Hp * Wp, Cin_p)
    xp = jnp.pad(xp, ((0, 0), (0, M - Hp * Wp), (0, 0)))

    # Interior masks (1.0 on rows corresponding to a real output pixel).
    rows = jnp.arange(Hp * Wp, dtype=jnp.int32)
    hh, ww = rows // Wp, rows % Wp
    interior = ((hh >= 1) & (hh <= H) & (ww >= 1) & (ww <= W)).astype(jnp.float32)
    interior = jnp.pad(interior, (0, M - Hp * Wp))
    colmask = interior.reshape(M, 1)                                  # f32
    rowmask = jnp.broadcast_to(interior.reshape(1, M), (8, M)).astype(jnp.bfloat16)

    def prep(w_hwio, bn, cin_pad, cout_pad):
        """Fold BN scale into the conv weight, pad channels, flatten to
        (9*cin_pad, cout_pad) bf16 so the conv is one fat MXU dot."""
        assert w_hwio.shape[:2] == (3, 3)
        scale, bias = bn
        ci, co = w_hwio.shape[2], w_hwio.shape[3]
        wf = w_hwio * scale.reshape(1, 1, 1, co)
        wf = jnp.pad(wf, ((0, 0), (0, 0), (0, cin_pad - ci), (0, cout_pad - co)))
        wf = wf.reshape(9 * cin_pad, cout_pad).astype(jnp.bfloat16)
        bz = jnp.pad(bias.reshape(1, co), ((0, 0), (0, cout_pad - co)))
        return wf, bz.astype(jnp.float32)

    w0, b0 = prep(params["stem_w"], params["stem_bn"], Cin_p, Cmid_p)
    w1, b1 = prep(params["b1_w1"], params["b1_bn1"], Cmid_p, Cmid_p)
    w2, b2 = prep(params["b1_w2"], params["b1_bn2"], Cmid_p, Cmid_p)

    fcw = jnp.pad(params["fc_w"],
                  ((0, Cmid_p - cmid), (0, ncls_p - ncls))).astype(jnp.bfloat16)
    fcb = jnp.pad(params["fc_b"].reshape(1, -1),
                  ((0, 0), (0, ncls_p - ncls))).astype(jnp.float32)

    def full_spec(shape):
        zeros = (0,) * len(shape)
        return pl.BlockSpec(shape, lambda n, _z=zeros: _z)

    kernel = functools.partial(_fused_forward_kernel, H=H, W=W, normalize=admloss)

    emb3, pred3 = pl.pallas_call(
        kernel,
        out_shape=(
            jax.ShapeDtypeStruct((N, 8, Cmid_p), jnp.float32),
            jax.ShapeDtypeStruct((N, 8, ncls_p), jnp.float32),
        ),
        grid_spec=pltpu.PrefetchScalarGridSpec(
            num_scalar_prefetch=0,
            grid=(N,),
            in_specs=[
                pl.BlockSpec((None, M, Cin_p), lambda n: (n, 0, 0)),   # image n
                full_spec((M, 1)),                                     # col mask
                full_spec((8, M)),                                     # row mask
                full_spec((9 * Cin_p, Cmid_p)), full_spec((1, Cmid_p)),   # stem
                full_spec((9 * Cmid_p, Cmid_p)), full_spec((1, Cmid_p)),  # conv1
                full_spec((9 * Cmid_p, Cmid_p)), full_spec((1, Cmid_p)),  # conv2
                full_spec((Cmid_p, ncls_p)), full_spec((1, ncls_p)),      # fc
            ],
            out_specs=[
                pl.BlockSpec((None, 8, Cmid_p), lambda n: (n, 0, 0)),
                pl.BlockSpec((None, 8, ncls_p), lambda n: (n, 0, 0)),
            ],
        ),
        compiler_params=pltpu.CompilerParams(
            dimension_semantics=("parallel",),       # v7x: one image per TC
            vmem_limit_bytes=64 * 1024 * 1024,       # sized for v7x 64 MiB/TC
        ),
    )(xp, colmask, rowmask, w0, b0, w1, b1, w2, b2, fcw, fcb)

    embedding = emb3[:, 0, :cmid]                    # slice off lane padding
    preds = pred3[:, 0, :ncls]

    if return_features:
        return embedding, preds
    return preds


# -----------------------------------------------------------------------------
# Synthetic tiny ResNet params (3x3 stem + one BasicBlock, folded BatchNorm).
# -----------------------------------------------------------------------------
def make_params(key, cin=4, cmid=16, num_classes=8):
    keys = iter(jax.random.split(key, 32))

    def conv_w(ci, co):
        return 0.1 * jax.random.normal(next(keys), (3, 3, ci, co), jnp.float32)

    def bn_folded(c):
        gamma = 1.0 + 0.1 * jax.random.normal(next(keys), (c,), jnp.float32)
        beta = 0.1 * jax.random.normal(next(keys), (c,), jnp.float32)
        mean = 0.1 * jax.random.normal(next(keys), (c,), jnp.float32)
        var = jnp.abs(jax.random.normal(next(keys), (c,), jnp.float32)) + 1.0
        scale = gamma / jnp.sqrt(var + 1e-5)
        bias = beta - mean * scale
        return scale, bias

    return {
        "stem_w": conv_w(cin, cmid), "stem_bn": bn_folded(cmid),
        "b1_w1": conv_w(cmid, cmid), "b1_bn1": bn_folded(cmid),
        "b1_w2": conv_w(cmid, cmid), "b1_bn2": bn_folded(cmid),
        # fc_w stored as (C, num_classes) == torch fc.weight.T
        "fc_w": 0.1 * jax.random.normal(next(keys), (cmid, num_classes), jnp.float32),
        "fc_b": 0.1 * jax.random.normal(next(keys), (1, num_classes), jnp.float32),
    }


if __name__ == "__main__":
    key = jax.random.PRNGKey(0)
    kx, kp = jax.random.split(key)

    N, C, H, W = 2, 4, 16, 16
    x = jax.random.normal(kx, (N, C, H, W), jnp.float32)
    params = make_params(kp, cin=C, cmid=16, num_classes=8)

    embedding, preds = timm_resnet_wrapper_forward(
        x, params, admloss=True, return_features=True)
    jax.block_until_ready((embedding, preds))

    assert embedding.shape == (N, 16) and preds.shape == (N, 8)
    # admloss=True -> returned embedding is L2-normalized along dim=1.
    assert bool(jnp.all(jnp.abs(jnp.linalg.norm(embedding, axis=1) - 1.0) < 1e-4))
    assert bool(jnp.all(jnp.isfinite(preds)))
    print("KERNEL_OK")
</pallas_src>

<mosaic_0001>
module attributes {stable_mosaic.version = 11 : i64} {
  func.func @_fused_forward_kernel(%arg0: i32, %arg1: memref<1x336x128xf32, #tpu.memory_space<vmem>>, %arg2: memref<336x1xf32, #tpu.memory_space<vmem>>, %arg3: memref<8x336xbf16, #tpu.memory_space<vmem>>, %arg4: memref<1152x128xbf16, #tpu.memory_space<vmem>>, %arg5: memref<1x128xf32, #tpu.memory_space<vmem>>, %arg6: memref<1152x128xbf16, #tpu.memory_space<vmem>>, %arg7: memref<1x128xf32, #tpu.memory_space<vmem>>, %arg8: memref<1152x128xbf16, #tpu.memory_space<vmem>>, %arg9: memref<1x128xf32, #tpu.memory_space<vmem>>, %arg10: memref<128x128xbf16, #tpu.memory_space<vmem>>, %arg11: memref<1x128xf32, #tpu.memory_space<vmem>>, %arg12: memref<1x8x128xf32, #tpu.memory_space<vmem>>, %arg13: memref<1x8x128xf32, #tpu.memory_space<vmem>>) attributes {dimension_semantics = [#tpu.dimension_semantics<parallel>], iteration_bounds = array<i64: 2>, scalar_prefetch = 0 : i64, scratch_operands = 0 : i64, tpu.core_type = #tpu.core_type<tc>, window_params = [{transform_indices = @transform_0, window_bounds = array<i64: 1, 336, 128>}, {pipeline_mode = #tpu.pipeline_mode<synchronous>, transform_indices = @transform_1, window_bounds = array<i64: 336, 1>}, {pipeline_mode = #tpu.pipeline_mode<synchronous>, transform_indices = @transform_2, window_bounds = array<i64: 8, 336>}, {pipeline_mode = #tpu.pipeline_mode<synchronous>, transform_indices = @transform_3, window_bounds = array<i64: 1152, 128>}, {pipeline_mode = #tpu.pipeline_mode<synchronous>, transform_indices = @transform_4, window_bounds = array<i64: 1, 128>}, {pipeline_mode = #tpu.pipeline_mode<synchronous>, transform_indices = @transform_5, window_bounds = array<i64: 1152, 128>}, {pipeline_mode = #tpu.pipeline_mode<synchronous>, transform_indices = @transform_6, window_bounds = array<i64: 1, 128>}, {pipeline_mode = #tpu.pipeline_mode<synchronous>, transform_indices = @transform_7, window_bounds = array<i64: 1152, 128>}, {pipeline_mode = #tpu.pipeline_mode<synchronous>, transform_indices = @transform_8, window_bounds = array<i64: 1, 128>}, {pipeline_mode = #tpu.pipeline_mode<synchronous>, transform_indices = @transform_9, window_bounds = array<i64: 128, 128>}, {pipeline_mode = #tpu.pipeline_mode<synchronous>, transform_indices = @transform_10, window_bounds = array<i64: 1, 128>}, {transform_indices = @transform_11, window_bounds = array<i64: 1, 8, 128>}, {transform_indices = @transform_12, window_bounds = array<i64: 1, 8, 128>}]} {
    %c0 = arith.constant 0 : index
    %c0_0 = arith.constant 0 : index
    %0 = vector.load %arg2[%c0, %c0_0] : memref<336x1xf32, #tpu.memory_space<vmem>>, vector<336x1xf32>
    %c0_1 = arith.constant 0 : index
    %c0_2 = arith.constant 0 : index
    %1 = vector.load %arg3[%c0_1, %c0_2] : memref<8x336xbf16, #tpu.memory_space<vmem>>, vector<8x336xbf16>
    %c0_3 = arith.constant 0 : index
    %c0_4 = arith.constant 0 : index
    %c0_5 = arith.constant 0 : index
    %2 = vector.load %arg1[%c0_3, %c0_4, %c0_5] : memref<1x336x128xf32, #tpu.memory_space<vmem>>, vector<1x336x128xf32>
    %3 = vector.shape_cast %2 : vector<1x336x128xf32> to vector<336x128xf32>
    %c19_i32 = arith.constant 19 : i32
    %4 = tpu.dynamic_rotate %3 by %c19_i32 dim 0 : vector<336x128xf32>, i32 -> vector<336x128xf32>
    %c18_i32 = arith.constant 18 : i32
    %5 = tpu.dynamic_rotate %3 by %c18_i32 dim 0 : vector<336x128xf32>, i32 -> vector<336x128xf32>
    %c17_i32 = arith.constant 17 : i32
    %6 = tpu.dynamic_rotate %3 by %c17_i32 dim 0 : vector<336x128xf32>, i32 -> vector<336x128xf32>
    %c1_i32 = arith.constant 1 : i32
    %7 = tpu.dynamic_rotate %3 by %c1_i32 dim 0 : vector<336x128xf32>, i32 -> vector<336x128xf32>
    %c335_i32 = arith.constant 335 : i32
    %8 = tpu.dynamic_rotate %3 by %c335_i32 dim 0 : vector<336x128xf32>, i32 -> vector<336x128xf32>
    %c319_i32 = arith.constant 319 : i32
    %9 = tpu.dynamic_rotate %3 by %c319_i32 dim 0 : vector<336x128xf32>, i32 -> vector<336x128xf32>
    %c318_i32 = arith.constant 318 : i32
    %10 = tpu.dynamic_rotate %3 by %c318_i32 dim 0 : vector<336x128xf32>, i32 -> vector<336x128xf32>
    %c317_i32 = arith.constant 317 : i32
    %11 = tpu.dynamic_rotate %3 by %c317_i32 dim 0 : vector<336x128xf32>, i32 -> vector<336x128xf32>
    %12 = tpu.concatenate %4, %5, %6, %7, %3, %8, %9, %10, %11 in 1 : vector<336x128xf32>, vector<336x128xf32>, vector<336x128xf32>, vector<336x128xf32>, vector<336x128xf32>, vector<336x128xf32>, vector<336x128xf32>, vector<336x128xf32>, vector<336x128xf32> -> vector<336x1152xf32>
    %13 = arith.truncf %12 : vector<336x1152xf32> to vector<336x1152xbf16>
    %c0_6 = arith.constant 0 : index
    %c0_7 = arith.constant 0 : index
    %14 = vector.load %arg4[%c0_6, %c0_7] : memref<1152x128xbf16, #tpu.memory_space<vmem>>, vector<1152x128xbf16>
    %cst = arith.constant dense<0.000000e+00> : vector<336x128xf32>
    %15 = tpu.matmul %13, %14, %cst {dimension_numbers = #tpu.dot_dimension_numbers<[1], [0], [0], [1], [0, 0, 1, 1], [], []>} : vector<336x1152xbf16>, vector<1152x128xbf16>, vector<336x128xf32> -> vector<336x128xf32>
    %c0_8 = arith.constant 0 : index
    %c0_9 = arith.constant 0 : index
    %16 = vector.load %arg5[%c0_8, %c0_9] : memref<1x128xf32, #tpu.memory_space<vmem>>, vector<1x128xf32>
    %17 = vector.broadcast %16 : vector<1x128xf32> to vector<336x128xf32>
    %18 = arith.addf %15, %17 : vector<336x128xf32>
    %cst_10 = arith.constant 0.000000e+00 : f32
    %19 = vector.broadcast %cst_10 : f32 to vector<336x128xf32>
    %20 = arith.maximumf %18, %19 : vector<336x128xf32>
    %21 = vector.broadcast %0 : vector<336x1xf32> to vector<336x128xf32>
    %22 = arith.mulf %20, %21 : vector<336x128xf32>
    %c19_i32_11 = arith.constant 19 : i32
    %23 = tpu.dynamic_rotate %22 by %c19_i32_11 dim 0 : vector<336x128xf32>, i32 -> vector<336x128xf32>
    %c18_i32_12 = arith.constant 18 : i32
    %24 = tpu.dynamic_rotate %22 by %c18_i32_12 dim 0 : vector<336x128xf32>, i32 -> vector<336x128xf32>
    %c17_i32_13 = arith.constant 17 : i32
    %25 = tpu.dynamic_rotate %22 by %c17_i32_13 dim 0 : vector<336x128xf32>, i32 -> vector<336x128xf32>
    %c1_i32_14 = arith.constant 1 : i32
    %26 = tpu.dynamic_rotate %22 by %c1_i32_14 dim 0 : vector<336x128xf32>, i32 -> vector<336x128xf32>
    %c335_i32_15 = arith.constant 335 : i32
    %27 = tpu.dynamic_rotate %22 by %c335_i32_15 dim 0 : vector<336x128xf32>, i32 -> vector<336x128xf32>
    %c319_i32_16 = arith.constant 319 : i32
    %28 = tpu.dynamic_rotate %22 by %c319_i32_16 dim 0 : vector<336x128xf32>, i32 -> vector<336x128xf32>
    %c318_i32_17 = arith.constant 318 : i32
    %29 = tpu.dynamic_rotate %22 by %c318_i32_17 dim 0 : vector<336x128xf32>, i32 -> vector<336x128xf32>
    %c317_i32_18 = arith.constant 317 : i32
    %30 = tpu.dynamic_rotate %22 by %c317_i32_18 dim 0 : vector<336x128xf32>, i32 -> vector<336x128xf32>
    %31 = tpu.concatenate %23, %24, %25, %26, %22, %27, %28, %29, %30 in 1 : vector<336x128xf32>, vector<336x128xf32>, vector<336x128xf32>, vector<336x128xf32>, vector<336x128xf32>, vector<336x128xf32>, vector<336x128xf32>, vector<336x128xf32>, vector<336x128xf32> -> vector<336x1152xf32>
    %32 = arith.truncf %31 : vector<336x1152xf32> to vector<336x1152xbf16>
    %c0_19 = arith.constant 0 : index
    %c0_20 = arith.constant 0 : index
    %33 = vector.load %arg6[%c0_19, %c0_20] : memref<1152x128xbf16, #tpu.memory_space<vmem>>, vector<1152x128xbf16>
    %cst_21 = arith.constant dense<0.000000e+00> : vector<336x128xf32>
    %34 = tpu.matmul %32, %33, %cst_21 {dimension_numbers = #tpu.dot_dimension_numbers<[1], [0], [0], [1], [0, 0, 1, 1], [], []>} : vector<336x1152xbf16>, vector<1152x128xbf16>, vector<336x128xf32> -> vector<336x128xf32>
    %c0_22 = arith.constant 0 : index
    %c0_23 = arith.constant 0 : index
    %35 = vector.load %arg7[%c0_22, %c0_23] : memref<1x128xf32, #tpu.memory_space<vmem>>, vector<1x128xf32>
    %36 = vector.broadcast %35 : vector<1x128xf32> to vector<336x128xf32>
    %37 = arith.addf %34, %36 : vector<336x128xf32>
    %cst_24 = arith.constant 0.000000e+00 : f32
    %38 = vector.broadcast %cst_24 : f32 to vector<336x128xf32>
    %39 = arith.maximumf %37, %38 : vector<336x128xf32>
    %40 = vector.broadcast %0 : vector<336x1xf32> to vector<336x128xf32>
    %41 = arith.mulf %39, %40 : vector<336x128xf32>
    %c19_i32_25 = arith.constant 19 : i32
    %42 = tpu.dynamic_rotate %41 by %c19_i32_25 dim 0 : vector<336x128xf32>, i32 -> vector<336x128xf32>
    %c18_i32_26 = arith.constant 18 : i32
    %43 = tpu.dynamic_rotate %41 by %c18_i32_26 dim 0 : vector<336x128xf32>, i32 -> vector<336x128xf32>
    %c17_i32_27 = arith.constant 17 : i32
    %44 = tpu.dynamic_rotate %41 by %c17_i32_27 dim 0 : vector<336x128xf32>, i32 -> vector<336x128xf32>
    %c1_i32_28 = arith.constant 1 : i32
    %45 = tpu.dynamic_rotate %41 by %c1_i32_28 dim 0 : vector<336x128xf32>, i32 -> vector<336x128xf32>
    %c335_i32_29 = arith.constant 335 : i32
    %46 = tpu.dynamic_rotate %41 by %c335_i32_29 dim 0 : vector<336x128xf32>, i32 -> vector<336x128xf32>
    %c319_i32_30 = arith.constant 319 : i32
    %47 = tpu.dynamic_rotate %41 by %c319_i32_30 dim 0 : vector<336x128xf32>, i32 -> vector<336x128xf32>
    %c318_i32_31 = arith.constant 318 : i32
    %48 = tpu.dynamic_rotate %41 by %c318_i32_31 dim 0 : vector<336x128xf32>, i32 -> vector<336x128xf32>
    %c317_i32_32 = arith.constant 317 : i32
    %49 = tpu.dynamic_rotate %41 by %c317_i32_32 dim 0 : vector<336x128xf32>, i32 -> vector<336x128xf32>
    %50 = tpu.concatenate %42, %43, %44, %45, %41, %46, %47, %48, %49 in 1 : vector<336x128xf32>, vector<336x128xf32>, vector<336x128xf32>, vector<336x128xf32>, vector<336x128xf32>, vector<336x128xf32>, vector<336x128xf32>, vector<336x128xf32>, vector<336x128xf32> -> vector<336x1152xf32>
    %51 = arith.truncf %50 : vector<336x1152xf32> to vector<336x1152xbf16>
    %c0_33 = arith.constant 0 : index
    %c0_34 = arith.constant 0 : index
    %52 = vector.load %arg8[%c0_33, %c0_34] : memref<1152x128xbf16, #tpu.memory_space<vmem>>, vector<1152x128xbf16>
    %cst_35 = arith.constant dense<0.000000e+00> : vector<336x128xf32>
    %53 = tpu.matmul %51, %52, %cst_35 {dimension_numbers = #tpu.dot_dimension_numbers<[1], [0], [0], [1], [0, 0, 1, 1], [], []>} : vector<336x1152xbf16>, vector<1152x128xbf16>, vector<336x128xf32> -> vector<336x128xf32>
    %c0_36 = arith.constant 0 : index
    %c0_37 = arith.constant 0 : index
    %54 = vector.load %arg9[%c0_36, %c0_37] : memref<1x128xf32, #tpu.memory_space<vmem>>, vector<1x128xf32>
    %55 = vector.broadcast %54 : vector<1x128xf32> to vector<336x128xf32>
    %56 = arith.addf %53, %55 : vector<336x128xf32>
    %57 = arith.addf %56, %22 : vector<336x128xf32>
    %cst_38 = arith.constant 0.000000e+00 : f32
    %58 = vector.broadcast %cst_38 : f32 to vector<336x128xf32>
    %59 = arith.maximumf %57, %58 : vector<336x128xf32>
    %60 = arith.truncf %59 : vector<336x128xf32> to vector<336x128xbf16>
    %cst_39 = arith.constant dense<0.000000e+00> : vector<8x128xf32>
    %61 = tpu.matmul %1, %60, %cst_39 {dimension_numbers = #tpu.dot_dimension_numbers<[1], [0], [0], [1], [0, 0, 1, 1], [], []>} : vector<8x336xbf16>, vector<336x128xbf16>, vector<8x128xf32> -> vector<8x128xf32>
    %cst_40 = arith.constant 3.906250e-03 : f32
    %62 = vector.broadcast %cst_40 : f32 to vector<8x128xf32>
    %63 = arith.mulf %61, %62 : vector<8x128xf32>
    %64 = arith.mulf %63, %63 : vector<8x128xf32>
    %cst_41 = arith.constant dense<0.000000e+00> : vector<8xf32>
    %65 = vector.multi_reduction <add>, %64, %cst_41 [1] : vector<8x128xf32> to vector<8xf32>
    %66 = vector.shape_cast %65 : vector<8xf32> to vector<8x1xf32>
    %67 = math.sqrt %66 : vector<8x1xf32>
    %cst_42 = arith.constant 9.99999996E-13 : f32
    %68 = vector.broadcast %cst_42 : f32 to vector<8x1xf32>
    %69 = arith.maximumf %67, %68 : vector<8x1xf32>
    %70 = vector.broadcast %69 : vector<8x1xf32> to vector<8x128xf32>
    %71 = arith.divf %63, %70 : vector<8x128xf32>
    %c0_43 = arith.constant 0 : index
    %c0_44 = arith.constant 0 : index
    %c0_45 = arith.constant 0 : index
    %72 = vector.load %arg12[%c0_43, %c0_44, %c0_45] : memref<1x8x128xf32, #tpu.memory_space<vmem>>, vector<1x8x128xf32>
    %73 = vector.shape_cast %72 : vector<1x8x128xf32> to vector<8x128xf32>
    %74 = vector.shape_cast %71 : vector<8x128xf32> to vector<1x8x128xf32>
    tpu.vector_store %arg12[%c0_43, %c0_44, %c0_45], %74 {strides = array<i32>} : memref<1x8x128xf32, #tpu.memory_space<vmem>>, vector<1x8x128xf32>,
    %75 = arith.truncf %71 : vector<8x128xf32> to vector<8x128xbf16>
    %c0_46 = arith.constant 0 : index
    %c0_47 = arith.constant 0 : index
    %76 = vector.load %arg10[%c0_46, %c0_47] : memref<128x128xbf16, #tpu.memory_space<vmem>>, vector<128x128xbf16>
    %cst_48 = arith.constant dense<0.000000e+00> : vector<8x128xf32>
    %77 = tpu.matmul %75, %76, %cst_48 {dimension_numbers = #tpu.dot_dimension_numbers<[1], [0], [0], [1], [0, 0, 1, 1], [], []>} : vector<8x128xbf16>, vector<128x128xbf16>, vector<8x128xf32> -> vector<8x128xf32>
    %c0_49 = arith.constant 0 : index
    %c0_50 = arith.constant 0 : index
    %78 = vector.load %arg11[%c0_49, %c0_50] : memref<1x128xf32, #tpu.memory_space<vmem>>, vector<1x128xf32>
    %79 = vector.broadcast %78 : vector<1x128xf32> to vector<8x128xf32>
    %80 = arith.addf %77, %79 : vector<8x128xf32>
    %c0_51 = arith.constant 0 : index
    %c0_52 = arith.constant 0 : index
    %c0_53 = arith.constant 0 : index
    %81 = vector.load %arg13[%c0_51, %c0_52, %c0_53] : memref<1x8x128xf32, #tpu.memory_space<vmem>>, vector<1x8x128xf32>
    %82 = vector.shape_cast %81 : vector<1x8x128xf32> to vector<8x128xf32>
    %83 = vector.shape_cast %80 : vector<8x128xf32> to vector<1x8x128xf32>
    tpu.vector_store %arg13[%c0_51, %c0_52, %c0_53], %83 {strides = array<i32>} : memref<1x8x128xf32, #tpu.memory_space<vmem>>, vector<1x8x128xf32>,
    return
  }
  func.func @transform_0(%arg0: i32) -> (i32, i32, i32) {
    %c0_i32 = arith.constant 0 : i32
    %c0_i32_0 = arith.constant 0 : i32
    %c0_i32_1 = arith.constant 0 : i32
    return %arg0, %c0_i32, %c0_i32_0 : i32, i32, i32
  }
  func.func @transform_1(%arg0: i32) -> (i32, i32) {
    %c0_i32 = arith.constant 0 : i32
    %c0_i32_0 = arith.constant 0 : i32
    %c0_i32_1 = arith.constant 0 : i32
    return %c0_i32, %c0_i32_0 : i32, i32
  }
  func.func @transform_2(%arg0: i32) -> (i32, i32) {
    %c0_i32 = arith.constant 0 : i32
    %c0_i32_0 = arith.constant 0 : i32
    %c0_i32_1 = arith.constant 0 : i32
    return %c0_i32, %c0_i32_0 : i32, i32
  }
  func.func @transform_3(%arg0: i32) -> (i32, i32) {
    %c0_i32 = arith.constant 0 : i32
    %c0_i32_0 = arith.constant 0 : i32
    %c0_i32_1 = arith.constant 0 : i32
    return %c0_i32, %c0_i32_0 : i32, i32
  }
  func.func @transform_4(%arg0: i32) -> (i32, i32) {
    %c0_i32 = arith.constant 0 : i32
    %c0_i32_0 = arith.constant 0 : i32
    %c0_i32_1 = arith.constant 0 : i32
    return %c0_i32, %c0_i32_0 : i32, i32
  }
  func.func @transform_5(%arg0: i32) -> (i32, i32) {
    %c0_i32 = arith.constant 0 : i32
    %c0_i32_0 = arith.constant 0 : i32
    %c0_i32_1 = arith.constant 0 : i32
    return %c0_i32, %c0_i32_0 : i32, i32
  }
  func.func @transform_6(%arg0: i32) -> (i32, i32) {
    %c0_i32 = arith.constant 0 : i32
    %c0_i32_0 = arith.constant 0 : i32
    %c0_i32_1 = arith.constant 0 : i32
    return %c0_i32, %c0_i32_0 : i32, i32
  }
  func.func @transform_7(%arg0: i32) -> (i32, i32) {
    %c0_i32 = arith.constant 0 : i32
    %c0_i32_0 = arith.constant 0 : i32
    %c0_i32_1 = arith.constant 0 : i32
    return %c0_i32, %c0_i32_0 : i32, i32
  }
  func.func @transform_8(%arg0: i32) -> (i32, i32) {
    %c0_i32 = arith.constant 0 : i32
    %c0_i32_0 = arith.constant 0 : i32
    %c0_i32_1 = arith.constant 0 : i32
    return %c0_i32, %c0_i32_0 : i32, i32
  }
  func.func @transform_9(%arg0: i32) -> (i32, i32) {
    %c0_i32 = arith.constant 0 : i32
    %c0_i32_0 = arith.constant 0 : i32
    %c0_i32_1 = arith.constant 0 : i32
    return %c0_i32, %c0_i32_0 : i32, i32
  }
  func.func @transform_10(%arg0: i32) -> (i32, i32) {
    %c0_i32 = arith.constant 0 : i32
    %c0_i32_0 = arith.constant 0 : i32
    %c0_i32_1 = arith.constant 0 : i32
    return %c0_i32, %c0_i32_0 : i32, i32
  }
  func.func @transform_11(%arg0: i32) -> (i32, i32, i32) {
    %c0_i32 = arith.constant 0 : i32
    %c0_i32_0 = arith.constant 0 : i32
    %c0_i32_1 = arith.constant 0 : i32
    return %arg0, %c0_i32, %c0_i32_0 : i32, i32, i32
  }
  func.func @transform_12(%arg0: i32) -> (i32, i32, i32) {
    %c0_i32 = arith.constant 0 : i32
    %c0_i32_0 = arith.constant 0 : i32
    %c0_i32_1 = arith.constant 0 : i32
    return %arg0, %c0_i32, %c0_i32_0 : i32, i32, i32
  }
}

</mosaic_0001>

<llo_original>
// kernel: timm_resnet_wrapper_forward.1
$region0: #{timm_resnet_wrapper_forward.1}
  #allocation0 [shape = 'u32[]', space=smem, size = 0x4, offset = 0x4, fixed_abs, tag = 'smem constant byte address 0x4 - core index']
  #allocation1 [shape = 'u32[144,128]{1,0:T(1,128)}', space=vmem, size = 0x12000, scoped, tag = 'internal scratch']
  %s0 = inlined_call_operand.hbm [shape: f32[2,336,128], index: 0, kind: input, shape index: {}]
  %s1 = inlined_call_operand.hbm [shape: f32[336,1], index: 1, kind: input, shape index: {}]
  %s2 = inlined_call_operand.hbm [shape: bf16[8,336], index: 2, kind: input, shape index: {}]
  %s3 = inlined_call_operand.hbm [shape: bf16[1152,128], index: 3, kind: input, shape index: {}]
  %s4 = inlined_call_operand.hbm [shape: f32[1,128], index: 4, kind: input, shape index: {}]
  %s5 = inlined_call_operand.hbm [shape: bf16[1152,128], index: 5, kind: input, shape index: {}]
  %s6 = inlined_call_operand.hbm [shape: f32[1,128], index: 6, kind: input, shape index: {}]
  %s7 = inlined_call_operand.hbm [shape: bf16[1152,128], index: 7, kind: input, shape index: {}]
  %s8 = inlined_call_operand.hbm [shape: f32[1,128], index: 8, kind: input, shape index: {}]
  %s9 = inlined_call_operand.hbm [shape: bf16[128,128], index: 9, kind: input, shape index: {}]
  %s10 = inlined_call_operand.hbm [shape: f32[1,128], index: 10, kind: input, shape index: {}]
  %s11 = inlined_call_operand.hbm [shape: f32[2,8,128], index: 11, kind: output, shape index: {0}]
  %s12 = inlined_call_operand.hbm [shape: f32[2,8,128], index: 12, kind: output, shape index: {1}]
  %13 = xla_tuple %s11, %s12
  %s14 = sld [smem:[#allocation0]]
  $region129: #{timm_resnet_wrapper_forward.1} parent=0
    _
  %s16 = ssub.s32 1, %s14
  %s17 = scalar_select 0, %s16, %s14
  $region1: #{timm_resnet_wrapper_forward.1} parent=0
    #allocation2 [shape = 'u8[344064]{0}', space=vmem, size = 0x54000, scoped, tag = 'input window, operand 0']
    #allocation3 [shape = 's32[2]{0}', space=sflag, size = 0x8, scoped, tag = 'scoped memory for timm_resnet_wrapper_forward.1']
    #allocation4 [shape = 's32[2]{0}', space=sflag, size = 0x8, scoped, tag = 'scoped memory for timm_resnet_wrapper_forward.1']
    #allocation5 [shape = 'u8[172032]{0}', space=vmem, size = 0x2a000, scoped, tag = 'input window, operand 1, single buffered']
    #allocation6 [shape = 's32[1]{0}', space=sflag, size = 0x4, scoped, tag = 'scoped memory for timm_resnet_wrapper_forward.1']
    #allocation7 [shape = 'u8[6144]{0}', space=vmem, size = 0x1800, scoped, tag = 'input window, operand 2, single buffered']
    #allocation8 [shape = 'u8[294912]{0}', space=vmem, size = 0x48000, scoped, tag = 'input window, operand 3, single buffered']
    #allocation9 [shape = 's32[1]{0}', space=sflag, size = 0x4, scoped, tag = 'scoped memory for timm_resnet_wrapper_forward.1']
    #allocation10 [shape = 'u8[512]{0}', space=vmem, size = 0x400, scoped, tag = 'input window, operand 4, single buffered']
    #allocation11 [shape = 'u8[294912]{0}', space=vmem, size = 0x48000, scoped, tag = 'input window, operand 5, single buffered']
    #allocation12 [shape = 's32[1]{0}', space=sflag, size = 0x4, scoped, tag = 'scoped memory for timm_resnet_wrapper_forward.1']
    #allocation13 [shape = 'u8[512]{0}', space=vmem, size = 0x400, scoped, tag = 'input window, operand 6, single buffered']
    #allocation14 [shape = 'u8[294912]{0}', space=vmem, size = 0x48000, scoped, tag = 'input window, operand 7, single buffered']
    #allocation15 [shape = 's32[1]{0}', space=sflag, size = 0x4, scoped, tag = 'scoped memory for timm_resnet_wrapper_forward.1']
    #allocation16 [shape = 'u8[512]{0}', space=vmem, size = 0x400, scoped, tag = 'input window, operand 8, single buffered']
    #allocation17 [shape = 'u8[32768]{0}', space=vmem, size = 0x8000, scoped, tag = 'input window, operand 9, single buffered']
    #allocation18 [shape = 's32[1]{0}', space=sflag, size = 0x4, scoped, tag = 'scoped memory for timm_resnet_wrapper_forward.1']
    #allocation19 [shape = 'u8[512]{0}', space=vmem, size = 0x400, scoped, tag = 'input window, operand 10, single buffered']
    #allocation20 [shape = 'u8[8192]{0}', space=vmem, size = 0x2000, scoped, tag = 'output window, operand 0']
    #allocation21 [shape = 'u8[8192]{0}', space=vmem, size = 0x2000, scoped, tag = 'output window, operand 1']
    #allocation22 [shape = 's32[2]{0}', space=sflag, size = 0x8, scoped, tag = 'scoped memory for timm_resnet_wrapper_forward.1']
    %18 = vsyncpa [#allocation3], 0
    %s19 = scalar_lea.sflag [#allocation3], 1
    %20 = vsyncpa %s19, 0
    %21 = vsyncpa [#allocation6], 0
    %22 = vsyncpa [#allocation9], 0
    %23 = vsyncpa [#allocation12], 0
    %24 = vsyncpa [#allocation15], 0
    %25 = vsyncpa [#allocation18], 0
    %26 = vsyncpa [#allocation4], 0
    %s27 = scalar_lea.sflag [#allocation4], 1
    %28 = vsyncpa %s27, 0
    %29 = vsyncpa [#allocation22], 0
    %s30 = scalar_lea.sflag [#allocation22], 1
    %31 = vsyncpa %s30, 0
    loop: start=0, step=1, limit=4
    $region2: #{timm_resnet_wrapper_forward.1} parent=1 // loop_pre_header
      _
    $region3: #{timm_resnet_wrapper_forward.1} parent=1 // loop_header
      %s33 = sphi 0, %s37
      %p34 = scmp.ge.s32.totalorder %s33, 4
      %s43 = sphi 0, %s45
      %s46 = sphi 0, %s43
      %s47 = sphi 0, %s46
      %s63 = sphi 0, %s47
      %s67 = sphi 0, %s67
      %s69 = sphi 0, %s67
      %s70 = sphi 0, %s69
      %s84 = sphi 0, %s70
      %s88 = sphi 0, %s88
      %s90 = sphi 0, %s88
      %s91 = sphi 0, %s90
      %s105 = sphi 0, %s91
      %s109 = sphi 0, %s109
      %s111 = sphi 0, %s109
      %s112 = sphi 0, %s111
      %s126 = sphi 0, %s112
      %s130 = sphi 0, %s130
      %s132 = sphi 0, %s130
      %s133 = sphi 0, %s132
      %s147 = sphi 0, %s133
      %s151 = sphi 0, %s151
      %s153 = sphi 0, %s151
      %s154 = sphi 0, %s153
      %s168 = sphi 0, %s154
      %s172 = sphi 0, %s172
      %s174 = sphi 0, %s172
      %s175 = sphi 0, %s174
      %s189 = sphi 0, %s175
      %s193 = sphi 0, %s193
      %s195 = sphi 0, %s193
      %s196 = sphi 0, %s195
      %s210 = sphi 0, %s196
      %s214 = sphi 0, %s214
      %s216 = sphi 0, %s214
      %s217 = sphi 0, %s216
      %s231 = sphi 0, %s217
      %s235 = sphi 0, %s235
      %s237 = sphi 0, %s235
      %s238 = sphi 0, %s237
      %s252 = sphi 0, %s238
      %s256 = sphi 0, %s256
      %s258 = sphi 0, %s256
      %s259 = sphi 0, %s258
      %s273 = sphi 0, %s259
      %s279 = sphi 0, %s281
      %s282 = sphi 0, %s279
      %s283 = sphi 0, %s282
      %s299 = sphi 0, %s283
      %s305 = sphi 0, %s307
      %s308 = sphi 0, %s305
      %s309 = sphi 0, %s308
      %s325 = sphi 0, %s309
    $region4: #{timm_resnet_wrapper_forward.1} parent=1 // loop_header_branch
      %36 = sbr.rel (%p34) target = $region8
    $region5: #{timm_resnet_wrapper_forward.1} parent=1 // loop_body
      %s38 = ssub.s32 %s33, 1
      %s39 = ssub.s32 %s33, 2
      %s40 = sadd.s32 %s33, 1
      %s41 = ssub.s32 %s33, %s40
      %p42 = scmp.eq.s32.totalorder %s41, 0
      %s44 = sadd.s32 %s43, 1
      %s45 = scalar_select %p42, %s43, %s44
      %p48 = pneg %p42
      %p49 = scmp.eq.s32.totalorder %s33, 1
      %p50 = por %p48, %p49
      %p51 = scmp.ne.s32.totalorder %s43, %s46
      %p52 = scmp.eq.s32.totalorder %s33, 0
      %p53 = por %p51, %p52
      %p54 = scmp.ne.s32.totalorder %s43, %s46
      %p55 = scmp.eq.s32.totalorder %s38, 1
      %p56 = por %p54, %p55
      %p57 = scmp.ne.s32.totalorder %s46, %s47
      %p58 = scmp.eq.s32.totalorder %s38, 0
      %p59 = por %p57, %p58
      %p60 = scmp.ne.s32.totalorder %s46, %s47
      %p61 = scmp.eq.s32.totalorder %s39, 1
      %p62 = por %p60, %p61
      %p64 = scmp.ne.s32.totalorder %s47, %s63
      %p65 = scmp.eq.s32.totalorder %s39, 0
      %p66 = por %p64, %p65
      %s68 = sadd.s32 %s67, 1
      %p71 = scmp.eq.s32.totalorder %s33, 1
      %p72 = scmp.ne.s32.totalorder %s67, %s69
      %p73 = scmp.eq.s32.totalorder %s33, 0
      %p74 = por %p72, %p73
      %p75 = scmp.ne.s32.totalorder %s67, %s69
      %p76 = scmp.eq.s32.totalorder %s38, 1
      %p77 = por %p75, %p76
      %p78 = scmp.ne.s32.totalorder %s69, %s70
      %p79 = scmp.eq.s32.totalorder %s38, 0
      %p80 = por %p78, %p79
      %p81 = scmp.ne.s32.totalorder %s69, %s70
      %p82 = scmp.eq.s32.totalorder %s39, 1
      %p83 = por %p81, %p82
      %p85 = scmp.ne.s32.totalorder %s70, %s84
      %p86 = scmp.eq.s32.totalorder %s39, 0
      %p87 = por %p85, %p86
      %s89 = sadd.s32 %s88, 1
      %p92 = scmp.eq.s32.totalorder %s33, 1
      %p93 = scmp.ne.s32.totalorder %s88, %s90
      %p94 = scmp.eq.s32.totalorder %s33, 0
      %p95 = por %p93, %p94
      %p96 = scmp.ne.s32.totalorder %s88, %s90
      %p97 = scmp.eq.s32.totalorder %s38, 1
      %p98 = por %p96, %p97
      %p99 = scmp.ne.s32.totalorder %s90, %s91
      %p100 = scmp.eq.s32.totalorder %s38, 0
      %p101 = por %p99, %p100
      %p102 = scmp.ne.s32.totalorder %s90, %s91
      %p103 = scmp.eq.s32.totalorder %s39, 1
      %p104 = por %p102, %p103
      %p106 = scmp.ne.s32.totalorder %s91, %s105
      %p107 = scmp.eq.s32.totalorder %s39, 0
      %p108 = por %p106, %p107
      %s110 = sadd.s32 %s109, 1
      %p113 = scmp.eq.s32.totalorder %s33, 1
      %p114 = scmp.ne.s32.totalorder %s109, %s111
      %p115 = scmp.eq.s32.totalorder %s33, 0
      %p116 = por %p114, %p115
      %p117 = scmp.ne.s32.totalorder %s109, %s111
      %p118 = scmp.eq.s32.totalorder %s38, 1
      %p119 = por %p117, %p118
      %p120 = scmp.ne.s32.totalorder %s111, %s112
      %p121 = scmp.eq.s32.totalorder %s38, 0
      %p122 = por %p120, %p121
      %p123 = scmp.ne.s32.totalorder %s111, %s112
      %p124 = scmp.eq.s32.totalorder %s39, 1
      %p125 = por %p123, %p124
      %p127 = scmp.ne.s32.totalorder %s112, %s126
      %p128 = scmp.eq.s32.totalorder %s39, 0
      %p129 = por %p127, %p128
      %s131 = sadd.s32 %s130, 1
      %p134 = scmp.eq.s32.totalorder %s33, 1
      %p135 = scmp.ne.s32.totalorder %s130, %s132
      %p136 = scmp.eq.s32.totalorder %s33, 0
      %p137 = por %p135, %p136
      %p138 = scmp.ne.s32.totalorder %s130, %s132
      %p139 = scmp.eq.s32.totalorder %s38, 1
      %p140 = por %p138, %p139
      %p141 = scmp.ne.s32.totalorder %s132, %s133
      %p142 = scmp.eq.s32.totalorder %s38, 0
      %p143 = por %p141, %p142
      %p144 = scmp.ne.s32.totalorder %s132, %s133
      %p145 = scmp.eq.s32.totalorder %s39, 1
      %p146 = por %p144, %p145
      %p148 = scmp.ne.s32.totalorder %s133, %s147
      %p149 = scmp.eq.s32.totalorder %s39, 0
      %p150 = por %p148, %p149
      %s152 = sadd.s32 %s151, 1
      %p155 = scmp.eq.s32.totalorder %s33, 1
      %p156 = scmp.ne.s32.totalorder %s151, %s153
      %p157 = scmp.eq.s32.totalorder %s33, 0
      %p158 = por %p156, %p157
      %p159 = scmp.ne.s32.totalorder %s151, %s153
      %p160 = scmp.eq.s32.totalorder %s38, 1
      %p161 = por %p159, %p160
      %p162 = scmp.ne.s32.totalorder %s153, %s154
      %p163 = scmp.eq.s32.totalorder %s38, 0
      %p164 = por %p162, %p163
      %p165 = scmp.ne.s32.totalorder %s153, %s154
      %p166 = scmp.eq.s32.totalorder %s39, 1
      %p167 = por %p165, %p166
      %p169 = scmp.ne.s32.totalorder %s154, %s168
      %p170 = scmp.eq.s32.totalorder %s39, 0
      %p171 = por %p169, %p170
      %s173 = sadd.s32 %s172, 1
      %p176 = scmp.eq.s32.totalorder %s33, 1
      %p177 = scmp.ne.s32.totalorder %s172, %s174
      %p178 = scmp.eq.s32.totalorder %s33, 0
      %p179 = por %p177, %p178
      %p180 = scmp.ne.s32.totalorder %s172, %s174
      %p181 = scmp.eq.s32.totalorder %s38, 1
      %p182 = por %p180, %p181
      %p183 = scmp.ne.s32.totalorder %s174, %s175
      %p184 = scmp.eq.s32.totalorder %s38, 0
      %p185 = por %p183, %p184
      %p186 = scmp.ne.s32.totalorder %s174, %s175
      %p187 = scmp.eq.s32.totalorder %s39, 1
      %p188 = por %p186, %p187
      %p190 = scmp.ne.s32.totalorder %s175, %s189
      %p191 = scmp.eq.s32.totalorder %s39, 0
      %p192 = por %p190, %p191
      %s194 = sadd.s32 %s193, 1
      %p197 = scmp.eq.s32.totalorder %s33, 1
      %p198 = scmp.ne.s32.totalorder %s193, %s195
      %p199 = scmp.eq.s32.totalorder %s33, 0
      %p200 = por %p198, %p199
      %p201 = scmp.ne.s32.totalorder %s193, %s195
      %p202 = scmp.eq.s32.totalorder %s38, 1
      %p203 = por %p201, %p202
      %p204 = scmp.ne.s32.totalorder %s195, %s196
      %p205 = scmp.eq.s32.totalorder %s38, 0
      %p206 = por %p204, %p205
      %p207 = scmp.ne.s32.totalorder %s195, %s196
      %p208 = scmp.eq.s32.totalorder %s39, 1
      %p209 = por %p207, %p208
      %p211 = scmp.ne.s32.totalorder %s196, %s210
      %p212 = scmp.eq.s32.totalorder %s39, 0
      %p213 = por %p211, %p212
      %s215 = sadd.s32 %s214, 1
      %p218 = scmp.eq.s32.totalorder %s33, 1
      %p219 = scmp.ne.s32.totalorder %s214, %s216
      %p220 = scmp.eq.s32.totalorder %s33, 0
      %p221 = por %p219, %p220
      %p222 = scmp.ne.s32.totalorder %s214, %s216
      %p223 = scmp.eq.s32.totalorder %s38, 1
      %p224 = por %p222, %p223
      %p225 = scmp.ne.s32.totalorder %s216, %s217
      %p226 = scmp.eq.s32.totalorder %s38, 0
      %p227 = por %p225, %p226
      %p228 = scmp.ne.s32.totalorder %s216, %s217
      %p229 = scmp.eq.s32.totalorder %s39, 1
      %p230 = por %p228, %p229
      %p232 = scmp.ne.s32.totalorder %s217, %s231
      %p233 = scmp.eq.s32.totalorder %s39, 0
      %p234 = por %p232, %p233
      %s236 = sadd.s32 %s235, 1
      %p239 = scmp.eq.s32.totalorder %s33, 1
      %p240 = scmp.ne.s32.totalorder %s235, %s237
      %p241 = scmp.eq.s32.totalorder %s33, 0
      %p242 = por %p240, %p241
      %p243 = scmp.ne.s32.totalorder %s235, %s237
      %p244 = scmp.eq.s32.totalorder %s38, 1
      %p245 = por %p243, %p244
      %p246 = scmp.ne.s32.totalorder %s237, %s238
      %p247 = scmp.eq.s32.totalorder %s38, 0
      %p248 = por %p246, %p247
      %p249 = scmp.ne.s32.totalorder %s237, %s238
      %p250 = scmp.eq.s32.totalorder %s39, 1
      %p251 = por %p249, %p250
      %p253 = scmp.ne.s32.totalorder %s238, %s252
      %p254 = scmp.eq.s32.totalorder %s39, 0
      %p255 = por %p253, %p254
      %s257 = sadd.s32 %s256, 1
      %p260 = scmp.eq.s32.totalorder %s33, 1
      %p261 = scmp.ne.s32.totalorder %s256, %s258
      %p262 = scmp.eq.s32.totalorder %s33, 0
      %p263 = por %p261, %p262
      %p264 = scmp.ne.s32.totalorder %s256, %s258
      %p265 = scmp.eq.s32.totalorder %s38, 1
      %p266 = por %p264, %p265
      %p267 = scmp.ne.s32.totalorder %s258, %s259
      %p268 = scmp.eq.s32.totalorder %s38, 0
      %p269 = por %p267, %p268
      %p270 = scmp.ne.s32.totalorder %s258, %s259
      %p271 = scmp.eq.s32.totalorder %s39, 1
      %p272 = por %p270, %p271
      %p274 = scmp.ne.s32.totalorder %s259, %s273
      %p275 = scmp.eq.s32.totalorder %s39, 0
      %p276 = por %p274, %p275
      %s277 = ssub.s32 %s33, %s40
      %p278 = scmp.eq.s32.totalorder %s277, 0
      %s280 = sadd.s32 %s279, 1
      %s281 = scalar_select %p278, %s279, %s280
      %p284 = pneg %p278
      %p285 = scmp.eq.s32.totalorder %s33, 1
      %p286 = por %p284, %p285
      %p287 = scmp.ne.s32.totalorder %s279, %s282
      %p288 = scmp.eq.s32.totalorder %s33, 0
      %p289 = por %p287, %p288
      %p290 = scmp.ne.s32.totalorder %s279, %s282
      %p291 = scmp.eq.s32.totalorder %s38, 1
      %p292 = por %p290, %p291
      %p293 = scmp.ne.s32.totalorder %s282, %s283
      %p294 = scmp.eq.s32.totalorder %s38, 0
      %p295 = por %p293, %p294
      %p296 = scmp.ne.s32.totalorder %s282, %s283
      %p297 = scmp.eq.s32.totalorder %s39, 1
      %p298 = por %p296, %p297
      %p300 = scmp.ne.s32.totalorder %s283, %s299
      %p301 = scmp.eq.s32.totalorder %s39, 0
      %p302 = por %p300, %p301
      %s303 = ssub.s32 %s33, %s40
      %p304 = scmp.eq.s32.totalorder %s303, 0
      %s306 = sadd.s32 %s305, 1
      %s307 = scalar_select %p304, %s305, %s306
      %p310 = pneg %p304
      %p311 = scmp.eq.s32.totalorder %s33, 1
      %p312 = por %p310, %p311
      %p313 = scmp.ne.s32.totalorder %s305, %s308
      %p314 = scmp.eq.s32.totalorder %s33, 0
      %p315 = por %p313, %p314
      %p316 = scmp.ne.s32.totalorder %s305, %s308
      %p317 = scmp.eq.s32.totalorder %s38, 1
      %p318 = por %p316, %p317
      %p319 = scmp.ne.s32.totalorder %s308, %s309
      %p320 = scmp.eq.s32.totalorder %s38, 0
      %p321 = por %p319, %p320
      %p322 = scmp.ne.s32.totalorder %s308, %s309
      %p323 = scmp.eq.s32.totalorder %s39, 1
      %p324 = por %p322, %p323
      %p326 = scmp.ne.s32.totalorder %s309, %s325
      %p327 = scmp.eq.s32.totalorder %s39, 0
      %p328 = por %p326, %p327
      %p329 = scmp.le.s32.totalorder 1, %s33
      %p330 = scmp.lt.s32.totalorder %s33, 3
      %p331 = pnand %p329, %p330
      %p332 = pneg %p331
      // Predicated region
      $region9: #{timm_resnet_wrapper_forward.1} parent=5 // pred_check
        _
      $region10: #{timm_resnet_wrapper_forward.1} parent=5 // pred_check_branch
        %334 = sbr.rel (%p331) target = $region12
      $region11: #{timm_resnet_wrapper_forward.1} parent=5 // pred_region
        %s335 = ssub.s32 %s33, 1
        // Predicated region
        $region13: #{timm_resnet_wrapper_forward.1} parent=11 // pred_check
          %p336 = pneg %p80
        $region14: #{timm_resnet_wrapper_forward.1} parent=11 // pred_check_branch
          %338 = sbr.rel (%p336) target = $region16
        $region15: #{timm_resnet_wrapper_forward.1} parent=11 // pred_region
          %s340 = ssub.s32 5376, 5376
          %341 = vsyncadd [#allocation6], %s340
          %s342 = sshll.u32 [#allocation5], 4
          %s343 = int_to_ptr.vmem [resolvable:$true] %s342
          %348 = dma.hbm_to_vmem [thread:$0]  %s1, 5376, %s343, [#allocation6], 128, 128, 8
        $region16: #{timm_resnet_wrapper_forward.1} parent=11 // pred_fallthru
          _
        // Predicated region
        $region17: #{timm_resnet_wrapper_forward.1} parent=11 // pred_check
          %p349 = pneg %p101
        $region18: #{timm_resnet_wrapper_forward.1} parent=11 // pred_check_branch
          %351 = sbr.rel (%p349) target = $region20
        $region19: #{timm_resnet_wrapper_forward.1} parent=11 // pred_region
          %s353 = ssub.s32 192, 192
          %354 = vsyncadd [#allocation6], %s353
          %s356 = sshll.u32 [#allocation7], 4
          %s357 = int_to_ptr.vmem [resolvable:$true] %s356
          %359 = dma.hbm_to_vmem [thread:$0]  %s2, 192, %s357, [#allocation6]
        $region20: #{timm_resnet_wrapper_forward.1} parent=11 // pred_fallthru
          _
        // Predicated region
        $region21: #{timm_resnet_wrapper_forward.1} parent=11 // pred_check
          %p360 = pneg %p122
        $region22: #{timm_resnet_wrapper_forward.1} parent=11 // pred_check_branch
          %362 = sbr.rel (%p360) target = $region24
        $region23: #{timm_resnet_wrapper_forward.1} parent=11 // pred_region
          %s364 = ssub.s32 9216, 9216
          %365 = vsyncadd [#allocation9], %s364
          %s366 = sshll.u32 [#allocation8], 4
          %s367 = int_to_ptr.vmem [resolvable:$true] %s366
          %372 = dma.hbm_to_vmem [thread:$0]  %s3, 9216, %s367, [#allocation9], 64, 64, 4
        $region24: #{timm_resnet_wrapper_forward.1} parent=11 // pred_fallthru
          _
        // Predicated region
        $region25: #{timm_resnet_wrapper_forward.1} parent=11 // pred_check
          %p373 = pneg %p143
        $region26: #{timm_resnet_wrapper_forward.1} parent=11 // pred_check_branch
          %375 = sbr.rel (%p373) target = $region28
        $region27: #{timm_resnet_wrapper_forward.1} parent=11 // pred_region
          %s377 = ssub.s32 16, 16
          %378 = vsyncadd [#allocation9], %s377
          %s380 = sshll.u32 [#allocation10], 4
          %s381 = int_to_ptr.vmem [resolvable:$true] %s380
          %383 = dma.hbm_to_vmem [thread:$0]  %s4, 16, %s381, [#allocation9]
        $region28: #{timm_resnet_wrapper_forward.1} parent=11 // pred_fallthru
          _
        // Predicated region
        $region29: #{timm_resnet_wrapper_forward.1} parent=11 // pred_check
          %p384 = pneg %p164
        $region30: #{timm_resnet_wrapper_forward.1} parent=11 // pred_check_branch
          %386 = sbr.rel (%p384) target = $region32
        $region31: #{timm_resnet_wrapper_forward.1} parent=11 // pred_region
          %s388 = ssub.s32 9216, 9216
          %389 = vsyncadd [#allocation12], %s388
          %s390 = sshll.u32 [#allocation11], 4
          %s391 = int_to_ptr.vmem [resolvable:$true] %s390
          %396 = dma.hbm_to_vmem [thread:$0]  %s5, 9216, %s391, [#allocation12], 64, 64, 4
        $region32: #{timm_resnet_wrapper_forward.1} parent=11 // pred_fallthru
          _
        // Predicated region
        $region33: #{timm_resnet_wrapper_forward.1} parent=11 // pred_check
          %p397 = pneg %p185
        $region34: #{timm_resnet_wrapper_forward.1} parent=11 // pred_check_branch
          %399 = sbr.rel (%p397) target = $region36
        $region35: #{timm_resnet_wrapper_forward.1} parent=11 // pred_region
          %s401 = ssub.s32 16, 16
          %402 = vsyncadd [#allocation12], %s401
          %s404 = sshll.u32 [#allocation13], 4
          %s405 = int_to_ptr.vmem [resolvable:$true] %s404
          %407 = dma.hbm_to_vmem [thread:$0]  %s6, 16, %s405, [#allocation12]
        $region36: #{timm_resnet_wrapper_forward.1} parent=11 // pred_fallthru
          _
        // Predicated region
        $region37: #{timm_resnet_wrapper_forward.1} parent=11 // pred_check
          %p408 = pneg %p206
        $region38: #{timm_resnet_wrapper_forward.1} parent=11 // pred_check_branch
          %410 = sbr.rel (%p408) target = $region40
        $region39: #{timm_resnet_wrapper_forward.1} parent=11 // pred_region
          %s412 = ssub.s32 9216, 9216
          %413 = vsyncadd [#allocation15], %s412
          %s414 = sshll.u32 [#allocation14], 4
          %s415 = int_to_ptr.vmem [resolvable:$true] %s414
          %420 = dma.hbm_to_vmem [thread:$0]  %s7, 9216, %s415, [#allocation15], 64, 64, 4
        $region40: #{timm_resnet_wrapper_forward.1} parent=11 // pred_fallthru
          _
        // Predicated region
        $region41: #{timm_resnet_wrapper_forward.1} parent=11 // pred_check
          %p421 = pneg %p227
        $region42: #{timm_resnet_wrapper_forward.1} parent=11 // pred_check_branch
          %423 = sbr.rel (%p421) target = $region44
        $region43: #{timm_resnet_wrapper_forward.1} parent=11 // pred_region
          %s425 = ssub.s32 16, 16
          %426 = vsyncadd [#allocation15], %s425
          %s428 = sshll.u32 [#allocation16], 4
          %s429 = int_to_ptr.vmem [resolvable:$true] %s428
          %431 = dma.hbm_to_vmem [thread:$0]  %s8, 16, %s429, [#allocation15]
        $region44: #{timm_resnet_wrapper_forward.1} parent=11 // pred_fallthru
          _
        // Predicated region
        $region45: #{timm_resnet_wrapper_forward.1} parent=11 // pred_check
          %p432 = pneg %p248
        $region46: #{timm_resnet_wrapper_forward.1} parent=11 // pred_check_branch
          %434 = sbr.rel (%p432) target = $region48
        $region47: #{timm_resnet_wrapper_forward.1} parent=11 // pred_region
          %s436 = ssub.s32 1024, 1024
          %437 = vsyncadd [#allocation18], %s436
          %s438 = sshll.u32 [#allocation17], 4
          %s439 = int_to_ptr.vmem [resolvable:$true] %s438
          %444 = dma.hbm_to_vmem [thread:$0]  %s9, 1024, %s439, [#allocation18], 64, 64, 4
        $region48: #{timm_resnet_wrapper_forward.1} parent=11 // pred_fallthru
          _
        // Predicated region
        $region49: #{timm_resnet_wrapper_forward.1} parent=11 // pred_check
          %p445 = pneg %p269
        $region50: #{timm_resnet_wrapper_forward.1} parent=11 // pred_check_branch
          %447 = sbr.rel (%p445) target = $region52
        $region51: #{timm_resnet_wrapper_forward.1} parent=11 // pred_region
          %s449 = ssub.s32 16, 16
          %450 = vsyncadd [#allocation18], %s449
          %s452 = sshll.u32 [#allocation19], 4
          %s453 = int_to_ptr.vmem [resolvable:$true] %s452
          %455 = dma.hbm_to_vmem [thread:$0]  %s10, 16, %s453, [#allocation18]
        $region52: #{timm_resnet_wrapper_forward.1} parent=11 // pred_fallthru
          _
      $region12: #{timm_resnet_wrapper_forward.1} parent=5 // pred_fallthru
        _
      %p456 = scmp.lt.s32.totalorder %s33, 2
      // Predicated region
      $region53: #{timm_resnet_wrapper_forward.1} parent=5 // pred_check
        %p457 = pneg %p456
      $region54: #{timm_resnet_wrapper_forward.1} parent=5 // pred_check_branch
        %459 = sbr.rel (%p457) target = $region56
      $region55: #{timm_resnet_wrapper_forward.1} parent=5 // pred_region
        // Predicated region
        $region57: #{timm_resnet_wrapper_forward.1} parent=55 // pred_check
          %p460 = pneg %p53
        $region58: #{timm_resnet_wrapper_forward.1} parent=55 // pred_check_branch
          %462 = sbr.rel (%p460) target = $region60
        $region59: #{timm_resnet_wrapper_forward.1} parent=55 // pred_region
          %s463 = sand.u32 %s43, 1
          %s464 = scalar_lea.sflag [#allocation3], %s463
          %s465 = sand.u32 %s43, 1
          %s466 = smul.addr %s465, 336
          %s467 = scalar_lea.vmem [#allocation2], %s466
          %s469 = ssub.s32 5376, 5376
          %470 = vsyncadd %s464, %s469
          %s471 = smul.addr %s33, 42
          %s472 = smul.addr %s471, 128
          %s473 = scalar_lea.hbm %s0, %s472
          %s474 = sshll.u32 %s467, 4
          %s475 = int_to_ptr.vmem [resolvable:$true] %s474
          %480 = dma.hbm_to_vmem [thread:$0]  %s473, 5376, %s475, %s464, 128, 128, 8
        $region60: #{timm_resnet_wrapper_forward.1} parent=55 // pred_fallthru
          _
      $region56: #{timm_resnet_wrapper_forward.1} parent=5 // pred_fallthru
        _
      %p481 = scmp.le.s32.totalorder 1, %s33
      %p482 = scmp.lt.s32.totalorder %s33, 3
      %p483 = pnand %p481, %p482
      %p484 = pneg %p483
      // Predicated region
      $region61: #{timm_resnet_wrapper_forward.1} parent=5 // pred_check
        _
      $region62: #{timm_resnet_wrapper_forward.1} parent=5 // pred_check_branch
        %486 = sbr.rel (%p483) target = $region64
      $region63: #{timm_resnet_wrapper_forward.1} parent=5 // pred_region
        %s487 = ssub.s32 %s33, 1
        %s488 = sand.u32 %s46, 1
        %s489 = scalar_lea.sflag [#allocation3], %s488
        %s490 = sand.u32 %s46, 1
        %s491 = smul.addr %s490, 336
        %s492 = scalar_lea.vmem [#allocation2], %s491
        // Predicated region
        $region65: #{timm_resnet_wrapper_forward.1} parent=63 // pred_check
          %p493 = pneg %p59
        $region66: #{timm_resnet_wrapper_forward.1} parent=63 // pred_check_branch
          %495 = sbr.rel (%p493) target = $region68
        $region67: #{timm_resnet_wrapper_forward.1} parent=63 // pred_region
          %496 = dma.done %s489, 5376
        $region68: #{timm_resnet_wrapper_forward.1} parent=63 // pred_fallthru
          _
        // Predicated region
        $region69: #{timm_resnet_wrapper_forward.1} parent=63 // pred_check
          %p497 = pneg %p80
        $region70: #{timm_resnet_wrapper_forward.1} parent=63 // pred_check_branch
          %499 = sbr.rel (%p497) target = $region72
        $region71: #{timm_resnet_wrapper_forward.1} parent=63 // pred_region
          %500 = dma.done [#allocation6], 5376
        $region72: #{timm_resnet_wrapper_forward.1} parent=63 // pred_fallthru
          _
        // Predicated region
        $region73: #{timm_resnet_wrapper_forward.1} parent=63 // pred_check
          %p501 = pneg %p101
        $region74: #{timm_resnet_wrapper_forward.1} parent=63 // pred_check_branch
          %503 = sbr.rel (%p501) target = $region76
        $region75: #{timm_resnet_wrapper_forward.1} parent=63 // pred_region
          %504 = dma.done [#allocation6], 192
        $region76: #{timm_resnet_wrapper_forward.1} parent=63 // pred_fallthru
          _
        // Predicated region
        $region77: #{timm_resnet_wrapper_forward.1} parent=63 // pred_check
          %p505 = pneg %p122
        $region78: #{timm_resnet_wrapper_forward.1} parent=63 // pred_check_branch
          %507 = sbr.rel (%p505) target = $region80
        $region79: #{timm_resnet_wrapper_forward.1} parent=63 // pred_region
          %508 = dma.done [#allocation9], 9216
        $region80: #{timm_resnet_wrapper_forward.1} parent=63 // pred_fallthru
          _
        // Predicated region
        $region81: #{timm_resnet_wrapper_forward.1} parent=63 // pred_check
          %p509 = pneg %p143
        $region82: #{timm_resnet_wrapper_forward.1} parent=63 // pred_check_branch
          %511 = sbr.rel (%p509) target = $region84
        $region83: #{timm_resnet_wrapper_forward.1} parent=63 // pred_region
          %512 = dma.done [#allocation9], 16
        $region84: #{timm_resnet_wrapper_forward.1} parent=63 // pred_fallthru
          _
        // Predicated region
        $region85: #{timm_resnet_wrapper_forward.1} parent=63 // pred_check
          %p513 = pneg %p164
        $region86: #{timm_resnet_wrapper_forward.1} parent=63 // pred_check_branch
          %515 = sbr.rel (%p513) target = $region88
        $region87: #{timm_resnet_wrapper_forward.1} parent=63 // pred_region
          %516 = dma.done [#allocation12], 9216
        $region88: #{timm_resnet_wrapper_forward.1} parent=63 // pred_fallthru
          _
        // Predicated region
        $region89: #{timm_resnet_wrapper_forward.1} parent=63 // pred_check
          %p517 = pneg %p185
        $region90: #{timm_resnet_wrapper_forward.1} parent=63 // pred_check_branch
          %519 = sbr.rel (%p517) target = $region92
        $region91: #{timm_resnet_wrapper_forward.1} parent=63 // pred_region
          %520 = dma.done [#allocation12], 16
        $region92: #{timm_resnet_wrapper_forward.1} parent=63 // pred_fallthru
          _
        // Predicated region
        $region93: #{timm_resnet_wrapper_forward.1} parent=63 // pred_check
          %p521 = pneg %p206
        $region94: #{timm_resnet_wrapper_forward.1} parent=63 // pred_check_branch
          %523 = sbr.rel (%p521) target = $region96
        $region95: #{timm_resnet_wrapper_forward.1} parent=63 // pred_region
          %524 = dma.done [#allocation15], 9216
        $region96: #{timm_resnet_wrapper_forward.1} parent=63 // pred_fallthru
          _
        // Predicated region
        $region97: #{timm_resnet_wrapper_forward.1} parent=63 // pred_check
          %p525 = pneg %p227
        $region98: #{timm_resnet_wrapper_forward.1} parent=63 // pred_check_branch
          %527 = sbr.rel (%p525) target = $region100
        $region99: #{timm_resnet_wrapper_forward.1} parent=63 // pred_region
          %528 = dma.done [#allocation15], 16
        $region100: #{timm_resnet_wrapper_forward.1} parent=63 // pred_fallthru
          _
        // Predicated region
        $region101: #{timm_resnet_wrapper_forward.1} parent=63 // pred_check
          %p529 = pneg %p248
        $region102: #{timm_resnet_wrapper_forward.1} parent=63 // pred_check_branch
          %531 = sbr.rel (%p529) target = $region104
        $region103: #{timm_resnet_wrapper_forward.1} parent=63 // pred_region
          %532 = dma.done [#allocation18], 1024
        $region104: #{timm_resnet_wrapper_forward.1} parent=63 // pred_fallthru
          _
        // Predicated region
        $region105: #{timm_resnet_wrapper_forward.1} parent=63 // pred_check
          %p533 = pneg %p269
        $region106: #{timm_resnet_wrapper_forward.1} parent=63 // pred_check_branch
          %535 = sbr.rel (%p533) target = $region108
        $region107: #{timm_resnet_wrapper_forward.1} parent=63 // pred_region
          %536 = dma.done [#allocation18], 16
        $region108: #{timm_resnet_wrapper_forward.1} parent=63 // pred_fallthru
          _
        %s537 = sand.u32 %s46, 1
        %s538 = scalar_lea.sflag [#allocation3], %s537
        %s539 = sand.u32 %s46, 1
        %s540 = smul.addr %s539, 336
        %s541 = scalar_lea.vmem [#allocation2], %s540
        %p542 = pneg %p59
        %p543 = pneg %p56
        %p544 = pneg %p80
        %p545 = pneg %p77
        %p546 = pneg %p101
        %p547 = pneg %p98
        %p548 = pneg %p122
        %p549 = pneg %p119
        %p550 = pneg %p143
        %p551 = pneg %p140
        %p552 = pneg %p164
        %p553 = pneg %p161
        %p554 = pneg %p185
        %p555 = pneg %p182
        %p556 = pneg %p206
        %p557 = pneg %p203
        %p558 = pneg %p227
        %p559 = pneg %p224
        %p560 = pneg %p248
        %p561 = pneg %p245
        %p562 = pneg %p269
        %p563 = pneg %p266
        %p564 = pneg %p295
        %p565 = pneg %p292
        %s566 = sand.u32 %s282, 1
        %s567 = scalar_lea.sflag [#allocation4], %s566
        %s568 = sand.u32 %s282, 1
        %s569 = smul.addr %s568, 8
        %s570 = scalar_lea.vmem [#allocation20], %s569
        %p571 = pneg %p321
        %p572 = pneg %p318
        %s573 = sand.u32 %s308, 1
        %s574 = scalar_lea.sflag [#allocation22], %s573
        %s575 = sand.u32 %s308, 1
        %s576 = smul.addr %s575, 8
        %s577 = scalar_lea.vmem [#allocation21], %s576
        %v579 = vld [vmem:[#allocation5] sm:$0xff]
        %v580 = vld [vmem:[#allocation5 + $0x8] sm:$0xff]
        %v581 = vld [vmem:[#allocation5 + $0x10] sm:$0xff]
        %v582 = vld [vmem:[#allocation5 + $0x18] sm:$0xff]
        %v583 = vld [vmem:[#allocation5 + $0x20] sm:$0xff]
        %v584 = vld [vmem:[#allocation5 + $0x28] sm:$0xff]
        %v585 = vld [vmem:[#allocation5 + $0x30] sm:$0xff]
        %v586 = vld [vmem:[#allocation5 + $0x38] sm:$0xff]
        %v587 = vld [vmem:[#allocation5 + $0x40] sm:$0xff]
        %v588 = vld [vmem:[#allocation5 + $0x48] sm:$0xff]
        %v589 = vld [vmem:[#allocation5 + $0x50] sm:$0xff]
        %v590 = vld [vmem:[#allocation5 + $0x58] sm:$0xff]
        %v591 = vld [vmem:[#allocation5 + $0x60] sm:$0xff]
        %v592 = vld [vmem:[#allocation5 + $0x68] sm:$0xff]
        %v593 = vld [vmem:[#allocation5 + $0x70] sm:$0xff]
        %v594 = vld [vmem:[#allocation5 + $0x78] sm:$0xff]
        %v595 = vld [vmem:[#allocation5 + $0x80] sm:$0xff]
        %v596 = vld [vmem:[#allocation5 + $0x88] sm:$0xff]
        %v597 = vld [vmem:[#allocation5 + $0x90] sm:$0xff]
        %v598 = vld [vmem:[#allocation5 + $0x98] sm:$0xff]
        %v599 = vld [vmem:[#allocation5 + $0xa0] sm:$0xff]
        %v600 = vld [vmem:[#allocation5 + $0xa8] sm:$0xff]
        %v601 = vld [vmem:[#allocation5 + $0xb0] sm:$0xff]
        %v602 = vld [vmem:[#allocation5 + $0xb8] sm:$0xff]
        %v603 = vld [vmem:[#allocation5 + $0xc0] sm:$0xff]
        %v604 = vld [vmem:[#allocation5 + $0xc8] sm:$0xff]
        %v605 = vld [vmem:[#allocation5 + $0xd0] sm:$0xff]
        %v606 = vld [vmem:[#allocation5 + $0xd8] sm:$0xff]
        %v607 = vld [vmem:[#allocation5 + $0xe0] sm:$0xff]
        %v608 = vld [vmem:[#allocation5 + $0xe8] sm:$0xff]
        %v609 = vld [vmem:[#allocation5 + $0xf0] sm:$0xff]
        %v610 = vld [vmem:[#allocation5 + $0xf8] sm:$0xff]
        %v611 = vld [vmem:[#allocation5 + $0x100] sm:$0xff]
        %v612 = vld [vmem:[#allocation5 + $0x108] sm:$0xff]
        %v613 = vld [vmem:[#allocation5 + $0x110] sm:$0xff]
        %v614 = vld [vmem:[#allocation5 + $0x118] sm:$0xff]
        %v615 = vld [vmem:[#allocation5 + $0x120] sm:$0xff]
        %v616 = vld [vmem:[#allocation5 + $0x128] sm:$0xff]
        %v617 = vld [vmem:[#allocation5 + $0x130] sm:$0xff]
        %v618 = vld [vmem:[#allocation5 + $0x138] sm:$0xff]
        %v619 = vld [vmem:[#allocation5 + $0x140] sm:$0xff]
        %v620 = vld [vmem:[#allocation5 + $0x148] sm:$0xff]
        %v621 = vld [vmem:[#allocation7] sm:$0xff]
        %v622 = vld [vmem:[#allocation7 + $0x8] sm:$0xf]
        %v623 = vld [vmem:[%s492] sm:$0xff]
        %v624 = vld [vmem:[%s492 + $0x8] sm:$0xff]
        %v625 = vld [vmem:[%s492 + $0x10] sm:$0xff]
        %v626 = vld [vmem:[%s492 + $0x18] sm:$0xff]
        %v627 = vld [vmem:[%s492 + $0x20] sm:$0xff]
        %v628 = vld [vmem:[%s492 + $0x28] sm:$0xff]
        %v629 = vld [vmem:[%s492 + $0x30] sm:$0xff]
        %v630 = vld [vmem:[%s492 + $0x38] sm:$0xff]
        %v631 = vld [vmem:[%s492 + $0x40] sm:$0xff]
        %v632 = vld [vmem:[%s492 + $0x48] sm:$0xff]
        %v633 = vld [vmem:[%s492 + $0x50] sm:$0xff]
        %v634 = vld [vmem:[%s492 + $0x58] sm:$0xff]
        %v635 = vld [vmem:[%s492 + $0x60] sm:$0xff]
        %v636 = vld [vmem:[%s492 + $0x68] sm:$0xff]
        %v637 = vld [vmem:[%s492 + $0x70] sm:$0xff]
        %v638 = vld [vmem:[%s492 + $0x78] sm:$0xff]
        %v639 = vld [vmem:[%s492 + $0x80] sm:$0xff]
        %v640 = vld [vmem:[%s492 + $0x88] sm:$0xff]
        %v641 = vld [vmem:[%s492 + $0x90] sm:$0xff]
        %v642 = vld [vmem:[%s492 + $0x98] sm:$0xff]
        %v643 = vld [vmem:[%s492 + $0xa0] sm:$0xff]
        %v644 = vld [vmem:[%s492 + $0xa8] sm:$0xff]
        %v645 = vld [vmem:[%s492 + $0xb0] sm:$0xff]
        %v646 = vld [vmem:[%s492 + $0xb8] sm:$0xff]
        %v647 = vld [vmem:[%s492 + $0xc0] sm:$0xff]
        %v648 = vld [vmem:[%s492 + $0xc8] sm:$0xff]
        %v649 = vld [vmem:[%s492 + $0xd0] sm:$0xff]
        %v650 = vld [vmem:[%s492 + $0xd8] sm:$0xff]
        %v651 = vld [vmem:[%s492 + $0xe0] sm:$0xff]
        %v652 = vld [vmem:[%s492 + $0xe8] sm:$0xff]
        %v653 = vld [vmem:[%s492 + $0xf0] sm:$0xff]
        %v654 = vld [vmem:[%s492 + $0xf8] sm:$0xff]
        %v655 = vld [vmem:[%s492 + $0x100] sm:$0xff]
        %v656 = vld [vmem:[%s492 + $0x108] sm:$0xff]
        %v657 = vld [vmem:[%s492 + $0x110] sm:$0xff]
        %v658 = vld [vmem:[%s492 + $0x118] sm:$0xff]
        %v659 = vld [vmem:[%s492 + $0x120] sm:$0xff]
        %v660 = vld [vmem:[%s492 + $0x128] sm:$0xff]
        %v661 = vld [vmem:[%s492 + $0x130] sm:$0xff]
        %v662 = vld [vmem:[%s492 + $0x138] sm:$0xff]
        %v663 = vld [vmem:[%s492 + $0x140] sm:$0xff]
        %v664 = vld [vmem:[%s492 + $0x148] sm:$0xff]
        %v665 = vrot.slane %v623, 5
        %v666 = vrot.slane %v624, 5
        %v667 = vrot.slane %v625, 5
        %v668 = vrot.slane %v626, 5
        %v669 = vrot.slane %v627, 5
        %v670 = vrot.slane %v628, 5
        %v671 = vrot.slane %v629, 5
        %v672 = vrot.slane %v630, 5
        %v673 = vrot.slane %v631, 5
        %v674 = vrot.slane %v632, 5
        %v675 = vrot.slane %v633, 5
        %v676 = vrot.slane %v634, 5
        %v677 = vrot.slane %v635, 5
        %v678 = vrot.slane %v636, 5
        %v679 = vrot.slane %v637, 5
        %v680 = vrot.slane %v638, 5
        %v681 = vrot.slane %v639, 5
        %v682 = vrot.slane %v640, 5
        %v683 = vrot.slane %v641, 5
        %v684 = vrot.slane %v642, 5
        %v685 = vrot.slane %v643, 5
        %v686 = vrot.slane %v644, 5
        %v687 = vrot.slane %v645, 5
        %v688 = vrot.slane %v646, 5
        %v689 = vrot.slane %v647, 5
        %v690 = vrot.slane %v648, 5
        %v691 = vrot.slane %v649, 5
        %v692 = vrot.slane %v650, 5
        %v693 = vrot.slane %v651, 5
        %v694 = vrot.slane %v652, 5
        %v695 = vrot.slane %v653, 5
        %v696 = vrot.slane %v654, 5
        %v697 = vrot.slane %v655, 5
        %v698 = vrot.slane %v656, 5
        %v699 = vrot.slane %v657, 5
        %v700 = vrot.slane %v658, 5
        %v701 = vrot.slane %v659, 5
        %v702 = vrot.slane %v660, 5
        %v703 = vrot.slane %v661, 5
        %v704 = vrot.slane %v662, 5
        %v705 = vrot.slane %v663, 5
        %v706 = vrot.slane %v664, 5
        %v707 = vlaneseq
        %v708 = vshrl.u32 %v707, 7
        %vm709 = vcmp.lt.s32.totalorder %v708, 3
        %v710 = vsel %vm709, %v705, %v706
        %v711 = vsel %vm709, %v704, %v705
        %v712 = vsel %vm709, %v703, %v704
        %v713 = vsel %vm709, %v702, %v703
        %v714 = vsel %vm709, %v701, %v702
        %v715 = vsel %vm709, %v700, %v701
        %v716 = vsel %vm709, %v699, %v700
        %v717 = vsel %vm709, %v698, %v699
        %v718 = vsel %vm709, %v697, %v698
        %v719 = vsel %vm709, %v696, %v697
        %v720 = vsel %vm709, %v695, %v696
        %v721 = vsel %vm709, %v694, %v695
        %v722 = vsel %vm709, %v693, %v694
        %v723 = vsel %vm709, %v692, %v693
        %v724 = vsel %vm709, %v691, %v692
        %v725 = vsel %vm709, %v690, %v691
        %v726 = vsel %vm709, %v689, %v690
        %v727 = vsel %vm709, %v688, %v689
        %v728 = vsel %vm709, %v687, %v688
        %v729 = vsel %vm709, %v686, %v687
        %v730 = vsel %vm709, %v685, %v686
        %v731 = vsel %vm709, %v684, %v685
        %v732 = vsel %vm709, %v683, %v684
        %v733 = vsel %vm709, %v682, %v683
        %v734 = vsel %vm709, %v681, %v682
        %v735 = vsel %vm709, %v680, %v681
        %v736 = vsel %vm709, %v679, %v680
        %v737 = vsel %vm709, %v678, %v679
        %v738 = vsel %vm709, %v677, %v678
        %v739 = vsel %vm709, %v676, %v677
        %v740 = vsel %vm709, %v675, %v676
        %v741 = vsel %vm709, %v674, %v675
        %v742 = vsel %vm709, %v673, %v674
        %v743 = vsel %vm709, %v672, %v673
        %v744 = vsel %vm709, %v671, %v672
        %v745 = vsel %vm709, %v670, %v671
        %v746 = vsel %vm709, %v669, %v670
        %v747 = vsel %vm709, %v668, %v669
        %v748 = vsel %vm709, %v667, %v668
        %v749 = vsel %vm709, %v666, %v667
        %v750 = vsel %vm709, %v665, %v666
        %v751 = vsel %vm709, %v706, %v665
        %v752 = vrot.slane %v623, 6
        %v753 = vrot.slane %v624, 6
        %v754 = vrot.slane %v625, 6
        %v755 = vrot.slane %v626, 6
        %v756 = vrot.slane %v627, 6
        %v757 = vrot.slane %v628, 6
        %v758 = vrot.slane %v629, 6
        %v759 = vrot.slane %v630, 6
        %v760 = vrot.slane %v631, 6
        %v761 = vrot.slane %v632, 6
        %v762 = vrot.slane %v633, 6
        %v763 = vrot.slane %v634, 6
        %v764 = vrot.slane %v635, 6
        %v765 = vrot.slane %v636, 6
        %v766 = vrot.slane %v637, 6
        %v767 = vrot.slane %v638, 6
        %v768 = vrot.slane %v639, 6
        %v769 = vrot.slane %v640, 6
        %v770 = vrot.slane %v641, 6
        %v771 = vrot.slane %v642, 6
        %v772 = vrot.slane %v643, 6
        %v773 = vrot.slane %v644, 6
        %v774 = vrot.slane %v645, 6
        %v775 = vrot.slane %v646, 6
        %v776 = vrot.slane %v647, 6
        %v777 = vrot.slane %v648, 6
        %v778 = vrot.slane %v649, 6
        %v779 = vrot.slane %v650, 6
        %v780 = vrot.slane %v651, 6
        %v781 = vrot.slane %v652, 6
        %v782 = vrot.slane %v653, 6
        %v783 = vrot.slane %v654, 6
        %v784 = vrot.slane %v655, 6
        %v785 = vrot.slane %v656, 6
        %v786 = vrot.slane %v657, 6
        %v787 = vrot.slane %v658, 6
        %v788 = vrot.slane %v659, 6
        %v789 = vrot.slane %v660, 6
        %v790 = vrot.slane %v661, 6
        %v791 = vrot.slane %v662, 6
        %v792 = vrot.slane %v663, 6
        %v793 = vrot.slane %v664, 6
        %vm794 = vcmp.lt.s32.totalorder %v708, 2
        %v795 = vsel %vm794, %v792, %v793
        %v796 = vsel %vm794, %v791, %v792
        %v797 = vsel %vm794, %v790, %v791
        %v798 = vsel %vm794, %v789, %v790
        %v799 = vsel %vm794, %v788, %v789
        %v800 = vsel %vm794, %v787, %v788
        %v801 = vsel %vm794, %v786, %v787
        %v802 = vsel %vm794, %v785, %v786
        %v803 = vsel %vm794, %v784, %v785
        %v804 = vsel %vm794, %v783, %v784
        %v805 = vsel %vm794, %v782, %v783
        %v806 = vsel %vm794, %v781, %v782
        %v807 = vsel %vm794, %v780, %v781
        %v808 = vsel %vm794, %v779, %v780
        %v809 = vsel %vm794, %v778, %v779
        %v810 = vsel %vm794, %v777, %v778
        %v811 = vsel %vm794, %v776, %v777
        %v812 = vsel %vm794, %v775, %v776
        %v813 = vsel %vm794, %v774, %v775
        %v814 = vsel %vm794, %v773, %v774
        %v815 = vsel %vm794, %v772, %v773
        %v816 = vsel %vm794, %v771, %v772
        %v817 = vsel %vm794, %v770, %v771
        %v818 = vsel %vm794, %v769, %v770
        %v819 = vsel %vm794, %v768, %v769
        %v820 = vsel %vm794, %v767, %v768
        %v821 = vsel %vm794, %v766, %v767
        %v822 = vsel %vm794, %v765, %v766
        %v823 = vsel %vm794, %v764, %v765
        %v824 = vsel %vm794, %v763, %v764
        %v825 = vsel %vm794, %v762, %v763
        %v826 = vsel %vm794, %v761, %v762
        %v827 = vsel %vm794, %v760, %v761
        %v828 = vsel %vm794, %v759, %v760
        %v829 = vsel %vm794, %v758, %v759
        %v830 = vsel %vm794, %v757, %v758
        %v831 = vsel %vm794, %v756, %v757
        %v832 = vsel %vm794, %v755, %v756
        %v833 = vsel %vm794, %v754, %v755
        %v834 = vsel %vm794, %v753, %v754
        %v835 = vsel %vm794, %v752, %v753
        %v836 = vsel %vm794, %v793, %v752
        %v837 = vrot.slane %v623, 7
        %v838 = vrot.slane %v624, 7
        %v839 = vrot.slane %v625, 7
        %v840 = vrot.slane %v626, 7
        %v841 = vrot.slane %v627, 7
        %v842 = vrot.slane %v628, 7
        %v843 = vrot.slane %v629, 7
        %v844 = vrot.slane %v630, 7
        %v845 = vrot.slane %v631, 7
        %v846 = vrot.slane %v632, 7
        %v847 = vrot.slane %v633, 7
        %v848 = vrot.slane %v634, 7
        %v849 = vrot.slane %v635, 7
        %v850 = vrot.slane %v636, 7
        %v851 = vrot.slane %v637, 7
        %v852 = vrot.slane %v638, 7
        %v853 = vrot.slane %v639, 7
        %v854 = vrot.slane %v640, 7
        %v855 = vrot.slane %v641, 7
        %v856 = vrot.slane %v642, 7
        %v857 = vrot.slane %v643, 7
        %v858 = vrot.slane %v644, 7
        %v859 = vrot.slane %v645, 7
        %v860 = vrot.slane %v646, 7
        %v861 = vrot.slane %v647, 7
        %v862 = vrot.slane %v648, 7
        %v863 = vrot.slane %v649, 7
        %v864 = vrot.slane %v650, 7
        %v865 = vrot.slane %v651, 7
        %v866 = vrot.slane %v652, 7
        %v867 = vrot.slane %v653, 7
        %v868 = vrot.slane %v654, 7
        %v869 = vrot.slane %v655, 7
        %v870 = vrot.slane %v656, 7
        %v871 = vrot.slane %v657, 7
        %v872 = vrot.slane %v658, 7
        %v873 = vrot.slane %v659, 7
        %v874 = vrot.slane %v660, 7
        %v875 = vrot.slane %v661, 7
        %v876 = vrot.slane %v662, 7
        %v877 = vrot.slane %v663, 7
        %v878 = vrot.slane %v664, 7
        %vm879 = vcmp.lt.s32.totalorder %v708, 1
        %v880 = vsel %vm879, %v877, %v878
        %v881 = vsel %vm879, %v876, %v877
        %v882 = vsel %vm879, %v875, %v876
        %v883 = vsel %vm879, %v874, %v875
        %v884 = vsel %vm879, %v873, %v874
        %v885 = vsel %vm879, %v872, %v873
        %v886 = vsel %vm879, %v871, %v872
        %v887 = vsel %vm879, %v870, %v871
        %v888 = vsel %vm879, %v869, %v870
        %v889 = vsel %vm879, %v868, %v869
        %v890 = vsel %vm879, %v867, %v868
        %v891 = vsel %vm879, %v866, %v867
        %v892 = vsel %vm879, %v865, %v866
        %v893 = vsel %vm879, %v864, %v865
        %v894 = vsel %vm879, %v863, %v864
        %v895 = vsel %vm879, %v862, %v863
        %v896 = vsel %vm879, %v861, %v862
        %v897 = vsel %vm879, %v860, %v861
        %v898 = vsel %vm879, %v859, %v860
        %v899 = vsel %vm879, %v858, %v859
        %v900 = vsel %vm879, %v857, %v858
        %v901 = vsel %vm879, %v856, %v857
        %v902 = vsel %vm879, %v855, %v856
        %v903 = vsel %vm879, %v854, %v855
        %v904 = vsel %vm879, %v853, %v854
        %v905 = vsel %vm879, %v852, %v853
        %v906 = vsel %vm879, %v851, %v852
        %v907 = vsel %vm879, %v850, %v851
        %v908 = vsel %vm879, %v849, %v850
        %v909 = vsel %vm879, %v848, %v849
        %v910 = vsel %vm879, %v847, %v848
        %v911 = vsel %vm879, %v846, %v847
        %v912 = vsel %vm879, %v845, %v846
        %v913 = vsel %vm879, %v844, %v845
        %v914 = vsel %vm879, %v843, %v844
        %v915 = vsel %vm879, %v842, %v843
        %v916 = vsel %vm879, %v841, %v842
        %v917 = vsel %vm879, %v840, %v841
        %v918 = vsel %vm879, %v839, %v840
        %v919 = vsel %vm879, %v838, %v839
        %v920 = vsel %vm879, %v837, %v838
        %v921 = vsel %vm879, %v878, %v837
        %v922 = vrot.slane %v623, 1
        %v923 = vrot.slane %v624, 1
        %v924 = vrot.slane %v625, 1
        %v925 = vrot.slane %v626, 1
        %v926 = vrot.slane %v627, 1
        %v927 = vrot.slane %v628, 1
        %v928 = vrot.slane %v629, 1
        %v929 = vrot.slane %v630, 1
        %v930 = vrot.slane %v631, 1
        %v931 = vrot.slane %v632, 1
        %v932 = vrot.slane %v633, 1
        %v933 = vrot.slane %v634, 1
        %v934 = vrot.slane %v635, 1
        %v935 = vrot.slane %v636, 1
        %v936 = vrot.slane %v637, 1
        %v937 = vrot.slane %v638, 1
        %v938 = vrot.slane %v639, 1
        %v939 = vrot.slane %v640, 1
        %v940 = vrot.slane %v641, 1
        %v941 = vrot.slane %v642, 1
        %v942 = vrot.slane %v643, 1
        %v943 = vrot.slane %v644, 1
        %v944 = vrot.slane %v645, 1
        %v945 = vrot.slane %v646, 1
        %v946 = vrot.slane %v647, 1
        %v947 = vrot.slane %v648, 1
        %v948 = vrot.slane %v649, 1
        %v949 = vrot.slane %v650, 1
        %v950 = vrot.slane %v651, 1
        %v951 = vrot.slane %v652, 1
        %v952 = vrot.slane %v653, 1
        %v953 = vrot.slane %v654, 1
        %v954 = vrot.slane %v655, 1
        %v955 = vrot.slane %v656, 1
        %v956 = vrot.slane %v657, 1
        %v957 = vrot.slane %v658, 1
        %v958 = vrot.slane %v659, 1
        %v959 = vrot.slane %v660, 1
        %v960 = vrot.slane %v661, 1
        %v961 = vrot.slane %v662, 1
        %v962 = vrot.slane %v663, 1
        %v963 = vrot.slane %v664, 1
        %vm964 = vcmp.lt.s32.totalorder %v708, 7
        %v965 = vsel %vm964, %v962, %v963
        %v966 = vsel %vm964, %v961, %v962
        %v967 = vsel %vm964, %v960, %v961
        %v968 = vsel %vm964, %v959, %v960
        %v969 = vsel %vm964, %v958, %v959
        %v970 = vsel %vm964, %v957, %v958
        %v971 = vsel %vm964, %v956, %v957
        %v972 = vsel %vm964, %v955, %v956
        %v973 = vsel %vm964, %v954, %v955
        %v974 = vsel %vm964, %v953, %v954
        %v975 = vsel %vm964, %v952, %v953
        %v976 = vsel %vm964, %v951, %v952
        %v977 = vsel %vm964, %v950, %v951
        %v978 = vsel %vm964, %v949, %v950
        %v979 = vsel %vm964, %v948, %v949
        %v980 = vsel %vm964, %v947, %v948
        %v981 = vsel %vm964, %v946, %v947
        %v982 = vsel %vm964, %v945, %v946
        %v983 = vsel %vm964, %v944, %v945
        %v984 = vsel %vm964, %v943, %v944
        %v985 = vsel %vm964, %v942, %v943
        %v986 = vsel %vm964, %v941, %v942
        %v987 = vsel %vm964, %v940, %v941
        %v988 = vsel %vm964, %v939, %v940
        %v989 = vsel %vm964, %v938, %v939
        %v990 = vsel %vm964, %v937, %v938
        %v991 = vsel %vm964, %v936, %v937
        %v992 = vsel %vm964, %v935, %v936
        %v993 = vsel %vm964, %v934, %v935
        %v994 = vsel %vm964, %v933, %v934
        %v995 = vsel %vm964, %v932, %v933
        %v996 = vsel %vm964, %v931, %v932
        %v997 = vsel %vm964, %v930, %v931
        %v998 = vsel %vm964, %v929, %v930
        %v999 = vsel %vm964, %v928, %v929
        %v1000 = vsel %vm964, %v927, %v928
        %v1001 = vsel %vm964, %v926, %v927
        %v1002 = vsel %vm964, %v925, %v926
        %v1003 = vsel %vm964, %v924, %v925
        %v1004 = vsel %vm964, %v923, %v924
        %v1005 = vsel %vm964, %v922, %v923
        %v1006 = vsel %vm964, %v963, %v922
        %v1007 = vrot.slane %v623, 2
        %v1008 = vrot.slane %v624, 2
        %v1009 = vrot.slane %v625, 2
        %v1010 = vrot.slane %v626, 2
        %v1011 = vrot.slane %v627, 2
        %v1012 = vrot.slane %v628, 2
        %v1013 = vrot.slane %v629, 2
        %v1014 = vrot.slane %v630, 2
        %v1015 = vrot.slane %v631, 2
        %v1016 = vrot.slane %v632, 2
        %v1017 = vrot.slane %v633, 2
        %v1018 = vrot.slane %v634, 2
        %v1019 = vrot.slane %v635, 2
        %v1020 = vrot.slane %v636, 2
        %v1021 = vrot.slane %v637, 2
        %v1022 = vrot.slane %v638, 2
        %v1023 = vrot.slane %v639, 2
        %v1024 = vrot.slane %v640, 2
        %v1025 = vrot.slane %v641, 2
        %v1026 = vrot.slane %v642, 2
        %v1027 = vrot.slane %v643, 2
        %v1028 = vrot.slane %v644, 2
        %v1029 = vrot.slane %v645, 2
        %v1030 = vrot.slane %v646, 2
        %v1031 = vrot.slane %v647, 2
        %v1032 = vrot.slane %v648, 2
        %v1033 = vrot.slane %v649, 2
        %v1034 = vrot.slane %v650, 2
        %v1035 = vrot.slane %v651, 2
        %v1036 = vrot.slane %v652, 2
        %v1037 = vrot.slane %v653, 2
        %v1038 = vrot.slane %v654, 2
        %v1039 = vrot.slane %v655, 2
        %v1040 = vrot.slane %v656, 2
        %v1041 = vrot.slane %v657, 2
        %v1042 = vrot.slane %v658, 2
        %v1043 = vrot.slane %v659, 2
        %v1044 = vrot.slane %v660, 2
        %v1045 = vrot.slane %v661, 2
        %v1046 = vrot.slane %v662, 2
        %v1047 = vrot.slane %v663, 2
        %v1048 = vrot.slane %v664, 2
        %vm1049 = vcmp.lt.s32.totalorder %v708, 6
        %v1050 = vsel %vm1049, %v1047, %v1048
        %v1051 = vsel %vm1049, %v1046, %v1047
        %v1052 = vsel %vm1049, %v1045, %v1046
        %v1053 = vsel %vm1049, %v1044, %v1045
        %v1054 = vsel %vm1049, %v1043, %v1044
        %v1055 = vsel %vm1049, %v1042, %v1043
        %v1056 = vsel %vm1049, %v1041, %v1042
        %v1057 = vsel %vm1049, %v1040, %v1041
        %v1058 = vsel %vm1049, %v1039, %v1040
        %v1059 = vsel %vm1049, %v1038, %v1039
        %v1060 = vsel %vm1049, %v1037, %v1038
        %v1061 = vsel %vm1049, %v1036, %v1037
        %v1062 = vsel %vm1049, %v1035, %v1036
        %v1063 = vsel %vm1049, %v1034, %v1035
        %v1064 = vsel %vm1049, %v1033, %v1034
        %v1065 = vsel %vm1049, %v1032, %v1033
        %v1066 = vsel %vm1049, %v1031, %v1032
        %v1067 = vsel %vm1049, %v1030, %v1031
        %v1068 = vsel %vm1049, %v1029, %v1030
        %v1069 = vsel %vm1049, %v1028, %v1029
        %v1070 = vsel %vm1049, %v1027, %v1028
        %v1071 = vsel %vm1049, %v1026, %v1027
        %v1072 = vsel %vm1049, %v1025, %v1026
        %v1073 = vsel %vm1049, %v1024, %v1025
        %v1074 = vsel %vm1049, %v1023, %v1024
        %v1075 = vsel %vm1049, %v1022, %v1023
        %v1076 = vsel %vm1049, %v1021, %v1022
        %v1077 = vsel %vm1049, %v1020, %v1021
        %v1078 = vsel %vm1049, %v1019, %v1020
        %v1079 = vsel %vm1049, %v1018, %v1019
        %v1080 = vsel %vm1049, %v1017, %v1018
        %v1081 = vsel %vm1049, %v1016, %v1017
        %v1082 = vsel %vm1049, %v1015, %v1016
        %v1083 = vsel %vm1049, %v1014, %v1015
        %v1084 = vsel %vm1049, %v1013, %v1014
        %v1085 = vsel %vm1049, %v1012, %v1013
        %v1086 = vsel %vm1049, %v1011, %v1012
        %v1087 = vsel %vm1049, %v1010, %v1011
        %v1088 = vsel %vm1049, %v1009, %v1010
        %v1089 = vsel %vm1049, %v1008, %v1009
        %v1090 = vsel %vm1049, %v1007, %v1008
        %v1091 = vsel %vm1049, %v1048, %v1007
        %v1092 = vrot.slane %v623, 3
        %v1093 = vrot.slane %v624, 3
        %v1094 = vrot.slane %v625, 3
        %v1095 = vrot.slane %v626, 3
        %v1096 = vrot.slane %v627, 3
        %v1097 = vrot.slane %v628, 3
        %v1098 = vrot.slane %v629, 3
        %v1099 = vrot.slane %v630, 3
        %v1100 = vrot.slane %v631, 3
        %v1101 = vrot.slane %v632, 3
        %v1102 = vrot.slane %v633, 3
        %v1103 = vrot.slane %v634, 3
        %v1104 = vrot.slane %v635, 3
        %v1105 = vrot.slane %v636, 3
        %v1106 = vrot.slane %v637, 3
        %v1107 = vrot.slane %v638, 3
        %v1108 = vrot.slane %v639, 3
        %v1109 = vrot.slane %v640, 3
        %v1110 = vrot.slane %v641, 3
        %v1111 = vrot.slane %v642, 3
        %v1112 = vrot.slane %v643, 3
        %v1113 = vrot.slane %v644, 3
        %v1114 = vrot.slane %v645, 3
        %v1115 = vrot.slane %v646, 3
        %v1116 = vrot.slane %v647, 3
        %v1117 = vrot.slane %v648, 3
        %v1118 = vrot.slane %v649, 3
        %v1119 = vrot.slane %v650, 3
        %v1120 = vrot.slane %v651, 3
        %v1121 = vrot.slane %v652, 3
        %v1122 = vrot.slane %v653, 3
        %v1123 = vrot.slane %v654, 3
        %v1124 = vrot.slane %v655, 3
        %v1125 = vrot.slane %v656, 3
        %v1126 = vrot.slane %v657, 3
        %v1127 = vrot.slane %v658, 3
        %v1128 = vrot.slane %v659, 3
        %v1129 = vrot.slane %v660, 3
        %v1130 = vrot.slane %v661, 3
        %v1131 = vrot.slane %v662, 3
        %v1132 = vrot.slane %v663, 3
        %v1133 = vrot.slane %v664, 3
        %vm1134 = vcmp.lt.s32.totalorder %v708, 5
        %v1135 = vsel %vm1134, %v1132, %v1133
        %v1136 = vsel %vm1134, %v1131, %v1132
        %v1137 = vsel %vm1134, %v1130, %v1131
        %v1138 = vsel %vm1134, %v1129, %v1130
        %v1139 = vsel %vm1134, %v1128, %v1129
        %v1140 = vsel %vm1134, %v1127, %v1128
        %v1141 = vsel %vm1134, %v1126, %v1127
        %v1142 = vsel %vm1134, %v1125, %v1126
        %v1143 = vsel %vm1134, %v1124, %v1125
        %v1144 = vsel %vm1134, %v1123, %v1124
        %v1145 = vsel %vm1134, %v1122, %v1123
        %v1146 = vsel %vm1134, %v1121, %v1122
        %v1147 = vsel %vm1134, %v1120, %v1121
        %v1148 = vsel %vm1134, %v1119, %v1120
        %v1149 = vsel %vm1134, %v1118, %v1119
        %v1150 = vsel %vm1134, %v1117, %v1118
        %v1151 = vsel %vm1134, %v1116, %v1117
        %v1152 = vsel %vm1134, %v1115, %v1116
        %v1153 = vsel %vm1134, %v1114, %v1115
        %v1154 = vsel %vm1134, %v1113, %v1114
        %v1155 = vsel %vm1134, %v1112, %v1113
        %v1156 = vsel %vm1134, %v1111, %v1112
        %v1157 = vsel %vm1134, %v1110, %v1111
        %v1158 = vsel %vm1134, %v1109, %v1110
        %v1159 = vsel %vm1134, %v1108, %v1109
        %v1160 = vsel %vm1134, %v1107, %v1108
        %v1161 = vsel %vm1134, %v1106, %v1107
        %v1162 = vsel %vm1134, %v1105, %v1106
        %v1163 = vsel %vm1134, %v1104, %v1105
        %v1164 = vsel %vm1134, %v1103, %v1104
        %v1165 = vsel %vm1134, %v1102, %v1103
        %v1166 = vsel %vm1134, %v1101, %v1102
        %v1167 = vsel %vm1134, %v1100, %v1101
        %v1168 = vsel %vm1134, %v1099, %v1100
        %v1169 = vsel %vm1134, %v1098, %v1099
        %v1170 = vsel %vm1134, %v1097, %v1098
        %v1171 = vsel %vm1134, %v1096, %v1097
        %v1172 = vsel %vm1134, %v1095, %v1096
        %v1173 = vsel %vm1134, %v1094, %v1095
        %v1174 = vsel %vm1134, %v1093, %v1094
        %v1175 = vsel %vm1134, %v1092, %v1093
        %v1176 = vsel %vm1134, %v1133, %v1092
        %v1177 = vpack.c.bf16 %v710, %v711
        %v1178 = vpack.c.bf16 %v795, %v796
        %v1179 = vpack.c.bf16 %v880, %v881
        %v1180 = vpack.c.bf16 %v920, %v921
        %v1181 = vpack.c.bf16 %v624, %v623
        %v1182 = vpack.c.bf16 %v1004, %v1005
        %v1183 = vpack.c.bf16 %v1002, %v1003
        %v1184 = vpack.c.bf16 %v1087, %v1088
        %v1185 = vpack.c.bf16 %v1172, %v1173
        %v1186 = vpack.c.bf16 %v750, %v751
        %v1187 = vpack.c.bf16 %v835, %v836
        %v1188 = vpack.c.bf16 %v918, %v919
        %v1189 = vpack.c.bf16 %v626, %v625
        %v1190 = vpack.c.bf16 %v1000, %v1001
        %v1191 = vpack.c.bf16 %v1085, %v1086
        %v1192 = vpack.c.bf16 %v1170, %v1171
        %v1193 = vpack.c.bf16 %v748, %v749
        %v1194 = vpack.c.bf16 %v833, %v834
        %v1195 = vpack.c.bf16 %v916, %v917
        %v1196 = vpack.c.bf16 %v628, %v627
        %v1197 = vpack.c.bf16 %v998, %v999
        %v1198 = vpack.c.bf16 %v1083, %v1084
        %v1199 = vpack.c.bf16 %v1168, %v1169
        %v1200 = vpack.c.bf16 %v746, %v747
        %v1201 = vpack.c.bf16 %v831, %v832
        %v1202 = vpack.c.bf16 %v914, %v915
        %v1203 = vpack.c.bf16 %v630, %v629
        %v1204 = vpack.c.bf16 %v996, %v997
        %v1205 = vpack.c.bf16 %v1081, %v1082
        %v1206 = vpack.c.bf16 %v1166, %v1167
        %v1207 = vpack.c.bf16 %v744, %v745
        %v1208 = vpack.c.bf16 %v829, %v830
        %v1209 = vpack.c.bf16 %v912, %v913
        %v1210 = vpack.c.bf16 %v632, %v631
        %v1211 = vpack.c.bf16 %v994, %v995
        %v1212 = vpack.c.bf16 %v1079, %v1080
        %v1213 = vpack.c.bf16 %v1164, %v1165
        %v1214 = vpack.c.bf16 %v742, %v743
        %v1215 = vpack.c.bf16 %v827, %v828
        %v1216 = vpack.c.bf16 %v910, %v911
        %v1217 = vpack.c.bf16 %v634, %v633
        %v1218 = vpack.c.bf16 %v992, %v993
        %v1219 = vpack.c.bf16 %v1077, %v1078
        %v1220 = vpack.c.bf16 %v1162, %v1163
        %v1221 = vpack.c.bf16 %v740, %v741
        %v1222 = vpack.c.bf16 %v825, %v826
        %v1223 = vpack.c.bf16 %v908, %v909
        %v1224 = vpack.c.bf16 %v636, %v635
        %v1225 = vpack.c.bf16 %v990, %v991
        %v1226 = vpack.c.bf16 %v1075, %v1076
        %v1227 = vpack.c.bf16 %v1160, %v1161
        %v1228 = vpack.c.bf16 %v738, %v739
        %v1229 = vpack.c.bf16 %v823, %v824
        %v1230 = vpack.c.bf16 %v906, %v907
        %v1231 = vpack.c.bf16 %v638, %v637
        %v1232 = vpack.c.bf16 %v988, %v989
        %v1233 = vpack.c.bf16 %v1073, %v1074
        %v1234 = vpack.c.bf16 %v1158, %v1159
        %v1235 = vpack.c.bf16 %v736, %v737
        %v1236 = vpack.c.bf16 %v821, %v822
        %v1237 = vpack.c.bf16 %v904, %v905
        %v1238 = vpack.c.bf16 %v640, %v639
        %v1239 = vpack.c.bf16 %v986, %v987
        %v1240 = vpack.c.bf16 %v1071, %v1072
        %v1241 = vpack.c.bf16 %v1156, %v1157
        %v1242 = vpack.c.bf16 %v734, %v735
        %v1243 = vpack.c.bf16 %v819, %v820
        %v1244 = vpack.c.bf16 %v902, %v903
        %v1245 = vpack.c.bf16 %v642, %v641
        %v1246 = vpack.c.bf16 %v984, %v985
        %v1247 = vpack.c.bf16 %v1069, %v1070
        %v1248 = vpack.c.bf16 %v1154, %v1155
        %v1249 = vpack.c.bf16 %v732, %v733
        %v1250 = vpack.c.bf16 %v817, %v818
        %v1251 = vpack.c.bf16 %v900, %v901
        %v1252 = vpack.c.bf16 %v644, %v643
        %v1253 = vpack.c.bf16 %v982, %v983
        %v1254 = vpack.c.bf16 %v1067, %v1068
        %v1255 = vpack.c.bf16 %v1152, %v1153
        %v1256 = vpack.c.bf16 %v730, %v731
        %v1257 = vpack.c.bf16 %v815, %v816
        %v1258 = vpack.c.bf16 %v898, %v899
        %v1259 = vpack.c.bf16 %v646, %v645
        %v1260 = vpack.c.bf16 %v980, %v981
        %v1261 = vpack.c.bf16 %v1065, %v1066
        %v1262 = vpack.c.bf16 %v1150, %v1151
        %v1263 = vpack.c.bf16 %v728, %v729
        %v1264 = vpack.c.bf16 %v813, %v814
        %v1265 = vpack.c.bf16 %v896, %v897
        %v1266 = vpack.c.bf16 %v648, %v647
        %v1267 = vpack.c.bf16 %v978, %v979
        %v1268 = vpack.c.bf16 %v1063, %v1064
        %v1269 = vpack.c.bf16 %v1148, %v1149
        %v1270 = vpack.c.bf16 %v726, %v727
        %v1271 = vpack.c.bf16 %v811, %v812
        %v1272 = vpack.c.bf16 %v894, %v895
        %v1273 = vpack.c.bf16 %v650, %v649
        %v1274 = vpack.c.bf16 %v976, %v977
        %v1275 = vpack.c.bf16 %v1061, %v1062
        %v1276 = vpack.c.bf16 %v1146, %v1147
        %v1277 = vpack.c.bf16 %v724, %v725
        %v1278 = vpack.c.bf16 %v809, %v810
        %v1279 = vpack.c.bf16 %v892, %v893
        %v1280 = vpack.c.bf16 %v652, %v651
        %v1281 = vpack.c.bf16 %v974, %v975
        %v1282 = vpack.c.bf16 %v1059, %v1060
        %v1283 = vpack.c.bf16 %v1144, %v1145
        %v1284 = vpack.c.bf16 %v722, %v723
        %v1285 = vpack.c.bf16 %v807, %v808
        %v1286 = vpack.c.bf16 %v890, %v891
        %v1287 = vpack.c.bf16 %v654, %v653
        %v1288 = vpack.c.bf16 %v972, %v973
        %v1289 = vpack.c.bf16 %v1057, %v1058
        %v1290 = vpack.c.bf16 %v1142, %v1143
        %v1291 = vpack.c.bf16 %v720, %v721
        %v1292 = vpack.c.bf16 %v805, %v806
        %v1293 = vpack.c.bf16 %v888, %v889
        %v1294 = vpack.c.bf16 %v656, %v655
        %v1295 = vpack.c.bf16 %v970, %v971
        %v1296 = vpack.c.bf16 %v1055, %v1056
        %v1297 = vpack.c.bf16 %v1140, %v1141
        %v1298 = vpack.c.bf16 %v718, %v719
        %v1299 = vpack.c.bf16 %v803, %v804
        %v1300 = vpack.c.bf16 %v886, %v887
        %v1301 = vpack.c.bf16 %v658, %v657
        %v1302 = vpack.c.bf16 %v968, %v969
        %v1303 = vpack.c.bf16 %v1053, %v1054
        %v1304 = vpack.c.bf16 %v1138, %v1139
        %v1305 = vpack.c.bf16 %v716, %v717
        %v1306 = vpack.c.bf16 %v801, %v802
        %v1307 = vpack.c.bf16 %v884, %v885
        %v1308 = vpack.c.bf16 %v660, %v659
        %v1309 = vpack.c.bf16 %v966, %v967
        %v1310 = vpack.c.bf16 %v1051, %v1052
        %v1311 = vpack.c.bf16 %v1136, %v1137
        %v1312 = vpack.c.bf16 %v714, %v715
        %v1313 = vpack.c.bf16 %v799, %v800
        %v1314 = vpack.c.bf16 %v882, %v883
        %v1315 = vpack.c.bf16 %v662, %v661
        %v1316 = vpack.c.bf16 %v1006, %v965
        %v1317 = vpack.c.bf16 %v1091, %v1050
        %v1318 = vpack.c.bf16 %v1176, %v1135
        %v1319 = vpack.c.bf16 %v712, %v713
        %v1320 = vpack.c.bf16 %v797, %v798
        %v1321 = vpack.c.bf16 %v664, %v663
        %v1322 = vpack.c.bf16 %v1089, %v1090
        %v1323 = vpack.c.bf16 %v1174, %v1175
        %v1324 = vld [vmem:[#allocation8] sm:$0xf]
        %v1325 = vld [vmem:[#allocation8 + $0x4] sm:$0xf]
        %v1326 = vld [vmem:[#allocation8 + $0x8] sm:$0xf]
        %v1327 = vld [vmem:[#allocation8 + $0xc] sm:$0xf]
        %v1328 = vld [vmem:[#allocation8 + $0x10] sm:$0xf]
        %v1329 = vld [vmem:[#allocation8 + $0x14] sm:$0xf]
        %v1330 = vld [vmem:[#allocation8 + $0x18] sm:$0xf]
        %v1331 = vld [vmem:[#allocation8 + $0x1c] sm:$0xf]
        %v1332 = vld [vmem:[#allocation8 + $0x20] sm:$0xf]
        %v1333 = vld [vmem:[#allocation8 + $0x24] sm:$0xf]
        %v1334 = vld [vmem:[#allocation8 + $0x28] sm:$0xf]
        %v1335 = vld [vmem:[#allocation8 + $0x2c] sm:$0xf]
        %v1336 = vld [vmem:[#allocation8 + $0x30] sm:$0xf]
        %v1337 = vld [vmem:[#allocation8 + $0x34] sm:$0xf]
        %v1338 = vld [vmem:[#allocation8 + $0x38] sm:$0xf]
        %v1339 = vld [vmem:[#allocation8 + $0x3c] sm:$0xf]
        %v1340 = vld [vmem:[#allocation8 + $0x40] sm:$0xf]
        %v1341 = vld [vmem:[#allocation8 + $0x44] sm:$0xf]
        %v1342 = vld [vmem:[#allocation8 + $0x48] sm:$0xf]
        %v1343 = vld [vmem:[#allocation8 + $0x4c] sm:$0xf]
        %v1344 = vld [vmem:[#allocation8 + $0x50] sm:$0xf]
        %v1345 = vld [vmem:[#allocation8 + $0x54] sm:$0xf]
        %v1346 = vld [vmem:[#allocation8 + $0x58] sm:$0xf]
        %v1347 = vld [vmem:[#allocation8 + $0x5c] sm:$0xf]
        %v1348 = vld [vmem:[#allocation8 + $0x60] sm:$0xf]
        %v1349 = vld [vmem:[#allocation8 + $0x64] sm:$0xf]
        %v1350 = vld [vmem:[#allocation8 + $0x68] sm:$0xf]
        %v1351 = vld [vmem:[#allocation8 + $0x6c] sm:$0xf]
        %v1352 = vld [vmem:[#allocation8 + $0x70] sm:$0xf]
        %v1353 = vld [vmem:[#allocation8 + $0x74] sm:$0xf]
        %v1354 = vld [vmem:[#allocation8 + $0x78] sm:$0xf]
        %v1355 = vld [vmem:[#allocation8 + $0x7c] sm:$0xf]
        %v1356 = vld [vmem:[#allocation8 + $0x80] sm:$0xf]
        %v1357 = vld [vmem:[#allocation8 + $0x84] sm:$0xf]
        %v1358 = vld [vmem:[#allocation8 + $0x88] sm:$0xf]
        %v1359 = vld [vmem:[#allocation8 + $0x8c] sm:$0xf]
        %v1360 = vld [vmem:[#allocation8 + $0x90] sm:$0xf]
        %v1361 = vld [vmem:[#allocation8 + $0x94] sm:$0xf]
        %v1362 = vld [vmem:[#allocation8 + $0x98] sm:$0xf]
        %v1363 = vld [vmem:[#allocation8 + $0x9c] sm:$0xf]
        %v1364 = vld [vmem:[#allocation8 + $0xa0] sm:$0xf]
        %v1365 = vld [vmem:[#allocation8 + $0xa4] sm:$0xf]
        %v1366 = vld [vmem:[#allocation8 + $0xa8] sm:$0xf]
        %v1367 = vld [vmem:[#allocation8 + $0xac] sm:$0xf]
        %v1368 = vld [vmem:[#allocation8 + $0xb0] sm:$0xf]
        %v1369 = vld [vmem:[#allocation8 + $0xb4] sm:$0xf]
        %v1370 = vld [vmem:[#allocation8 + $0xb8] sm:$0xf]
        %v1371 = vld [vmem:[#allocation8 + $0xbc] sm:$0xf]
        %v1372 = vld [vmem:[#allocation8 + $0xc0] sm:$0xf]
        %v1373 = vld [vmem:[#allocation8 + $0xc4] sm:$0xf]
        %v1374 = vld [vmem:[#allocation8 + $0xc8] sm:$0xf]
        %v1375 = vld [vmem:[#allocation8 + $0xcc] sm:$0xf]
        %v1376 = vld [vmem:[#allocation8 + $0xd0] sm:$0xf]
        %v1377 = vld [vmem:[#allocation8 + $0xd4] sm:$0xf]
        %v1378 = vld [vmem:[#allocation8 + $0xd8] sm:$0xf]
        %v1379 = vld [vmem:[#allocation8 + $0xdc] sm:$0xf]
        %v1380 = vld [vmem:[#allocation8 + $0xe0] sm:$0xf]
        %v1381 = vld [vmem:[#allocation8 + $0xe4] sm:$0xf]
        %v1382 = vld [vmem:[#allocation8 + $0xe8] sm:$0xf]
        %v1383 = vld [vmem:[#allocation8 + $0xec] sm:$0xf]
        %v1384 = vld [vmem:[#allocation8 + $0xf0] sm:$0xf]
        %v1385 = vld [vmem:[#allocation8 + $0xf4] sm:$0xf]
        %v1386 = vld [vmem:[#allocation8 + $0xf8] sm:$0xf]
        %v1387 = vld [vmem:[#allocation8 + $0xfc] sm:$0xf]
        %v1388 = vld [vmem:[#allocation8 + $0x100] sm:$0xf]
        %v1389 = vld [vmem:[#allocation8 + $0x104] sm:$0xf]
        %v1390 = vld [vmem:[#allocation8 + $0x108] sm:$0xf]
        %v1391 = vld [vmem:[#allocation8 + $0x10c] sm:$0xf]
        %v1392 = vld [vmem:[#allocation8 + $0x110] sm:$0xf]
        %v1393 = vld [vmem:[#allocation8 + $0x114] sm:$0xf]
        %v1394 = vld [vmem:[#allocation8 + $0x118] sm:$0xf]
        %v1395 = vld [vmem:[#allocation8 + $0x11c] sm:$0xf]
        %v1396 = vld [vmem:[#allocation8 + $0x120] sm:$0xf]
        %v1397 = vld [vmem:[#allocation8 + $0x124] sm:$0xf]
        %v1398 = vld [vmem:[#allocation8 + $0x128] sm:$0xf]
        %v1399 = vld [vmem:[#allocation8 + $0x12c] sm:$0xf]
        %v1400 = vld [vmem:[#allocation8 + $0x130] sm:$0xf]
        %v1401 = vld [vmem:[#allocation8 + $0x134] sm:$0xf]
        %v1402 = vld [vmem:[#allocation8 + $0x138] sm:$0xf]
        %v1403 = vld [vmem:[#allocation8 + $0x13c] sm:$0xf]
        %v1404 = vld [vmem:[#allocation8 + $0x140] sm:$0xf]
        %v1405 = vld [vmem:[#allocation8 + $0x144] sm:$0xf]
        %v1406 = vld [vmem:[#allocation8 + $0x148] sm:$0xf]
        %v1407 = vld [vmem:[#allocation8 + $0x14c] sm:$0xf]
        %v1408 = vld [vmem:[#allocation8 + $0x150] sm:$0xf]
        %v1409 = vld [vmem:[#allocation8 + $0x154] sm:$0xf]
        %v1410 = vld [vmem:[#allocation8 + $0x158] sm:$0xf]
        %v1411 = vld [vmem:[#allocation8 + $0x15c] sm:$0xf]
        %v1412 = vld [vmem:[#allocation8 + $0x160] sm:$0xf]
        %v1413 = vld [vmem:[#allocation8 + $0x164] sm:$0xf]
        %v1414 = vld [vmem:[#allocation8 + $0x168] sm:$0xf]
        %v1415 = vld [vmem:[#allocation8 + $0x16c] sm:$0xf]
        %v1416 = vld [vmem:[#allocation8 + $0x170] sm:$0xf]
        %v1417 = vld [vmem:[#allocation8 + $0x174] sm:$0xf]
        %v1418 = vld [vmem:[#allocation8 + $0x178] sm:$0xf]
        %v1419 = vld [vmem:[#allocation8 + $0x17c] sm:$0xf]
        %v1420 = vld [vmem:[#allocation8 + $0x180] sm:$0xf]
        %v1421 = vld [vmem:[#allocation8 + $0x184] sm:$0xf]
        %v1422 = vld [vmem:[#allocation8 + $0x188] sm:$0xf]
        %v1423 = vld [vmem:[#allocation8 + $0x18c] sm:$0xf]
        %v1424 = vld [vmem:[#allocation8 + $0x190] sm:$0xf]
        %v1425 = vld [vmem:[#allocation8 + $0x194] sm:$0xf]
        %v1426 = vld [vmem:[#allocation8 + $0x198] sm:$0xf]
        %v1427 = vld [vmem:[#allocation8 + $0x19c] sm:$0xf]
        %v1428 = vld [vmem:[#allocation8 + $0x1a0] sm:$0xf]
        %v1429 = vld [vmem:[#allocation8 + $0x1a4] sm:$0xf]
        %v1430 = vld [vmem:[#allocation8 + $0x1a8] sm:$0xf]
        %v1431 = vld [vmem:[#allocation8 + $0x1ac] sm:$0xf]
        %v1432 = vld [vmem:[#allocation8 + $0x1b0] sm:$0xf]
        %v1433 = vld [vmem:[#allocation8 + $0x1b4] sm:$0xf]
        %v1434 = vld [vmem:[#allocation8 + $0x1b8] sm:$0xf]
        %v1435 = vld [vmem:[#allocation8 + $0x1bc] sm:$0xf]
        %v1436 = vld [vmem:[#allocation8 + $0x1c0] sm:$0xf]
        %v1437 = vld [vmem:[#allocation8 + $0x1c4] sm:$0xf]
        %v1438 = vld [vmem:[#allocation8 + $0x1c8] sm:$0xf]
        %v1439 = vld [vmem:[#allocation8 + $0x1cc] sm:$0xf]
        %v1440 = vld [vmem:[#allocation8 + $0x1d0] sm:$0xf]
        %v1441 = vld [vmem:[#allocation8 + $0x1d4] sm:$0xf]
        %v1442 = vld [vmem:[#allocation8 + $0x1d8] sm:$0xf]
        %v1443 = vld [vmem:[#allocation8 + $0x1dc] sm:$0xf]
        %v1444 = vld [vmem:[#allocation8 + $0x1e0] sm:$0xf]
        %v1445 = vld [vmem:[#allocation8 + $0x1e4] sm:$0xf]
        %v1446 = vld [vmem:[#allocation8 + $0x1e8] sm:$0xf]
        %v1447 = vld [vmem:[#allocation8 + $0x1ec] sm:$0xf]
        %v1448 = vld [vmem:[#allocation8 + $0x1f0] sm:$0xf]
        %v1449 = vld [vmem:[#allocation8 + $0x1f4] sm:$0xf]
        %v1450 = vld [vmem:[#allocation8 + $0x1f8] sm:$0xf]
        %v1451 = vld [vmem:[#allocation8 + $0x1fc] sm:$0xf]
        %v1452 = vld [vmem:[#allocation8 + $0x200] sm:$0xf]
        %v1453 = vld [vmem:[#allocation8 + $0x204] sm:$0xf]
        %v1454 = vld [vmem:[#allocation8 + $0x208] sm:$0xf]
        %v1455 = vld [vmem:[#allocation8 + $0x20c] sm:$0xf]
        %v1456 = vld [vmem:[#allocation8 + $0x210] sm:$0xf]
        %v1457 = vld [vmem:[#allocation8 + $0x214] sm:$0xf]
        %v1458 = vld [vmem:[#allocation8 + $0x218] sm:$0xf]
        %v1459 = vld [vmem:[#allocation8 + $0x21c] sm:$0xf]
        %v1460 = vld [vmem:[#allocation8 + $0x220] sm:$0xf]
        %v1461 = vld [vmem:[#allocation8 + $0x224] sm:$0xf]
        %v1462 = vld [vmem:[#allocation8 + $0x228] sm:$0xf]
        %v1463 = vld [vmem:[#allocation8 + $0x22c] sm:$0xf]
        %v1464 = vld [vmem:[#allocation8 + $0x230] sm:$0xf]
        %v1465 = vld [vmem:[#allocation8 + $0x234] sm:$0xf]
        %v1466 = vld [vmem:[#allocation8 + $0x238] sm:$0xf]
        %v1467 = vld [vmem:[#allocation8 + $0x23c] sm:$0xf]
        %v1468 = vld [vmem:[#allocation10] sm:$0x1]
        %v1470 = vlaneseq
        %v1471 = vshrl.u32 %v1470, 7
        %v1472 = vsub.s32 0, %v1471
        %v1473 = vrot.slane %v1468, %v1472
        %v1619 = vunpack.c.l.b16 %v1324
        %v1620 = vunpack.c.l.b16 %v1325
        %v1621 = vunpack.c.l.b16 %v1326
        %v1622 = vunpack.c.l.b16 %v1327
        %v1623 = vunpack.c.l.b16 %v1328
        %v1624 = vunpack.c.l.b16 %v1329
        %v1625 = vunpack.c.l.b16 %v1330
        %v1626 = vunpack.c.l.b16 %v1331
        %v1627 = vunpack.c.l.b16 %v1332
        %v1628 = vunpack.c.l.b16 %v1333
        %v1629 = vunpack.c.l.b16 %v1334
        %v1630 = vunpack.c.l.b16 %v1335
        %v1631 = vunpack.c.l.b16 %v1336
        %v1632 = vunpack.c.l.b16 %v1337
        %v1633 = vunpack.c.l.b16 %v1338
        %v1634 = vunpack.c.l.b16 %v1339
        %v1635 = vunpack.c.l.b16 %v1340
        %v1636 = vunpack.c.l.b16 %v1341
        %v1637 = vunpack.c.l.b16 %v1342
        %v1638 = vunpack.c.l.b16 %v1343
        %v1639 = vunpack.c.l.b16 %v1344
        %v1640 = vunpack.c.l.b16 %v1345
        %v1641 = vunpack.c.l.b16 %v1346
        %v1642 = vunpack.c.l.b16 %v1347
        %v1643 = vunpack.c.l.b16 %v1348
        %v1644 = vunpack.c.l.b16 %v1349
        %v1645 = vunpack.c.l.b16 %v1350
        %v1646 = vunpack.c.l.b16 %v1351
        %v1647 = vunpack.c.l.b16 %v1352
        %v1648 = vunpack.c.l.b16 %v1353
        %v1649 = vunpack.c.l.b16 %v1354
        %v1650 = vunpack.c.l.b16 %v1355
        %v1651 = vunpack.c.l.b16 %v1356
        %v1652 = vunpack.c.l.b16 %v1357
        %v1653 = vunpack.c.l.b16 %v1358
        %v1654 = vunpack.c.l.b16 %v1359
        %v1655 = vunpack.c.l.b16 %v1360
        %v1656 = vunpack.c.l.b16 %v1361
        %v1657 = vunpack.c.l.b16 %v1362
        %v1658 = vunpack.c.l.b16 %v1363
        %v1659 = vunpack.c.l.b16 %v1364
        %v1660 = vunpack.c.l.b16 %v1365
        %v1661 = vunpack.c.l.b16 %v1366
        %v1662 = vunpack.c.l.b16 %v1367
        %v1663 = vunpack.c.l.b16 %v1368
        %v1664 = vunpack.c.l.b16 %v1369
        %v1665 = vunpack.c.l.b16 %v1370
        %v1666 = vunpack.c.l.b16 %v1371
        %v1667 = vunpack.c.l.b16 %v1372
        %v1668 = vunpack.c.l.b16 %v1373
        %v1669 = vunpack.c.l.b16 %v1374
        %v1670 = vunpack.c.l.b16 %v1375
        %v1671 = vunpack.c.l.b16 %v1376
        %v1672 = vunpack.c.l.b16 %v1377
        %v1673 = vunpack.c.l.b16 %v1378
        %v1674 = vunpack.c.l.b16 %v1379
        %v1675 = vunpack.c.l.b16 %v1380
        %v1676 = vunpack.c.l.b16 %v1381
        %v1677 = vunpack.c.l.b16 %v1382
        %v1678 = vunpack.c.l.b16 %v1383
        %v1679 = vunpack.c.l.b16 %v1384
        %v1680 = vunpack.c.l.b16 %v1385
        %v1681 = vunpack.c.l.b16 %v1386
        %v1682 = vunpack.c.l.b16 %v1387
        %v1683 = vunpack.c.l.b16 %v1388
        %v1684 = vunpack.c.l.b16 %v1389
        %v1685 = vunpack.c.l.b16 %v1390
        %v1686 = vunpack.c.l.b16 %v1391
        %v1687 = vunpack.c.l.b16 %v1392
        %v1688 = vunpack.c.l.b16 %v1393
        %v1689 = vunpack.c.l.b16 %v1394
        %v1690 = vunpack.c.l.b16 %v1395
        %v1691 = vunpack.c.l.b16 %v1396
        %v1692 = vunpack.c.l.b16 %v1397
        %v1693 = vunpack.c.l.b16 %v1398
        %v1694 = vunpack.c.l.b16 %v1399
        %v1695 = vunpack.c.l.b16 %v1400
        %v1696 = vunpack.c.l.b16 %v1401
        %v1697 = vunpack.c.l.b16 %v1402
        %v1698 = vunpack.c.l.b16 %v1403
        %v1699 = vunpack.c.l.b16 %v1404
        %v1700 = vunpack.c.l.b16 %v1405
        %v1701 = vunpack.c.l.b16 %v1406
        %v1702 = vunpack.c.l.b16 %v1407
        %v1703 = vunpack.c.l.b16 %v1408
        %v1704 = vunpack.c.l.b16 %v1409
        %v1705 = vunpack.c.l.b16 %v1410
        %v1706 = vunpack.c.l.b16 %v1411
        %v1707 = vunpack.c.l.b16 %v1412
        %v1708 = vunpack.c.l.b16 %v1413
        %v1709 = vunpack.c.l.b16 %v1414
        %v1710 = vunpack.c.l.b16 %v1415
        %v1711 = vunpack.c.l.b16 %v1416
        %v1712 = vunpack.c.l.b16 %v1417
        %v1713 = vunpack.c.l.b16 %v1418
        %v1714 = vunpack.c.l.b16 %v1419
        %v1715 = vunpack.c.l.b16 %v1420
        %v1716 = vunpack.c.l.b16 %v1421
        %v1717 = vunpack.c.l.b16 %v1422
        %v1718 = vunpack.c.l.b16 %v1423
        %v1719 = vunpack.c.l.b16 %v1424
        %v1720 = vunpack.c.l.b16 %v1425
        %v1721 = vunpack.c.l.b16 %v1426
        %v1722 = vunpack.c.l.b16 %v1427
        %v1723 = vunpack.c.l.b16 %v1428
        %v1724 = vunpack.c.l.b16 %v1429
        %v1725 = vunpack.c.l.b16 %v1430
        %v1726 = vunpack.c.l.b16 %v1431
        %v1727 = vunpack.c.l.b16 %v1432
        %v1728 = vunpack.c.l.b16 %v1433
        %v1729 = vunpack.c.l.b16 %v1434
        %v1730 = vunpack.c.l.b16 %v1435
        %v1731 = vunpack.c.l.b16 %v1436
        %v1732 = vunpack.c.l.b16 %v1437
        %v1733 = vunpack.c.l.b16 %v1438
        %v1734 = vunpack.c.l.b16 %v1439
        %v1735 = vunpack.c.l.b16 %v1440
        %v1736 = vunpack.c.l.b16 %v1441
        %v1737 = vunpack.c.l.b16 %v1442
        %v1738 = vunpack.c.l.b16 %v1443
        %v1739 = vunpack.c.l.b16 %v1444
        %v1740 = vunpack.c.l.b16 %v1445
        %v1741 = vunpack.c.l.b16 %v1446
        %v1742 = vunpack.c.l.b16 %v1447
        %v1743 = vunpack.c.l.b16 %v1448
        %v1744 = vunpack.c.l.b16 %v1449
        %v1745 = vunpack.c.l.b16 %v1450
        %v1746 = vunpack.c.l.b16 %v1451
        %v1747 = vunpack.c.l.b16 %v1452
        %v1748 = vunpack.c.l.b16 %v1453
        %v1749 = vunpack.c.l.b16 %v1454
        %v1750 = vunpack.c.l.b16 %v1455
        %v1751 = vunpack.c.l.b16 %v1456
        %v1752 = vunpack.c.l.b16 %v1457
        %v1753 = vunpack.c.l.b16 %v1458
        %v1754 = vunpack.c.l.b16 %v1459
        %v1755 = vunpack.c.l.b16 %v1460
        %v1756 = vunpack.c.l.b16 %v1461
        %v1757 = vunpack.c.l.b16 %v1462
        %v1758 = vunpack.c.l.b16 %v1463
        %v1759 = vunpack.c.l.b16 %v1464
        %v1760 = vunpack.c.l.b16 %v1465
        %v1761 = vunpack.c.l.b16 %v1466
        %v1762 = vunpack.c.l.b16 %v1467
        %v1763 = vpack.c.b16 %v1620, %v1619
        %v1764 = vpack.c.b16 %v1622, %v1621
        %v1765 = vpack.c.b16 %v1624, %v1623
        %v1766 = vpack.c.b16 %v1626, %v1625
        %v1767 = vpack.c.b16 %v1628, %v1627
        %v1768 = vpack.c.b16 %v1630, %v1629
        %v1769 = vpack.c.b16 %v1632, %v1631
        %v1770 = vpack.c.b16 %v1634, %v1633
        %v1771 = vpack.c.b16 %v1636, %v1635
        %v1772 = vpack.c.b16 %v1638, %v1637
        %v1773 = vpack.c.b16 %v1640, %v1639
        %v1774 = vpack.c.b16 %v1642, %v1641
        %v1775 = vpack.c.b16 %v1644, %v1643
        %v1776 = vpack.c.b16 %v1646, %v1645
        %v1777 = vpack.c.b16 %v1648, %v1647
        %v1778 = vpack.c.b16 %v1650, %v1649
        %v1779 = vpack.c.b16 %v1652, %v1651
        %v1780 = vpack.c.b16 %v1654, %v1653
        %v1781 = vpack.c.b16 %v1656, %v1655
        %v1782 = vpack.c.b16 %v1658, %v1657
        %v1783 = vpack.c.b16 %v1660, %v1659
        %v1784 = vpack.c.b16 %v1662, %v1661
        %v1785 = vpack.c.b16 %v1664, %v1663
        %v1786 = vpack.c.b16 %v1666, %v1665
        %v1787 = vpack.c.b16 %v1668, %v1667
        %v1788 = vpack.c.b16 %v1670, %v1669
        %v1789 = vpack.c.b16 %v1672, %v1671
        %v1790 = vpack.c.b16 %v1674, %v1673
        %v1791 = vpack.c.b16 %v1676, %v1675
        %v1792 = vpack.c.b16 %v1678, %v1677
        %v1793 = vpack.c.b16 %v1680, %v1679
        %v1794 = vpack.c.b16 %v1682, %v1681
        %v1795 = vpack.c.b16 %v1684, %v1683
        %v1796 = vpack.c.b16 %v1686, %v1685
        %v1797 = vpack.c.b16 %v1688, %v1687
        %v1798 = vpack.c.b16 %v1690, %v1689
        %v1799 = vpack.c.b16 %v1692, %v1691
        %v1800 = vpack.c.b16 %v1694, %v1693
        %v1801 = vpack.c.b16 %v1696, %v1695
        %v1802 = vpack.c.b16 %v1698, %v1697
        %v1803 = vpack.c.b16 %v1700, %v1699
        %v1804 = vpack.c.b16 %v1702, %v1701
        %v1805 = vpack.c.b16 %v1704, %v1703
        %v1806 = vpack.c.b16 %v1706, %v1705
        %v1807 = vpack.c.b16 %v1708, %v1707
        %v1808 = vpack.c.b16 %v1710, %v1709
        %v1809 = vpack.c.b16 %v1712, %v1711
        %v1810 = vpack.c.b16 %v1714, %v1713
        %v1811 = vpack.c.b16 %v1716, %v1715
        %v1812 = vpack.c.b16 %v1718, %v1717
        %v1813 = vpack.c.b16 %v1720, %v1719
        %v1814 = vpack.c.b16 %v1722, %v1721
        %v1815 = vpack.c.b16 %v1724, %v1723
        %v1816 = vpack.c.b16 %v1726, %v1725
        %v1817 = vpack.c.b16 %v1728, %v1727
        %v1818 = vpack.c.b16 %v1730, %v1729
        %v1819 = vpack.c.b16 %v1732, %v1731
        %v1820 = vpack.c.b16 %v1734, %v1733
        %v1821 = vpack.c.b16 %v1736, %v1735
        %v1822 = vpack.c.b16 %v1738, %v1737
        %v1823 = vpack.c.b16 %v1740, %v1739
        %v1824 = vpack.c.b16 %v1742, %v1741
        %v1825 = vpack.c.b16 %v1744, %v1743
        %v1826 = vpack.c.b16 %v1746, %v1745
        %v1827 = vpack.c.b16 %v1748, %v1747
        %v1828 = vpack.c.b16 %v1750, %v1749
        %v1829 = vpack.c.b16 %v1752, %v1751
        %v1830 = vpack.c.b16 %v1754, %v1753
        %v1831 = vpack.c.b16 %v1756, %v1755
        %v1832 = vpack.c.b16 %v1758, %v1757
        %v1833 = vpack.c.b16 %v1760, %v1759
        %v1834 = vpack.c.b16 %v1762, %v1761
        %1907 = vmatprep.subr.bf16.mxu0 0
        %1908 = vmatpush1.bf16.msra.mxu0 %v1763
        %1909 = vmatprep.subr.bf16.mxu0 0
        %1910 = vmatpush1.bf16.msra.mxu0 %v1764
        %1911 = vmatprep.subr.bf16.mxu0 0
        %1912 = vmatpush1.bf16.msra.mxu0 %v1765
        %1913 = vmatprep.subr.bf16.mxu0 0
        %1914 = vmatpush1.bf16.msra.mxu0 %v1766
        %1915 = vmatprep.subr.bf16.mxu0 0
        %1916 = vmatpush1.bf16.msra.mxu0 %v1767
        %1917 = vmatprep.subr.bf16.mxu0 0
        %1918 = vmatpush1.bf16.msra.mxu0 %v1768
        %1919 = vmatprep.subr.bf16.mxu0 0
        %1920 = vmatpush1.bf16.msra.mxu0 %v1769
        %1921 = vmatprep.subr.bf16.mxu0 0
        %1922 = vmatpush1.bf16.msra.mxu0 %v1770
        %1923 = vmatprep.subr.bf16.mxu0 0
        %1924 = vmatpush1.bf16.msra.mxu0 %v1771
        %1925 = vmatprep.subr.bf16.mxu0 0
        %1926 = vmatpush1.bf16.msra.mxu0 %v1772
        %1927 = vmatprep.subr.bf16.mxu0 0
        %1928 = vmatpush1.bf16.msra.mxu0 %v1773
        %1929 = vmatprep.subr.bf16.mxu0 0
        %1930 = vmatpush1.bf16.msra.mxu0 %v1774
        %1931 = vmatprep.subr.bf16.mxu0 0
        %1932 = vmatpush1.bf16.msra.mxu0 %v1775
        %1933 = vmatprep.subr.bf16.mxu0 0
        %1934 = vmatpush1.bf16.msra.mxu0 %v1776
        %1935 = vmatprep.subr.bf16.mxu0 0
        %1936 = vmatpush1.bf16.msra.mxu0 %v1777
        %1937 = vmatprep.subr.bf16.mxu0 0
        %1938 = vmatpush1.bf16.msra.mxu0 %v1778
        %1939 = vmatprep.mubr.bf16.mxu0 %v1178
        %1940 = vmatmul.mubr.bf16.gmra.mrb[0].mxu0 %v1177
        %v1941 = vpop.f32.mrb[0].mxu0
        %v1942 = vadd.f32 %v1473, %v1941
        %v1943 = vpop.f32.mrb[0].mxu0
        %v1944 = vpop.f32.mrb[0].mxu0
        %v1945 = vadd.f32 %v1473, %v1944
        %v1946 = vpop.f32.mrb[0].mxu0
        %1947 = vmatprep.mubr.bf16.mxu0 %v1187
        %1948 = vmatmul.mubr.bf16.gmra.mrb[0].mxu0 %v1186
        %v1949 = vpop.f32.mrb[0].mxu0
        %v1950 = vadd.f32 %v1473, %v1949
        %v1951 = vpop.f32.mrb[0].mxu0
        %v1952 = vpop.f32.mrb[0].mxu0
        %v1953 = vadd.f32 %v1473, %v1952
        %v1954 = vpop.f32.mrb[0].mxu0
        %1955 = vmatprep.mubr.bf16.mxu0 %v1194
        %1956 = vmatmul.mubr.bf16.gmra.mrb[0].mxu0 %v1193
        %v1957 = vpop.f32.mrb[0].mxu0
        %v1958 = vadd.f32 %v1473, %v1957
        %v1959 = vpop.f32.mrb[0].mxu0
        %v1960 = vpop.f32.mrb[0].mxu0
        %v1961 = vadd.f32 %v1473, %v1960
        %v1962 = vpop.f32.mrb[0].mxu0
        %1963 = vmatprep.mubr.bf16.mxu0 %v1201
        %1964 = vmatmul.mubr.bf16.gmra.mrb[0].mxu0 %v1200
        %v1965 = vpop.f32.mrb[0].mxu0
        %v1966 = vadd.f32 %v1473, %v1965
        %v1967 = vpop.f32.mrb[0].mxu0
        %v1968 = vpop.f32.mrb[0].mxu0
        %v1969 = vadd.f32 %v1473, %v1968
        %v1970 = vpop.f32.mrb[0].mxu0
        %1971 = vmatprep.mubr.bf16.mxu0 %v1208
        %1972 = vmatmul.mubr.bf16.gmra.mrb[0].mxu0 %v1207
        %v1973 = vpop.f32.mrb[0].mxu0
        %v1974 = vadd.f32 %v1473, %v1973
        %v1975 = vpop.f32.mrb[0].mxu0
        %v1976 = vpop.f32.mrb[0].mxu0
        %v1977 = vadd.f32 %v1473, %v1976
        %v1978 = vpop.f32.mrb[0].mxu0
        %1979 = vmatprep.mubr.bf16.mxu0 %v1215
        %1980 = vmatmul.mubr.bf16.gmra.mrb[0].mxu0 %v1214
        %v1981 = vpop.f32.mrb[0].mxu0
        %v1982 = vadd.f32 %v1473, %v1981
        %v1983 = vpop.f32.mrb[0].mxu0
        %v1984 = vpop.f32.mrb[0].mxu0
        %v1985 = vadd.f32 %v1473, %v1984
        %v1986 = vpop.f32.mrb[0].mxu0
        %1987 = vmatprep.mubr.bf16.mxu0 %v1222
        %1988 = vmatmul.mubr.bf16.gmra.mrb[0].mxu0 %v1221
        %v1989 = vpop.f32.mrb[0].mxu0
        %v1990 = vadd.f32 %v1473, %v1989
        %v1991 = vpop.f32.mrb[0].mxu0
        %v1992 = vpop.f32.mrb[0].mxu0
        %v1993 = vadd.f32 %v1473, %v1992
        %v1994 = vpop.f32.mrb[0].mxu0
        %1995 = vmatprep.mubr.bf16.mxu0 %v1229
        %1996 = vmatmul.mubr.bf16.gmra.mrb[0].mxu0 %v1228
        %v1997 = vpop.f32.mrb[0].mxu0
        %v1998 = vadd.f32 %v1473, %v1997
        %v1999 = vpop.f32.mrb[0].mxu0
        %v2000 = vpop.f32.mrb[0].mxu0
        %v2001 = vadd.f32 %v1473, %v2000
        %v2002 = vpop.f32.mrb[0].mxu0
        %2003 = vmatprep.mubr.bf16.mxu0 %v1236
        %2004 = vmatmul.mubr.bf16.gmra.mrb[0].mxu0 %v1235
        %v2005 = vpop.f32.mrb[0].mxu0
        %v2006 = vadd.f32 %v1473, %v2005
        %v2007 = vpop.f32.mrb[0].mxu0
        %v2008 = vpop.f32.mrb[0].mxu0
        %v2009 = vadd.f32 %v1473, %v2008
        %v2010 = vpop.f32.mrb[0].mxu0
        %2011 = vmatprep.mubr.bf16.mxu0 %v1243
        %2012 = vmatmul.mubr.bf16.gmra.mrb[0].mxu0 %v1242
        %v2013 = vpop.f32.mrb[0].mxu0
        %v2014 = vadd.f32 %v1473, %v2013
        %v2015 = vpop.f32.mrb[0].mxu0
        %v2016 = vpop.f32.mrb[0].mxu0
        %v2017 = vadd.f32 %v1473, %v2016
        %v2018 = vpop.f32.mrb[0].mxu0
        %2019 = vmatprep.mubr.bf16.mxu0 %v1250
        %2020 = vmatmul.mubr.bf16.gmra.mrb[0].mxu0 %v1249
        %v2021 = vpop.f32.mrb[0].mxu0
        %v2022 = vadd.f32 %v1473, %v2021
        %v2023 = vpop.f32.mrb[0].mxu0
        %v2024 = vpop.f32.mrb[0].mxu0
        %v2025 = vadd.f32 %v1473, %v2024
        %v2026 = vpop.f32.mrb[0].mxu0
        %2027 = vmatprep.mubr.bf16.mxu0 %v1257
        %2028 = vmatmul.mubr.bf16.gmra.mrb[0].mxu0 %v1256
        %v2029 = vpop.f32.mrb[0].mxu0
        %v2030 = vadd.f32 %v1473, %v2029
        %v2031 = vpop.f32.mrb[0].mxu0
        %v2032 = vpop.f32.mrb[0].mxu0
        %v2033 = vadd.f32 %v1473, %v2032
        %v2034 = vpop.f32.mrb[0].mxu0
        %2035 = vmatprep.mubr.bf16.mxu0 %v1264
        %2036 = vmatmul.mubr.bf16.gmra.mrb[0].mxu0 %v1263
        %v2037 = vpop.f32.mrb[0].mxu0
        %v2038 = vadd.f32 %v1473, %v2037
        %v2039 = vpop.f32.mrb[0].mxu0
        %v2040 = vpop.f32.mrb[0].mxu0
        %v2041 = vadd.f32 %v1473, %v2040
        %v2042 = vpop.f32.mrb[0].mxu0
        %2043 = vmatprep.mubr.bf16.mxu0 %v1271
        %2044 = vmatmul.mubr.bf16.gmra.mrb[0].mxu0 %v1270
        %v2045 = vpop.f32.mrb[0].mxu0
        %v2046 = vadd.f32 %v1473, %v2045
        %v2047 = vpop.f32.mrb[0].mxu0
        %v2048 = vpop.f32.mrb[0].mxu0
        %v2049 = vadd.f32 %v1473, %v2048
        %v2050 = vpop.f32.mrb[0].mxu0
        %2051 = vmatprep.mubr.bf16.mxu0 %v1278
        %2052 = vmatmul.mubr.bf16.gmra.mrb[0].mxu0 %v1277
        %v2053 = vpop.f32.mrb[0].mxu0
        %v2054 = vadd.f32 %v1473, %v2053
        %v2055 = vpop.f32.mrb[0].mxu0
        %v2056 = vpop.f32.mrb[0].mxu0
        %v2057 = vadd.f32 %v1473, %v2056
        %v2058 = vpop.f32.mrb[0].mxu0
        %2059 = vmatprep.mubr.bf16.mxu0 %v1285
        %2060 = vmatmul.mubr.bf16.gmra.mrb[0].mxu0 %v1284
        %v2061 = vpop.f32.mrb[0].mxu0
        %v2062 = vadd.f32 %v1473, %v2061
        %v2063 = vpop.f32.mrb[0].mxu0
        %v2064 = vpop.f32.mrb[0].mxu0
        %v2065 = vadd.f32 %v1473, %v2064
        %v2066 = vpop.f32.mrb[0].mxu0
        %2067 = vmatprep.mubr.bf16.mxu0 %v1292
        %2068 = vmatmul.mubr.bf16.gmra.mrb[0].mxu0 %v1291
        %v2069 = vpop.f32.mrb[0].mxu0
        %v2070 = vadd.f32 %v1473, %v2069
        %v2071 = vpop.f32.mrb[0].mxu0
        %v2072 = vpop.f32.mrb[0].mxu0
        %v2073 = vadd.f32 %v1473, %v2072
        %v2074 = vpop.f32.mrb[0].mxu0
        %2075 = vmatprep.mubr.bf16.mxu0 %v1299
        %2076 = vmatmul.mubr.bf16.gmra.mrb[0].mxu0 %v1298
        %v2077 = vpop.f32.mrb[0].mxu0
        %v2078 = vadd.f32 %v1473, %v2077
        %v2079 = vpop.f32.mrb[0].mxu0
        %v2080 = vpop.f32.mrb[0].mxu0
        %v2081 = vadd.f32 %v1473, %v2080
        %v2082 = vpop.f32.mrb[0].mxu0
        %2083 = vmatprep.mubr.bf16.mxu0 %v1306
        %2084 = vmatmul.mubr.bf16.gmra.mrb[0].mxu0 %v1305
        %v2085 = vpop.f32.mrb[0].mxu0
        %v2086 = vadd.f32 %v1473, %v2085
        %v2087 = vpop.f32.mrb[0].mxu0
        %v2088 = vpop.f32.mrb[0].mxu0
        %v2089 = vadd.f32 %v1473, %v2088
        %v2090 = vpop.f32.mrb[0].mxu0
        %2091 = vmatprep.mubr.bf16.mxu0 %v1313
        %2092 = vmatmul.mubr.bf16.gmra.mrb[0].mxu0 %v1312
        %v2093 = vpop.f32.mrb[0].mxu0
        %v2094 = vadd.f32 %v1473, %v2093
        %v2095 = vpop.f32.mrb[0].mxu0
        %v2096 = vpop.f32.mrb[0].mxu0
        %v2097 = vadd.f32 %v1473, %v2096
        %v2098 = vpop.f32.mrb[0].mxu0
        %2099 = vmatprep.mubr.bf16.mxu0 %v1320
        %2100 = vmatmul.mubr.bf16.gmra.mrb[0].mxu0 %v1319
        %v2101 = vpop.f32.mrb[0].mxu0
        %v2102 = vadd.f32 %v1473, %v2101
        %v2103 = vpop.f32.mrb[0].mxu0
        %v2104 = vpop.f32.mrb[0].mxu0
        %v2105 = vadd.f32 %v1473, %v2104
        %v2106 = vpop.f32.mrb[0].mxu0
        %2107 = vdwg.mxu0
        %2108 = vmatprep.subr.bf16.mxu0 0
        %2109 = vmatpush1.bf16.msra.mxu0 %v1779
        %2110 = vmatprep.subr.bf16.mxu0 0
        %2111 = vmatpush1.bf16.msra.mxu0 %v1780
        %2112 = vmatprep.subr.bf16.mxu0 0
        %2113 = vmatpush1.bf16.msra.mxu0 %v1781
        %2114 = vmatprep.subr.bf16.mxu0 0
        %2115 = vmatpush1.bf16.msra.mxu0 %v1782
        %2116 = vmatprep.subr.bf16.mxu0 0
        %2117 = vmatpush1.bf16.msra.mxu0 %v1783
        %2118 = vmatprep.subr.bf16.mxu0 0
        %2119 = vmatpush1.bf16.msra.mxu0 %v1784
        %2120 = vmatprep.subr.bf16.mxu0 0
        %2121 = vmatpush1.bf16.msra.mxu0 %v1785
        %2122 = vmatprep.subr.bf16.mxu0 0
        %2123 = vmatpush1.bf16.msra.mxu0 %v1786
        %2124 = vmatprep.subr.bf16.mxu0 0
        %2125 = vmatpush1.bf16.msra.mxu0 %v1787
        %2126 = vmatprep.subr.bf16.mxu0 0
        %2127 = vmatpush1.bf16.msra.mxu0 %v1788
        %2128 = vmatprep.subr.bf16.mxu0 0
        %2129 = vmatpush1.bf16.msra.mxu0 %v1789
        %2130 = vmatprep.subr.bf16.mxu0 0
        %2131 = vmatpush1.bf16.msra.mxu0 %v1790
        %2132 = vmatprep.subr.bf16.mxu0 0
        %2133 = vmatpush1.bf16.msra.mxu0 %v1791
        %2134 = vmatprep.subr.bf16.mxu0 0
        %2135 = vmatpush1.bf16.msra.mxu0 %v1792
        %2136 = vmatprep.subr.bf16.mxu0 0
        %2137 = vmatpush1.bf16.msra.mxu0 %v1793
        %2138 = vmatprep.subr.bf16.mxu0 0
        %2139 = vmatpush1.bf16.msra.mxu0 %v1794
        %2140 = vmatprep.mubr.bf16.mxu0 %v1180
        %2141 = vmatmul.mubr.bf16.gmra.mrb[0].mxu0 %v1179
        %v2142 = vpop.f32.mrb[0].mxu0
        %v2143 = vadd.f32 %v1942, %v2142
        %v2144 = vpop.f32.mrb[0].mxu0
        %v2145 = vpop.f32.mrb[0].mxu0
        %v2146 = vadd.f32 %v1945, %v2145
        %v2147 = vpop.f32.mrb[0].mxu0
        %2148 = vmatprep.mubr.bf16.mxu0 %v1188
        %2149 = vmatmul.mubr.bf16.gmra.mrb[0].mxu0 %v1180
        %v2150 = vpop.f32.mrb[0].mxu0
        %v2151 = vadd.f32 %v1950, %v2150
        %v2152 = vpop.f32.mrb[0].mxu0
        %v2153 = vpop.f32.mrb[0].mxu0
        %v2154 = vadd.f32 %v1953, %v2153
        %v2155 = vpop.f32.mrb[0].mxu0
        %2156 = vmatprep.mubr.bf16.mxu0 %v1195
        %2157 = vmatmul.mubr.bf16.gmra.mrb[0].mxu0 %v1188
        %v2158 = vpop.f32.mrb[0].mxu0
        %v2159 = vadd.f32 %v1958, %v2158
        %v2160 = vpop.f32.mrb[0].mxu0
        %v2161 = vpop.f32.mrb[0].mxu0
        %v2162 = vadd.f32 %v1961, %v2161
        %v2163 = vpop.f32.mrb[0].mxu0
        %2164 = vmatprep.mubr.bf16.mxu0 %v1202
        %2165 = vmatmul.mubr.bf16.gmra.mrb[0].mxu0 %v1195
        %v2166 = vpop.f32.mrb[0].mxu0
        %v2167 = vadd.f32 %v1966, %v2166
        %v2168 = vpop.f32.mrb[0].mxu0
        %v2169 = vpop.f32.mrb[0].mxu0
        %v2170 = vadd.f32 %v1969, %v2169
        %v2171 = vpop.f32.mrb[0].mxu0
        %2172 = vmatprep.mubr.bf16.mxu0 %v1209
        %2173 = vmatmul.mubr.bf16.gmra.mrb[0].mxu0 %v1202
        %v2174 = vpop.f32.mrb[0].mxu0
        %v2175 = vadd.f32 %v1974, %v2174
        %v2176 = vpop.f32.mrb[0].mxu0
        %v2177 = vpop.f32.mrb[0].mxu0
        %v2178 = vadd.f32 %v1977, %v2177
        %v2179 = vpop.f32.mrb[0].mxu0
        %2180 = vmatprep.mubr.bf16.mxu0 %v1216
        %2181 = vmatmul.mubr.bf16.gmra.mrb[0].mxu0 %v1209
        %v2182 = vpop.f32.mrb[0].mxu0
        %v2183 = vadd.f32 %v1982, %v2182
        %v2184 = vpop.f32.mrb[0].mxu0
        %v2185 = vpop.f32.mrb[0].mxu0
        %v2186 = vadd.f32 %v1985, %v2185
        %v2187 = vpop.f32.mrb[0].mxu0
        %2188 = vmatprep.mubr.bf16.mxu0 %v1223
        %2189 = vmatmul.mubr.bf16.gmra.mrb[0].mxu0 %v1216
        %v2190 = vpop.f32.mrb[0].mxu0
        %v2191 = vadd.f32 %v1990, %v2190
        %v2192 = vpop.f32.mrb[0].mxu0
        %v2193 = vpop.f32.mrb[0].mxu0
        %v2194 = vadd.f32 %v1993, %v2193
        %v2195 = vpop.f32.mrb[0].mxu0
        %2196 = vmatprep.mubr.bf16.mxu0 %v1230
        %2197 = vmatmul.mubr.bf16.gmra.mrb[0].mxu0 %v1223
        %v2198 = vpop.f32.mrb[0].mxu0
        %v2199 = vadd.f32 %v1998, %v2198
        %v2200 = vpop.f32.mrb[0].mxu0
        %v2201 = vpop.f32.mrb[0].mxu0
        %v2202 = vadd.f32 %v2001, %v2201
        %v2203 = vpop.f32.mrb[0].mxu0
        %2204 = vmatprep.mubr.bf16.mxu0 %v1237
        %2205 = vmatmul.mubr.bf16.gmra.mrb[0].mxu0 %v1230
        %v2206 = vpop.f32.mrb[0].mxu0
        %v2207 = vadd.f32 %v2006, %v2206
        %v2208 = vpop.f32.mrb[0].mxu0
        %v2209 = vpop.f32.mrb[0].mxu0
        %v2210 = vadd.f32 %v2009, %v2209
        %v2211 = vpop.f32.mrb[0].mxu0
        %2212 = vmatprep.mubr.bf16.mxu0 %v1244
        %2213 = vmatmul.mubr.bf16.gmra.mrb[0].mxu0 %v1237
        %v2214 = vpop.f32.mrb[0].mxu0
        %v2215 = vadd.f32 %v2014, %v2214
        %v2216 = vpop.f32.mrb[0].mxu0
        %v2217 = vpop.f32.mrb[0].mxu0
        %v2218 = vadd.f32 %v2017, %v2217
        %v2219 = vpop.f32.mrb[0].mxu0
        %2220 = vmatprep.mubr.bf16.mxu0 %v1251
        %2221 = vmatmul.mubr.bf16.gmra.mrb[0].mxu0 %v1244
        %v2222 = vpop.f32.mrb[0].mxu0
        %v2223 = vadd.f32 %v2022, %v2222
        %v2224 = vpop.f32.mrb[0].mxu0
        %v2225 = vpop.f32.mrb[0].mxu0
        %v2226 = vadd.f32 %v2025, %v2225
        %v2227 = vpop.f32.mrb[0].mxu0
        %2228 = vmatprep.mubr.bf16.mxu0 %v1258
        %2229 = vmatmul.mubr.bf16.gmra.mrb[0].mxu0 %v1251
        %v2230 = vpop.f32.mrb[0].mxu0
        %v2231 = vadd.f32 %v2030, %v2230
        %v2232 = vpop.f32.mrb[0].mxu0
        %v2233 = vpop.f32.mrb[0].mxu0
        %v2234 = vadd.f32 %v2033, %v2233
        %v2235 = vpop.f32.mrb[0].mxu0
        %2236 = vmatprep.mubr.bf16.mxu0 %v1265
        %2237 = vmatmul.mubr.bf16.gmra.mrb[0].mxu0 %v1258
        %v2238 = vpop.f32.mrb[0].mxu0
        %v2239 = vadd.f32 %v2038, %v2238
        %v2240 = vpop.f32.mrb[0].mxu0
        %v2241 = vpop.f32.mrb[0].mxu0
        %v2242 = vadd.f32 %v2041, %v2241
        %v2243 = vpop.f32.mrb[0].mxu0
        %2244 = vmatprep.mubr.bf16.mxu0 %v1272
        %2245 = vmatmul.mubr.bf16.gmra.mrb[0].mxu0 %v1265
        %v2246 = vpop.f32.mrb[0].mxu0
        %v2247 = vadd.f32 %v2046, %v2246
        %v2248 = vpop.f32.mrb[0].mxu0
        %v2249 = vpop.f32.mrb[0].mxu0
        %v2250 = vadd.f32 %v2049, %v2249
        %v2251 = vpop.f32.mrb[0].mxu0
        %2252 = vmatprep.mubr.bf16.mxu0 %v1279
        %2253 = vmatmul.mubr.bf16.gmra.mrb[0].mxu0 %v1272
        %v2254 = vpop.f32.mrb[0].mxu0
        %v2255 = vadd.f32 %v2054, %v2254
        %v2256 = vpop.f32.mrb[0].mxu0
        %v2257 = vpop.f32.mrb[0].mxu0
        %v2258 = vadd.f32 %v2057, %v2257
        %v2259 = vpop.f32.mrb[0].mxu0
        %2260 = vmatprep.mubr.bf16.mxu0 %v1286
        %2261 = vmatmul.mubr.bf16.gmra.mrb[0].mxu0 %v1279
        %v2262 = vpop.f32.mrb[0].mxu0
        %v2263 = vadd.f32 %v2062, %v2262
        %v2264 = vpop.f32.mrb[0].mxu0
        %v2265 = vpop.f32.mrb[0].mxu0
        %v2266 = vadd.f32 %v2065, %v2265
        %v2267 = vpop.f32.mrb[0].mxu0
        %2268 = vmatprep.mubr.bf16.mxu0 %v1293
        %2269 = vmatmul.mubr.bf16.gmra.mrb[0].mxu0 %v1286
        %v2270 = vpop.f32.mrb[0].mxu0
        %v2271 = vadd.f32 %v2070, %v2270
        %v2272 = vpop.f32.mrb[0].mxu0
        %v2273 = vpop.f32.mrb[0].mxu0
        %v2274 = vadd.f32 %v2073, %v2273
        %v2275 = vpop.f32.mrb[0].mxu0
        %2276 = vmatprep.mubr.bf16.mxu0 %v1300
        %2277 = vmatmul.mubr.bf16.gmra.mrb[0].mxu0 %v1293
        %v2278 = vpop.f32.mrb[0].mxu0
        %v2279 = vadd.f32 %v2078, %v2278
        %v2280 = vpop.f32.mrb[0].mxu0
        %v2281 = vpop.f32.mrb[0].mxu0
        %v2282 = vadd.f32 %v2081, %v2281
        %v2283 = vpop.f32.mrb[0].mxu0
        %2284 = vmatprep.mubr.bf16.mxu0 %v1307
        %2285 = vmatmul.mubr.bf16.gmra.mrb[0].mxu0 %v1300
        %v2286 = vpop.f32.mrb[0].mxu0
        %v2287 = vadd.f32 %v2086, %v2286
        %v2288 = vpop.f32.mrb[0].mxu0
        %v2289 = vpop.f32.mrb[0].mxu0
        %v2290 = vadd.f32 %v2089, %v2289
        %v2291 = vpop.f32.mrb[0].mxu0
        %2292 = vmatprep.mubr.bf16.mxu0 %v1314
        %2293 = vmatmul.mubr.bf16.gmra.mrb[0].mxu0 %v1307
        %v2294 = vpop.f32.mrb[0].mxu0
        %v2295 = vadd.f32 %v2094, %v2294
        %v2296 = vpop.f32.mrb[0].mxu0
        %v2297 = vpop.f32.mrb[0].mxu0
        %v2298 = vadd.f32 %v2097, %v2297
        %v2299 = vpop.f32.mrb[0].mxu0
        %2300 = vmatprep.mubr.bf16.mxu0 %v1179
        %2301 = vmatmul.mubr.bf16.gmra.mrb[0].mxu0 %v1314
        %v2302 = vpop.f32.mrb[0].mxu0
        %v2303 = vadd.f32 %v2102, %v2302
        %v2304 = vpop.f32.mrb[0].mxu0
        %v2305 = vpop.f32.mrb[0].mxu0
        %v2306 = vadd.f32 %v2105, %v2305
        %v2307 = vpop.f32.mrb[0].mxu0
        %2308 = vdwg.mxu0
        %2309 = vmatprep.subr.bf16.mxu0 0
        %2310 = vmatpush1.bf16.msra.mxu0 %v1795
        %2311 = vmatprep.subr.bf16.mxu0 0
        %2312 = vmatpush1.bf16.msra.mxu0 %v1796
        %2313 = vmatprep.subr.bf16.mxu0 0
        %2314 = vmatpush1.bf16.msra.mxu0 %v1797
        %2315 = vmatprep.subr.bf16.mxu0 0
        %2316 = vmatpush1.bf16.msra.mxu0 %v1798
        %2317 = vmatprep.subr.bf16.mxu0 0
        %2318 = vmatpush1.bf16.msra.mxu0 %v1799
        %2319 = vmatprep.subr.bf16.mxu0 0
        %2320 = vmatpush1.bf16.msra.mxu0 %v1800
        %2321 = vmatprep.subr.bf16.mxu0 0
        %2322 = vmatpush1.bf16.msra.mxu0 %v1801
        %2323 = vmatprep.subr.bf16.mxu0 0
        %2324 = vmatpush1.bf16.msra.mxu0 %v1802
        %2325 = vmatprep.subr.bf16.mxu0 0
        %2326 = vmatpush1.bf16.msra.mxu0 %v1803
        %2327 = vmatprep.subr.bf16.mxu0 0
        %2328 = vmatpush1.bf16.msra.mxu0 %v1804
        %2329 = vmatprep.subr.bf16.mxu0 0
        %2330 = vmatpush1.bf16.msra.mxu0 %v1805
        %2331 = vmatprep.subr.bf16.mxu0 0
        %2332 = vmatpush1.bf16.msra.mxu0 %v1806
        %2333 = vmatprep.subr.bf16.mxu0 0
        %2334 = vmatpush1.bf16.msra.mxu0 %v1807
        %2335 = vmatprep.subr.bf16.mxu0 0
        %2336 = vmatpush1.bf16.msra.mxu0 %v1808
        %2337 = vmatprep.subr.bf16.mxu0 0
        %2338 = vmatpush1.bf16.msra.mxu0 %v1809
        %2339 = vmatprep.subr.bf16.mxu0 0
        %2340 = vmatpush1.bf16.msra.mxu0 %v1810
        %2341 = vmatprep.mubr.bf16.mxu0 %v1182
        %2342 = vmatmul.mubr.bf16.gmra.mrb[0].mxu0 %v1181
        %v2343 = vpop.f32.mrb[0].mxu0
        %v2344 = vadd.f32 %v2143, %v2343
        %v2345 = vpop.f32.mrb[0].mxu0
        %v2346 = vpop.f32.mrb[0].mxu0
        %v2347 = vadd.f32 %v2146, %v2346
        %v2348 = vpop.f32.mrb[0].mxu0
        %2349 = vmatprep.mubr.bf16.mxu0 %v1183
        %2350 = vmatmul.mubr.bf16.gmra.mrb[0].mxu0 %v1189
        %v2351 = vpop.f32.mrb[0].mxu0
        %v2352 = vadd.f32 %v2151, %v2351
        %v2353 = vpop.f32.mrb[0].mxu0
        %v2354 = vpop.f32.mrb[0].mxu0
        %v2355 = vadd.f32 %v2154, %v2354
        %v2356 = vpop.f32.mrb[0].mxu0
        %2357 = vmatprep.mubr.bf16.mxu0 %v1190
        %2358 = vmatmul.mubr.bf16.gmra.mrb[0].mxu0 %v1196
        %v2359 = vpop.f32.mrb[0].mxu0
        %v2360 = vadd.f32 %v2159, %v2359
        %v2361 = vpop.f32.mrb[0].mxu0
        %v2362 = vpop.f32.mrb[0].mxu0
        %v2363 = vadd.f32 %v2162, %v2362
        %v2364 = vpop.f32.mrb[0].mxu0
        %2365 = vmatprep.mubr.bf16.mxu0 %v1197
        %2366 = vmatmul.mubr.bf16.gmra.mrb[0].mxu0 %v1203
        %v2367 = vpop.f32.mrb[0].mxu0
        %v2368 = vadd.f32 %v2167, %v2367
        %v2369 = vpop.f32.mrb[0].mxu0
        %v2370 = vpop.f32.mrb[0].mxu0
        %v2371 = vadd.f32 %v2170, %v2370
        %v2372 = vpop.f32.mrb[0].mxu0
        %2373 = vmatprep.mubr.bf16.mxu0 %v1204
        %2374 = vmatmul.mubr.bf16.gmra.mrb[0].mxu0 %v1210
        %v2375 = vpop.f32.mrb[0].mxu0
        %v2376 = vadd.f32 %v2175, %v2375
        %v2377 = vpop.f32.mrb[0].mxu0
        %v2378 = vpop.f32.mrb[0].mxu0
        %v2379 = vadd.f32 %v2178, %v2378
        %v2380 = vpop.f32.mrb[0].mxu0
        %2381 = vmatprep.mubr.bf16.mxu0 %v1211
        %2382 = vmatmul.mubr.bf16.gmra.mrb[0].mxu0 %v1217
        %v2383 = vpop.f32.mrb[0].mxu0
        %v2384 = vadd.f32 %v2183, %v2383
        %v2385 = vpop.f32.mrb[0].mxu0
        %v2386 = vpop.f32.mrb[0].mxu0
        %v2387 = vadd.f32 %v2186, %v2386
        %v2388 = vpop.f32.mrb[0].mxu0
        %2389 = vmatprep.mubr.bf16.mxu0 %v1218
        %2390 = vmatmul.mubr.bf16.gmra.mrb[0].mxu0 %v1224
        %v2391 = vpop.f32.mrb[0].mxu0
        %v2392 = vadd.f32 %v2191, %v2391
        %v2393 = vpop.f32.mrb[0].mxu0
        %v2394 = vpop.f32.mrb[0].mxu0
        %v2395 = vadd.f32 %v2194, %v2394
        %v2396 = vpop.f32.mrb[0].mxu0
        %2397 = vmatprep.mubr.bf16.mxu0 %v1225
        %2398 = vmatmul.mubr.bf16.gmra.mrb[0].mxu0 %v1231
        %v2399 = vpop.f32.mrb[0].mxu0
        %v2400 = vadd.f32 %v2199, %v2399
        %v2401 = vpop.f32.mrb[0].mxu0
        %v2402 = vpop.f32.mrb[0].mxu0
        %v2403 = vadd.f32 %v2202, %v2402
        %v2404 = vpop.f32.mrb[0].mxu0
        %2405 = vmatprep.mubr.bf16.mxu0 %v1232
        %2406 = vmatmul.mubr.bf16.gmra.mrb[0].mxu0 %v1238
        %v2407 = vpop.f32.mrb[0].mxu0
        %v2408 = vadd.f32 %v2207, %v2407
        %v2409 = vpop.f32.mrb[0].mxu0
        %v2410 = vpop.f32.mrb[0].mxu0
        %v2411 = vadd.f32 %v2210, %v2410
        %v2412 = vpop.f32.mrb[0].mxu0
        %2413 = vmatprep.mubr.bf16.mxu0 %v1239
        %2414 = vmatmul.mubr.bf16.gmra.mrb[0].mxu0 %v1245
        %v2415 = vpop.f32.mrb[0].mxu0
        %v2416 = vadd.f32 %v2215, %v2415
        %v2417 = vpop.f32.mrb[0].mxu0
        %v2418 = vpop.f32.mrb[0].mxu0
        %v2419 = vadd.f32 %v2218, %v2418
        %v2420 = vpop.f32.mrb[0].mxu0
        %2421 = vmatprep.mubr.bf16.mxu0 %v1246
        %2422 = vmatmul.mubr.bf16.gmra.mrb[0].mxu0 %v1252
        %v2423 = vpop.f32.mrb[0].mxu0
        %v2424 = vadd.f32 %v2223, %v2423
        %v2425 = vpop.f32.mrb[0].mxu0
        %v2426 = vpop.f32.mrb[0].mxu0
        %v2427 = vadd.f32 %v2226, %v2426
        %v2428 = vpop.f32.mrb[0].mxu0
        %2429 = vmatprep.mubr.bf16.mxu0 %v1253
        %2430 = vmatmul.mubr.bf16.gmra.mrb[0].mxu0 %v1259
        %v2431 = vpop.f32.mrb[0].mxu0
        %v2432 = vadd.f32 %v2231, %v2431
        %v2433 = vpop.f32.mrb[0].mxu0
        %v2434 = vpop.f32.mrb[0].mxu0
        %v2435 = vadd.f32 %v2234, %v2434
        %v2436 = vpop.f32.mrb[0].mxu0
        %2437 = vmatprep.mubr.bf16.mxu0 %v1260
        %2438 = vmatmul.mubr.bf16.gmra.mrb[0].mxu0 %v1266
        %v2439 = vpop.f32.mrb[0].mxu0
        %v2440 = vadd.f32 %v2239, %v2439
        %v2441 = vpop.f32.mrb[0].mxu0
        %v2442 = vpop.f32.mrb[0].mxu0
        %v2443 = vadd.f32 %v2242, %v2442
        %v2444 = vpop.f32.mrb[0].mxu0
        %2445 = vmatprep.mubr.bf16.mxu0 %v1267
        %2446 = vmatmul.mubr.bf16.gmra.mrb[0].mxu0 %v1273
        %v2447 = vpop.f32.mrb[0].mxu0
        %v2448 = vadd.f32 %v2247, %v2447
        %v2449 = vpop.f32.mrb[0].mxu0
        %v2450 = vpop.f32.mrb[0].mxu0
        %v2451 = vadd.f32 %v2250, %v2450
        %v2452 = vpop.f32.mrb[0].mxu0
        %2453 = vmatprep.mubr.bf16.mxu0 %v1274
        %2454 = vmatmul.mubr.bf16.gmra.mrb[0].mxu0 %v1280
        %v2455 = vpop.f32.mrb[0].mxu0
        %v2456 = vadd.f32 %v2255, %v2455
        %v2457 = vpop.f32.mrb[0].mxu0
        %v2458 = vpop.f32.mrb[0].mxu0
        %v2459 = vadd.f32 %v2258, %v2458
        %v2460 = vpop.f32.mrb[0].mxu0
        %2461 = vmatprep.mubr.bf16.mxu0 %v1281
        %2462 = vmatmul.mubr.bf16.gmra.mrb[0].mxu0 %v1287
        %v2463 = vpop.f32.mrb[0].mxu0
        %v2464 = vadd.f32 %v2263, %v2463
        %v2465 = vpop.f32.mrb[0].mxu0
        %v2466 = vpop.f32.mrb[0].mxu0
        %v2467 = vadd.f32 %v2266, %v2466
        %v2468 = vpop.f32.mrb[0].mxu0
        %2469 = vmatprep.mubr.bf16.mxu0 %v1288
        %2470 = vmatmul.mubr.bf16.gmra.mrb[0].mxu0 %v1294
        %v2471 = vpop.f32.mrb[0].mxu0
        %v2472 = vadd.f32 %v2271, %v2471
        %v2473 = vpop.f32.mrb[0].mxu0
        %v2474 = vpop.f32.mrb[0].mxu0
        %v2475 = vadd.f32 %v2274, %v2474
        %v2476 = vpop.f32.mrb[0].mxu0
        %2477 = vmatprep.mubr.bf16.mxu0 %v1295
        %2478 = vmatmul.mubr.bf16.gmra.mrb[0].mxu0 %v1301
        %v2479 = vpop.f32.mrb[0].mxu0
        %v2480 = vadd.f32 %v2279, %v2479
        %v2481 = vpop.f32.mrb[0].mxu0
        %v2482 = vpop.f32.mrb[0].mxu0
        %v2483 = vadd.f32 %v2282, %v2482
        %v2484 = vpop.f32.mrb[0].mxu0
        %2485 = vmatprep.mubr.bf16.mxu0 %v1302
        %2486 = vmatmul.mubr.bf16.gmra.mrb[0].mxu0 %v1308
        %v2487 = vpop.f32.mrb[0].mxu0
        %v2488 = vadd.f32 %v2287, %v2487
        %v2489 = vpop.f32.mrb[0].mxu0
        %v2490 = vpop.f32.mrb[0].mxu0
        %v2491 = vadd.f32 %v2290, %v2490
        %v2492 = vpop.f32.mrb[0].mxu0
        %2493 = vmatprep.mubr.bf16.mxu0 %v1309
        %2494 = vmatmul.mubr.bf16.gmra.mrb[0].mxu0 %v1315
        %v2495 = vpop.f32.mrb[0].mxu0
        %v2496 = vadd.f32 %v2295, %v2495
        %v2497 = vpop.f32.mrb[0].mxu0
        %v2498 = vpop.f32.mrb[0].mxu0
        %v2499 = vadd.f32 %v2298, %v2498
        %v2500 = vpop.f32.mrb[0].mxu0
        %2501 = vmatprep.mubr.bf16.mxu0 %v1316
        %2502 = vmatmul.mubr.bf16.gmra.mrb[0].mxu0 %v1321
        %v2503 = vpop.f32.mrb[0].mxu0
        %v2504 = vadd.f32 %v2303, %v2503
        %v2505 = vpop.f32.mrb[0].mxu0
        %v2506 = vpop.f32.mrb[0].mxu0
        %v2507 = vadd.f32 %v2306, %v2506
        %v2508 = vpop.f32.mrb[0].mxu0
        %2509 = vdwg.mxu0
        %2510 = vmatprep.subr.bf16.mxu0 0
        %2511 = vmatpush1.bf16.msra.mxu0 %v1811
        %2512 = vmatprep.subr.bf16.mxu0 0
        %2513 = vmatpush1.bf16.msra.mxu0 %v1812
        %2514 = vmatprep.subr.bf16.mxu0 0
        %2515 = vmatpush1.bf16.msra.mxu0 %v1813
        %2516 = vmatprep.subr.bf16.mxu0 0
        %2517 = vmatpush1.bf16.msra.mxu0 %v1814
        %2518 = vmatprep.subr.bf16.mxu0 0
        %2519 = vmatpush1.bf16.msra.mxu0 %v1815
        %2520 = vmatprep.subr.bf16.mxu0 0
        %2521 = vmatpush1.bf16.msra.mxu0 %v1816
        %2522 = vmatprep.subr.bf16.mxu0 0
        %2523 = vmatpush1.bf16.msra.mxu0 %v1817
        %2524 = vmatprep.subr.bf16.mxu0 0
        %2525 = vmatpush1.bf16.msra.mxu0 %v1818
        %2526 = vmatprep.subr.bf16.mxu0 0
        %2527 = vmatpush1.bf16.msra.mxu0 %v1819
        %2528 = vmatprep.subr.bf16.mxu0 0
        %2529 = vmatpush1.bf16.msra.mxu0 %v1820
        %2530 = vmatprep.subr.bf16.mxu0 0
        %2531 = vmatpush1.bf16.msra.mxu0 %v1821
        %2532 = vmatprep.subr.bf16.mxu0 0
        %2533 = vmatpush1.bf16.msra.mxu0 %v1822
        %2534 = vmatprep.subr.bf16.mxu0 0
        %2535 = vmatpush1.bf16.msra.mxu0 %v1823
        %2536 = vmatprep.subr.bf16.mxu0 0
        %2537 = vmatpush1.bf16.msra.mxu0 %v1824
        %2538 = vmatprep.subr.bf16.mxu0 0
        %2539 = vmatpush1.bf16.msra.mxu0 %v1825
        %2540 = vmatprep.subr.bf16.mxu0 0
        %2541 = vmatpush1.bf16.msra.mxu0 %v1826
        %2542 = vmatprep.mubr.bf16.mxu0 %v1184
        %2543 = vmatmul.mubr.bf16.gmra.mrb[0].mxu0 %v1183
        %v2544 = vpop.f32.mrb[0].mxu0
        %v2545 = vadd.f32 %v2344, %v2544
        %v2546 = vpop.f32.mrb[0].mxu0
        %v2547 = vpop.f32.mrb[0].mxu0
        %v2548 = vadd.f32 %v2347, %v2547
        %v2549 = vpop.f32.mrb[0].mxu0
        %2550 = vmatprep.mubr.bf16.mxu0 %v1191
        %2551 = vmatmul.mubr.bf16.gmra.mrb[0].mxu0 %v1190
        %v2552 = vpop.f32.mrb[0].mxu0
        %v2553 = vadd.f32 %v2352, %v2552
        %v2554 = vpop.f32.mrb[0].mxu0
        %v2555 = vpop.f32.mrb[0].mxu0
        %v2556 = vadd.f32 %v2355, %v2555
        %v2557 = vpop.f32.mrb[0].mxu0
        %2558 = vmatprep.mubr.bf16.mxu0 %v1198
        %2559 = vmatmul.mubr.bf16.gmra.mrb[0].mxu0 %v1197
        %v2560 = vpop.f32.mrb[0].mxu0
        %v2561 = vadd.f32 %v2360, %v2560
        %v2562 = vpop.f32.mrb[0].mxu0
        %v2563 = vpop.f32.mrb[0].mxu0
        %v2564 = vadd.f32 %v2363, %v2563
        %v2565 = vpop.f32.mrb[0].mxu0
        %2566 = vmatprep.mubr.bf16.mxu0 %v1205
        %2567 = vmatmul.mubr.bf16.gmra.mrb[0].mxu0 %v1204
        %v2568 = vpop.f32.mrb[0].mxu0
        %v2569 = vadd.f32 %v2368, %v2568
        %v2570 = vpop.f32.mrb[0].mxu0
        %v2571 = vpop.f32.mrb[0].mxu0
        %v2572 = vadd.f32 %v2371, %v2571
        %v2573 = vpop.f32.mrb[0].mxu0
        %2574 = vmatprep.mubr.bf16.mxu0 %v1212
        %2575 = vmatmul.mubr.bf16.gmra.mrb[0].mxu0 %v1211
        %v2576 = vpop.f32.mrb[0].mxu0
        %v2577 = vadd.f32 %v2376, %v2576
        %v2578 = vpop.f32.mrb[0].mxu0
        %v2579 = vpop.f32.mrb[0].mxu0
        %v2580 = vadd.f32 %v2379, %v2579
        %v2581 = vpop.f32.mrb[0].mxu0
        %2582 = vmatprep.mubr.bf16.mxu0 %v1219
        %2583 = vmatmul.mubr.bf16.gmra.mrb[0].mxu0 %v1218
        %v2584 = vpop.f32.mrb[0].mxu0
        %v2585 = vadd.f32 %v2384, %v2584
        %v2586 = vpop.f32.mrb[0].mxu0
        %v2587 = vpop.f32.mrb[0].mxu0
        %v2588 = vadd.f32 %v2387, %v2587
        %v2589 = vpop.f32.mrb[0].mxu0
        %2590 = vmatprep.mubr.bf16.mxu0 %v1226
        %2591 = vmatmul.mubr.bf16.gmra.mrb[0].mxu0 %v1225
        %v2592 = vpop.f32.mrb[0].mxu0
        %v2593 = vadd.f32 %v2392, %v2592
        %v2594 = vpop.f32.mrb[0].mxu0
        %v2595 = vpop.f32.mrb[0].mxu0
        %v2596 = vadd.f32 %v2395, %v2595
        %v2597 = vpop.f32.mrb[0].mxu0
        %2598 = vmatprep.mubr.bf16.mxu0 %v1233
        %2599 = vmatmul.mubr.bf16.gmra.mrb[0].mxu0 %v1232
        %v2600 = vpop.f32.mrb[0].mxu0
        %v2601 = vadd.f32 %v2400, %v2600
        %v2602 = vpop.f32.mrb[0].mxu0
        %v2603 = vpop.f32.mrb[0].mxu0
        %v2604 = vadd.f32 %v2403, %v2603
        %v2605 = vpop.f32.mrb[0].mxu0
        %2606 = vmatprep.mubr.bf16.mxu0 %v1240
        %2607 = vmatmul.mubr.bf16.gmra.mrb[0].mxu0 %v1239
        %v2608 = vpop.f32.mrb[0].mxu0
        %v2609 = vadd.f32 %v2408, %v2608
        %v2610 = vpop.f32.mrb[0].mxu0
        %v2611 = vpop.f32.mrb[0].mxu0
        %v2612 = vadd.f32 %v2411, %v2611
        %v2613 = vpop.f32.mrb[0].mxu0
        %2614 = vmatprep.mubr.bf16.mxu0 %v1247
        %2615 = vmatmul.mubr.bf16.gmra.mrb[0].mxu0 %v1246
        %v2616 = vpop.f32.mrb[0].mxu0
        %v2617 = vadd.f32 %v2416, %v2616
        %v2618 = vpop.f32.mrb[0].mxu0
        %v2619 = vpop.f32.mrb[0].mxu0
        %v2620 = vadd.f32 %v2419, %v2619
        %v2621 = vpop.f32.mrb[0].mxu0
        %2622 = vmatprep.mubr.bf16.mxu0 %v1254
        %2623 = vmatmul.mubr.bf16.gmra.mrb[0].mxu0 %v1253
        %v2624 = vpop.f32.mrb[0].mxu0
        %v2625 = vadd.f32 %v2424, %v2624
        %v2626 = vpop.f32.mrb[0].mxu0
        %v2627 = vpop.f32.mrb[0].mxu0
        %v2628 = vadd.f32 %v2427, %v2627
        %v2629 = vpop.f32.mrb[0].mxu0
        %2630 = vmatprep.mubr.bf16.mxu0 %v1261
        %2631 = vmatmul.mubr.bf16.gmra.mrb[0].mxu0 %v1260
        %v2632 = vpop.f32.mrb[0].mxu0
        %v2633 = vadd.f32 %v2432, %v2632
        %v2634 = vpop.f32.mrb[0].mxu0
        %v2635 = vpop.f32.mrb[0].mxu0
        %v2636 = vadd.f32 %v2435, %v2635
        %v2637 = vpop.f32.mrb[0].mxu0
        %2638 = vmatprep.mubr.bf16.mxu0 %v1268
        %2639 = vmatmul.mubr.bf16.gmra.mrb[0].mxu0 %v1267
        %v2640 = vpop.f32.mrb[0].mxu0
        %v2641 = vadd.f32 %v2440, %v2640
        %v2642 = vpop.f32.mrb[0].mxu0
        %v2643 = vpop.f32.mrb[0].mxu0
        %v2644 = vadd.f32 %v2443, %v2643
        %v2645 = vpop.f32.mrb[0].mxu0
        %2646 = vmatprep.mubr.bf16.mxu0 %v1275
        %2647 = vmatmul.mubr.bf16.gmra.mrb[0].mxu0 %v1274
        %v2648 = vpop.f32.mrb[0].mxu0
        %v2649 = vadd.f32 %v2448, %v2648
        %v2650 = vpop.f32.mrb[0].mxu0
        %v2651 = vpop.f32.mrb[0].mxu0
        %v2652 = vadd.f32 %v2451, %v2651
        %v2653 = vpop.f32.mrb[0].mxu0
        %2654 = vmatprep.mubr.bf16.mxu0 %v1282
        %2655 = vmatmul.mubr.bf16.gmra.mrb[0].mxu0 %v1281
        %v2656 = vpop.f32.mrb[0].mxu0
        %v2657 = vadd.f32 %v2456, %v2656
        %v2658 = vpop.f32.mrb[0].mxu0
        %v2659 = vpop.f32.mrb[0].mxu0
        %v2660 = vadd.f32 %v2459, %v2659
        %v2661 = vpop.f32.mrb[0].mxu0
        %2662 = vmatprep.mubr.bf16.mxu0 %v1289
        %2663 = vmatmul.mubr.bf16.gmra.mrb[0].mxu0 %v1288
        %v2664 = vpop.f32.mrb[0].mxu0
        %v2665 = vadd.f32 %v2464, %v2664
        %v2666 = vpop.f32.mrb[0].mxu0
        %v2667 = vpop.f32.mrb[0].mxu0
        %v2668 = vadd.f32 %v2467, %v2667
        %v2669 = vpop.f32.mrb[0].mxu0
        %2670 = vmatprep.mubr.bf16.mxu0 %v1296
        %2671 = vmatmul.mubr.bf16.gmra.mrb[0].mxu0 %v1295
        %v2672 = vpop.f32.mrb[0].mxu0
        %v2673 = vadd.f32 %v2472, %v2672
        %v2674 = vpop.f32.mrb[0].mxu0
        %v2675 = vpop.f32.mrb[0].mxu0
        %v2676 = vadd.f32 %v2475, %v2675
        %v2677 = vpop.f32.mrb[0].mxu0
        %2678 = vmatprep.mubr.bf16.mxu0 %v1303
        %2679 = vmatmul.mubr.bf16.gmra.mrb[0].mxu0 %v1302
        %v2680 = vpop.f32.mrb[0].mxu0
        %v2681 = vadd.f32 %v2480, %v2680
        %v2682 = vpop.f32.mrb[0].mxu0
        %v2683 = vpop.f32.mrb[0].mxu0
        %v2684 = vadd.f32 %v2483, %v2683
        %v2685 = vpop.f32.mrb[0].mxu0
        %2686 = vmatprep.mubr.bf16.mxu0 %v1310
        %2687 = vmatmul.mubr.bf16.gmra.mrb[0].mxu0 %v1309
        %v2688 = vpop.f32.mrb[0].mxu0
        %v2689 = vadd.f32 %v2488, %v2688
        %v2690 = vpop.f32.mrb[0].mxu0
        %v2691 = vpop.f32.mrb[0].mxu0
        %v2692 = vadd.f32 %v2491, %v2691
        %v2693 = vpop.f32.mrb[0].mxu0
        %2694 = vmatprep.mubr.bf16.mxu0 %v1317
        %2695 = vmatmul.mubr.bf16.gmra.mrb[0].mxu0 %v1316
        %v2696 = vpop.f32.mrb[0].mxu0
        %v2697 = vadd.f32 %v2496, %v2696
        %v2698 = vpop.f32.mrb[0].mxu0
        %v2699 = vpop.f32.mrb[0].mxu0
        %v2700 = vadd.f32 %v2499, %v2699
        %v2701 = vpop.f32.mrb[0].mxu0
        %2702 = vmatprep.mubr.bf16.mxu0 %v1322
        %2703 = vmatmul.mubr.bf16.gmra.mrb[0].mxu0 %v1182
        %v2704 = vpop.f32.mrb[0].mxu0
        %v2705 = vadd.f32 %v2504, %v2704
        %v2706 = vpop.f32.mrb[0].mxu0
        %v2707 = vpop.f32.mrb[0].mxu0
        %v2708 = vadd.f32 %v2507, %v2707
        %v2709 = vpop.f32.mrb[0].mxu0
        %2710 = vdwg.mxu0
        %2711 = vmatprep.subr.bf16.mxu0 0
        %2712 = vmatpush1.bf16.msra.mxu0 %v1827
        %2713 = vmatprep.subr.bf16.mxu0 0
        %2714 = vmatpush1.bf16.msra.mxu0 %v1828
        %2715 = vmatprep.subr.bf16.mxu0 0
        %2716 = vmatpush1.bf16.msra.mxu0 %v1829
        %2717 = vmatprep.subr.bf16.mxu0 0
        %2718 = vmatpush1.bf16.msra.mxu0 %v1830
        %2719 = vmatprep.subr.bf16.mxu0 0
        %2720 = vmatpush1.bf16.msra.mxu0 %v1831
        %2721 = vmatprep.subr.bf16.mxu0 0
        %2722 = vmatpush1.bf16.msra.mxu0 %v1832
        %2723 = vmatprep.subr.bf16.mxu0 0
        %2724 = vmatpush1.bf16.msra.mxu0 %v1833
        %2725 = vmatprep.subr.bf16.mxu0 0
        %2726 = vmatpush1.bf16.msra.mxu0 %v1834
        %2727 = vmatprep.subr.bf16.mxu0 0
        %2728 = vmatpush1.bf16.msra.mxu0 0
        %2729 = vmatprep.subr.bf16.mxu0 0
        %2730 = vmatpush1.bf16.msra.mxu0 0
        %2731 = vmatprep.subr.bf16.mxu0 0
        %2732 = vmatpush1.bf16.msra.mxu0 0
        %2733 = vmatprep.subr.bf16.mxu0 0
        %2734 = vmatpush1.bf16.msra.mxu0 0
        %2735 = vmatprep.subr.bf16.mxu0 0
        %2736 = vmatpush1.bf16.msra.mxu0 0
        %2737 = vmatprep.subr.bf16.mxu0 0
        %2738 = vmatpush1.bf16.msra.mxu0 0
        %2739 = vmatprep.subr.bf16.mxu0 0
        %2740 = vmatpush1.bf16.msra.mxu0 0
        %2741 = vmatprep.subr.bf16.mxu0 0
        %2742 = vmatpush1.bf16.msra.mxu0 0
        %2743 = vmatprep.mubr.bf16.mxu0 0
        %2744 = vmatmul.mubr.bf16.gmra.mrb[0].mxu0 %v1185
        %v2745 = vpop.f32.mrb[0].mxu0
        %v2746 = vadd.f32 %v2545, %v2745
        %v2747 = vpop.f32.mrb[0].mxu0
        %v2748 = vpop.f32.mrb[0].mxu0
        %v2749 = vadd.f32 %v2548, %v2748
        %v2750 = vpop.f32.mrb[0].mxu0
        %2751 = vmatprep.mubr.bf16.mxu0 0
        %2752 = vmatmul.mubr.bf16.gmra.mrb[0].mxu0 %v1192
        %v2753 = vpop.f32.mrb[0].mxu0
        %v2754 = vadd.f32 %v2553, %v2753
        %v2755 = vpop.f32.mrb[0].mxu0
        %v2756 = vpop.f32.mrb[0].mxu0
        %v2757 = vadd.f32 %v2556, %v2756
        %v2758 = vpop.f32.mrb[0].mxu0
        %2759 = vmatprep.mubr.bf16.mxu0 0
        %2760 = vmatmul.mubr.bf16.gmra.mrb[0].mxu0 %v1199
        %v2761 = vpop.f32.mrb[0].mxu0
        %v2762 = vadd.f32 %v2561, %v2761
        %v2763 = vpop.f32.mrb[0].mxu0
        %v2764 = vpop.f32.mrb[0].mxu0
        %v2765 = vadd.f32 %v2564, %v2764
        %v2766 = vpop.f32.mrb[0].mxu0
        %2767 = vmatprep.mubr.bf16.mxu0 0
        %2768 = vmatmul.mubr.bf16.gmra.mrb[0].mxu0 %v1206
        %v2769 = vpop.f32.mrb[0].mxu0
        %v2770 = vadd.f32 %v2569, %v2769
        %v2771 = vpop.f32.mrb[0].mxu0
        %v2772 = vpop.f32.mrb[0].mxu0
        %v2773 = vadd.f32 %v2572, %v2772
        %v2774 = vpop.f32.mrb[0].mxu0
        %2775 = vmatprep.mubr.bf16.mxu0 0
        %2776 = vmatmul.mubr.bf16.gmra.mrb[0].mxu0 %v1213
        %v2777 = vpop.f32.mrb[0].mxu0
        %v2778 = vadd.f32 %v2577, %v2777
        %v2779 = vpop.f32.mrb[0].mxu0
        %v2780 = vpop.f32.mrb[0].mxu0
        %v2781 = vadd.f32 %v2580, %v2780
        %v2782 = vpop.f32.mrb[0].mxu0
        %2783 = vmatprep.mubr.bf16.mxu0 0
        %2784 = vmatmul.mubr.bf16.gmra.mrb[0].mxu0 %v1220
        %v2785 = vpop.f32.mrb[0].mxu0
        %v2786 = vadd.f32 %v2585, %v2785
        %v2787 = vpop.f32.mrb[0].mxu0
        %v2788 = vpop.f32.mrb[0].mxu0
        %v2789 = vadd.f32 %v2588, %v2788
        %v2790 = vpop.f32.mrb[0].mxu0
        %2791 = vmatprep.mubr.bf16.mxu0 0
        %2792 = vmatmul.mubr.bf16.gmra.mrb[0].mxu0 %v1227
        %v2793 = vpop.f32.mrb[0].mxu0
        %v2794 = vadd.f32 %v2593, %v2793
        %v2795 = vpop.f32.mrb[0].mxu0
        %v2796 = vpop.f32.mrb[0].mxu0
        %v2797 = vadd.f32 %v2596, %v2796
        %v2798 = vpop.f32.mrb[0].mxu0
        %2799 = vmatprep.mubr.bf16.mxu0 0
        %2800 = vmatmul.mubr.bf16.gmra.mrb[0].mxu0 %v1234
        %v2801 = vpop.f32.mrb[0].mxu0
        %v2802 = vadd.f32 %v2601, %v2801
        %v2803 = vpop.f32.mrb[0].mxu0
        %v2804 = vpop.f32.mrb[0].mxu0
        %v2805 = vadd.f32 %v2604, %v2804
        %v2806 = vpop.f32.mrb[0].mxu0
        %2807 = vmatprep.mubr.bf16.mxu0 0
        %2808 = vmatmul.mubr.bf16.gmra.mrb[0].mxu0 %v1241
        %v2809 = vpop.f32.mrb[0].mxu0
        %v2810 = vadd.f32 %v2609, %v2809
        %v2811 = vpop.f32.mrb[0].mxu0
        %v2812 = vpop.f32.mrb[0].mxu0
        %v2813 = vadd.f32 %v2612, %v2812
        %v2814 = vpop.f32.mrb[0].mxu0
        %2815 = vmatprep.mubr.bf16.mxu0 0
        %2816 = vmatmul.mubr.bf16.gmra.mrb[0].mxu0 %v1248
        %v2817 = vpop.f32.mrb[0].mxu0
        %v2818 = vadd.f32 %v2617, %v2817
        %v2819 = vpop.f32.mrb[0].mxu0
        %v2820 = vpop.f32.mrb[0].mxu0
        %v2821 = vadd.f32 %v2620, %v2820
        %v2822 = vpop.f32.mrb[0].mxu0
        %2823 = vmatprep.mubr.bf16.mxu0 0
        %2824 = vmatmul.mubr.bf16.gmra.mrb[0].mxu0 %v1255
        %v2825 = vpop.f32.mrb[0].mxu0
        %v2826 = vadd.f32 %v2625, %v2825
        %v2827 = vpop.f32.mrb[0].mxu0
        %v2828 = vpop.f32.mrb[0].mxu0
        %v2829 = vadd.f32 %v2628, %v2828
        %v2830 = vpop.f32.mrb[0].mxu0
        %2831 = vmatprep.mubr.bf16.mxu0 0
        %2832 = vmatmul.mubr.bf16.gmra.mrb[0].mxu0 %v1262
        %v2833 = vpop.f32.mrb[0].mxu0
        %v2834 = vadd.f32 %v2633, %v2833
        %v2835 = vpop.f32.mrb[0].mxu0
        %v2836 = vpop.f32.mrb[0].mxu0
        %v2837 = vadd.f32 %v2636, %v2836
        %v2838 = vpop.f32.mrb[0].mxu0
        %2839 = vmatprep.mubr.bf16.mxu0 0
        %2840 = vmatmul.mubr.bf16.gmra.mrb[0].mxu0 %v1269
        %v2841 = vpop.f32.mrb[0].mxu0
        %v2842 = vadd.f32 %v2641, %v2841
        %v2843 = vpop.f32.mrb[0].mxu0
        %v2844 = vpop.f32.mrb[0].mxu0
        %v2845 = vadd.f32 %v2644, %v2844
        %v2846 = vpop.f32.mrb[0].mxu0
        %2847 = vmatprep.mubr.bf16.mxu0 0
        %2848 = vmatmul.mubr.bf16.gmra.mrb[0].mxu0 %v1276
        %v2849 = vpop.f32.mrb[0].mxu0
        %v2850 = vadd.f32 %v2649, %v2849
        %v2851 = vpop.f32.mrb[0].mxu0
        %v2852 = vpop.f32.mrb[0].mxu0
        %v2853 = vadd.f32 %v2652, %v2852
        %v2854 = vpop.f32.mrb[0].mxu0
        %2855 = vmatprep.mubr.bf16.mxu0 0
        %2856 = vmatmul.mubr.bf16.gmra.mrb[0].mxu0 %v1283
        %v2857 = vpop.f32.mrb[0].mxu0
        %v2858 = vadd.f32 %v2657, %v2857
        %v2859 = vpop.f32.mrb[0].mxu0
        %v2860 = vpop.f32.mrb[0].mxu0
        %v2861 = vadd.f32 %v2660, %v2860
        %v2862 = vpop.f32.mrb[0].mxu0
        %2863 = vmatprep.mubr.bf16.mxu0 0
        %2864 = vmatmul.mubr.bf16.gmra.mrb[0].mxu0 %v1290
        %v2865 = vpop.f32.mrb[0].mxu0
        %v2866 = vadd.f32 %v2665, %v2865
        %v2867 = vpop.f32.mrb[0].mxu0
        %v2868 = vpop.f32.mrb[0].mxu0
        %v2869 = vadd.f32 %v2668, %v2868
        %v2870 = vpop.f32.mrb[0].mxu0
        %2871 = vmatprep.mubr.bf16.mxu0 0
        %2872 = vmatmul.mubr.bf16.gmra.mrb[0].mxu0 %v1297
        %v2873 = vpop.f32.mrb[0].mxu0
        %v2874 = vadd.f32 %v2673, %v2873
        %v2875 = vpop.f32.mrb[0].mxu0
        %v2876 = vpop.f32.mrb[0].mxu0
        %v2877 = vadd.f32 %v2676, %v2876
        %v2878 = vpop.f32.mrb[0].mxu0
        %2879 = vmatprep.mubr.bf16.mxu0 0
        %2880 = vmatmul.mubr.bf16.gmra.mrb[0].mxu0 %v1304
        %v2881 = vpop.f32.mrb[0].mxu0
        %v2882 = vadd.f32 %v2681, %v2881
        %v2883 = vpop.f32.mrb[0].mxu0
        %v2884 = vpop.f32.mrb[0].mxu0
        %v2885 = vadd.f32 %v2684, %v2884
        %v2886 = vpop.f32.mrb[0].mxu0
        %2887 = vmatprep.mubr.bf16.mxu0 0
        %2888 = vmatmul.mubr.bf16.gmra.mrb[0].mxu0 %v1311
        %v2889 = vpop.f32.mrb[0].mxu0
        %v2890 = vadd.f32 %v2689, %v2889
        %v2891 = vpop.f32.mrb[0].mxu0
        %v2892 = vpop.f32.mrb[0].mxu0
        %v2893 = vadd.f32 %v2692, %v2892
        %v2894 = vpop.f32.mrb[0].mxu0
        %2895 = vmatprep.mubr.bf16.mxu0 0
        %2896 = vmatmul.mubr.bf16.gmra.mrb[0].mxu0 %v1318
        %v2897 = vpop.f32.mrb[0].mxu0
        %v2898 = vadd.f32 %v2697, %v2897
        %v2899 = vpop.f32.mrb[0].mxu0
        %v2900 = vpop.f32.mrb[0].mxu0
        %v2901 = vadd.f32 %v2700, %v2900
        %v2902 = vpop.f32.mrb[0].mxu0
        %2903 = vmatprep.mubr.bf16.mxu0 0
        %2904 = vmatmul.mubr.bf16.gmra.mrb[0].mxu0 %v1323
        %v2905 = vpop.f32.mrb[0].mxu0
        %v2906 = vadd.f32 %v2705, %v2905
        %v2907 = vpop.f32.mrb[0].mxu0
        %v2908 = vpop.f32.mrb[0].mxu0
        %v2909 = vadd.f32 %v2708, %v2908
        %v2910 = vpop.f32.mrb[0].mxu0
        %2911 = vdwg.mxu0
        %v2912 = vmax.f32 %v2746, 0.0
        %v2913 = vmax.f32 %v2749, 0.0
        %v2914 = vmax.f32 %v2754, 0.0
        %v2915 = vmax.f32 %v2757, 0.0
        %v2916 = vmax.f32 %v2762, 0.0
        %v2917 = vmax.f32 %v2765, 0.0
        %v2918 = vmax.f32 %v2770, 0.0
        %v2919 = vmax.f32 %v2773, 0.0
        %v2920 = vmax.f32 %v2778, 0.0
        %v2921 = vmax.f32 %v2781, 0.0
        %v2922 = vmax.f32 %v2786, 0.0
        %v2923 = vmax.f32 %v2789, 0.0
        %v2924 = vmax.f32 %v2794, 0.0
        %v2925 = vmax.f32 %v2797, 0.0
        %v2926 = vmax.f32 %v2802, 0.0
        %v2927 = vmax.f32 %v2805, 0.0
        %v2928 = vmax.f32 %v2810, 0.0
        %v2929 = vmax.f32 %v2813, 0.0
        %v2930 = vmax.f32 %v2818, 0.0
        %v2931 = vmax.f32 %v2821, 0.0
        %v2932 = vmax.f32 %v2826, 0.0
        %v2933 = vmax.f32 %v2829, 0.0
        %v2934 = vmax.f32 %v2834, 0.0
        %v2935 = vmax.f32 %v2837, 0.0
        %v2936 = vmax.f32 %v2842, 0.0
        %v2937 = vmax.f32 %v2845, 0.0
        %v2938 = vmax.f32 %v2850, 0.0
        %v2939 = vmax.f32 %v2853, 0.0
        %v2940 = vmax.f32 %v2858, 0.0
        %v2941 = vmax.f32 %v2861, 0.0
        %v2942 = vmax.f32 %v2866, 0.0
        %v2943 = vmax.f32 %v2869, 0.0
        %v2944 = vmax.f32 %v2874, 0.0
        %v2945 = vmax.f32 %v2877, 0.0
        %v2946 = vmax.f32 %v2882, 0.0
        %v2947 = vmax.f32 %v2885, 0.0
        %v2948 = vmax.f32 %v2890, 0.0
        %v2949 = vmax.f32 %v2893, 0.0
        %v2950 = vmax.f32 %v2898, 0.0
        %v2951 = vmax.f32 %v2901, 0.0
        %v2952 = vmax.f32 %v2906, 0.0
        %v2953 = vmax.f32 %v2909, 0.0
        %2955 = vset.pattern.permute.xlu0 0
        %2956 = vperm.xlu0 %2955, %v579
        %v2957 = vpop.permute.xlu0 %2956
        %2960 = vset.pattern.permute.xlu0 0
        %2961 = vperm.xlu0 %2960, %v580
        %v2962 = vpop.permute.xlu0 %2961
        %2965 = vset.pattern.permute.xlu0 0
        %2966 = vperm.xlu0 %2965, %v581
        %v2967 = vpop.permute.xlu0 %2966
        %2970 = vset.pattern.permute.xlu0 0
        %2971 = vperm.xlu0 %2970, %v582
        %v2972 = vpop.permute.xlu0 %2971
        %2975 = vset.pattern.permute.xlu0 0
        %2976 = vperm.xlu0 %2975, %v583
        %v2977 = vpop.permute.xlu0 %2976
        %2980 = vset.pattern.permute.xlu0 0
        %2981 = vperm.xlu0 %2980, %v584
        %v2982 = vpop.permute.xlu0 %2981
        %2985 = vset.pattern.permute.xlu0 0
        %2986 = vperm.xlu0 %2985, %v585
        %v2987 = vpop.permute.xlu0 %2986
        %2990 = vset.pattern.permute.xlu0 0
        %2991 = vperm.xlu0 %2990, %v586
        %v2992 = vpop.permute.xlu0 %2991
        %2995 = vset.pattern.permute.xlu0 0
        %2996 = vperm.xlu0 %2995, %v587
        %v2997 = vpop.permute.xlu0 %2996
        %3000 = vset.pattern.permute.xlu0 0
        %3001 = vperm.xlu0 %3000, %v588
        %v3002 = vpop.permute.xlu0 %3001
        %3005 = vset.pattern.permute.xlu0 0
        %3006 = vperm.xlu0 %3005, %v589
        %v3007 = vpop.permute.xlu0 %3006
        %3010 = vset.pattern.permute.xlu0 0
        %3011 = vperm.xlu0 %3010, %v590
        %v3012 = vpop.permute.xlu0 %3011
        %3015 = vset.pattern.permute.xlu0 0
        %3016 = vperm.xlu0 %3015, %v591
        %v3017 = vpop.permute.xlu0 %3016
        %3020 = vset.pattern.permute.xlu0 0
        %3021 = vperm.xlu0 %3020, %v592
        %v3022 = vpop.permute.xlu0 %3021
        %3025 = vset.pattern.permute.xlu0 0
        %3026 = vperm.xlu0 %3025, %v593
        %v3027 = vpop.permute.xlu0 %3026
        %3030 = vset.pattern.permute.xlu0 0
        %3031 = vperm.xlu0 %3030, %v594
        %v3032 = vpop.permute.xlu0 %3031
        %3035 = vset.pattern.permute.xlu0 0
        %3036 = vperm.xlu0 %3035, %v595
        %v3037 = vpop.permute.xlu0 %3036
        %3040 = vset.pattern.permute.xlu0 0
        %3041 = vperm.xlu0 %3040, %v596
        %v3042 = vpop.permute.xlu0 %3041
        %3045 = vset.pattern.permute.xlu0 0
        %3046 = vperm.xlu0 %3045, %v597
        %v3047 = vpop.permute.xlu0 %3046
        %3050 = vset.pattern.permute.xlu0 0
        %3051 = vperm.xlu0 %3050, %v598
        %v3052 = vpop.permute.xlu0 %3051
        %3055 = vset.pattern.permute.xlu0 0
        %3056 = vperm.xlu0 %3055, %v599
        %v3057 = vpop.permute.xlu0 %3056
        %3060 = vset.pattern.permute.xlu0 0
        %3061 = vperm.xlu0 %3060, %v600
        %v3062 = vpop.permute.xlu0 %3061
        %3065 = vset.pattern.permute.xlu0 0
        %3066 = vperm.xlu0 %3065, %v601
        %v3067 = vpop.permute.xlu0 %3066
        %3070 = vset.pattern.permute.xlu0 0
        %3071 = vperm.xlu0 %3070, %v602
        %v3072 = vpop.permute.xlu0 %3071
        %3075 = vset.pattern.permute.xlu0 0
        %3076 = vperm.xlu0 %3075, %v603
        %v3077 = vpop.permute.xlu0 %3076
        %3080 = vset.pattern.permute.xlu0 0
        %3081 = vperm.xlu0 %3080, %v604
        %v3082 = vpop.permute.xlu0 %3081
        %3085 = vset.pattern.permute.xlu0 0
        %3086 = vperm.xlu0 %3085, %v605
        %v3087 = vpop.permute.xlu0 %3086
        %3090 = vset.pattern.permute.xlu0 0
        %3091 = vperm.xlu0 %3090, %v606
        %v3092 = vpop.permute.xlu0 %3091
        %3095 = vset.pattern.permute.xlu0 0
        %3096 = vperm.xlu0 %3095, %v607
        %v3097 = vpop.permute.xlu0 %3096
        %3100 = vset.pattern.permute.xlu0 0
        %3101 = vperm.xlu0 %3100, %v608
        %v3102 = vpop.permute.xlu0 %3101
        %3105 = vset.pattern.permute.xlu0 0
        %3106 = vperm.xlu0 %3105, %v609
        %v3107 = vpop.permute.xlu0 %3106
        %3110 = vset.pattern.permute.xlu0 0
        %3111 = vperm.xlu0 %3110, %v610
        %v3112 = vpop.permute.xlu0 %3111
        %3115 = vset.pattern.permute.xlu0 0
        %3116 = vperm.xlu0 %3115, %v611
        %v3117 = vpop.permute.xlu0 %3116
        %3120 = vset.pattern.permute.xlu0 0
        %3121 = vperm.xlu0 %3120, %v612
        %v3122 = vpop.permute.xlu0 %3121
        %3125 = vset.pattern.permute.xlu0 0
        %3126 = vperm.xlu0 %3125, %v613
        %v3127 = vpop.permute.xlu0 %3126
        %3130 = vset.pattern.permute.xlu0 0
        %3131 = vperm.xlu0 %3130, %v614
        %v3132 = vpop.permute.xlu0 %3131
        %3135 = vset.pattern.permute.xlu0 0
        %3136 = vperm.xlu0 %3135, %v615
        %v3137 = vpop.permute.xlu0 %3136
        %3140 = vset.pattern.permute.xlu0 0
        %3141 = vperm.xlu0 %3140, %v616
        %v3142 = vpop.permute.xlu0 %3141
        %3145 = vset.pattern.permute.xlu0 0
        %3146 = vperm.xlu0 %3145, %v617
        %v3147 = vpop.permute.xlu0 %3146
        %3150 = vset.pattern.permute.xlu0 0
        %3151 = vperm.xlu0 %3150, %v618
        %v3152 = vpop.permute.xlu0 %3151
        %3155 = vset.pattern.permute.xlu0 0
        %3156 = vperm.xlu0 %3155, %v619
        %v3157 = vpop.permute.xlu0 %3156
        %3160 = vset.pattern.permute.xlu0 0
        %3161 = vperm.xlu0 %3160, %v620
        %v3162 = vpop.permute.xlu0 %3161
        %v3164 = vmul.f32 %v2912, %v2957
        %v3165 = vmul.f32 %v2913, %v2962
        %v3166 = vmul.f32 %v2914, %v2967
        %v3167 = vmul.f32 %v2915, %v2972
        %v3168 = vmul.f32 %v2916, %v2977
        %v3169 = vmul.f32 %v2917, %v2982
        %v3170 = vmul.f32 %v2918, %v2987
        %v3171 = vmul.f32 %v2919, %v2992
        %v3172 = vmul.f32 %v2920, %v2997
        %v3173 = vmul.f32 %v2921, %v3002
        %v3174 = vmul.f32 %v2922, %v3007
        %v3175 = vmul.f32 %v2923, %v3012
        %v3176 = vmul.f32 %v2924, %v3017
        %v3177 = vmul.f32 %v2925, %v3022
        %v3178 = vmul.f32 %v2926, %v3027
        %v3179 = vmul.f32 %v2927, %v3032
        %v3180 = vmul.f32 %v2928, %v3037
        %v3181 = vmul.f32 %v2929, %v3042
        %v3182 = vmul.f32 %v2930, %v3047
        %v3183 = vmul.f32 %v2931, %v3052
        %v3184 = vmul.f32 %v2932, %v3057
        %v3185 = vmul.f32 %v2933, %v3062
        %v3186 = vmul.f32 %v2934, %v3067
        %v3187 = vmul.f32 %v2935, %v3072
        %v3188 = vmul.f32 %v2936, %v3077
        %v3189 = vmul.f32 %v2937, %v3082
        %v3190 = vmul.f32 %v2938, %v3087
        %v3191 = vmul.f32 %v2939, %v3092
        %v3192 = vmul.f32 %v2940, %v3097
        %v3193 = vmul.f32 %v2941, %v3102
        %v3194 = vmul.f32 %v2942, %v3107
        %v3195 = vmul.f32 %v2943, %v3112
        %v3196 = vmul.f32 %v2944, %v3117
        %v3197 = vmul.f32 %v2945, %v3122
        %v3198 = vmul.f32 %v2946, %v3127
        %v3199 = vmul.f32 %v2947, %v3132
        %v3200 = vmul.f32 %v2948, %v3137
        %v3201 = vmul.f32 %v2949, %v3142
        %v3202 = vmul.f32 %v2950, %v3147
        %v3203 = vmul.f32 %v2951, %v3152
        %v3204 = vmul.f32 %v2952, %v3157
        %v3205 = vmul.f32 %v2953, %v3162
        %v3206 = vrot.slane %v3164, 5
        %v3207 = vrot.slane %v3165, 5
        %v3208 = vrot.slane %v3166, 5
        %v3209 = vrot.slane %v3167, 5
        %v3210 = vrot.slane %v3168, 5
        %v3211 = vrot.slane %v3169, 5
        %v3212 = vrot.slane %v3170, 5
        %v3213 = vrot.slane %v3171, 5
        %v3214 = vrot.slane %v3172, 5
        %v3215 = vrot.slane %v3173, 5
        %v3216 = vrot.slane %v3174, 5
        %v3217 = vrot.slane %v3175, 5
        %v3218 = vrot.slane %v3176, 5
        %v3219 = vrot.slane %v3177, 5
        %v3220 = vrot.slane %v3178, 5
        %v3221 = vrot.slane %v3179, 5
        %v3222 = vrot.slane %v3180, 5
        %v3223 = vrot.slane %v3181, 5
        %v3224 = vrot.slane %v3182, 5
        %v3225 = vrot.slane %v3183, 5
        %v3226 = vrot.slane %v3184, 5
        %v3227 = vrot.slane %v3185, 5
        %v3228 = vrot.slane %v3186, 5
        %v3229 = vrot.slane %v3187, 5
        %v3230 = vrot.slane %v3188, 5
        %v3231 = vrot.slane %v3189, 5
        %v3232 = vrot.slane %v3190, 5
        %v3233 = vrot.slane %v3191, 5
        %v3234 = vrot.slane %v3192, 5
        %v3235 = vrot.slane %v3193, 5
        %v3236 = vrot.slane %v3194, 5
        %v3237 = vrot.slane %v3195, 5
        %v3238 = vrot.slane %v3196, 5
        %v3239 = vrot.slane %v3197, 5
        %v3240 = vrot.slane %v3198, 5
        %v3241 = vrot.slane %v3199, 5
        %v3242 = vrot.slane %v3200, 5
        %v3243 = vrot.slane %v3201, 5
        %v3244 = vrot.slane %v3202, 5
        %v3245 = vrot.slane %v3203, 5
        %v3246 = vrot.slane %v3204, 5
        %v3247 = vrot.slane %v3205, 5
        %v3248 = vsel %vm709, %v3246, %v3247
        %v3249 = vsel %vm709, %v3245, %v3246
        %v3250 = vsel %vm709, %v3244, %v3245
        %v3251 = vsel %vm709, %v3243, %v3244
        %v3252 = vsel %vm709, %v3242, %v3243
        %v3253 = vsel %vm709, %v3241, %v3242
        %v3254 = vsel %vm709, %v3240, %v3241
        %v3255 = vsel %vm709, %v3239, %v3240
        %v3256 = vsel %vm709, %v3238, %v3239
        %v3257 = vsel %vm709, %v3237, %v3238
        %v3258 = vsel %vm709, %v3236, %v3237
        %v3259 = vsel %vm709, %v3235, %v3236
        %v3260 = vsel %vm709, %v3234, %v3235
        %v3261 = vsel %vm709, %v3233, %v3234
        %v3262 = vsel %vm709, %v3232, %v3233
        %v3263 = vsel %vm709, %v3231, %v3232
        %v3264 = vsel %vm709, %v3230, %v3231
        %v3265 = vsel %vm709, %v3229, %v3230
        %v3266 = vsel %vm709, %v3228, %v3229
        %v3267 = vsel %vm709, %v3227, %v3228
        %v3268 = vsel %vm709, %v3226, %v3227
        %v3269 = vsel %vm709, %v3225, %v3226
        %v3270 = vsel %vm709, %v3224, %v3225
        %v3271 = vsel %vm709, %v3223, %v3224
        %v3272 = vsel %vm709, %v3222, %v3223
        %v3273 = vsel %vm709, %v3221, %v3222
        %v3274 = vsel %vm709, %v3220, %v3221
        %v3275 = vsel %vm709, %v3219, %v3220
        %v3276 = vsel %vm709, %v3218, %v3219
        %v3277 = vsel %vm709, %v3217, %v3218
        %v3278 = vsel %vm709, %v3216, %v3217
        %v3279 = vsel %vm709, %v3215, %v3216
        %v3280 = vsel %vm709, %v3214, %v3215
        %v3281 = vsel %vm709, %v3213, %v3214
        %v3282 = vsel %vm709, %v3212, %v3213
        %v3283 = vsel %vm709, %v3211, %v3212
        %v3284 = vsel %vm709, %v3210, %v3211
        %v3285 = vsel %vm709, %v3209, %v3210
        %v3286 = vsel %vm709, %v3208, %v3209
        %v3287 = vsel %vm709, %v3207, %v3208
        %v3288 = vsel %vm709, %v3206, %v3207
        %v3289 = vsel %vm709, %v3247, %v3206
        %v3290 = vrot.slane %v3164, 6
        %v3291 = vrot.slane %v3165, 6
        %v3292 = vrot.slane %v3166, 6
        %v3293 = vrot.slane %v3167, 6
        %v3294 = vrot.slane %v3168, 6
        %v3295 = vrot.slane %v3169, 6
        %v3296 = vrot.slane %v3170, 6
        %v3297 = vrot.slane %v3171, 6
        %v3298 = vrot.slane %v3172, 6
        %v3299 = vrot.slane %v3173, 6
        %v3300 = vrot.slane %v3174, 6
        %v3301 = vrot.slane %v3175, 6
        %v3302 = vrot.slane %v3176, 6
        %v3303 = vrot.slane %v3177, 6
        %v3304 = vrot.slane %v3178, 6
        %v3305 = vrot.slane %v3179, 6
        %v3306 = vrot.slane %v3180, 6
        %v3307 = vrot.slane %v3181, 6
        %v3308 = vrot.slane %v3182, 6
        %v3309 = vrot.slane %v3183, 6
        %v3310 = vrot.slane %v3184, 6
        %v3311 = vrot.slane %v3185, 6
        %v3312 = vrot.slane %v3186, 6
        %v3313 = vrot.slane %v3187, 6
        %v3314 = vrot.slane %v3188, 6
        %v3315 = vrot.slane %v3189, 6
        %v3316 = vrot.slane %v3190, 6
        %v3317 = vrot.slane %v3191, 6
        %v3318 = vrot.slane %v3192, 6
        %v3319 = vrot.slane %v3193, 6
        %v3320 = vrot.slane %v3194, 6
        %v3321 = vrot.slane %v3195, 6
        %v3322 = vrot.slane %v3196, 6
        %v3323 = vrot.slane %v3197, 6
        %v3324 = vrot.slane %v3198, 6
        %v3325 = vrot.slane %v3199, 6
        %v3326 = vrot.slane %v3200, 6
        %v3327 = vrot.slane %v3201, 6
        %v3328 = vrot.slane %v3202, 6
        %v3329 = vrot.slane %v3203, 6
        %v3330 = vrot.slane %v3204, 6
        %v3331 = vrot.slane %v3205, 6
        %v3332 = vsel %vm794, %v3330, %v3331
        %v3333 = vsel %vm794, %v3329, %v3330
        %v3334 = vsel %vm794, %v3328, %v3329
        %v3335 = vsel %vm794, %v3327, %v3328
        %v3336 = vsel %vm794, %v3326, %v3327
        %v3337 = vsel %vm794, %v3325, %v3326
        %v3338 = vsel %vm794, %v3324, %v3325
        %v3339 = vsel %vm794, %v3323, %v3324
        %v3340 = vsel %vm794, %v3322, %v3323
        %v3341 = vsel %vm794, %v3321, %v3322
        %v3342 = vsel %vm794, %v3320, %v3321
        %v3343 = vsel %vm794, %v3319, %v3320
        %v3344 = vsel %vm794, %v3318, %v3319
        %v3345 = vsel %vm794, %v3317, %v3318
        %v3346 = vsel %vm794, %v3316, %v3317
        %v3347 = vsel %vm794, %v3315, %v3316
        %v3348 = vsel %vm794, %v3314, %v3315
        %v3349 = vsel %vm794, %v3313, %v3314
        %v3350 = vsel %vm794, %v3312, %v3313
        %v3351 = vsel %vm794, %v3311, %v3312
        %v3352 = vsel %vm794, %v3310, %v3311
        %v3353 = vsel %vm794, %v3309, %v3310
        %v3354 = vsel %vm794, %v3308, %v3309
        %v3355 = vsel %vm794, %v3307, %v3308
        %v3356 = vsel %vm794, %v3306, %v3307
        %v3357 = vsel %vm794, %v3305, %v3306
        %v3358 = vsel %vm794, %v3304, %v3305
        %v3359 = vsel %vm794, %v3303, %v3304
        %v3360 = vsel %vm794, %v3302, %v3303
        %v3361 = vsel %vm794, %v3301, %v3302
        %v3362 = vsel %vm794, %v3300, %v3301
        %v3363 = vsel %vm794, %v3299, %v3300
        %v3364 = vsel %vm794, %v3298, %v3299
        %v3365 = vsel %vm794, %v3297, %v3298
        %v3366 = vsel %vm794, %v3296, %v3297
        %v3367 = vsel %vm794, %v3295, %v3296
        %v3368 = vsel %vm794, %v3294, %v3295
        %v3369 = vsel %vm794, %v3293, %v3294
        %v3370 = vsel %vm794, %v3292, %v3293
        %v3371 = vsel %vm794, %v3291, %v3292
        %v3372 = vsel %vm794, %v3290, %v3291
        %v3373 = vsel %vm794, %v3331, %v3290
        %v3374 = vrot.slane %v3164, 7
        %v3375 = vrot.slane %v3165, 7
        %v3376 = vrot.slane %v3166, 7
        %v3377 = vrot.slane %v3167, 7
        %v3378 = vrot.slane %v3168, 7
        %v3379 = vrot.slane %v3169, 7
        %v3380 = vrot.slane %v3170, 7
        %v3381 = vrot.slane %v3171, 7
        %v3382 = vrot.slane %v3172, 7
        %v3383 = vrot.slane %v3173, 7
        %v3384 = vrot.slane %v3174, 7
        %v3385 = vrot.slane %v3175, 7
        %v3386 = vrot.slane %v3176, 7
        %v3387 = vrot.slane %v3177, 7
        %v3388 = vrot.slane %v3178, 7
        %v3389 = vrot.slane %v3179, 7
        %v3390 = vrot.slane %v3180, 7
        %v3391 = vrot.slane %v3181, 7
        %v3392 = vrot.slane %v3182, 7
        %v3393 = vrot.slane %v3183, 7
        %v3394 = vrot.slane %v3184, 7
        %v3395 = vrot.slane %v3185, 7
        %v3396 = vrot.slane %v3186, 7
        %v3397 = vrot.slane %v3187, 7
        %v3398 = vrot.slane %v3188, 7
        %v3399 = vrot.slane %v3189, 7
        %v3400 = vrot.slane %v3190, 7
        %v3401 = vrot.slane %v3191, 7
        %v3402 = vrot.slane %v3192, 7
        %v3403 = vrot.slane %v3193, 7
        %v3404 = vrot.slane %v3194, 7
        %v3405 = vrot.slane %v3195, 7
        %v3406 = vrot.slane %v3196, 7
        %v3407 = vrot.slane %v3197, 7
        %v3408 = vrot.slane %v3198, 7
        %v3409 = vrot.slane %v3199, 7
        %v3410 = vrot.slane %v3200, 7
        %v3411 = vrot.slane %v3201, 7
        %v3412 = vrot.slane %v3202, 7
        %v3413 = vrot.slane %v3203, 7
        %v3414 = vrot.slane %v3204, 7
        %v3415 = vrot.slane %v3205, 7
        %v3416 = vsel %vm879, %v3414, %v3415
        %v3417 = vsel %vm879, %v3413, %v3414
        %v3418 = vsel %vm879, %v3412, %v3413
        %v3419 = vsel %vm879, %v3411, %v3412
        %v3420 = vsel %vm879, %v3410, %v3411
        %v3421 = vsel %vm879, %v3409, %v3410
        %v3422 = vsel %vm879, %v3408, %v3409
        %v3423 = vsel %vm879, %v3407, %v3408
        %v3424 = vsel %vm879, %v3406, %v3407
        %v3425 = vsel %vm879, %v3405, %v3406
        %v3426 = vsel %vm879, %v3404, %v3405
        %v3427 = vsel %vm879, %v3403, %v3404
        %v3428 = vsel %vm879, %v3402, %v3403
        %v3429 = vsel %vm879, %v3401, %v3402
        %v3430 = vsel %vm879, %v3400, %v3401
        %v3431 = vsel %vm879, %v3399, %v3400
        %v3432 = vsel %vm879, %v3398, %v3399
        %v3433 = vsel %vm879, %v3397, %v3398
        %v3434 = vsel %vm879, %v3396, %v3397
        %v3435 = vsel %vm879, %v3395, %v3396
        %v3436 = vsel %vm879, %v3394, %v3395
        %v3437 = vsel %vm879, %v3393, %v3394
        %v3438 = vsel %vm879, %v3392, %v3393
        %v3439 = vsel %vm879, %v3391, %v3392
        %v3440 = vsel %vm879, %v3390, %v3391
        %v3441 = vsel %vm879, %v3389, %v3390
        %v3442 = vsel %vm879, %v3388, %v3389
        %v3443 = vsel %vm879, %v3387, %v3388
        %v3444 = vsel %vm879, %v3386, %v3387
        %v3445 = vsel %vm879, %v3385, %v3386
        %v3446 = vsel %vm879, %v3384, %v3385
        %v3447 = vsel %vm879, %v3383, %v3384
        %v3448 = vsel %vm879, %v3382, %v3383
        %v3449 = vsel %vm879, %v3381, %v3382
        %v3450 = vsel %vm879, %v3380, %v3381
        %v3451 = vsel %vm879, %v3379, %v3380
        %v3452 = vsel %vm879, %v3378, %v3379
        %v3453 = vsel %vm879, %v3377, %v3378
        %v3454 = vsel %vm879, %v3376, %v3377
        %v3455 = vsel %vm879, %v3375, %v3376
        %v3456 = vsel %vm879, %v3374, %v3375
        %v3457 = vsel %vm879, %v3415, %v3374
        %v3458 = vrot.slane %v3164, 1
        %v3459 = vrot.slane %v3165, 1
        %v3460 = vrot.slane %v3166, 1
        %v3461 = vrot.slane %v3167, 1
        %v3462 = vrot.slane %v3168, 1
        %v3463 = vrot.slane %v3169, 1
        %v3464 = vrot.slane %v3170, 1
        %v3465 = vrot.slane %v3171, 1
        %v3466 = vrot.slane %v3172, 1
        %v3467 = vrot.slane %v3173, 1
        %v3468 = vrot.slane %v3174, 1
        %v3469 = vrot.slane %v3175, 1
        %v3470 = vrot.slane %v3176, 1
        %v3471 = vrot.slane %v3177, 1
        %v3472 = vrot.slane %v3178, 1
        %v3473 = vrot.slane %v3179, 1
        %v3474 = vrot.slane %v3180, 1
        %v3475 = vrot.slane %v3181, 1
        %v3476 = vrot.slane %v3182, 1
        %v3477 = vrot.slane %v3183, 1
        %v3478 = vrot.slane %v3184, 1
        %v3479 = vrot.slane %v3185, 1
        %v3480 = vrot.slane %v3186, 1
        %v3481 = vrot.slane %v3187, 1
        %v3482 = vrot.slane %v3188, 1
        %v3483 = vrot.slane %v3189, 1
        %v3484 = vrot.slane %v3190, 1
        %v3485 = vrot.slane %v3191, 1
        %v3486 = vrot.slane %v3192, 1
        %v3487 = vrot.slane %v3193, 1
        %v3488 = vrot.slane %v3194, 1
        %v3489 = vrot.slane %v3195, 1
        %v3490 = vrot.slane %v3196, 1
        %v3491 = vrot.slane %v3197, 1
        %v3492 = vrot.slane %v3198, 1
        %v3493 = vrot.slane %v3199, 1
        %v3494 = vrot.slane %v3200, 1
        %v3495 = vrot.slane %v3201, 1
        %v3496 = vrot.slane %v3202, 1
        %v3497 = vrot.slane %v3203, 1
        %v3498 = vrot.slane %v3204, 1
        %v3499 = vrot.slane %v3205, 1
        %v3500 = vsel %vm964, %v3498, %v3499
        %v3501 = vsel %vm964, %v3497, %v3498
        %v3502 = vsel %vm964, %v3496, %v3497
        %v3503 = vsel %vm964, %v3495, %v3496
        %v3504 = vsel %vm964, %v3494, %v3495
        %v3505 = vsel %vm964, %v3493, %v3494
        %v3506 = vsel %vm964, %v3492, %v3493
        %v3507 = vsel %vm964, %v3491, %v3492
        %v3508 = vsel %vm964, %v3490, %v3491
        %v3509 = vsel %vm964, %v3489, %v3490
        %v3510 = vsel %vm964, %v3488, %v3489
        %v3511 = vsel %vm964, %v3487, %v3488
        %v3512 = vsel %vm964, %v3486, %v3487
        %v3513 = vsel %vm964, %v3485, %v3486
        %v3514 = vsel %vm964, %v3484, %v3485
        %v3515 = vsel %vm964, %v3483, %v3484
        %v3516 = vsel %vm964, %v3482, %v3483
        %v3517 = vsel %vm964, %v3481, %v3482
        %v3518 = vsel %vm964, %v3480, %v3481
        %v3519 = vsel %vm964, %v3479, %v3480
        %v3520 = vsel %vm964, %v3478, %v3479
        %v3521 = vsel %vm964, %v3477, %v3478
        %v3522 = vsel %vm964, %v3476, %v3477
        %v3523 = vsel %vm964, %v3475, %v3476
        %v3524 = vsel %vm964, %v3474, %v3475
        %v3525 = vsel %vm964, %v3473, %v3474
        %v3526 = vsel %vm964, %v3472, %v3473
        %v3527 = vsel %vm964, %v3471, %v3472
        %v3528 = vsel %vm964, %v3470, %v3471
        %v3529 = vsel %vm964, %v3469, %v3470
        %v3530 = vsel %vm964, %v3468, %v3469
        %v3531 = vsel %vm964, %v3467, %v3468
        %v3532 = vsel %vm964, %v3466, %v3467
        %v3533 = vsel %vm964, %v3465, %v3466
        %v3534 = vsel %vm964, %v3464, %v3465
        %v3535 = vsel %vm964, %v3463, %v3464
        %v3536 = vsel %vm964, %v3462, %v3463
        %v3537 = vsel %vm964, %v3461, %v3462
        %v3538 = vsel %vm964, %v3460, %v3461
        %v3539 = vsel %vm964, %v3459, %v3460
        %v3540 = vsel %vm964, %v3458, %v3459
        %v3541 = vsel %vm964, %v3499, %v3458
        %v3542 = vrot.slane %v3164, 2
        %v3543 = vrot.slane %v3165, 2
        %v3544 = vrot.slane %v3166, 2
        %v3545 = vrot.slane %v3167, 2
        %v3546 = vrot.slane %v3168, 2
        %v3547 = vrot.slane %v3169, 2
        %v3548 = vrot.slane %v3170, 2
        %v3549 = vrot.slane %v3171, 2
        %v3550 = vrot.slane %v3172, 2
        %v3551 = vrot.slane %v3173, 2
        %v3552 = vrot.slane %v3174, 2
        %v3553 = vrot.slane %v3175, 2
        %v3554 = vrot.slane %v3176, 2
        %v3555 = vrot.slane %v3177, 2
        %v3556 = vrot.slane %v3178, 2
        %v3557 = vrot.slane %v3179, 2
        %v3558 = vrot.slane %v3180, 2
        %v3559 = vrot.slane %v3181, 2
        %v3560 = vrot.slane %v3182, 2
        %v3561 = vrot.slane %v3183, 2
        %v3562 = vrot.slane %v3184, 2
        %v3563 = vrot.slane %v3185, 2
        %v3564 = vrot.slane %v3186, 2
        %v3565 = vrot.slane %v3187, 2
        %v3566 = vrot.slane %v3188, 2
        %v3567 = vrot.slane %v3189, 2
        %v3568 = vrot.slane %v3190, 2
        %v3569 = vrot.slane %v3191, 2
        %v3570 = vrot.slane %v3192, 2
        %v3571 = vrot.slane %v3193, 2
        %v3572 = vrot.slane %v3194, 2
        %v3573 = vrot.slane %v3195, 2
        %v3574 = vrot.slane %v3196, 2
        %v3575 = vrot.slane %v3197, 2
        %v3576 = vrot.slane %v3198, 2
        %v3577 = vrot.slane %v3199, 2
        %v3578 = vrot.slane %v3200, 2
        %v3579 = vrot.slane %v3201, 2
        %v3580 = vrot.slane %v3202, 2
        %v3581 = vrot.slane %v3203, 2
        %v3582 = vrot.slane %v3204, 2
        %v3583 = vrot.slane %v3205, 2
        %v3584 = vsel %vm1049, %v3582, %v3583
        %v3585 = vsel %vm1049, %v3581, %v3582
        %v3586 = vsel %vm1049, %v3580, %v3581
        %v3587 = vsel %vm1049, %v3579, %v3580
        %v3588 = vsel %vm1049, %v3578, %v3579
        %v3589 = vsel %vm1049, %v3577, %v3578
        %v3590 = vsel %vm1049, %v3576, %v3577
        %v3591 = vsel %vm1049, %v3575, %v3576
        %v3592 = vsel %vm1049, %v3574, %v3575
        %v3593 = vsel %vm1049, %v3573, %v3574
        %v3594 = vsel %vm1049, %v3572, %v3573
        %v3595 = vsel %vm1049, %v3571, %v3572
        %v3596 = vsel %vm1049, %v3570, %v3571
        %v3597 = vsel %vm1049, %v3569, %v3570
        %v3598 = vsel %vm1049, %v3568, %v3569
        %v3599 = vsel %vm1049, %v3567, %v3568
        %v3600 = vsel %vm1049, %v3566, %v3567
        %v3601 = vsel %vm1049, %v3565, %v3566
        %v3602 = vsel %vm1049, %v3564, %v3565
        %v3603 = vsel %vm1049, %v3563, %v3564
        %v3604 = vsel %vm1049, %v3562, %v3563
        %v3605 = vsel %vm1049, %v3561, %v3562
        %v3606 = vsel %vm1049, %v3560, %v3561
        %v3607 = vsel %vm1049, %v3559, %v3560
        %v3608 = vsel %vm1049, %v3558, %v3559
        %v3609 = vsel %vm1049, %v3557, %v3558
        %v3610 = vsel %vm1049, %v3556, %v3557
        %v3611 = vsel %vm1049, %v3555, %v3556
        %v3612 = vsel %vm1049, %v3554, %v3555
        %v3613 = vsel %vm1049, %v3553, %v3554
        %v3614 = vsel %vm1049, %v3552, %v3553
        %v3615 = vsel %vm1049, %v3551, %v3552
        %v3616 = vsel %vm1049, %v3550, %v3551
        %v3617 = vsel %vm1049, %v3549, %v3550
        %v3618 = vsel %vm1049, %v3548, %v3549
        %v3619 = vsel %vm1049, %v3547, %v3548
        %v3620 = vsel %vm1049, %v3546, %v3547
        %v3621 = vsel %vm1049, %v3545, %v3546
        %v3622 = vsel %vm1049, %v3544, %v3545
        %v3623 = vsel %vm1049, %v3543, %v3544
        %v3624 = vsel %vm1049, %v3542, %v3543
        %v3625 = vsel %vm1049, %v3583, %v3542
        %v3626 = vrot.slane %v3164, 3
        %v3627 = vrot.slane %v3165, 3
        %v3628 = vrot.slane %v3166, 3
        %v3629 = vrot.slane %v3167, 3
        %v3630 = vrot.slane %v3168, 3
        %v3631 = vrot.slane %v3169, 3
        %v3632 = vrot.slane %v3170, 3
        %v3633 = vrot.slane %v3171, 3
        %v3634 = vrot.slane %v3172, 3
        %v3635 = vrot.slane %v3173, 3
        %v3636 = vrot.slane %v3174, 3
        %v3637 = vrot.slane %v3175, 3
        %v3638 = vrot.slane %v3176, 3
        %v3639 = vrot.slane %v3177, 3
        %v3640 = vrot.slane %v3178, 3
        %v3641 = vrot.slane %v3179, 3
        %v3642 = vrot.slane %v3180, 3
        %v3643 = vrot.slane %v3181, 3
        %v3644 = vrot.slane %v3182, 3
        %v3645 = vrot.slane %v3183, 3
        %v3646 = vrot.slane %v3184, 3
        %v3647 = vrot.slane %v3185, 3
        %v3648 = vrot.slane %v3186, 3
        %v3649 = vrot.slane %v3187, 3
        %v3650 = vrot.slane %v3188, 3
        %v3651 = vrot.slane %v3189, 3
        %v3652 = vrot.slane %v3190, 3
        %v3653 = vrot.slane %v3191, 3
        %v3654 = vrot.slane %v3192, 3
        %v3655 = vrot.slane %v3193, 3
        %v3656 = vrot.slane %v3194, 3
        %v3657 = vrot.slane %v3195, 3
        %v3658 = vrot.slane %v3196, 3
        %v3659 = vrot.slane %v3197, 3
        %v3660 = vrot.slane %v3198, 3
        %v3661 = vrot.slane %v3199, 3
        %v3662 = vrot.slane %v3200, 3
        %v3663 = vrot.slane %v3201, 3
        %v3664 = vrot.slane %v3202, 3
        %v3665 = vrot.slane %v3203, 3
        %v3666 = vrot.slane %v3204, 3
        %v3667 = vrot.slane %v3205, 3
        %v3668 = vsel %vm1134, %v3666, %v3667
        %v3669 = vsel %vm1134, %v3665, %v3666
        %v3670 = vsel %vm1134, %v3664, %v3665
        %v3671 = vsel %vm1134, %v3663, %v3664
        %v3672 = vsel %vm1134, %v3662, %v3663
        %v3673 = vsel %vm1134, %v3661, %v3662
        %v3674 = vsel %vm1134, %v3660, %v3661
        %v3675 = vsel %vm1134, %v3659, %v3660
        %v3676 = vsel %vm1134, %v3658, %v3659
        %v3677 = vsel %vm1134, %v3657, %v3658
        %v3678 = vsel %vm1134, %v3656, %v3657
        %v3679 = vsel %vm1134, %v3655, %v3656
        %v3680 = vsel %vm1134, %v3654, %v3655
        %v3681 = vsel %vm1134, %v3653, %v3654
        %v3682 = vsel %vm1134, %v3652, %v3653
        %v3683 = vsel %vm1134, %v3651, %v3652
        %v3684 = vsel %vm1134, %v3650, %v3651
        %v3685 = vsel %vm1134, %v3649, %v3650
        %v3686 = vsel %vm1134, %v3648, %v3649
        %v3687 = vsel %vm1134, %v3647, %v3648
        %v3688 = vsel %vm1134, %v3646, %v3647
        %v3689 = vsel %vm1134, %v3645, %v3646
        %v3690 = vsel %vm1134, %v3644, %v3645
        %v3691 = vsel %vm1134, %v3643, %v3644
        %v3692 = vsel %vm1134, %v3642, %v3643
        %v3693 = vsel %vm1134, %v3641, %v3642
        %v3694 = vsel %vm1134, %v3640, %v3641
        %v3695 = vsel %vm1134, %v3639, %v3640
        %v3696 = vsel %vm1134, %v3638, %v3639
        %v3697 = vsel %vm1134, %v3637, %v3638
        %v3698 = vsel %vm1134, %v3636, %v3637
        %v3699 = vsel %vm1134, %v3635, %v3636
        %v3700 = vsel %vm1134, %v3634, %v3635
        %v3701 = vsel %vm1134, %v3633, %v3634
        %v3702 = vsel %vm1134, %v3632, %v3633
        %v3703 = vsel %vm1134, %v3631, %v3632
        %v3704 = vsel %vm1134, %v3630, %v3631
        %v3705 = vsel %vm1134, %v3629, %v3630
        %v3706 = vsel %vm1134, %v3628, %v3629
        %v3707 = vsel %vm1134, %v3627, %v3628
        %v3708 = vsel %vm1134, %v3626, %v3627
        %v3709 = vsel %vm1134, %v3667, %v3626
        %v3710 = vpack.c.bf16 %v3248, %v3249
        %v3711 = vpack.c.bf16 %v3332, %v3333
        %v3712 = vpack.c.bf16 %v3416, %v3417
        %v3713 = vpack.c.bf16 %v3456, %v3457
        %v3714 = vpack.c.bf16 %v3165, %v3164
        %v3715 = vpack.c.bf16 %v3539, %v3540
        %v3716 = vpack.c.bf16 %v3537, %v3538
        %v3717 = vpack.c.bf16 %v3621, %v3622
        %v3718 = vpack.c.bf16 %v3705, %v3706
        %v3719 = vpack.c.bf16 %v3288, %v3289
        %v3720 = vpack.c.bf16 %v3372, %v3373
        %v3721 = vpack.c.bf16 %v3454, %v3455
        %v3722 = vpack.c.bf16 %v3167, %v3166
        %v3723 = vpack.c.bf16 %v3535, %v3536
        %v3724 = vpack.c.bf16 %v3619, %v3620
        %v3725 = vpack.c.bf16 %v3703, %v3704
        %v3726 = vpack.c.bf16 %v3286, %v3287
        %v3727 = vpack.c.bf16 %v3370, %v3371
        %v3728 = vpack.c.bf16 %v3452, %v3453
        %v3729 = vpack.c.bf16 %v3169, %v3168
        %v3730 = vpack.c.bf16 %v3533, %v3534
        %v3731 = vpack.c.bf16 %v3617, %v3618
        %v3732 = vpack.c.bf16 %v3701, %v3702
        %v3733 = vpack.c.bf16 %v3284, %v3285
        %v3734 = vpack.c.bf16 %v3368, %v3369
        %v3735 = vpack.c.bf16 %v3450, %v3451
        %v3736 = vpack.c.bf16 %v3171, %v3170
        %v3737 = vpack.c.bf16 %v3531, %v3532
        %v3738 = vpack.c.bf16 %v3615, %v3616
        %v3739 = vpack.c.bf16 %v3699, %v3700
        %v3740 = vpack.c.bf16 %v3282, %v3283
        %v3741 = vpack.c.bf16 %v3366, %v3367
        %v3742 = vpack.c.bf16 %v3448, %v3449
        %v3743 = vpack.c.bf16 %v3173, %v3172
        %v3744 = vpack.c.bf16 %v3529, %v3530
        %v3745 = vpack.c.bf16 %v3613, %v3614
        %v3746 = vpack.c.bf16 %v3697, %v3698
        %v3747 = vpack.c.bf16 %v3280, %v3281
        %v3748 = vpack.c.bf16 %v3364, %v3365
        %v3749 = vpack.c.bf16 %v3446, %v3447
        %v3750 = vpack.c.bf16 %v3175, %v3174
        %v3751 = vpack.c.bf16 %v3527, %v3528
        %v3752 = vpack.c.bf16 %v3611, %v3612
        %v3753 = vpack.c.bf16 %v3695, %v3696
        %v3754 = vpack.c.bf16 %v3278, %v3279
        %v3755 = vpack.c.bf16 %v3362, %v3363
        %v3756 = vpack.c.bf16 %v3444, %v3445
        %v3757 = vpack.c.bf16 %v3177, %v3176
        %v3758 = vpack.c.bf16 %v3525, %v3526
        %v3759 = vpack.c.bf16 %v3609, %v3610
        %v3760 = vpack.c.bf16 %v3693, %v3694
        %v3761 = vpack.c.bf16 %v3276, %v3277
        %v3762 = vpack.c.bf16 %v3360, %v3361
        %v3763 = vpack.c.bf16 %v3442, %v3443
        %v3764 = vpack.c.bf16 %v3179, %v3178
        %v3765 = vpack.c.bf16 %v3523, %v3524
        %v3766 = vpack.c.bf16 %v3607, %v3608
        %v3767 = vpack.c.bf16 %v3691, %v3692
        %v3768 = vpack.c.bf16 %v3274, %v3275
        %v3769 = vpack.c.bf16 %v3358, %v3359
        %v3770 = vpack.c.bf16 %v3440, %v3441
        %v3771 = vpack.c.bf16 %v3181, %v3180
        %v3772 = vpack.c.bf16 %v3521, %v3522
        %v3773 = vpack.c.bf16 %v3605, %v3606
        %v3774 = vpack.c.bf16 %v3689, %v3690
        %v3775 = vpack.c.bf16 %v3272, %v3273
        %v3776 = vpack.c.bf16 %v3356, %v3357
        %v3777 = vpack.c.bf16 %v3438, %v3439
        %v3778 = vpack.c.bf16 %v3183, %v3182
        %v3779 = vpack.c.bf16 %v3519, %v3520
        %v3780 = vpack.c.bf16 %v3603, %v3604
        %v3781 = vpack.c.bf16 %v3687, %v3688
        %v3782 = vpack.c.bf16 %v3270, %v3271
        %v3783 = vpack.c.bf16 %v3354, %v3355
        %v3784 = vpack.c.bf16 %v3436, %v3437
        %v3785 = vpack.c.bf16 %v3185, %v3184
        %v3786 = vpack.c.bf16 %v3517, %v3518
        %v3787 = vpack.c.bf16 %v3601, %v3602
        %v3788 = vpack.c.bf16 %v3685, %v3686
        %v3789 = vpack.c.bf16 %v3268, %v3269
        %v3790 = vpack.c.bf16 %v3352, %v3353
        %v3791 = vpack.c.bf16 %v3434, %v3435
        %v3792 = vpack.c.bf16 %v3187, %v3186
        %v3793 = vpack.c.bf16 %v3515, %v3516
        %v3794 = vpack.c.bf16 %v3599, %v3600
        %v3795 = vpack.c.bf16 %v3683, %v3684
        %v3796 = vpack.c.bf16 %v3266, %v3267
        %v3797 = vpack.c.bf16 %v3350, %v3351
        %v3798 = vpack.c.bf16 %v3432, %v3433
        %v3799 = vpack.c.bf16 %v3189, %v3188
        %v3800 = vpack.c.bf16 %v3513, %v3514
        %v3801 = vpack.c.bf16 %v3597, %v3598
        %v3802 = vpack.c.bf16 %v3681, %v3682
        %v3803 = vpack.c.bf16 %v3264, %v3265
        %v3804 = vpack.c.bf16 %v3348, %v3349
        %v3805 = vpack.c.bf16 %v3430, %v3431
        %v3806 = vpack.c.bf16 %v3191, %v3190
        %v3807 = vpack.c.bf16 %v3511, %v3512
        %v3808 = vpack.c.bf16 %v3595, %v3596
        %v3809 = vpack.c.bf16 %v3679, %v3680
        %v3810 = vpack.c.bf16 %v3262, %v3263
        %v3811 = vpack.c.bf16 %v3346, %v3347
        %v3812 = vpack.c.bf16 %v3428, %v3429
        %v3813 = vpack.c.bf16 %v3193, %v3192
        %v3814 = vpack.c.bf16 %v3509, %v3510
        %v3815 = vpack.c.bf16 %v3593, %v3594
        %v3816 = vpack.c.bf16 %v3677, %v3678
        %v3817 = vpack.c.bf16 %v3260, %v3261
        %v3818 = vpack.c.bf16 %v3344, %v3345
        %v3819 = vpack.c.bf16 %v3426, %v3427
        %v3820 = vpack.c.bf16 %v3195, %v3194
        %v3821 = vpack.c.bf16 %v3507, %v3508
        %v3822 = vpack.c.bf16 %v3591, %v3592
        %v3823 = vpack.c.bf16 %v3675, %v3676
        %v3824 = vpack.c.bf16 %v3258, %v3259
        %v3825 = vpack.c.bf16 %v3342, %v3343
        %v3826 = vpack.c.bf16 %v3424, %v3425
        %v3827 = vpack.c.bf16 %v3197, %v3196
        %v3828 = vpack.c.bf16 %v3505, %v3506
        %v3829 = vpack.c.bf16 %v3589, %v3590
        %v3830 = vpack.c.bf16 %v3673, %v3674
        %v3831 = vpack.c.bf16 %v3256, %v3257
        %v3832 = vpack.c.bf16 %v3340, %v3341
        %v3833 = vpack.c.bf16 %v3422, %v3423
        %v3834 = vpack.c.bf16 %v3199, %v3198
        %v3835 = vpack.c.bf16 %v3503, %v3504
        %v3836 = vpack.c.bf16 %v3587, %v3588
        %v3837 = vpack.c.bf16 %v3671, %v3672
        %v3838 = vpack.c.bf16 %v3254, %v3255
        %v3839 = vpack.c.bf16 %v3338, %v3339
        %v3840 = vpack.c.bf16 %v3420, %v3421
        %v3841 = vpack.c.bf16 %v3201, %v3200
        %v3842 = vpack.c.bf16 %v3501, %v3502
        %v3843 = vpack.c.bf16 %v3585, %v3586
        %v3844 = vpack.c.bf16 %v3669, %v3670
        %v3845 = vpack.c.bf16 %v3252, %v3253
        %v3846 = vpack.c.bf16 %v3336, %v3337
        %v3847 = vpack.c.bf16 %v3418, %v3419
        %v3848 = vpack.c.bf16 %v3203, %v3202
        %v3849 = vpack.c.bf16 %v3541, %v3500
        %v3850 = vpack.c.bf16 %v3625, %v3584
        %v3851 = vpack.c.bf16 %v3709, %v3668
        %v3852 = vpack.c.bf16 %v3250, %v3251
        %v3853 = vpack.c.bf16 %v3334, %v3335
        %v3854 = vpack.c.bf16 %v3205, %v3204
        %v3855 = vpack.c.bf16 %v3623, %v3624
        %v3856 = vpack.c.bf16 %v3707, %v3708
        %v3857 = vld [vmem:[#allocation11] sm:$0xf]
        %v3858 = vld [vmem:[#allocation11 + $0x4] sm:$0xf]
        %v3859 = vld [vmem:[#allocation11 + $0x8] sm:$0xf]
        %v3860 = vld [vmem:[#allocation11 + $0xc] sm:$0xf]
        %v3861 = vld [vmem:[#allocation11 + $0x10] sm:$0xf]
        %v3862 = vld [vmem:[#allocation11 + $0x14] sm:$0xf]
        %v3863 = vld [vmem:[#allocation11 + $0x18] sm:$0xf]
        %v3864 = vld [vmem:[#allocation11 + $0x1c] sm:$0xf]
        %v3865 = vld [vmem:[#allocation11 + $0x20] sm:$0xf]
        %v3866 = vld [vmem:[#allocation11 + $0x24] sm:$0xf]
        %v3867 = vld [vmem:[#allocation11 + $0x28] sm:$0xf]
        %v3868 = vld [vmem:[#allocation11 + $0x2c] sm:$0xf]
        %v3869 = vld [vmem:[#allocation11 + $0x30] sm:$0xf]
        %v3870 = vld [vmem:[#allocation11 + $0x34] sm:$0xf]
        %v3871 = vld [vmem:[#allocation11 + $0x38] sm:$0xf]
        %v3872 = vld [vmem:[#allocation11 + $0x3c] sm:$0xf]
        %v3873 = vld [vmem:[#allocation11 + $0x40] sm:$0xf]
        %v3874 = vld [vmem:[#allocation11 + $0x44] sm:$0xf]
        %v3875 = vld [vmem:[#allocation11 + $0x48] sm:$0xf]
        %v3876 = vld [vmem:[#allocation11 + $0x4c] sm:$0xf]
        %v3877 = vld [vmem:[#allocation11 + $0x50] sm:$0xf]
        %v3878 = vld [vmem:[#allocation11 + $0x54] sm:$0xf]
        %v3879 = vld [vmem:[#allocation11 + $0x58] sm:$0xf]
        %v3880 = vld [vmem:[#allocation11 + $0x5c] sm:$0xf]
        %v3881 = vld [vmem:[#allocation11 + $0x60] sm:$0xf]
        %v3882 = vld [vmem:[#allocation11 + $0x64] sm:$0xf]
        %v3883 = vld [vmem:[#allocation11 + $0x68] sm:$0xf]
        %v3884 = vld [vmem:[#allocation11 + $0x6c] sm:$0xf]
        %v3885 = vld [vmem:[#allocation11 + $0x70] sm:$0xf]
        %v3886 = vld [vmem:[#allocation11 + $0x74] sm:$0xf]
        %v3887 = vld [vmem:[#allocation11 + $0x78] sm:$0xf]
        %v3888 = vld [vmem:[#allocation11 + $0x7c] sm:$0xf]
        %v3889 = vld [vmem:[#allocation11 + $0x80] sm:$0xf]
        %v3890 = vld [vmem:[#allocation11 + $0x84] sm:$0xf]
        %v3891 = vld [vmem:[#allocation11 + $0x88] sm:$0xf]
        %v3892 = vld [vmem:[#allocation11 + $0x8c] sm:$0xf]
        %v3893 = vld [vmem:[#allocation11 + $0x90] sm:$0xf]
        %v3894 = vld [vmem:[#allocation11 + $0x94] sm:$0xf]
        %v3895 = vld [vmem:[#allocation11 + $0x98] sm:$0xf]
        %v3896 = vld [vmem:[#allocation11 + $0x9c] sm:$0xf]
        %v3897 = vld [vmem:[#allocation11 + $0xa0] sm:$0xf]
        %v3898 = vld [vmem:[#allocation11 + $0xa4] sm:$0xf]
        %v3899 = vld [vmem:[#allocation11 + $0xa8] sm:$0xf]
        %v3900 = vld [vmem:[#allocation11 + $0xac] sm:$0xf]
        %v3901 = vld [vmem:[#allocation11 + $0xb0] sm:$0xf]
        %v3902 = vld [vmem:[#allocation11 + $0xb4] sm:$0xf]
        %v3903 = vld [vmem:[#allocation11 + $0xb8] sm:$0xf]
        %v3904 = vld [vmem:[#allocation11 + $0xbc] sm:$0xf]
        %v3905 = vld [vmem:[#allocation11 + $0xc0] sm:$0xf]
        %v3906 = vld [vmem:[#allocation11 + $0xc4] sm:$0xf]
        %v3907 = vld [vmem:[#allocation11 + $0xc8] sm:$0xf]
        %v3908 = vld [vmem:[#allocation11 + $0xcc] sm:$0xf]
        %v3909 = vld [vmem:[#allocation11 + $0xd0] sm:$0xf]
        %v3910 = vld [vmem:[#allocation11 + $0xd4] sm:$0xf]
        %v3911 = vld [vmem:[#allocation11 + $0xd8] sm:$0xf]
        %v3912 = vld [vmem:[#allocation11 + $0xdc] sm:$0xf]
        %v3913 = vld [vmem:[#allocation11 + $0xe0] sm:$0xf]
        %v3914 = vld [vmem:[#allocation11 + $0xe4] sm:$0xf]
        %v3915 = vld [vmem:[#allocation11 + $0xe8] sm:$0xf]
        %v3916 = vld [vmem:[#allocation11 + $0xec] sm:$0xf]
        %v3917 = vld [vmem:[#allocation11 + $0xf0] sm:$0xf]
        %v3918 = vld [vmem:[#allocation11 + $0xf4] sm:$0xf]
        %v3919 = vld [vmem:[#allocation11 + $0xf8] sm:$0xf]
        %v3920 = vld [vmem:[#allocation11 + $0xfc] sm:$0xf]
        %v3921 = vld [vmem:[#allocation11 + $0x100] sm:$0xf]
        %v3922 = vld [vmem:[#allocation11 + $0x104] sm:$0xf]
        %v3923 = vld [vmem:[#allocation11 + $0x108] sm:$0xf]
        %v3924 = vld [vmem:[#allocation11 + $0x10c] sm:$0xf]
        %v3925 = vld [vmem:[#allocation11 + $0x110] sm:$0xf]
        %v3926 = vld [vmem:[#allocation11 + $0x114] sm:$0xf]
        %v3927 = vld [vmem:[#allocation11 + $0x118] sm:$0xf]
        %v3928 = vld [vmem:[#allocation11 + $0x11c] sm:$0xf]
        %v3929 = vld [vmem:[#allocation11 + $0x120] sm:$0xf]
        %v3930 = vld [vmem:[#allocation11 + $0x124] sm:$0xf]
        %v3931 = vld [vmem:[#allocation11 + $0x128] sm:$0xf]
        %v3932 = vld [vmem:[#allocation11 + $0x12c] sm:$0xf]
        %v3933 = vld [vmem:[#allocation11 + $0x130] sm:$0xf]
        %v3934 = vld [vmem:[#allocation11 + $0x134] sm:$0xf]
        %v3935 = vld [vmem:[#allocation11 + $0x138] sm:$0xf]
        %v3936 = vld [vmem:[#allocation11 + $0x13c] sm:$0xf]
        %v3937 = vld [vmem:[#allocation11 + $0x140] sm:$0xf]
        %v3938 = vld [vmem:[#allocation11 + $0x144] sm:$0xf]
        %v3939 = vld [vmem:[#allocation11 + $0x148] sm:$0xf]
        %v3940 = vld [vmem:[#allocation11 + $0x14c] sm:$0xf]
        %v3941 = vld [vmem:[#allocation11 + $0x150] sm:$0xf]
        %v3942 = vld [vmem:[#allocation11 + $0x154] sm:$0xf]
        %v3943 = vld [vmem:[#allocation11 + $0x158] sm:$0xf]
        %v3944 = vld [vmem:[#allocation11 + $0x15c] sm:$0xf]
        %v3945 = vld [vmem:[#allocation11 + $0x160] sm:$0xf]
        %v3946 = vld [vmem:[#allocation11 + $0x164] sm:$0xf]
        %v3947 = vld [vmem:[#allocation11 + $0x168] sm:$0xf]
        %v3948 = vld [vmem:[#allocation11 + $0x16c] sm:$0xf]
        %v3949 = vld [vmem:[#allocation11 + $0x170] sm:$0xf]
        %v3950 = vld [vmem:[#allocation11 + $0x174] sm:$0xf]
        %v3951 = vld [vmem:[#allocation11 + $0x178] sm:$0xf]
        %v3952 = vld [vmem:[#allocation11 + $0x17c] sm:$0xf]
        %v3953 = vld [vmem:[#allocation11 + $0x180] sm:$0xf]
        %v3954 = vld [vmem:[#allocation11 + $0x184] sm:$0xf]
        %v3955 = vld [vmem:[#allocation11 + $0x188] sm:$0xf]
        %v3956 = vld [vmem:[#allocation11 + $0x18c] sm:$0xf]
        %v3957 = vld [vmem:[#allocation11 + $0x190] sm:$0xf]
        %v3958 = vld [vmem:[#allocation11 + $0x194] sm:$0xf]
        %v3959 = vld [vmem:[#allocation11 + $0x198] sm:$0xf]
        %v3960 = vld [vmem:[#allocation11 + $0x19c] sm:$0xf]
        %v3961 = vld [vmem:[#allocation11 + $0x1a0] sm:$0xf]
        %v3962 = vld [vmem:[#allocation11 + $0x1a4] sm:$0xf]
        %v3963 = vld [vmem:[#allocation11 + $0x1a8] sm:$0xf]
        %v3964 = vld [vmem:[#allocation11 + $0x1ac] sm:$0xf]
        %v3965 = vld [vmem:[#allocation11 + $0x1b0] sm:$0xf]
        %v3966 = vld [vmem:[#allocation11 + $0x1b4] sm:$0xf]
        %v3967 = vld [vmem:[#allocation11 + $0x1b8] sm:$0xf]
        %v3968 = vld [vmem:[#allocation11 + $0x1bc] sm:$0xf]
        %v3969 = vld [vmem:[#allocation11 + $0x1c0] sm:$0xf]
        %v3970 = vld [vmem:[#allocation11 + $0x1c4] sm:$0xf]
        %v3971 = vld [vmem:[#allocation11 + $0x1c8] sm:$0xf]
        %v3972 = vld [vmem:[#allocation11 + $0x1cc] sm:$0xf]
        %v3973 = vld [vmem:[#allocation11 + $0x1d0] sm:$0xf]
        %v3974 = vld [vmem:[#allocation11 + $0x1d4] sm:$0xf]
        %v3975 = vld [vmem:[#allocation11 + $0x1d8] sm:$0xf]
        %v3976 = vld [vmem:[#allocation11 + $0x1dc] sm:$0xf]
        %v3977 = vld [vmem:[#allocation11 + $0x1e0] sm:$0xf]
        %v3978 = vld [vmem:[#allocation11 + $0x1e4] sm:$0xf]
        %v3979 = vld [vmem:[#allocation11 + $0x1e8] sm:$0xf]
        %v3980 = vld [vmem:[#allocation11 + $0x1ec] sm:$0xf]
        %v3981 = vld [vmem:[#allocation11 + $0x1f0] sm:$0xf]
        %v3982 = vld [vmem:[#allocation11 + $0x1f4] sm:$0xf]
        %v3983 = vld [vmem:[#allocation11 + $0x1f8] sm:$0xf]
        %v3984 = vld [vmem:[#allocation11 + $0x1fc] sm:$0xf]
        %v3985 = vld [vmem:[#allocation11 + $0x200] sm:$0xf]
        %v3986 = vld [vmem:[#allocation11 + $0x204] sm:$0xf]
        %v3987 = vld [vmem:[#allocation11 + $0x208] sm:$0xf]
        %v3988 = vld [vmem:[#allocation11 + $0x20c] sm:$0xf]
        %v3989 = vld [vmem:[#allocation11 + $0x210] sm:$0xf]
        %v3990 = vld [vmem:[#allocation11 + $0x214] sm:$0xf]
        %v3991 = vld [vmem:[#allocation11 + $0x218] sm:$0xf]
        %v3992 = vld [vmem:[#allocation11 + $0x21c] sm:$0xf]
        %v3993 = vld [vmem:[#allocation11 + $0x220] sm:$0xf]
        %v3994 = vld [vmem:[#allocation11 + $0x224] sm:$0xf]
        %v3995 = vld [vmem:[#allocation11 + $0x228] sm:$0xf]
        %v3996 = vld [vmem:[#allocation11 + $0x22c] sm:$0xf]
        %v3997 = vld [vmem:[#allocation11 + $0x230] sm:$0xf]
        %v3998 = vld [vmem:[#allocation11 + $0x234] sm:$0xf]
        %v3999 = vld [vmem:[#allocation11 + $0x238] sm:$0xf]
        %v4000 = vld [vmem:[#allocation11 + $0x23c] sm:$0xf]
        %v4001 = vld [vmem:[#allocation13] sm:$0x1]
        %v4003 = vlaneseq
        %v4004 = vshrl.u32 %v4003, 7
        %v4005 = vsub.s32 0, %v4004
        %v4006 = vrot.slane %v4001, %v4005
        %v4152 = vunpack.c.l.b16 %v3857
        %v4153 = vunpack.c.l.b16 %v3858
        %v4154 = vunpack.c.l.b16 %v3859
        %v4155 = vunpack.c.l.b16 %v3860
        %v4156 = vunpack.c.l.b16 %v3861
        %v4157 = vunpack.c.l.b16 %v3862
        %v4158 = vunpack.c.l.b16 %v3863
        %v4159 = vunpack.c.l.b16 %v3864
        %v4160 = vunpack.c.l.b16 %v3865
        %v4161 = vunpack.c.l.b16 %v3866
        %v4162 = vunpack.c.l.b16 %v3867
        %v4163 = vunpack.c.l.b16 %v3868
        %v4164 = vunpack.c.l.b16 %v3869
        %v4165 = vunpack.c.l.b16 %v3870
        %v4166 = vunpack.c.l.b16 %v3871
        %v4167 = vunpack.c.l.b16 %v3872
        %v4168 = vunpack.c.l.b16 %v3873
        %v4169 = vunpack.c.l.b16 %v3874
        %v4170 = vunpack.c.l.b16 %v3875
        %v4171 = vunpack.c.l.b16 %v3876
        %v4172 = vunpack.c.l.b16 %v3877
        %v4173 = vunpack.c.l.b16 %v3878
        %v4174 = vunpack.c.l.b16 %v3879
        %v4175 = vunpack.c.l.b16 %v3880
        %v4176 = vunpack.c.l.b16 %v3881
        %v4177 = vunpack.c.l.b16 %v3882
        %v4178 = vunpack.c.l.b16 %v3883
        %v4179 = vunpack.c.l.b16 %v3884
        %v4180 = vunpack.c.l.b16 %v3885
        %v4181 = vunpack.c.l.b16 %v3886
        %v4182 = vunpack.c.l.b16 %v3887
        %v4183 = vunpack.c.l.b16 %v3888
        %v4184 = vunpack.c.l.b16 %v3889
        %v4185 = vunpack.c.l.b16 %v3890
        %v4186 = vunpack.c.l.b16 %v3891
        %v4187 = vunpack.c.l.b16 %v3892
        %v4188 = vunpack.c.l.b16 %v3893
        %v4189 = vunpack.c.l.b16 %v3894
        %v4190 = vunpack.c.l.b16 %v3895
        %v4191 = vunpack.c.l.b16 %v3896
        %v4192 = vunpack.c.l.b16 %v3897
        %v4193 = vunpack.c.l.b16 %v3898
        %v4194 = vunpack.c.l.b16 %v3899
        %v4195 = vunpack.c.l.b16 %v3900
        %v4196 = vunpack.c.l.b16 %v3901
        %v4197 = vunpack.c.l.b16 %v3902
        %v4198 = vunpack.c.l.b16 %v3903
        %v4199 = vunpack.c.l.b16 %v3904
        %v4200 = vunpack.c.l.b16 %v3905
        %v4201 = vunpack.c.l.b16 %v3906
        %v4202 = vunpack.c.l.b16 %v3907
        %v4203 = vunpack.c.l.b16 %v3908
        %v4204 = vunpack.c.l.b16 %v3909
        %v4205 = vunpack.c.l.b16 %v3910
        %v4206 = vunpack.c.l.b16 %v3911
        %v4207 = vunpack.c.l.b16 %v3912
        %v4208 = vunpack.c.l.b16 %v3913
        %v4209 = vunpack.c.l.b16 %v3914
        %v4210 = vunpack.c.l.b16 %v3915
        %v4211 = vunpack.c.l.b16 %v3916
        %v4212 = vunpack.c.l.b16 %v3917
        %v4213 = vunpack.c.l.b16 %v3918
        %v4214 = vunpack.c.l.b16 %v3919
        %v4215 = vunpack.c.l.b16 %v3920
        %v4216 = vunpack.c.l.b16 %v3921
        %v4217 = vunpack.c.l.b16 %v3922
        %v4218 = vunpack.c.l.b16 %v3923
        %v4219 = vunpack.c.l.b16 %v3924
        %v4220 = vunpack.c.l.b16 %v3925
        %v4221 = vunpack.c.l.b16 %v3926
        %v4222 = vunpack.c.l.b16 %v3927
        %v4223 = vunpack.c.l.b16 %v3928
        %v4224 = vunpack.c.l.b16 %v3929
        %v4225 = vunpack.c.l.b16 %v3930
        %v4226 = vunpack.c.l.b16 %v3931
        %v4227 = vunpack.c.l.b16 %v3932
        %v4228 = vunpack.c.l.b16 %v3933
        %v4229 = vunpack.c.l.b16 %v3934
        %v4230 = vunpack.c.l.b16 %v3935
        %v4231 = vunpack.c.l.b16 %v3936
        %v4232 = vunpack.c.l.b16 %v3937
        %v4233 = vunpack.c.l.b16 %v3938
        %v4234 = vunpack.c.l.b16 %v3939
        %v4235 = vunpack.c.l.b16 %v3940
        %v4236 = vunpack.c.l.b16 %v3941
        %v4237 = vunpack.c.l.b16 %v3942
        %v4238 = vunpack.c.l.b16 %v3943
        %v4239 = vunpack.c.l.b16 %v3944
        %v4240 = vunpack.c.l.b16 %v3945
        %v4241 = vunpack.c.l.b16 %v3946
        %v4242 = vunpack.c.l.b16 %v3947
        %v4243 = vunpack.c.l.b16 %v3948
        %v4244 = vunpack.c.l.b16 %v3949
        %v4245 = vunpack.c.l.b16 %v3950
        %v4246 = vunpack.c.l.b16 %v3951
        %v4247 = vunpack.c.l.b16 %v3952
        %v4248 = vunpack.c.l.b16 %v3953
        %v4249 = vunpack.c.l.b16 %v3954
        %v4250 = vunpack.c.l.b16 %v3955
        %v4251 = vunpack.c.l.b16 %v3956
        %v4252 = vunpack.c.l.b16 %v3957
        %v4253 = vunpack.c.l.b16 %v3958
        %v4254 = vunpack.c.l.b16 %v3959
        %v4255 = vunpack.c.l.b16 %v3960
        %v4256 = vunpack.c.l.b16 %v3961
        %v4257 = vunpack.c.l.b16 %v3962
        %v4258 = vunpack.c.l.b16 %v3963
        %v4259 = vunpack.c.l.b16 %v3964
        %v4260 = vunpack.c.l.b16 %v3965
        %v4261 = vunpack.c.l.b16 %v3966
        %v4262 = vunpack.c.l.b16 %v3967
        %v4263 = vunpack.c.l.b16 %v3968
        %v4264 = vunpack.c.l.b16 %v3969
        %v4265 = vunpack.c.l.b16 %v3970
        %v4266 = vunpack.c.l.b16 %v3971
        %v4267 = vunpack.c.l.b16 %v3972
        %v4268 = vunpack.c.l.b16 %v3973
        %v4269 = vunpack.c.l.b16 %v3974
        %v4270 = vunpack.c.l.b16 %v3975
        %v4271 = vunpack.c.l.b16 %v3976
        %v4272 = vunpack.c.l.b16 %v3977
        %v4273 = vunpack.c.l.b16 %v3978
        %v4274 = vunpack.c.l.b16 %v3979
        %v4275 = vunpack.c.l.b16 %v3980
        %v4276 = vunpack.c.l.b16 %v3981
        %v4277 = vunpack.c.l.b16 %v3982
        %v4278 = vunpack.c.l.b16 %v3983
        %v4279 = vunpack.c.l.b16 %v3984
        %v4280 = vunpack.c.l.b16 %v3985
        %v4281 = vunpack.c.l.b16 %v3986
        %v4282 = vunpack.c.l.b16 %v3987
        %v4283 = vunpack.c.l.b16 %v3988
        %v4284 = vunpack.c.l.b16 %v3989
        %v4285 = vunpack.c.l.b16 %v3990
        %v4286 = vunpack.c.l.b16 %v3991
        %v4287 = vunpack.c.l.b16 %v3992
        %v4288 = vunpack.c.l.b16 %v3993
        %v4289 = vunpack.c.l.b16 %v3994
        %v4290 = vunpack.c.l.b16 %v3995
        %v4291 = vunpack.c.l.b16 %v3996
        %v4292 = vunpack.c.l.b16 %v3997
        %v4293 = vunpack.c.l.b16 %v3998
        %v4294 = vunpack.c.l.b16 %v3999
        %v4295 = vunpack.c.l.b16 %v4000
        %v4296 = vpack.c.b16 %v4153, %v4152
        %v4297 = vpack.c.b16 %v4155, %v4154
        %v4298 = vpack.c.b16 %v4157, %v4156
        %v4299 = vpack.c.b16 %v4159, %v4158
        %v4300 = vpack.c.b16 %v4161, %v4160
        %v4301 = vpack.c.b16 %v4163, %v4162
        %v4302 = vpack.c.b16 %v4165, %v4164
        %v4303 = vpack.c.b16 %v4167, %v4166
        %v4304 = vpack.c.b16 %v4169, %v4168
        %v4305 = vpack.c.b16 %v4171, %v4170
        %v4306 = vpack.c.b16 %v4173, %v4172
        %v4307 = vpack.c.b16 %v4175, %v4174
        %v4308 = vpack.c.b16 %v4177, %v4176
        %v4309 = vpack.c.b16 %v4179, %v4178
        %v4310 = vpack.c.b16 %v4181, %v4180
        %v4311 = vpack.c.b16 %v4183, %v4182
        %v4312 = vpack.c.b16 %v4185, %v4184
        %v4313 = vpack.c.b16 %v4187, %v4186
        %v4314 = vpack.c.b16 %v4189, %v4188
        %v4315 = vpack.c.b16 %v4191, %v4190
        %v4316 = vpack.c.b16 %v4193, %v4192
        %v4317 = vpack.c.b16 %v4195, %v4194
        %v4318 = vpack.c.b16 %v4197, %v4196
        %v4319 = vpack.c.b16 %v4199, %v4198
        %v4320 = vpack.c.b16 %v4201, %v4200
        %v4321 = vpack.c.b16 %v4203, %v4202
        %v4322 = vpack.c.b16 %v4205, %v4204
        %v4323 = vpack.c.b16 %v4207, %v4206
        %v4324 = vpack.c.b16 %v4209, %v4208
        %v4325 = vpack.c.b16 %v4211, %v4210
        %v4326 = vpack.c.b16 %v4213, %v4212
        %v4327 = vpack.c.b16 %v4215, %v4214
        %v4328 = vpack.c.b16 %v4217, %v4216
        %v4329 = vpack.c.b16 %v4219, %v4218
        %v4330 = vpack.c.b16 %v4221, %v4220
        %v4331 = vpack.c.b16 %v4223, %v4222
        %v4332 = vpack.c.b16 %v4225, %v4224
        %v4333 = vpack.c.b16 %v4227, %v4226
        %v4334 = vpack.c.b16 %v4229, %v4228
        %v4335 = vpack.c.b16 %v4231, %v4230
        %v4336 = vpack.c.b16 %v4233, %v4232
        %v4337 = vpack.c.b16 %v4235, %v4234
        %v4338 = vpack.c.b16 %v4237, %v4236
        %v4339 = vpack.c.b16 %v4239, %v4238
        %v4340 = vpack.c.b16 %v4241, %v4240
        %v4341 = vpack.c.b16 %v4243, %v4242
        %v4342 = vpack.c.b16 %v4245, %v4244
        %v4343 = vpack.c.b16 %v4247, %v4246
        %v4344 = vpack.c.b16 %v4249, %v4248
        %v4345 = vpack.c.b16 %v4251, %v4250
        %v4346 = vpack.c.b16 %v4253, %v4252
        %v4347 = vpack.c.b16 %v4255, %v4254
        %v4348 = vpack.c.b16 %v4257, %v4256
        %v4349 = vpack.c.b16 %v4259, %v4258
        %v4350 = vpack.c.b16 %v4261, %v4260
        %v4351 = vpack.c.b16 %v4263, %v4262
        %v4352 = vpack.c.b16 %v4265, %v4264
        %v4353 = vpack.c.b16 %v4267, %v4266
        %v4354 = vpack.c.b16 %v4269, %v4268
        %v4355 = vpack.c.b16 %v4271, %v4270
        %v4356 = vpack.c.b16 %v4273, %v4272
        %v4357 = vpack.c.b16 %v4275, %v4274
        %v4358 = vpack.c.b16 %v4277, %v4276
        %v4359 = vpack.c.b16 %v4279, %v4278
        %v4360 = vpack.c.b16 %v4281, %v4280
        %v4361 = vpack.c.b16 %v4283, %v4282
        %v4362 = vpack.c.b16 %v4285, %v4284
        %v4363 = vpack.c.b16 %v4287, %v4286
        %v4364 = vpack.c.b16 %v4289, %v4288
        %v4365 = vpack.c.b16 %v4291, %v4290
        %v4366 = vpack.c.b16 %v4293, %v4292
        %v4367 = vpack.c.b16 %v4295, %v4294
        %4440 = vmatprep.subr.bf16.mxu0 0
        %4441 = vmatpush1.bf16.msra.mxu0 %v4296
        %4442 = vmatprep.subr.bf16.mxu0 0
        %4443 = vmatpush1.bf16.msra.mxu0 %v4297
        %4444 = vmatprep.subr.bf16.mxu0 0
        %4445 = vmatpush1.bf16.msra.mxu0 %v4298
        %4446 = vmatprep.subr.bf16.mxu0 0
        %4447 = vmatpush1.bf16.msra.mxu0 %v4299
        %4448 = vmatprep.subr.bf16.mxu0 0
        %4449 = vmatpush1.bf16.msra.mxu0 %v4300
        %4450 = vmatprep.subr.bf16.mxu0 0
        %4451 = vmatpush1.bf16.msra.mxu0 %v4301
        %4452 = vmatprep.subr.bf16.mxu0 0
        %4453 = vmatpush1.bf16.msra.mxu0 %v4302
        %4454 = vmatprep.subr.bf16.mxu0 0
        %4455 = vmatpush1.bf16.msra.mxu0 %v4303
        %4456 = vmatprep.subr.bf16.mxu0 0
        %4457 = vmatpush1.bf16.msra.mxu0 %v4304
        %4458 = vmatprep.subr.bf16.mxu0 0
        %4459 = vmatpush1.bf16.msra.mxu0 %v4305
        %4460 = vmatprep.subr.bf16.mxu0 0
        %4461 = vmatpush1.bf16.msra.mxu0 %v4306
        %4462 = vmatprep.subr.bf16.mxu0 0
        %4463 = vmatpush1.bf16.msra.mxu0 %v4307
        %4464 = vmatprep.subr.bf16.mxu0 0
        %4465 = vmatpush1.bf16.msra.mxu0 %v4308
        %4466 = vmatprep.subr.bf16.mxu0 0
        %4467 = vmatpush1.bf16.msra.mxu0 %v4309
        %4468 = vmatprep.subr.bf16.mxu0 0
        %4469 = vmatpush1.bf16.msra.mxu0 %v4310
        %4470 = vmatprep.subr.bf16.mxu0 0
        %4471 = vmatpush1.bf16.msra.mxu0 %v4311
        %4472 = vmatprep.mubr.bf16.mxu0 %v3711
        %4473 = vmatmul.mubr.bf16.gmra.mrb[0].mxu0 %v3710
        %v4474 = vpop.f32.mrb[0].mxu0
        %v4475 = vadd.f32 %v4006, %v4474
        %v4476 = vpop.f32.mrb[0].mxu0
        %v4477 = vpop.f32.mrb[0].mxu0
        %v4478 = vadd.f32 %v4006, %v4477
        %v4479 = vpop.f32.mrb[0].mxu0
        %4480 = vmatprep.mubr.bf16.mxu0 %v3720
        %4481 = vmatmul.mubr.bf16.gmra.mrb[0].mxu0 %v3719
        %v4482 = vpop.f32.mrb[0].mxu0
        %v4483 = vadd.f32 %v4006, %v4482
        %v4484 = vpop.f32.mrb[0].mxu0
        %v4485 = vpop.f32.mrb[0].mxu0
        %v4486 = vadd.f32 %v4006, %v4485
        %v4487 = vpop.f32.mrb[0].mxu0
        %4488 = vmatprep.mubr.bf16.mxu0 %v3727
        %4489 = vmatmul.mubr.bf16.gmra.mrb[0].mxu0 %v3726
        %v4490 = vpop.f32.mrb[0].mxu0
        %v4491 = vadd.f32 %v4006, %v4490
        %v4492 = vpop.f32.mrb[0].mxu0
        %v4493 = vpop.f32.mrb[0].mxu0
        %v4494 = vadd.f32 %v4006, %v4493
        %v4495 = vpop.f32.mrb[0].mxu0
        %4496 = vmatprep.mubr.bf16.mxu0 %v3734
        %4497 = vmatmul.mubr.bf16.gmra.mrb[0].mxu0 %v3733
        %v4498 = vpop.f32.mrb[0].mxu0
        %v4499 = vadd.f32 %v4006, %v4498
        %v4500 = vpop.f32.mrb[0].mxu0
        %v4501 = vpop.f32.mrb[0].mxu0
        %v4502 = vadd.f32 %v4006, %v4501
        %v4503 = vpop.f32.mrb[0].mxu0
        %4504 = vmatprep.mubr.bf16.mxu0 %v3741
        %4505 = vmatmul.mubr.bf16.gmra.mrb[0].mxu0 %v3740
        %v4506 = vpop.f32.mrb[0].mxu0
        %v4507 = vadd.f32 %v4006, %v4506
        %v4508 = vpop.f32.mrb[0].mxu0
        %v4509 = vpop.f32.mrb[0].mxu0
        %v4510 = vadd.f32 %v4006, %v4509
        %v4511 = vpop.f32.mrb[0].mxu0
        %4512 = vmatprep.mubr.bf16.mxu0 %v3748
        %4513 = vmatmul.mubr.bf16.gmra.mrb[0].mxu0 %v3747
        %v4514 = vpop.f32.mrb[0].mxu0
        %v4515 = vadd.f32 %v4006, %v4514
        %v4516 = vpop.f32.mrb[0].mxu0
        %v4517 = vpop.f32.mrb[0].mxu0
        %v4518 = vadd.f32 %v4006, %v4517
        %v4519 = vpop.f32.mrb[0].mxu0
        %4520 = vmatprep.mubr.bf16.mxu0 %v3755
        %4521 = vmatmul.mubr.bf16.gmra.mrb[0].mxu0 %v3754
        %v4522 = vpop.f32.mrb[0].mxu0
        %v4523 = vadd.f32 %v4006, %v4522
        %v4524 = vpop.f32.mrb[0].mxu0
        %v4525 = vpop.f32.mrb[0].mxu0
        %v4526 = vadd.f32 %v4006, %v4525
        %v4527 = vpop.f32.mrb[0].mxu0
        %4528 = vmatprep.mubr.bf16.mxu0 %v3762
        %4529 = vmatmul.mubr.bf16.gmra.mrb[0].mxu0 %v3761
        %v4530 = vpop.f32.mrb[0].mxu0
        %v4531 = vadd.f32 %v4006, %v4530
        %v4532 = vpop.f32.mrb[0].mxu0
        %v4533 = vpop.f32.mrb[0].mxu0
        %v4534 = vadd.f32 %v4006, %v4533
        %v4535 = vpop.f32.mrb[0].mxu0
        %4536 = vmatprep.mubr.bf16.mxu0 %v3769
        %4537 = vmatmul.mubr.bf16.gmra.mrb[0].mxu0 %v3768
        %v4538 = vpop.f32.mrb[0].mxu0
        %v4539 = vadd.f32 %v4006, %v4538
        %v4540 = vpop.f32.mrb[0].mxu0
        %v4541 = vpop.f32.mrb[0].mxu0
        %v4542 = vadd.f32 %v4006, %v4541
        %v4543 = vpop.f32.mrb[0].mxu0
        %4544 = vmatprep.mubr.bf16.mxu0 %v3776
        %4545 = vmatmul.mubr.bf16.gmra.mrb[0].mxu0 %v3775
        %v4546 = vpop.f32.mrb[0].mxu0
        %v4547 = vadd.f32 %v4006, %v4546
        %v4548 = vpop.f32.mrb[0].mxu0
        %v4549 = vpop.f32.mrb[0].mxu0
        %v4550 = vadd.f32 %v4006, %v4549
        %v4551 = vpop.f32.mrb[0].mxu0
        %4552 = vmatprep.mubr.bf16.mxu0 %v3783
        %4553 = vmatmul.mubr.bf16.gmra.mrb[0].mxu0 %v3782
        %v4554 = vpop.f32.mrb[0].mxu0
        %v4555 = vadd.f32 %v4006, %v4554
        %v4556 = vpop.f32.mrb[0].mxu0
        %v4557 = vpop.f32.mrb[0].mxu0
        %v4558 = vadd.f32 %v4006, %v4557
        %v4559 = vpop.f32.mrb[0].mxu0
        %4560 = vmatprep.mubr.bf16.mxu0 %v3790
        %4561 = vmatmul.mubr.bf16.gmra.mrb[0].mxu0 %v3789
        %v4562 = vpop.f32.mrb[0].mxu0
        %v4563 = vadd.f32 %v4006, %v4562
        %v4564 = vpop.f32.mrb[0].mxu0
        %v4565 = vpop.f32.mrb[0].mxu0
        %v4566 = vadd.f32 %v4006, %v4565
        %v4567 = vpop.f32.mrb[0].mxu0
        %4568 = vmatprep.mubr.bf16.mxu0 %v3797
        %4569 = vmatmul.mubr.bf16.gmra.mrb[0].mxu0 %v3796
        %v4570 = vpop.f32.mrb[0].mxu0
        %v4571 = vadd.f32 %v4006, %v4570
        %v4572 = vpop.f32.mrb[0].mxu0
        %v4573 = vpop.f32.mrb[0].mxu0
        %v4574 = vadd.f32 %v4006, %v4573
        %v4575 = vpop.f32.mrb[0].mxu0
        %4576 = vmatprep.mubr.bf16.mxu0 %v3804
        %4577 = vmatmul.mubr.bf16.gmra.mrb[0].mxu0 %v3803
        %v4578 = vpop.f32.mrb[0].mxu0
        %v4579 = vadd.f32 %v4006, %v4578
        %v4580 = vpop.f32.mrb[0].mxu0
        %v4581 = vpop.f32.mrb[0].mxu0
        %v4582 = vadd.f32 %v4006, %v4581
        %v4583 = vpop.f32.mrb[0].mxu0
        %4584 = vmatprep.mubr.bf16.mxu0 %v3811
        %4585 = vmatmul.mubr.bf16.gmra.mrb[0].mxu0 %v3810
        %v4586 = vpop.f32.mrb[0].mxu0
        %v4587 = vadd.f32 %v4006, %v4586
        %v4588 = vpop.f32.mrb[0].mxu0
        %v4589 = vpop.f32.mrb[0].mxu0
        %v4590 = vadd.f32 %v4006, %v4589
        %v4591 = vpop.f32.mrb[0].mxu0
        %4592 = vmatprep.mubr.bf16.mxu0 %v3818
        %4593 = vmatmul.mubr.bf16.gmra.mrb[0].mxu0 %v3817
        %v4594 = vpop.f32.mrb[0].mxu0
        %v4595 = vadd.f32 %v4006, %v4594
        %v4596 = vpop.f32.mrb[0].mxu0
        %v4597 = vpop.f32.mrb[0].mxu0
        %v4598 = vadd.f32 %v4006, %v4597
        %v4599 = vpop.f32.mrb[0].mxu0
        %4600 = vmatprep.mubr.bf16.mxu0 %v3825
        %4601 = vmatmul.mubr.bf16.gmra.mrb[0].mxu0 %v3824
        %v4602 = vpop.f32.mrb[0].mxu0
        %v4603 = vadd.f32 %v4006, %v4602
        %v4604 = vpop.f32.mrb[0].mxu0
        %v4605 = vpop.f32.mrb[0].mxu0
        %v4606 = vadd.f32 %v4006, %v4605
        %v4607 = vpop.f32.mrb[0].mxu0
        %4608 = vmatprep.mubr.bf16.mxu0 %v3832
        %4609 = vmatmul.mubr.bf16.gmra.mrb[0].mxu0 %v3831
        %v4610 = vpop.f32.mrb[0].mxu0
        %v4611 = vadd.f32 %v4006, %v4610
        %v4612 = vpop.f32.mrb[0].mxu0
        %v4613 = vpop.f32.mrb[0].mxu0
        %v4614 = vadd.f32 %v4006, %v4613
        %v4615 = vpop.f32.mrb[0].mxu0
        %4616 = vmatprep.mubr.bf16.mxu0 %v3839
        %4617 = vmatmul.mubr.bf16.gmra.mrb[0].mxu0 %v3838
        %v4618 = vpop.f32.mrb[0].mxu0
        %v4619 = vadd.f32 %v4006, %v4618
        %v4620 = vpop.f32.mrb[0].mxu0
        %v4621 = vpop.f32.mrb[0].mxu0
        %v4622 = vadd.f32 %v4006, %v4621
        %v4623 = vpop.f32.mrb[0].mxu0
        %4624 = vmatprep.mubr.bf16.mxu0 %v3846
        %4625 = vmatmul.mubr.bf16.gmra.mrb[0].mxu0 %v3845
        %v4626 = vpop.f32.mrb[0].mxu0
        %v4627 = vadd.f32 %v4006, %v4626
        %v4628 = vpop.f32.mrb[0].mxu0
        %v4629 = vpop.f32.mrb[0].mxu0
        %v4630 = vadd.f32 %v4006, %v4629
        %v4631 = vpop.f32.mrb[0].mxu0
        %4632 = vmatprep.mubr.bf16.mxu0 %v3853
        %4633 = vmatmul.mubr.bf16.gmra.mrb[0].mxu0 %v3852
        %v4634 = vpop.f32.mrb[0].mxu0
        %v4635 = vadd.f32 %v4006, %v4634
        %v4636 = vpop.f32.mrb[0].mxu0
        %v4637 = vpop.f32.mrb[0].mxu0
        %v4638 = vadd.f32 %v4006, %v4637
        %v4639 = vpop.f32.mrb[0].mxu0
        %4640 = vdwg.mxu0
        %4641 = vmatprep.subr.bf16.mxu0 0
        %4642 = vmatpush1.bf16.msra.mxu0 %v4312
        %4643 = vmatprep.subr.bf16.mxu0 0
        %4644 = vmatpush1.bf16.msra.mxu0 %v4313
        %4645 = vmatprep.subr.bf16.mxu0 0
        %4646 = vmatpush1.bf16.msra.mxu0 %v4314
        %4647 = vmatprep.subr.bf16.mxu0 0
        %4648 = vmatpush1.bf16.msra.mxu0 %v4315
        %4649 = vmatprep.subr.bf16.mxu0 0
        %4650 = vmatpush1.bf16.msra.mxu0 %v4316
        %4651 = vmatprep.subr.bf16.mxu0 0
        %4652 = vmatpush1.bf16.msra.mxu0 %v4317
        %4653 = vmatprep.subr.bf16.mxu0 0
        %4654 = vmatpush1.bf16.msra.mxu0 %v4318
        %4655 = vmatprep.subr.bf16.mxu0 0
        %4656 = vmatpush1.bf16.msra.mxu0 %v4319
        %4657 = vmatprep.subr.bf16.mxu0 0
        %4658 = vmatpush1.bf16.msra.mxu0 %v4320
        %4659 = vmatprep.subr.bf16.mxu0 0
        %4660 = vmatpush1.bf16.msra.mxu0 %v4321
        %4661 = vmatprep.subr.bf16.mxu0 0
        %4662 = vmatpush1.bf16.msra.mxu0 %v4322
        %4663 = vmatprep.subr.bf16.mxu0 0
        %4664 = vmatpush1.bf16.msra.mxu0 %v4323
        %4665 = vmatprep.subr.bf16.mxu0 0
        %4666 = vmatpush1.bf16.msra.mxu0 %v4324
        %4667 = vmatprep.subr.bf16.mxu0 0
        %4668 = vmatpush1.bf16.msra.mxu0 %v4325
        %4669 = vmatprep.subr.bf16.mxu0 0
        %4670 = vmatpush1.bf16.msra.mxu0 %v4326
        %4671 = vmatprep.subr.bf16.mxu0 0
        %4672 = vmatpush1.bf16.msra.mxu0 %v4327
        %4673 = vmatprep.mubr.bf16.mxu0 %v3713
        %4674 = vmatmul.mubr.bf16.gmra.mrb[0].mxu0 %v3712
        %v4675 = vpop.f32.mrb[0].mxu0
        %v4676 = vadd.f32 %v4475, %v4675
        %v4677 = vpop.f32.mrb[0].mxu0
        %v4678 = vpop.f32.mrb[0].mxu0
        %v4679 = vadd.f32 %v4478, %v4678
        %v4680 = vpop.f32.mrb[0].mxu0
        %4681 = vmatprep.mubr.bf16.mxu0 %v3721
        %4682 = vmatmul.mubr.bf16.gmra.mrb[0].mxu0 %v3713
        %v4683 = vpop.f32.mrb[0].mxu0
        %v4684 = vadd.f32 %v4483, %v4683
        %v4685 = vpop.f32.mrb[0].mxu0
        %v4686 = vpop.f32.mrb[0].mxu0
        %v4687 = vadd.f32 %v4486, %v4686
        %v4688 = vpop.f32.mrb[0].mxu0
        %4689 = vmatprep.mubr.bf16.mxu0 %v3728
        %4690 = vmatmul.mubr.bf16.gmra.mrb[0].mxu0 %v3721
        %v4691 = vpop.f32.mrb[0].mxu0
        %v4692 = vadd.f32 %v4491, %v4691
        %v4693 = vpop.f32.mrb[0].mxu0
        %v4694 = vpop.f32.mrb[0].mxu0
        %v4695 = vadd.f32 %v4494, %v4694
        %v4696 = vpop.f32.mrb[0].mxu0
        %4697 = vmatprep.mubr.bf16.mxu0 %v3735
        %4698 = vmatmul.mubr.bf16.gmra.mrb[0].mxu0 %v3728
        %v4699 = vpop.f32.mrb[0].mxu0
        %v4700 = vadd.f32 %v4499, %v4699
        %v4701 = vpop.f32.mrb[0].mxu0
        %v4702 = vpop.f32.mrb[0].mxu0
        %v4703 = vadd.f32 %v4502, %v4702
        %v4704 = vpop.f32.mrb[0].mxu0
        %4705 = vmatprep.mubr.bf16.mxu0 %v3742
        %4706 = vmatmul.mubr.bf16.gmra.mrb[0].mxu0 %v3735
        %v4707 = vpop.f32.mrb[0].mxu0
        %v4708 = vadd.f32 %v4507, %v4707
        %v4709 = vpop.f32.mrb[0].mxu0
        %v4710 = vpop.f32.mrb[0].mxu0
        %v4711 = vadd.f32 %v4510, %v4710
        %v4712 = vpop.f32.mrb[0].mxu0
        %4713 = vmatprep.mubr.bf16.mxu0 %v3749
        %4714 = vmatmul.mubr.bf16.gmra.mrb[0].mxu0 %v3742
        %v4715 = vpop.f32.mrb[0].mxu0
        %v4716 = vadd.f32 %v4515, %v4715
        %v4717 = vpop.f32.mrb[0].mxu0
        %v4718 = vpop.f32.mrb[0].mxu0
        %v4719 = vadd.f32 %v4518, %v4718
        %v4720 = vpop.f32.mrb[0].mxu0
        %4721 = vmatprep.mubr.bf16.mxu0 %v3756
        %4722 = vmatmul.mubr.bf16.gmra.mrb[0].mxu0 %v3749
        %v4723 = vpop.f32.mrb[0].mxu0
        %v4724 = vadd.f32 %v4523, %v4723
        %v4725 = vpop.f32.mrb[0].mxu0
        %v4726 = vpop.f32.mrb[0].mxu0
        %v4727 = vadd.f32 %v4526, %v4726
        %v4728 = vpop.f32.mrb[0].mxu0
        %4729 = vmatprep.mubr.bf16.mxu0 %v3763
        %4730 = vmatmul.mubr.bf16.gmra.mrb[0].mxu0 %v3756
        %v4731 = vpop.f32.mrb[0].mxu0
        %v4732 = vadd.f32 %v4531, %v4731
        %v4733 = vpop.f32.mrb[0].mxu0
        %v4734 = vpop.f32.mrb[0].mxu0
        %v4735 = vadd.f32 %v4534, %v4734
        %v4736 = vpop.f32.mrb[0].mxu0
        %4737 = vmatprep.mubr.bf16.mxu0 %v3770
        %4738 = vmatmul.mubr.bf16.gmra.mrb[0].mxu0 %v3763
        %v4739 = vpop.f32.mrb[0].mxu0
        %v4740 = vadd.f32 %v4539, %v4739
        %v4741 = vpop.f32.mrb[0].mxu0
        %v4742 = vpop.f32.mrb[0].mxu0
        %v4743 = vadd.f32 %v4542, %v4742
        %v4744 = vpop.f32.mrb[0].mxu0
        %4745 = vmatprep.mubr.bf16.mxu0 %v3777
        %4746 = vmatmul.mubr.bf16.gmra.mrb[0].mxu0 %v3770
        %v4747 = vpop.f32.mrb[0].mxu0
        %v4748 = vadd.f32 %v4547, %v4747
        %v4749 = vpop.f32.mrb[0].mxu0
        %v4750 = vpop.f32.mrb[0].mxu0
        %v4751 = vadd.f32 %v4550, %v4750
        %v4752 = vpop.f32.mrb[0].mxu0
        %4753 = vmatprep.mubr.bf16.mxu0 %v3784
        %4754 = vmatmul.mubr.bf16.gmra.mrb[0].mxu0 %v3777
        %v4755 = vpop.f32.mrb[0].mxu0
        %v4756 = vadd.f32 %v4555, %v4755
        %v4757 = vpop.f32.mrb[0].mxu0
        %v4758 = vpop.f32.mrb[0].mxu0
        %v4759 = vadd.f32 %v4558, %v4758
        %v4760 = vpop.f32.mrb[0].mxu0
        %4761 = vmatprep.mubr.bf16.mxu0 %v3791
        %4762 = vmatmul.mubr.bf16.gmra.mrb[0].mxu0 %v3784
        %v4763 = vpop.f32.mrb[0].mxu0
        %v4764 = vadd.f32 %v4563, %v4763
        %v4765 = vpop.f32.mrb[0].mxu0
        %v4766 = vpop.f32.mrb[0].mxu0
        %v4767 = vadd.f32 %v4566, %v4766
        %v4768 = vpop.f32.mrb[0].mxu0
        %4769 = vmatprep.mubr.bf16.mxu0 %v3798
        %4770 = vmatmul.mubr.bf16.gmra.mrb[0].mxu0 %v3791
        %v4771 = vpop.f32.mrb[0].mxu0
        %v4772 = vadd.f32 %v4571, %v4771
        %v4773 = vpop.f32.mrb[0].mxu0
        %v4774 = vpop.f32.mrb[0].mxu0
        %v4775 = vadd.f32 %v4574, %v4774
        %v4776 = vpop.f32.mrb[0].mxu0
        %4777 = vmatprep.mubr.bf16.mxu0 %v3805
        %4778 = vmatmul.mubr.bf16.gmra.mrb[0].mxu0 %v3798
        %v4779 = vpop.f32.mrb[0].mxu0
        %v4780 = vadd.f32 %v4579, %v4779
        %v4781 = vpop.f32.mrb[0].mxu0
        %v4782 = vpop.f32.mrb[0].mxu0
        %v4783 = vadd.f32 %v4582, %v4782
        %v4784 = vpop.f32.mrb[0].mxu0
        %4785 = vmatprep.mubr.bf16.mxu0 %v3812
        %4786 = vmatmul.mubr.bf16.gmra.mrb[0].mxu0 %v3805
        %v4787 = vpop.f32.mrb[0].mxu0
        %v4788 = vadd.f32 %v4587, %v4787
        %v4789 = vpop.f32.mrb[0].mxu0
        %v4790 = vpop.f32.mrb[0].mxu0
        %v4791 = vadd.f32 %v4590, %v4790
        %v4792 = vpop.f32.mrb[0].mxu0
        %4793 = vmatprep.mubr.bf16.mxu0 %v3819
        %4794 = vmatmul.mubr.bf16.gmra.mrb[0].mxu0 %v3812
        %v4795 = vpop.f32.mrb[0].mxu0
        %v4796 = vadd.f32 %v4595, %v4795
        %v4797 = vpop.f32.mrb[0].mxu0
        %v4798 = vpop.f32.mrb[0].mxu0
        %v4799 = vadd.f32 %v4598, %v4798
        %v4800 = vpop.f32.mrb[0].mxu0
        %4801 = vmatprep.mubr.bf16.mxu0 %v3826
        %4802 = vmatmul.mubr.bf16.gmra.mrb[0].mxu0 %v3819
        %v4803 = vpop.f32.mrb[0].mxu0
        %v4804 = vadd.f32 %v4603, %v4803
        %v4805 = vpop.f32.mrb[0].mxu0
        %v4806 = vpop.f32.mrb[0].mxu0
        %v4807 = vadd.f32 %v4606, %v4806
        %v4808 = vpop.f32.mrb[0].mxu0
        %4809 = vmatprep.mubr.bf16.mxu0 %v3833
        %4810 = vmatmul.mubr.bf16.gmra.mrb[0].mxu0 %v3826
        %v4811 = vpop.f32.mrb[0].mxu0
        %v4812 = vadd.f32 %v4611, %v4811
        %v4813 = vpop.f32.mrb[0].mxu0
        %v4814 = vpop.f32.mrb[0].mxu0
        %v4815 = vadd.f32 %v4614, %v4814
        %v4816 = vpop.f32.mrb[0].mxu0
        %4817 = vmatprep.mubr.bf16.mxu0 %v3840
        %4818 = vmatmul.mubr.bf16.gmra.mrb[0].mxu0 %v3833
        %v4819 = vpop.f32.mrb[0].mxu0
        %v4820 = vadd.f32 %v4619, %v4819
        %v4821 = vpop.f32.mrb[0].mxu0
        %v4822 = vpop.f32.mrb[0].mxu0
        %v4823 = vadd.f32 %v4622, %v4822
        %v4824 = vpop.f32.mrb[0].mxu0
        %4825 = vmatprep.mubr.bf16.mxu0 %v3847
        %4826 = vmatmul.mubr.bf16.gmra.mrb[0].mxu0 %v3840
        %v4827 = vpop.f32.mrb[0].mxu0
        %v4828 = vadd.f32 %v4627, %v4827
        %v4829 = vpop.f32.mrb[0].mxu0
        %v4830 = vpop.f32.mrb[0].mxu0
        %v4831 = vadd.f32 %v4630, %v4830
        %v4832 = vpop.f32.mrb[0].mxu0
        %4833 = vmatprep.mubr.bf16.mxu0 %v3712
        %4834 = vmatmul.mubr.bf16.gmra.mrb[0].mxu0 %v3847
        %v4835 = vpop.f32.mrb[0].mxu0
        %v4836 = vadd.f32 %v4635, %v4835
        %v4837 = vpop.f32.mrb[0].mxu0
        %v4838 = vpop.f32.mrb[0].mxu0
        %v4839 = vadd.f32 %v4638, %v4838
        %v4840 = vpop.f32.mrb[0].mxu0
        %4841 = vdwg.mxu0
        %4842 = vmatprep.subr.bf16.mxu0 0
        %4843 = vmatpush1.bf16.msra.mxu0 %v4328
        %4844 = vmatprep.subr.bf16.mxu0 0
        %4845 = vmatpush1.bf16.msra.mxu0 %v4329
        %4846 = vmatprep.subr.bf16.mxu0 0
        %4847 = vmatpush1.bf16.msra.mxu0 %v4330
        %4848 = vmatprep.subr.bf16.mxu0 0
        %4849 = vmatpush1.bf16.msra.mxu0 %v4331
        %4850 = vmatprep.subr.bf16.mxu0 0
        %4851 = vmatpush1.bf16.msra.mxu0 %v4332
        %4852 = vmatprep.subr.bf16.mxu0 0
        %4853 = vmatpush1.bf16.msra.mxu0 %v4333
        %4854 = vmatprep.subr.bf16.mxu0 0
        %4855 = vmatpush1.bf16.msra.mxu0 %v4334
        %4856 = vmatprep.subr.bf16.mxu0 0
        %4857 = vmatpush1.bf16.msra.mxu0 %v4335
        %4858 = vmatprep.subr.bf16.mxu0 0
        %4859 = vmatpush1.bf16.msra.mxu0 %v4336
        %4860 = vmatprep.subr.bf16.mxu0 0
        %4861 = vmatpush1.bf16.msra.mxu0 %v4337
        %4862 = vmatprep.subr.bf16.mxu0 0
        %4863 = vmatpush1.bf16.msra.mxu0 %v4338
        %4864 = vmatprep.subr.bf16.mxu0 0
        %4865 = vmatpush1.bf16.msra.mxu0 %v4339
        %4866 = vmatprep.subr.bf16.mxu0 0
        %4867 = vmatpush1.bf16.msra.mxu0 %v4340
        %4868 = vmatprep.subr.bf16.mxu0 0
        %4869 = vmatpush1.bf16.msra.mxu0 %v4341
        %4870 = vmatprep.subr.bf16.mxu0 0
        %4871 = vmatpush1.bf16.msra.mxu0 %v4342
        %4872 = vmatprep.subr.bf16.mxu0 0
        %4873 = vmatpush1.bf16.msra.mxu0 %v4343
        %4874 = vmatprep.mubr.bf16.mxu0 %v3715
        %4875 = vmatmul.mubr.bf16.gmra.mrb[0].mxu0 %v3714
        %v4876 = vpop.f32.mrb[0].mxu0
        %v4877 = vadd.f32 %v4676, %v4876
        %v4878 = vpop.f32.mrb[0].mxu0
        %v4879 = vpop.f32.mrb[0].mxu0
        %v4880 = vadd.f32 %v4679, %v4879
        %v4881 = vpop.f32.mrb[0].mxu0
        %4882 = vmatprep.mubr.bf16.mxu0 %v3716
        %4883 = vmatmul.mubr.bf16.gmra.mrb[0].mxu0 %v3722
        %v4884 = vpop.f32.mrb[0].mxu0
        %v4885 = vadd.f32 %v4684, %v4884
        %v4886 = vpop.f32.mrb[0].mxu0
        %v4887 = vpop.f32.mrb[0].mxu0
        %v4888 = vadd.f32 %v4687, %v4887
        %v4889 = vpop.f32.mrb[0].mxu0
        %4890 = vmatprep.mubr.bf16.mxu0 %v3723
        %4891 = vmatmul.mubr.bf16.gmra.mrb[0].mxu0 %v3729
        %v4892 = vpop.f32.mrb[0].mxu0
        %v4893 = vadd.f32 %v4692, %v4892
        %v4894 = vpop.f32.mrb[0].mxu0
        %v4895 = vpop.f32.mrb[0].mxu0
        %v4896 = vadd.f32 %v4695, %v4895
        %v4897 = vpop.f32.mrb[0].mxu0
        %4898 = vmatprep.mubr.bf16.mxu0 %v3730
        %4899 = vmatmul.mubr.bf16.gmra.mrb[0].mxu0 %v3736
        %v4900 = vpop.f32.mrb[0].mxu0
        %v4901 = vadd.f32 %v4700, %v4900
        %v4902 = vpop.f32.mrb[0].mxu0
        %v4903 = vpop.f32.mrb[0].mxu0
        %v4904 = vadd.f32 %v4703, %v4903
        %v4905 = vpop.f32.mrb[0].mxu0
        %4906 = vmatprep.mubr.bf16.mxu0 %v3737
        %4907 = vmatmul.mubr.bf16.gmra.mrb[0].mxu0 %v3743
        %v4908 = vpop.f32.mrb[0].mxu0
        %v4909 = vadd.f32 %v4708, %v4908
        %v4910 = vpop.f32.mrb[0].mxu0
        %v4911 = vpop.f32.mrb[0].mxu0
        %v4912 = vadd.f32 %v4711, %v4911
        %v4913 = vpop.f32.mrb[0].mxu0
        %4914 = vmatprep.mubr.bf16.mxu0 %v3744
        %4915 = vmatmul.mubr.bf16.gmra.mrb[0].mxu0 %v3750
        %v4916 = vpop.f32.mrb[0].mxu0
        %v4917 = vadd.f32 %v4716, %v4916
        %v4918 = vpop.f32.mrb[0].mxu0
        %v4919 = vpop.f32.mrb[0].mxu0
        %v4920 = vadd.f32 %v4719, %v4919
        %v4921 = vpop.f32.mrb[0].mxu0
        %4922 = vmatprep.mubr.bf16.mxu0 %v3751
        %4923 = vmatmul.mubr.bf16.gmra.mrb[0].mxu0 %v3757
        %v4924 = vpop.f32.mrb[0].mxu0
        %v4925 = vadd.f32 %v4724, %v4924
        %v4926 = vpop.f32.mrb[0].mxu0
        %v4927 = vpop.f32.mrb[0].mxu0
        %v4928 = vadd.f32 %v4727, %v4927
        %v4929 = vpop.f32.mrb[0].mxu0
        %4930 = vmatprep.mubr.bf16.mxu0 %v3758
        %4931 = vmatmul.mubr.bf16.gmra.mrb[0].mxu0 %v3764
        %v4932 = vpop.f32.mrb[0].mxu0
        %v4933 = vadd.f32 %v4732, %v4932
        %v4934 = vpop.f32.mrb[0].mxu0
        %v4935 = vpop.f32.mrb[0].mxu0
        %v4936 = vadd.f32 %v4735, %v4935
        %v4937 = vpop.f32.mrb[0].mxu0
        %4938 = vmatprep.mubr.bf16.mxu0 %v3765
        %4939 = vmatmul.mubr.bf16.gmra.mrb[0].mxu0 %v3771
        %v4940 = vpop.f32.mrb[0].mxu0
        %v4941 = vadd.f32 %v4740, %v4940
        %v4942 = vpop.f32.mrb[0].mxu0
        %v4943 = vpop.f32.mrb[0].mxu0
        %v4944 = vadd.f32 %v4743, %v4943
        %v4945 = vpop.f32.mrb[0].mxu0
        %4946 = vmatprep.mubr.bf16.mxu0 %v3772
        %4947 = vmatmul.mubr.bf16.gmra.mrb[0].mxu0 %v3778
        %v4948 = vpop.f32.mrb[0].mxu0
        %v4949 = vadd.f32 %v4748, %v4948
        %v4950 = vpop.f32.mrb[0].mxu0
        %v4951 = vpop.f32.mrb[0].mxu0
        %v4952 = vadd.f32 %v4751, %v4951
        %v4953 = vpop.f32.mrb[0].mxu0
        %4954 = vmatprep.mubr.bf16.mxu0 %v3779
        %4955 = vmatmul.mubr.bf16.gmra.mrb[0].mxu0 %v3785
        %v4956 = vpop.f32.mrb[0].mxu0
        %v4957 = vadd.f32 %v4756, %v4956
        %v4958 = vpop.f32.mrb[0].mxu0
        %v4959 = vpop.f32.mrb[0].mxu0
        %v4960 = vadd.f32 %v4759, %v4959
        %v4961 = vpop.f32.mrb[0].mxu0
        %4962 = vmatprep.mubr.bf16.mxu0 %v3786
        %4963 = vmatmul.mubr.bf16.gmra.mrb[0].mxu0 %v3792
        %v4964 = vpop.f32.mrb[0].mxu0
        %v4965 = vadd.f32 %v4764, %v4964
        %v4966 = vpop.f32.mrb[0].mxu0
        %v4967 = vpop.f32.mrb[0].mxu0
        %v4968 = vadd.f32 %v4767, %v4967
        %v4969 = vpop.f32.mrb[0].mxu0
        %4970 = vmatprep.mubr.bf16.mxu0 %v3793
        %4971 = vmatmul.mubr.bf16.gmra.mrb[0].mxu0 %v3799
        %v4972 = vpop.f32.mrb[0].mxu0
        %v4973 = vadd.f32 %v4772, %v4972
        %v4974 = vpop.f32.mrb[0].mxu0
        %v4975 = vpop.f32.mrb[0].mxu0
        %v4976 = vadd.f32 %v4775, %v4975
        %v4977 = vpop.f32.mrb[0].mxu0
        %4978 = vmatprep.mubr.bf16.mxu0 %v3800
        %4979 = vmatmul.mubr.bf16.gmra.mrb[0].mxu0 %v3806
        %v4980 = vpop.f32.mrb[0].mxu0
        %v4981 = vadd.f32 %v4780, %v4980
        %v4982 = vpop.f32.mrb[0].mxu0
        %v4983 = vpop.f32.mrb[0].mxu0
        %v4984 = vadd.f32 %v4783, %v4983
        %v4985 = vpop.f32.mrb[0].mxu0
        %4986 = vmatprep.mubr.bf16.mxu0 %v3807
        %4987 = vmatmul.mubr.bf16.gmra.mrb[0].mxu0 %v3813
        %v4988 = vpop.f32.mrb[0].mxu0
        %v4989 = vadd.f32 %v4788, %v4988
        %v4990 = vpop.f32.mrb[0].mxu0
        %v4991 = vpop.f32.mrb[0].mxu0
        %v4992 = vadd.f32 %v4791, %v4991
        %v4993 = vpop.f32.mrb[0].mxu0
        %4994 = vmatprep.mubr.bf16.mxu0 %v3814
        %4995 = vmatmul.mubr.bf16.gmra.mrb[0].mxu0 %v3820
        %v4996 = vpop.f32.mrb[0].mxu0
        %v4997 = vadd.f32 %v4796, %v4996
        %v4998 = vpop.f32.mrb[0].mxu0
        %v4999 = vpop.f32.mrb[0].mxu0
        %v5000 = vadd.f32 %v4799, %v4999
        %v5001 = vpop.f32.mrb[0].mxu0
        %5002 = vmatprep.mubr.bf16.mxu0 %v3821
        %5003 = vmatmul.mubr.bf16.gmra.mrb[0].mxu0 %v3827
        %v5004 = vpop.f32.mrb[0].mxu0
        %v5005 = vadd.f32 %v4804, %v5004
        %v5006 = vpop.f32.mrb[0].mxu0
        %v5007 = vpop.f32.mrb[0].mxu0
        %v5008 = vadd.f32 %v4807, %v5007
        %v5009 = vpop.f32.mrb[0].mxu0
        %5010 = vmatprep.mubr.bf16.mxu0 %v3828
        %5011 = vmatmul.mubr.bf16.gmra.mrb[0].mxu0 %v3834
        %v5012 = vpop.f32.mrb[0].mxu0
        %v5013 = vadd.f32 %v4812, %v5012
        %v5014 = vpop.f32.mrb[0].mxu0
        %v5015 = vpop.f32.mrb[0].mxu0
        %v5016 = vadd.f32 %v4815, %v5015
        %v5017 = vpop.f32.mrb[0].mxu0
        %5018 = vmatprep.mubr.bf16.mxu0 %v3835
        %5019 = vmatmul.mubr.bf16.gmra.mrb[0].mxu0 %v3841
        %v5020 = vpop.f32.mrb[0].mxu0
        %v5021 = vadd.f32 %v4820, %v5020
        %v5022 = vpop.f32.mrb[0].mxu0
        %v5023 = vpop.f32.mrb[0].mxu0
        %v5024 = vadd.f32 %v4823, %v5023
        %v5025 = vpop.f32.mrb[0].mxu0
        %5026 = vmatprep.mubr.bf16.mxu0 %v3842
        %5027 = vmatmul.mubr.bf16.gmra.mrb[0].mxu0 %v3848
        %v5028 = vpop.f32.mrb[0].mxu0
        %v5029 = vadd.f32 %v4828, %v5028
        %v5030 = vpop.f32.mrb[0].mxu0
        %v5031 = vpop.f32.mrb[0].mxu0
        %v5032 = vadd.f32 %v4831, %v5031
        %v5033 = vpop.f32.mrb[0].mxu0
        %5034 = vmatprep.mubr.bf16.mxu0 %v3849
        %5035 = vmatmul.mubr.bf16.gmra.mrb[0].mxu0 %v3854
        %v5036 = vpop.f32.mrb[0].mxu0
        %v5037 = vadd.f32 %v4836, %v5036
        %v5038 = vpop.f32.mrb[0].mxu0
        %v5039 = vpop.f32.mrb[0].mxu0
        %v5040 = vadd.f32 %v4839, %v5039
        %v5041 = vpop.f32.mrb[0].mxu0
        %5042 = vdwg.mxu0
        %5043 = vmatprep.subr.bf16.mxu0 0
        %5044 = vmatpush1.bf16.msra.mxu0 %v4344
        %5045 = vmatprep.subr.bf16.mxu0 0
        %5046 = vmatpush1.bf16.msra.mxu0 %v4345
        %5047 = vmatprep.subr.bf16.mxu0 0
        %5048 = vmatpush1.bf16.msra.mxu0 %v4346
        %5049 = vmatprep.subr.bf16.mxu0 0
        %5050 = vmatpush1.bf16.msra.mxu0 %v4347
        %5051 = vmatprep.subr.bf16.mxu0 0
        %5052 = vmatpush1.bf16.msra.mxu0 %v4348
        %5053 = vmatprep.subr.bf16.mxu0 0
        %5054 = vmatpush1.bf16.msra.mxu0 %v4349
        %5055 = vmatprep.subr.bf16.mxu0 0
        %5056 = vmatpush1.bf16.msra.mxu0 %v4350
        %5057 = vmatprep.subr.bf16.mxu0 0
        %5058 = vmatpush1.bf16.msra.mxu0 %v4351
        %5059 = vmatprep.subr.bf16.mxu0 0
        %5060 = vmatpush1.bf16.msra.mxu0 %v4352
        %5061 = vmatprep.subr.bf16.mxu0 0
        %5062 = vmatpush1.bf16.msra.mxu0 %v4353
        %5063 = vmatprep.subr.bf16.mxu0 0
        %5064 = vmatpush1.bf16.msra.mxu0 %v4354
        %5065 = vmatprep.subr.bf16.mxu0 0
        %5066 = vmatpush1.bf16.msra.mxu0 %v4355
        %5067 = vmatprep.subr.bf16.mxu0 0
        %5068 = vmatpush1.bf16.msra.mxu0 %v4356
        %5069 = vmatprep.subr.bf16.mxu0 0
        %5070 = vmatpush1.bf16.msra.mxu0 %v4357
        %5071 = vmatprep.subr.bf16.mxu0 0
        %5072 = vmatpush1.bf16.msra.mxu0 %v4358
        %5073 = vmatprep.subr.bf16.mxu0 0
        %5074 = vmatpush1.bf16.msra.mxu0 %v4359
        %5075 = vmatprep.mubr.bf16.mxu0 %v3717
        %5076 = vmatmul.mubr.bf16.gmra.mrb[0].mxu0 %v3716
        %v5077 = vpop.f32.mrb[0].mxu0
        %v5078 = vadd.f32 %v4877, %v5077
        %v5079 = vpop.f32.mrb[0].mxu0
        %v5080 = vpop.f32.mrb[0].mxu0
        %v5081 = vadd.f32 %v4880, %v5080
        %v5082 = vpop.f32.mrb[0].mxu0
        %5083 = vmatprep.mubr.bf16.mxu0 %v3724
        %5084 = vmatmul.mubr.bf16.gmra.mrb[0].mxu0 %v3723
        %v5085 = vpop.f32.mrb[0].mxu0
        %v5086 = vadd.f32 %v4885, %v5085
        %v5087 = vpop.f32.mrb[0].mxu0
        %v5088 = vpop.f32.mrb[0].mxu0
        %v5089 = vadd.f32 %v4888, %v5088
        %v5090 = vpop.f32.mrb[0].mxu0
        %5091 = vmatprep.mubr.bf16.mxu0 %v3731
        %5092 = vmatmul.mubr.bf16.gmra.mrb[0].mxu0 %v3730
        %v5093 = vpop.f32.mrb[0].mxu0
        %v5094 = vadd.f32 %v4893, %v5093
        %v5095 = vpop.f32.mrb[0].mxu0
        %v5096 = vpop.f32.mrb[0].mxu0
        %v5097 = vadd.f32 %v4896, %v5096
        %v5098 = vpop.f32.mrb[0].mxu0
        %5099 = vmatprep.mubr.bf16.mxu0 %v3738
        %5100 = vmatmul.mubr.bf16.gmra.mrb[0].mxu0 %v3737
        %v5101 = vpop.f32.mrb[0].mxu0
        %v5102 = vadd.f32 %v4901, %v5101
        %v5103 = vpop.f32.mrb[0].mxu0
        %v5104 = vpop.f32.mrb[0].mxu0
        %v5105 = vadd.f32 %v4904, %v5104
        %v5106 = vpop.f32.mrb[0].mxu0
        %5107 = vmatprep.mubr.bf16.mxu0 %v3745
        %5108 = vmatmul.mubr.bf16.gmra.mrb[0].mxu0 %v3744
        %v5109 = vpop.f32.mrb[0].mxu0
        %v5110 = vadd.f32 %v4909, %v5109
        %v5111 = vpop.f32.mrb[0].mxu0
        %v5112 = vpop.f32.mrb[0].mxu0
        %v5113 = vadd.f32 %v4912, %v5112
        %v5114 = vpop.f32.mrb[0].mxu0
        %5115 = vmatprep.mubr.bf16.mxu0 %v3752
        %5116 = vmatmul.mubr.bf16.gmra.mrb[0].mxu0 %v3751
        %v5117 = vpop.f32.mrb[0].mxu0
        %v5118 = vadd.f32 %v4917, %v5117
        %v5119 = vpop.f32.mrb[0].mxu0
        %v5120 = vpop.f32.mrb[0].mxu0
        %v5121 = vadd.f32 %v4920, %v5120
        %v5122 = vpop.f32.mrb[0].mxu0
        %5123 = vmatprep.mubr.bf16.mxu0 %v3759
        %5124 = vmatmul.mubr.bf16.gmra.mrb[0].mxu0 %v3758
        %v5125 = vpop.f32.mrb[0].mxu0
        %v5126 = vadd.f32 %v4925, %v5125
        %v5127 = vpop.f32.mrb[0].mxu0
        %v5128 = vpop.f32.mrb[0].mxu0
        %v5129 = vadd.f32 %v4928, %v5128
        %v5130 = vpop.f32.mrb[0].mxu0
        %5131 = vmatprep.mubr.bf16.mxu0 %v3766
        %5132 = vmatmul.mubr.bf16.gmra.mrb[0].mxu0 %v3765
        %v5133 = vpop.f32.mrb[0].mxu0
        %v5134 = vadd.f32 %v4933, %v5133
        %v5135 = vpop.f32.mrb[0].mxu0
        %v5136 = vpop.f32.mrb[0].mxu0
        %v5137 = vadd.f32 %v4936, %v5136
        %v5138 = vpop.f32.mrb[0].mxu0
        %5139 = vmatprep.mubr.bf16.mxu0 %v3773
        %5140 = vmatmul.mubr.bf16.gmra.mrb[0].mxu0 %v3772
        %v5141 = vpop.f32.mrb[0].mxu0
        %v5142 = vadd.f32 %v4941, %v5141
        %v5143 = vpop.f32.mrb[0].mxu0
        %v5144 = vpop.f32.mrb[0].mxu0
        %v5145 = vadd.f32 %v4944, %v5144
        %v5146 = vpop.f32.mrb[0].mxu0
        %5147 = vmatprep.mubr.bf16.mxu0 %v3780
        %5148 = vmatmul.mubr.bf16.gmra.mrb[0].mxu0 %v3779
        %v5149 = vpop.f32.mrb[0].mxu0
        %v5150 = vadd.f32 %v4949, %v5149
        %v5151 = vpop.f32.mrb[0].mxu0
        %v5152 = vpop.f32.mrb[0].mxu0
        %v5153 = vadd.f32 %v4952, %v5152
        %v5154 = vpop.f32.mrb[0].mxu0
        %5155 = vmatprep.mubr.bf16.mxu0 %v3787
        %5156 = vmatmul.mubr.bf16.gmra.mrb[0].mxu0 %v3786
        %v5157 = vpop.f32.mrb[0].mxu0
        %v5158 = vadd.f32 %v4957, %v5157
        %v5159 = vpop.f32.mrb[0].mxu0
        %v5160 = vpop.f32.mrb[0].mxu0
        %v5161 = vadd.f32 %v4960, %v5160
        %v5162 = vpop.f32.mrb[0].mxu0
        %5163 = vmatprep.mubr.bf16.mxu0 %v3794
        %5164 = vmatmul.mubr.bf16.gmra.mrb[0].mxu0 %v3793
        %v5165 = vpop.f32.mrb[0].mxu0
        %v5166 = vadd.f32 %v4965, %v5165
        %v5167 = vpop.f32.mrb[0].mxu0
        %v5168 = vpop.f32.mrb[0].mxu0
        %v5169 = vadd.f32 %v4968, %v5168
        %v5170 = vpop.f32.mrb[0].mxu0
        %5171 = vmatprep.mubr.bf16.mxu0 %v3801
        %5172 = vmatmul.mubr.bf16.gmra.mrb[0].mxu0 %v3800
        %v5173 = vpop.f32.mrb[0].mxu0
        %v5174 = vadd.f32 %v4973, %v5173
        %v5175 = vpop.f32.mrb[0].mxu0
        %v5176 = vpop.f32.mrb[0].mxu0
        %v5177 = vadd.f32 %v4976, %v5176
        %v5178 = vpop.f32.mrb[0].mxu0
        %5179 = vmatprep.mubr.bf16.mxu0 %v3808
        %5180 = vmatmul.mubr.bf16.gmra.mrb[0].mxu0 %v3807
        %v5181 = vpop.f32.mrb[0].mxu0
        %v5182 = vadd.f32 %v4981, %v5181
        %v5183 = vpop.f32.mrb[0].mxu0
        %v5184 = vpop.f32.mrb[0].mxu0
        %v5185 = vadd.f32 %v4984, %v5184
        %v5186 = vpop.f32.mrb[0].mxu0
        %5187 = vmatprep.mubr.bf16.mxu0 %v3815
        %5188 = vmatmul.mubr.bf16.gmra.mrb[0].mxu0 %v3814
        %v5189 = vpop.f32.mrb[0].mxu0
        %v5190 = vadd.f32 %v4989, %v5189
        %v5191 = vpop.f32.mrb[0].mxu0
        %v5192 = vpop.f32.mrb[0].mxu0
        %v5193 = vadd.f32 %v4992, %v5192
        %v5194 = vpop.f32.mrb[0].mxu0
        %5195 = vmatprep.mubr.bf16.mxu0 %v3822
        %5196 = vmatmul.mubr.bf16.gmra.mrb[0].mxu0 %v3821
        %v5197 = vpop.f32.mrb[0].mxu0
        %v5198 = vadd.f32 %v4997, %v5197
        %v5199 = vpop.f32.mrb[0].mxu0
        %v5200 = vpop.f32.mrb[0].mxu0
        %v5201 = vadd.f32 %v5000, %v5200
        %v5202 = vpop.f32.mrb[0].mxu0
        %5203 = vmatprep.mubr.bf16.mxu0 %v3829
        %5204 = vmatmul.mubr.bf16.gmra.mrb[0].mxu0 %v3828
        %v5205 = vpop.f32.mrb[0].mxu0
        %v5206 = vadd.f32 %v5005, %v5205
        %v5207 = vpop.f32.mrb[0].mxu0
        %v5208 = vpop.f32.mrb[0].mxu0
        %v5209 = vadd.f32 %v5008, %v5208
        %v5210 = vpop.f32.mrb[0].mxu0
        %5211 = vmatprep.mubr.bf16.mxu0 %v3836
        %5212 = vmatmul.mubr.bf16.gmra.mrb[0].mxu0 %v3835
        %v5213 = vpop.f32.mrb[0].mxu0
        %v5214 = vadd.f32 %v5013, %v5213
        %v5215 = vpop.f32.mrb[0].mxu0
        %v5216 = vpop.f32.mrb[0].mxu0
        %v5217 = vadd.f32 %v5016, %v5216
        %v5218 = vpop.f32.mrb[0].mxu0
        %5219 = vmatprep.mubr.bf16.mxu0 %v3843
        %5220 = vmatmul.mubr.bf16.gmra.mrb[0].mxu0 %v3842
        %v5221 = vpop.f32.mrb[0].mxu0
        %v5222 = vadd.f32 %v5021, %v5221
        %v5223 = vpop.f32.mrb[0].mxu0
        %v5224 = vpop.f32.mrb[0].mxu0
        %v5225 = vadd.f32 %v5024, %v5224
        %v5226 = vpop.f32.mrb[0].mxu0
        %5227 = vmatprep.mubr.bf16.mxu0 %v3850
        %5228 = vmatmul.mubr.bf16.gmra.mrb[0].mxu0 %v3849
        %v5229 = vpop.f32.mrb[0].mxu0
        %v5230 = vadd.f32 %v5029, %v5229
        %v5231 = vpop.f32.mrb[0].mxu0
        %v5232 = vpop.f32.mrb[0].mxu0
        %v5233 = vadd.f32 %v5032, %v5232
        %v5234 = vpop.f32.mrb[0].mxu0
        %5235 = vmatprep.mubr.bf16.mxu0 %v3855
        %5236 = vmatmul.mubr.bf16.gmra.mrb[0].mxu0 %v3715
        %v5237 = vpop.f32.mrb[0].mxu0
        %v5238 = vadd.f32 %v5037, %v5237
        %v5239 = vpop.f32.mrb[0].mxu0
        %v5240 = vpop.f32.mrb[0].mxu0
        %v5241 = vadd.f32 %v5040, %v5240
        %v5242 = vpop.f32.mrb[0].mxu0
        %5243 = vdwg.mxu0
        %5244 = vmatprep.subr.bf16.mxu0 0
        %5245 = vmatpush1.bf16.msra.mxu0 %v4360
        %5246 = vmatprep.subr.bf16.mxu0 0
        %5247 = vmatpush1.bf16.msra.mxu0 %v4361
        %5248 = vmatprep.subr.bf16.mxu0 0
        %5249 = vmatpush1.bf16.msra.mxu0 %v4362
        %5250 = vmatprep.subr.bf16.mxu0 0
        %5251 = vmatpush1.bf16.msra.mxu0 %v4363
        %5252 = vmatprep.subr.bf16.mxu0 0
        %5253 = vmatpush1.bf16.msra.mxu0 %v4364
        %5254 = vmatprep.subr.bf16.mxu0 0
        %5255 = vmatpush1.bf16.msra.mxu0 %v4365
        %5256 = vmatprep.subr.bf16.mxu0 0
        %5257 = vmatpush1.bf16.msra.mxu0 %v4366
        %5258 = vmatprep.subr.bf16.mxu0 0
        %5259 = vmatpush1.bf16.msra.mxu0 %v4367
        %5260 = vmatprep.subr.bf16.mxu0 0
        %5261 = vmatpush1.bf16.msra.mxu0 0
        %5262 = vmatprep.subr.bf16.mxu0 0
        %5263 = vmatpush1.bf16.msra.mxu0 0
        %5264 = vmatprep.subr.bf16.mxu0 0
        %5265 = vmatpush1.bf16.msra.mxu0 0
        %5266 = vmatprep.subr.bf16.mxu0 0
        %5267 = vmatpush1.bf16.msra.mxu0 0
        %5268 = vmatprep.subr.bf16.mxu0 0
        %5269 = vmatpush1.bf16.msra.mxu0 0
        %5270 = vmatprep.subr.bf16.mxu0 0
        %5271 = vmatpush1.bf16.msra.mxu0 0
        %5272 = vmatprep.subr.bf16.mxu0 0
        %5273 = vmatpush1.bf16.msra.mxu0 0
        %5274 = vmatprep.subr.bf16.mxu0 0
        %5275 = vmatpush1.bf16.msra.mxu0 0
        %5276 = vmatprep.mubr.bf16.mxu0 0
        %5277 = vmatmul.mubr.bf16.gmra.mrb[0].mxu0 %v3718
        %v5278 = vpop.f32.mrb[0].mxu0
        %v5279 = vadd.f32 %v5078, %v5278
        %v5280 = vpop.f32.mrb[0].mxu0
        %v5281 = vpop.f32.mrb[0].mxu0
        %v5282 = vadd.f32 %v5081, %v5281
        %v5283 = vpop.f32.mrb[0].mxu0
        %5284 = vmatprep.mubr.bf16.mxu0 0
        %5285 = vmatmul.mubr.bf16.gmra.mrb[0].mxu0 %v3725
        %v5286 = vpop.f32.mrb[0].mxu0
        %v5287 = vadd.f32 %v5086, %v5286
        %v5288 = vpop.f32.mrb[0].mxu0
        %v5289 = vpop.f32.mrb[0].mxu0
        %v5290 = vadd.f32 %v5089, %v5289
        %v5291 = vpop.f32.mrb[0].mxu0
        %5292 = vmatprep.mubr.bf16.mxu0 0
        %5293 = vmatmul.mubr.bf16.gmra.mrb[0].mxu0 %v3732
        %v5294 = vpop.f32.mrb[0].mxu0
        %v5295 = vadd.f32 %v5094, %v5294
        %v5296 = vpop.f32.mrb[0].mxu0
        %v5297 = vpop.f32.mrb[0].mxu0
        %v5298 = vadd.f32 %v5097, %v5297
        %v5299 = vpop.f32.mrb[0].mxu0
        %5300 = vmatprep.mubr.bf16.mxu0 0
        %5301 = vmatmul.mubr.bf16.gmra.mrb[0].mxu0 %v3739
        %v5302 = vpop.f32.mrb[0].mxu0
        %v5303 = vadd.f32 %v5102, %v5302
        %v5304 = vpop.f32.mrb[0].mxu0
        %v5305 = vpop.f32.mrb[0].mxu0
        %v5306 = vadd.f32 %v5105, %v5305
        %v5307 = vpop.f32.mrb[0].mxu0
        %5308 = vmatprep.mubr.bf16.mxu0 0
        %5309 = vmatmul.mubr.bf16.gmra.mrb[0].mxu0 %v3746
        %v5310 = vpop.f32.mrb[0].mxu0
        %v5311 = vadd.f32 %v5110, %v5310
        %v5312 = vpop.f32.mrb[0].mxu0
        %v5313 = vpop.f32.mrb[0].mxu0
        %v5314 = vadd.f32 %v5113, %v5313
        %v5315 = vpop.f32.mrb[0].mxu0
        %5316 = vmatprep.mubr.bf16.mxu0 0
        %5317 = vmatmul.mubr.bf16.gmra.mrb[0].mxu0 %v3753
        %v5318 = vpop.f32.mrb[0].mxu0
        %v5319 = vadd.f32 %v5118, %v5318
        %v5320 = vpop.f32.mrb[0].mxu0
        %v5321 = vpop.f32.mrb[0].mxu0
        %v5322 = vadd.f32 %v5121, %v5321
        %v5323 = vpop.f32.mrb[0].mxu0
        %5324 = vmatprep.mubr.bf16.mxu0 0
        %5325 = vmatmul.mubr.bf16.gmra.mrb[0].mxu0 %v3760
        %v5326 = vpop.f32.mrb[0].mxu0
        %v5327 = vadd.f32 %v5126, %v5326
        %v5328 = vpop.f32.mrb[0].mxu0
        %v5329 = vpop.f32.mrb[0].mxu0
        %v5330 = vadd.f32 %v5129, %v5329
        %v5331 = vpop.f32.mrb[0].mxu0
        %5332 = vmatprep.mubr.bf16.mxu0 0
        %5333 = vmatmul.mubr.bf16.gmra.mrb[0].mxu0 %v3767
        %v5334 = vpop.f32.mrb[0].mxu0
        %v5335 = vadd.f32 %v5134, %v5334
        %v5336 = vpop.f32.mrb[0].mxu0
        %v5337 = vpop.f32.mrb[0].mxu0
        %v5338 = vadd.f32 %v5137, %v5337
        %v5339 = vpop.f32.mrb[0].mxu0
        %5340 = vmatprep.mubr.bf16.mxu0 0
        %5341 = vmatmul.mubr.bf16.gmra.mrb[0].mxu0 %v3774
        %v5342 = vpop.f32.mrb[0].mxu0
        %v5343 = vadd.f32 %v5142, %v5342
        %v5344 = vpop.f32.mrb[0].mxu0
        %v5345 = vpop.f32.mrb[0].mxu0
        %v5346 = vadd.f32 %v5145, %v5345
        %v5347 = vpop.f32.mrb[0].mxu0
        %5348 = vmatprep.mubr.bf16.mxu0 0
        %5349 = vmatmul.mubr.bf16.gmra.mrb[0].mxu0 %v3781
        %v5350 = vpop.f32.mrb[0].mxu0
        %v5351 = vadd.f32 %v5150, %v5350
        %v5352 = vpop.f32.mrb[0].mxu0
        %v5353 = vpop.f32.mrb[0].mxu0
        %v5354 = vadd.f32 %v5153, %v5353
        %v5355 = vpop.f32.mrb[0].mxu0
        %5356 = vmatprep.mubr.bf16.mxu0 0
        %5357 = vmatmul.mubr.bf16.gmra.mrb[0].mxu0 %v3788
        %v5358 = vpop.f32.mrb[0].mxu0
        %v5359 = vadd.f32 %v5158, %v5358
        %v5360 = vpop.f32.mrb[0].mxu0
        %v5361 = vpop.f32.mrb[0].mxu0
        %v5362 = vadd.f32 %v5161, %v5361
        %v5363 = vpop.f32.mrb[0].mxu0
        %5364 = vmatprep.mubr.bf16.mxu0 0
        %5365 = vmatmul.mubr.bf16.gmra.mrb[0].mxu0 %v3795
        %v5366 = vpop.f32.mrb[0].mxu0
        %v5367 = vadd.f32 %v5166, %v5366
        %v5368 = vpop.f32.mrb[0].mxu0
        %v5369 = vpop.f32.mrb[0].mxu0
        %v5370 = vadd.f32 %v5169, %v5369
        %v5371 = vpop.f32.mrb[0].mxu0
        %5372 = vmatprep.mubr.bf16.mxu0 0
        %5373 = vmatmul.mubr.bf16.gmra.mrb[0].mxu0 %v3802
        %v5374 = vpop.f32.mrb[0].mxu0
        %v5375 = vadd.f32 %v5174, %v5374
        %v5376 = vpop.f32.mrb[0].mxu0
        %v5377 = vpop.f32.mrb[0].mxu0
        %v5378 = vadd.f32 %v5177, %v5377
        %v5379 = vpop.f32.mrb[0].mxu0
        %5380 = vmatprep.mubr.bf16.mxu0 0
        %5381 = vmatmul.mubr.bf16.gmra.mrb[0].mxu0 %v3809
        %v5382 = vpop.f32.mrb[0].mxu0
        %v5383 = vadd.f32 %v5182, %v5382
        %v5384 = vpop.f32.mrb[0].mxu0
        %v5385 = vpop.f32.mrb[0].mxu0
        %v5386 = vadd.f32 %v5185, %v5385
        %v5387 = vpop.f32.mrb[0].mxu0
        %5388 = vmatprep.mubr.bf16.mxu0 0
        %5389 = vmatmul.mubr.bf16.gmra.mrb[0].mxu0 %v3816
        %v5390 = vpop.f32.mrb[0].mxu0
        %v5391 = vadd.f32 %v5190, %v5390
        %v5392 = vpop.f32.mrb[0].mxu0
        %v5393 = vpop.f32.mrb[0].mxu0
        %v5394 = vadd.f32 %v5193, %v5393
        %v5395 = vpop.f32.mrb[0].mxu0
        %5396 = vmatprep.mubr.bf16.mxu0 0
        %5397 = vmatmul.mubr.bf16.gmra.mrb[0].mxu0 %v3823
        %v5398 = vpop.f32.mrb[0].mxu0
        %v5399 = vadd.f32 %v5198, %v5398
        %v5400 = vpop.f32.mrb[0].mxu0
        %v5401 = vpop.f32.mrb[0].mxu0
        %v5402 = vadd.f32 %v5201, %v5401
        %v5403 = vpop.f32.mrb[0].mxu0
        %5404 = vmatprep.mubr.bf16.mxu0 0
        %5405 = vmatmul.mubr.bf16.gmra.mrb[0].mxu0 %v3830
        %v5406 = vpop.f32.mrb[0].mxu0
        %v5407 = vadd.f32 %v5206, %v5406
        %v5408 = vpop.f32.mrb[0].mxu0
        %v5409 = vpop.f32.mrb[0].mxu0
        %v5410 = vadd.f32 %v5209, %v5409
        %v5411 = vpop.f32.mrb[0].mxu0
        %5412 = vmatprep.mubr.bf16.mxu0 0
        %5413 = vmatmul.mubr.bf16.gmra.mrb[0].mxu0 %v3837
        %v5414 = vpop.f32.mrb[0].mxu0
        %v5415 = vadd.f32 %v5214, %v5414
        %v5416 = vpop.f32.mrb[0].mxu0
        %v5417 = vpop.f32.mrb[0].mxu0
        %v5418 = vadd.f32 %v5217, %v5417
        %v5419 = vpop.f32.mrb[0].mxu0
        %5420 = vmatprep.mubr.bf16.mxu0 0
        %5421 = vmatmul.mubr.bf16.gmra.mrb[0].mxu0 %v3844
        %v5422 = vpop.f32.mrb[0].mxu0
        %v5423 = vadd.f32 %v5222, %v5422
        %v5424 = vpop.f32.mrb[0].mxu0
        %v5425 = vpop.f32.mrb[0].mxu0
        %v5426 = vadd.f32 %v5225, %v5425
        %v5427 = vpop.f32.mrb[0].mxu0
        %5428 = vmatprep.mubr.bf16.mxu0 0
        %5429 = vmatmul.mubr.bf16.gmra.mrb[0].mxu0 %v3851
        %v5430 = vpop.f32.mrb[0].mxu0
        %v5431 = vadd.f32 %v5230, %v5430
        %v5432 = vpop.f32.mrb[0].mxu0
        %v5433 = vpop.f32.mrb[0].mxu0
        %v5434 = vadd.f32 %v5233, %v5433
        %v5435 = vpop.f32.mrb[0].mxu0
        %5436 = vmatprep.mubr.bf16.mxu0 0
        %5437 = vmatmul.mubr.bf16.gmra.mrb[0].mxu0 %v3856
        %v5438 = vpop.f32.mrb[0].mxu0
        %v5439 = vadd.f32 %v5238, %v5438
        %v5440 = vpop.f32.mrb[0].mxu0
        %v5441 = vpop.f32.mrb[0].mxu0
        %v5442 = vadd.f32 %v5241, %v5441
        %v5443 = vpop.f32.mrb[0].mxu0
        %5444 = vdwg.mxu0
        %v5445 = vmax.f32 %v5279, 0.0
        %v5446 = vmax.f32 %v5282, 0.0
        %v5447 = vmax.f32 %v5287, 0.0
        %v5448 = vmax.f32 %v5290, 0.0
        %v5449 = vmax.f32 %v5295, 0.0
        %v5450 = vmax.f32 %v5298, 0.0
        %v5451 = vmax.f32 %v5303, 0.0
        %v5452 = vmax.f32 %v5306, 0.0
        %v5453 = vmax.f32 %v5311, 0.0
        %v5454 = vmax.f32 %v5314, 0.0
        %v5455 = vmax.f32 %v5319, 0.0
        %v5456 = vmax.f32 %v5322, 0.0
        %v5457 = vmax.f32 %v5327, 0.0
        %v5458 = vmax.f32 %v5330, 0.0
        %v5459 = vmax.f32 %v5335, 0.0
        %v5460 = vmax.f32 %v5338, 0.0
        %v5461 = vmax.f32 %v5343, 0.0
        %v5462 = vmax.f32 %v5346, 0.0
        %v5463 = vmax.f32 %v5351, 0.0
        %v5464 = vmax.f32 %v5354, 0.0
        %v5465 = vmax.f32 %v5359, 0.0
        %v5466 = vmax.f32 %v5362, 0.0
        %v5467 = vmax.f32 %v5367, 0.0
        %v5468 = vmax.f32 %v5370, 0.0
        %v5469 = vmax.f32 %v5375, 0.0
        %v5470 = vmax.f32 %v5378, 0.0
        %v5471 = vmax.f32 %v5383, 0.0
        %v5472 = vmax.f32 %v5386, 0.0
        %v5473 = vmax.f32 %v5391, 0.0
        %v5474 = vmax.f32 %v5394, 0.0
        %v5475 = vmax.f32 %v5399, 0.0
        %v5476 = vmax.f32 %v5402, 0.0
        %v5477 = vmax.f32 %v5407, 0.0
        %v5478 = vmax.f32 %v5410, 0.0
        %v5479 = vmax.f32 %v5415, 0.0
        %v5480 = vmax.f32 %v5418, 0.0
        %v5481 = vmax.f32 %v5423, 0.0
        %v5482 = vmax.f32 %v5426, 0.0
        %v5483 = vmax.f32 %v5431, 0.0
        %v5484 = vmax.f32 %v5434, 0.0
        %v5485 = vmax.f32 %v5439, 0.0
        %v5486 = vmax.f32 %v5442, 0.0
        %v5487 = vmul.f32 %v5445, %v2957
        %v5488 = vmul.f32 %v5446, %v2962
        %v5489 = vmul.f32 %v5447, %v2967
        %v5490 = vmul.f32 %v5448, %v2972
        %v5491 = vmul.f32 %v5449, %v2977
        %v5492 = vmul.f32 %v5450, %v2982
        %v5493 = vmul.f32 %v5451, %v2987
        %v5494 = vmul.f32 %v5452, %v2992
        %v5495 = vmul.f32 %v5453, %v2997
        %v5496 = vmul.f32 %v5454, %v3002
        %v5497 = vmul.f32 %v5455, %v3007
        %v5498 = vmul.f32 %v5456, %v3012
        %v5499 = vmul.f32 %v5457, %v3017
        %v5500 = vmul.f32 %v5458, %v3022
        %v5501 = vmul.f32 %v5459, %v3027
        %v5502 = vmul.f32 %v5460, %v3032
        %v5503 = vmul.f32 %v5461, %v3037
        %v5504 = vmul.f32 %v5462, %v3042
        %v5505 = vmul.f32 %v5463, %v3047
        %v5506 = vmul.f32 %v5464, %v3052
        %v5507 = vmul.f32 %v5465, %v3057
        %v5508 = vmul.f32 %v5466, %v3062
        %v5509 = vmul.f32 %v5467, %v3067
        %v5510 = vmul.f32 %v5468, %v3072
        %v5511 = vmul.f32 %v5469, %v3077
        %v5512 = vmul.f32 %v5470, %v3082
        %v5513 = vmul.f32 %v5471, %v3087
        %v5514 = vmul.f32 %v5472, %v3092
        %v5515 = vmul.f32 %v5473, %v3097
        %v5516 = vmul.f32 %v5474, %v3102
        %v5517 = vmul.f32 %v5475, %v3107
        %v5518 = vmul.f32 %v5476, %v3112
        %v5519 = vmul.f32 %v5477, %v3117
        %v5520 = vmul.f32 %v5478, %v3122
        %v5521 = vmul.f32 %v5479, %v3127
        %v5522 = vmul.f32 %v5480, %v3132
        %v5523 = vmul.f32 %v5481, %v3137
        %v5524 = vmul.f32 %v5482, %v3142
        %v5525 = vmul.f32 %v5483, %v3147
        %v5526 = vmul.f32 %v5484, %v3152
        %v5527 = vmul.f32 %v5485, %v3157
        %v5528 = vmul.f32 %v5486, %v3162
        %v5529 = vrot.slane %v5487, 5
        %v5530 = vrot.slane %v5488, 5
        %v5531 = vrot.slane %v5489, 5
        %v5532 = vrot.slane %v5490, 5
        %v5533 = vrot.slane %v5491, 5
        %v5534 = vrot.slane %v5492, 5
        %v5535 = vrot.slane %v5493, 5
        %v5536 = vrot.slane %v5494, 5
        %v5537 = vrot.slane %v5495, 5
        %v5538 = vrot.slane %v5496, 5
        %v5539 = vrot.slane %v5497, 5
        %v5540 = vrot.slane %v5498, 5
        %v5541 = vrot.slane %v5499, 5
        %v5542 = vrot.slane %v5500, 5
        %v5543 = vrot.slane %v5501, 5
        %v5544 = vrot.slane %v5502, 5
        %v5545 = vrot.slane %v5503, 5
        %v5546 = vrot.slane %v5504, 5
        %v5547 = vrot.slane %v5505, 5
        %v5548 = vrot.slane %v5506, 5
        %v5549 = vrot.slane %v5507, 5
        %v5550 = vrot.slane %v5508, 5
        %v5551 = vrot.slane %v5509, 5
        %v5552 = vrot.slane %v5510, 5
        %v5553 = vrot.slane %v5511, 5
        %v5554 = vrot.slane %v5512, 5
        %v5555 = vrot.slane %v5513, 5
        %v5556 = vrot.slane %v5514, 5
        %v5557 = vrot.slane %v5515, 5
        %v5558 = vrot.slane %v5516, 5
        %v5559 = vrot.slane %v5517, 5
        %v5560 = vrot.slane %v5518, 5
        %v5561 = vrot.slane %v5519, 5
        %v5562 = vrot.slane %v5520, 5
        %v5563 = vrot.slane %v5521, 5
        %v5564 = vrot.slane %v5522, 5
        %v5565 = vrot.slane %v5523, 5
        %v5566 = vrot.slane %v5524, 5
        %v5567 = vrot.slane %v5525, 5
        %v5568 = vrot.slane %v5526, 5
        %v5569 = vrot.slane %v5527, 5
        %v5570 = vrot.slane %v5528, 5
        %v5571 = vsel %vm709, %v5569, %v5570
        %v5572 = vsel %vm709, %v5568, %v5569
        %v5573 = vsel %vm709, %v5567, %v5568
        %v5574 = vsel %vm709, %v5566, %v5567
        %v5575 = vsel %vm709, %v5565, %v5566
        %v5576 = vsel %vm709, %v5564, %v5565
        %v5577 = vsel %vm709, %v5563, %v5564
        %v5578 = vsel %vm709, %v5562, %v5563
        %v5579 = vsel %vm709, %v5561, %v5562
        %v5580 = vsel %vm709, %v5560, %v5561
        %v5581 = vsel %vm709, %v5559, %v5560
        %v5582 = vsel %vm709, %v5558, %v5559
        %v5583 = vsel %vm709, %v5557, %v5558
        %v5584 = vsel %vm709, %v5556, %v5557
        %v5585 = vsel %vm709, %v5555, %v5556
        %v5586 = vsel %vm709, %v5554, %v5555
        %v5587 = vsel %vm709, %v5553, %v5554
        %v5588 = vsel %vm709, %v5552, %v5553
        %v5589 = vsel %vm709, %v5551, %v5552
        %v5590 = vsel %vm709, %v5550, %v5551
        %v5591 = vsel %vm709, %v5549, %v5550
        %v5592 = vsel %vm709, %v5548, %v5549
        %v5593 = vsel %vm709, %v5547, %v5548
        %v5594 = vsel %vm709, %v5546, %v5547
        %v5595 = vsel %vm709, %v5545, %v5546
        %v5596 = vsel %vm709, %v5544, %v5545
        %v5597 = vsel %vm709, %v5543, %v5544
        %v5598 = vsel %vm709, %v5542, %v5543
        %v5599 = vsel %vm709, %v5541, %v5542
        %v5600 = vsel %vm709, %v5540, %v5541
        %v5601 = vsel %vm709, %v5539, %v5540
        %v5602 = vsel %vm709, %v5538, %v5539
        %v5603 = vsel %vm709, %v5537, %v5538
        %v5604 = vsel %vm709, %v5536, %v5537
        %v5605 = vsel %vm709, %v5535, %v5536
        %v5606 = vsel %vm709, %v5534, %v5535
        %v5607 = vsel %vm709, %v5533, %v5534
        %v5608 = vsel %vm709, %v5532, %v5533
        %v5609 = vsel %vm709, %v5531, %v5532
        %v5610 = vsel %vm709, %v5530, %v5531
        %v5611 = vsel %vm709, %v5529, %v5530
        %v5612 = vsel %vm709, %v5570, %v5529
        %v5613 = vrot.slane %v5487, 6
        %v5614 = vrot.slane %v5488, 6
        %v5615 = vrot.slane %v5489, 6
        %v5616 = vrot.slane %v5490, 6
        %v5617 = vrot.slane %v5491, 6
        %v5618 = vrot.slane %v5492, 6
        %v5619 = vrot.slane %v5493, 6
        %v5620 = vrot.slane %v5494, 6
        %v5621 = vrot.slane %v5495, 6
        %v5622 = vrot.slane %v5496, 6
        %v5623 = vrot.slane %v5497, 6
        %v5624 = vrot.slane %v5498, 6
        %v5625 = vrot.slane %v5499, 6
        %v5626 = vrot.slane %v5500, 6
        %v5627 = vrot.slane %v5501, 6
        %v5628 = vrot.slane %v5502, 6
        %v5629 = vrot.slane %v5503, 6
        %v5630 = vrot.slane %v5504, 6
        %v5631 = vrot.slane %v5505, 6
        %v5632 = vrot.slane %v5506, 6
        %v5633 = vrot.slane %v5507, 6
        %v5634 = vrot.slane %v5508, 6
        %v5635 = vrot.slane %v5509, 6
        %v5636 = vrot.slane %v5510, 6
        %v5637 = vrot.slane %v5511, 6
        %v5638 = vrot.slane %v5512, 6
        %v5639 = vrot.slane %v5513, 6
        %v5640 = vrot.slane %v5514, 6
        %v5641 = vrot.slane %v5515, 6
        %v5642 = vrot.slane %v5516, 6
        %v5643 = vrot.slane %v5517, 6
        %v5644 = vrot.slane %v5518, 6
        %v5645 = vrot.slane %v5519, 6
        %v5646 = vrot.slane %v5520, 6
        %v5647 = vrot.slane %v5521, 6
        %v5648 = vrot.slane %v5522, 6
        %v5649 = vrot.slane %v5523, 6
        %v5650 = vrot.slane %v5524, 6
        %v5651 = vrot.slane %v5525, 6
        %v5652 = vrot.slane %v5526, 6
        %v5653 = vrot.slane %v5527, 6
        %v5654 = vrot.slane %v5528, 6
        %v5655 = vsel %vm794, %v5653, %v5654
        %v5656 = vsel %vm794, %v5652, %v5653
        %v5657 = vsel %vm794, %v5651, %v5652
        %v5658 = vsel %vm794, %v5650, %v5651
        %v5659 = vsel %vm794, %v5649, %v5650
        %v5660 = vsel %vm794, %v5648, %v5649
        %v5661 = vsel %vm794, %v5647, %v5648
        %v5662 = vsel %vm794, %v5646, %v5647
        %v5663 = vsel %vm794, %v5645, %v5646
        %v5664 = vsel %vm794, %v5644, %v5645
        %v5665 = vsel %vm794, %v5643, %v5644
        %v5666 = vsel %vm794, %v5642, %v5643
        %v5667 = vsel %vm794, %v5641, %v5642
        %v5668 = vsel %vm794, %v5640, %v5641
        %v5669 = vsel %vm794, %v5639, %v5640
        %v5670 = vsel %vm794, %v5638, %v5639
        %v5671 = vsel %vm794, %v5637, %v5638
        %v5672 = vsel %vm794, %v5636, %v5637
        %v5673 = vsel %vm794, %v5635, %v5636
        %v5674 = vsel %vm794, %v5634, %v5635
        %v5675 = vsel %vm794, %v5633, %v5634
        %v5676 = vsel %vm794, %v5632, %v5633
        %v5677 = vsel %vm794, %v5631, %v5632
        %v5678 = vsel %vm794, %v5630, %v5631
        %v5679 = vsel %vm794, %v5629, %v5630
        %v5680 = vsel %vm794, %v5628, %v5629
        %v5681 = vsel %vm794, %v5627, %v5628
        %v5682 = vsel %vm794, %v5626, %v5627
        %v5683 = vsel %vm794, %v5625, %v5626
        %v5684 = vsel %vm794, %v5624, %v5625
        %v5685 = vsel %vm794, %v5623, %v5624
        %v5686 = vsel %vm794, %v5622, %v5623
        %v5687 = vsel %vm794, %v5621, %v5622
        %v5688 = vsel %vm794, %v5620, %v5621
        %v5689 = vsel %vm794, %v5619, %v5620
        %v5690 = vsel %vm794, %v5618, %v5619
        %v5691 = vsel %vm794, %v5617, %v5618
        %v5692 = vsel %vm794, %v5616, %v5617
        %v5693 = vsel %vm794, %v5615, %v5616
        %v5694 = vsel %vm794, %v5614, %v5615
        %v5695 = vsel %vm794, %v5613, %v5614
        %v5696 = vsel %vm794, %v5654, %v5613
        %v5697 = vrot.slane %v5487, 7
        %v5698 = vrot.slane %v5488, 7
        %v5699 = vrot.slane %v5489, 7
        %v5700 = vrot.slane %v5490, 7
        %v5701 = vrot.slane %v5491, 7
        %v5702 = vrot.slane %v5492, 7
        %v5703 = vrot.slane %v5493, 7
        %v5704 = vrot.slane %v5494, 7
        %v5705 = vrot.slane %v5495, 7
        %v5706 = vrot.slane %v5496, 7
        %v5707 = vrot.slane %v5497, 7
        %v5708 = vrot.slane %v5498, 7
        %v5709 = vrot.slane %v5499, 7
        %v5710 = vrot.slane %v5500, 7
        %v5711 = vrot.slane %v5501, 7
        %v5712 = vrot.slane %v5502, 7
        %v5713 = vrot.slane %v5503, 7
        %v5714 = vrot.slane %v5504, 7
        %v5715 = vrot.slane %v5505, 7
        %v5716 = vrot.slane %v5506, 7
        %v5717 = vrot.slane %v5507, 7
        %v5718 = vrot.slane %v5508, 7
        %v5719 = vrot.slane %v5509, 7
        %v5720 = vrot.slane %v5510, 7
        %v5721 = vrot.slane %v5511, 7
        %v5722 = vrot.slane %v5512, 7
        %v5723 = vrot.slane %v5513, 7
        %v5724 = vrot.slane %v5514, 7
        %v5725 = vrot.slane %v5515, 7
        %v5726 = vrot.slane %v5516, 7
        %v5727 = vrot.slane %v5517, 7
        %v5728 = vrot.slane %v5518, 7
        %v5729 = vrot.slane %v5519, 7
        %v5730 = vrot.slane %v5520, 7
        %v5731 = vrot.slane %v5521, 7
        %v5732 = vrot.slane %v5522, 7
        %v5733 = vrot.slane %v5523, 7
        %v5734 = vrot.slane %v5524, 7
        %v5735 = vrot.slane %v5525, 7
        %v5736 = vrot.slane %v5526, 7
        %v5737 = vrot.slane %v5527, 7
        %v5738 = vrot.slane %v5528, 7
        %v5739 = vsel %vm879, %v5737, %v5738
        %v5740 = vsel %vm879, %v5736, %v5737
        %v5741 = vsel %vm879, %v5735, %v5736
        %v5742 = vsel %vm879, %v5734, %v5735
        %v5743 = vsel %vm879, %v5733, %v5734
        %v5744 = vsel %vm879, %v5732, %v5733
        %v5745 = vsel %vm879, %v5731, %v5732
        %v5746 = vsel %vm879, %v5730, %v5731
        %v5747 = vsel %vm879, %v5729, %v5730
        %v5748 = vsel %vm879, %v5728, %v5729
        %v5749 = vsel %vm879, %v5727, %v5728
        %v5750 = vsel %vm879, %v5726, %v5727
        %v5751 = vsel %vm879, %v5725, %v5726
        %v5752 = vsel %vm879, %v5724, %v5725
        %v5753 = vsel %vm879, %v5723, %v5724
        %v5754 = vsel %vm879, %v5722, %v5723
        %v5755 = vsel %vm879, %v5721, %v5722
        %v5756 = vsel %vm879, %v5720, %v5721
        %v5757 = vsel %vm879, %v5719, %v5720
        %v5758 = vsel %vm879, %v5718, %v5719
        %v5759 = vsel %vm879, %v5717, %v5718
        %v5760 = vsel %vm879, %v5716, %v5717
        %v5761 = vsel %vm879, %v5715, %v5716
        %v5762 = vsel %vm879, %v5714, %v5715
        %v5763 = vsel %vm879, %v5713, %v5714
        %v5764 = vsel %vm879, %v5712, %v5713
        %v5765 = vsel %vm879, %v5711, %v5712
        %v5766 = vsel %vm879, %v5710, %v5711
        %v5767 = vsel %vm879, %v5709, %v5710
        %v5768 = vsel %vm879, %v5708, %v5709
        %v5769 = vsel %vm879, %v5707, %v5708
        %v5770 = vsel %vm879, %v5706, %v5707
        %v5771 = vsel %vm879, %v5705, %v5706
        %v5772 = vsel %vm879, %v5704, %v5705
        %v5773 = vsel %vm879, %v5703, %v5704
        %v5774 = vsel %vm879, %v5702, %v5703
        %v5775 = vsel %vm879, %v5701, %v5702
        %v5776 = vsel %vm879, %v5700, %v5701
        %v5777 = vsel %vm879, %v5699, %v5700
        %v5778 = vsel %vm879, %v5698, %v5699
        %v5779 = vsel %vm879, %v5697, %v5698
        %v5780 = vsel %vm879, %v5738, %v5697
        %v5781 = vrot.slane %v5487, 1
        %v5782 = vrot.slane %v5488, 1
        %v5783 = vrot.slane %v5489, 1
        %v5784 = vrot.slane %v5490, 1
        %v5785 = vrot.slane %v5491, 1
        %v5786 = vrot.slane %v5492, 1
        %v5787 = vrot.slane %v5493, 1
        %v5788 = vrot.slane %v5494, 1
        %v5789 = vrot.slane %v5495, 1
        %v5790 = vrot.slane %v5496, 1
        %v5791 = vrot.slane %v5497, 1
        %v5792 = vrot.slane %v5498, 1
        %v5793 = vrot.slane %v5499, 1
        %v5794 = vrot.slane %v5500, 1
        %v5795 = vrot.slane %v5501, 1
        %v5796 = vrot.slane %v5502, 1
        %v5797 = vrot.slane %v5503, 1
        %v5798 = vrot.slane %v5504, 1
        %v5799 = vrot.slane %v5505, 1
        %v5800 = vrot.slane %v5506, 1
        %v5801 = vrot.slane %v5507, 1
        %v5802 = vrot.slane %v5508, 1
        %v5803 = vrot.slane %v5509, 1
        %v5804 = vrot.slane %v5510, 1
        %v5805 = vrot.slane %v5511, 1
        %v5806 = vrot.slane %v5512, 1
        %v5807 = vrot.slane %v5513, 1
        %v5808 = vrot.slane %v5514, 1
        %v5809 = vrot.slane %v5515, 1
        %v5810 = vrot.slane %v5516, 1
        %v5811 = vrot.slane %v5517, 1
        %v5812 = vrot.slane %v5518, 1
        %v5813 = vrot.slane %v5519, 1
        %v5814 = vrot.slane %v5520, 1
        %v5815 = vrot.slane %v5521, 1
        %v5816 = vrot.slane %v5522, 1
        %v5817 = vrot.slane %v5523, 1
        %v5818 = vrot.slane %v5524, 1
        %v5819 = vrot.slane %v5525, 1
        %v5820 = vrot.slane %v5526, 1
        %v5821 = vrot.slane %v5527, 1
        %v5822 = vrot.slane %v5528, 1
        %v5823 = vsel %vm964, %v5821, %v5822
        %v5824 = vsel %vm964, %v5820, %v5821
        %v5825 = vsel %vm964, %v5819, %v5820
        %v5826 = vsel %vm964, %v5818, %v5819
        %v5827 = vsel %vm964, %v5817, %v5818
        %v5828 = vsel %vm964, %v5816, %v5817
        %v5829 = vsel %vm964, %v5815, %v5816
        %v5830 = vsel %vm964, %v5814, %v5815
        %v5831 = vsel %vm964, %v5813, %v5814
        %v5832 = vsel %vm964, %v5812, %v5813
        %v5833 = vsel %vm964, %v5811, %v5812
        %v5834 = vsel %vm964, %v5810, %v5811
        %v5835 = vsel %vm964, %v5809, %v5810
        %v5836 = vsel %vm964, %v5808, %v5809
        %v5837 = vsel %vm964, %v5807, %v5808
        %v5838 = vsel %vm964, %v5806, %v5807
        %v5839 = vsel %vm964, %v5805, %v5806
        %v5840 = vsel %vm964, %v5804, %v5805
        %v5841 = vsel %vm964, %v5803, %v5804
        %v5842 = vsel %vm964, %v5802, %v5803
        %v5843 = vsel %vm964, %v5801, %v5802
        %v5844 = vsel %vm964, %v5800, %v5801
        %v5845 = vsel %vm964, %v5799, %v5800
        %v5846 = vsel %vm964, %v5798, %v5799
        %v5847 = vsel %vm964, %v5797, %v5798
        %v5848 = vsel %vm964, %v5796, %v5797
        %v5849 = vsel %vm964, %v5795, %v5796
        %v5850 = vsel %vm964, %v5794, %v5795
        %v5851 = vsel %vm964, %v5793, %v5794
        %v5852 = vsel %vm964, %v5792, %v5793
        %v5853 = vsel %vm964, %v5791, %v5792
        %v5854 = vsel %vm964, %v5790, %v5791
        %v5855 = vsel %vm964, %v5789, %v5790
        %v5856 = vsel %vm964, %v5788, %v5789
        %v5857 = vsel %vm964, %v5787, %v5788
        %v5858 = vsel %vm964, %v5786, %v5787
        %v5859 = vsel %vm964, %v5785, %v5786
        %v5860 = vsel %vm964, %v5784, %v5785
        %v5861 = vsel %vm964, %v5783, %v5784
        %v5862 = vsel %vm964, %v5782, %v5783
        %v5863 = vsel %vm964, %v5781, %v5782
        %v5864 = vsel %vm964, %v5822, %v5781
        %v5865 = vrot.slane %v5487, 2
        %v5866 = vrot.slane %v5488, 2
        %v5867 = vrot.slane %v5489, 2
        %v5868 = vrot.slane %v5490, 2
        %v5869 = vrot.slane %v5491, 2
        %v5870 = vrot.slane %v5492, 2
        %v5871 = vrot.slane %v5493, 2
        %v5872 = vrot.slane %v5494, 2
        %v5873 = vrot.slane %v5495, 2
        %v5874 = vrot.slane %v5496, 2
        %v5875 = vrot.slane %v5497, 2
        %v5876 = vrot.slane %v5498, 2
        %v5877 = vrot.slane %v5499, 2
        %v5878 = vrot.slane %v5500, 2
        %v5879 = vrot.slane %v5501, 2
        %v5880 = vrot.slane %v5502, 2
        %v5881 = vrot.slane %v5503, 2
        %v5882 = vrot.slane %v5504, 2
        %v5883 = vrot.slane %v5505, 2
        %v5884 = vrot.slane %v5506, 2
        %v5885 = vrot.slane %v5507, 2
        %v5886 = vrot.slane %v5508, 2
        %v5887 = vrot.slane %v5509, 2
        %v5888 = vrot.slane %v5510, 2
        %v5889 = vrot.slane %v5511, 2
        %v5890 = vrot.slane %v5512, 2
        %v5891 = vrot.slane %v5513, 2
        %v5892 = vrot.slane %v5514, 2
        %v5893 = vrot.slane %v5515, 2
        %v5894 = vrot.slane %v5516, 2
        %v5895 = vrot.slane %v5517, 2
        %v5896 = vrot.slane %v5518, 2
        %v5897 = vrot.slane %v5519, 2
        %v5898 = vrot.slane %v5520, 2
        %v5899 = vrot.slane %v5521, 2
        %v5900 = vrot.slane %v5522, 2
        %v5901 = vrot.slane %v5523, 2
        %v5902 = vrot.slane %v5524, 2
        %v5903 = vrot.slane %v5525, 2
        %v5904 = vrot.slane %v5526, 2
        %v5905 = vrot.slane %v5527, 2
        %v5906 = vrot.slane %v5528, 2
        %v5907 = vsel %vm1049, %v5905, %v5906
        %v5908 = vsel %vm1049, %v5904, %v5905
        %v5909 = vsel %vm1049, %v5903, %v5904
        %v5910 = vsel %vm1049, %v5902, %v5903
        %v5911 = vsel %vm1049, %v5901, %v5902
        %v5912 = vsel %vm1049, %v5900, %v5901
        %v5913 = vsel %vm1049, %v5899, %v5900
        %v5914 = vsel %vm1049, %v5898, %v5899
        %v5915 = vsel %vm1049, %v5897, %v5898
        %v5916 = vsel %vm1049, %v5896, %v5897
        %v5917 = vsel %vm1049, %v5895, %v5896
        %v5918 = vsel %vm1049, %v5894, %v5895
        %v5919 = vsel %vm1049, %v5893, %v5894
        %v5920 = vsel %vm1049, %v5892, %v5893
        %v5921 = vsel %vm1049, %v5891, %v5892
        %v5922 = vsel %vm1049, %v5890, %v5891
        %v5923 = vsel %vm1049, %v5889, %v5890
        %v5924 = vsel %vm1049, %v5888, %v5889
        %v5925 = vsel %vm1049, %v5887, %v5888
        %v5926 = vsel %vm1049, %v5886, %v5887
        %v5927 = vsel %vm1049, %v5885, %v5886
        %v5928 = vsel %vm1049, %v5884, %v5885
        %v5929 = vsel %vm1049, %v5883, %v5884
        %v5930 = vsel %vm1049, %v5882, %v5883
        %v5931 = vsel %vm1049, %v5881, %v5882
        %v5932 = vsel %vm1049, %v5880, %v5881
        %v5933 = vsel %vm1049, %v5879, %v5880
        %v5934 = vsel %vm1049, %v5878, %v5879
        %v5935 = vsel %vm1049, %v5877, %v5878
        %v5936 = vsel %vm1049, %v5876, %v5877
        %v5937 = vsel %vm1049, %v5875, %v5876
        %v5938 = vsel %vm1049, %v5874, %v5875
        %v5939 = vsel %vm1049, %v5873, %v5874
        %v5940 = vsel %vm1049, %v5872, %v5873
        %v5941 = vsel %vm1049, %v5871, %v5872
        %v5942 = vsel %vm1049, %v5870, %v5871
        %v5943 = vsel %vm1049, %v5869, %v5870
        %v5944 = vsel %vm1049, %v5868, %v5869
        %v5945 = vsel %vm1049, %v5867, %v5868
        %v5946 = vsel %vm1049, %v5866, %v5867
        %v5947 = vsel %vm1049, %v5865, %v5866
        %v5948 = vsel %vm1049, %v5906, %v5865
        %v5949 = vrot.slane %v5487, 3
        %v5950 = vrot.slane %v5488, 3
        %v5951 = vrot.slane %v5489, 3
        %v5952 = vrot.slane %v5490, 3
        %v5953 = vrot.slane %v5491, 3
        %v5954 = vrot.slane %v5492, 3
        %v5955 = vrot.slane %v5493, 3
        %v5956 = vrot.slane %v5494, 3
        %v5957 = vrot.slane %v5495, 3
        %v5958 = vrot.slane %v5496, 3
        %v5959 = vrot.slane %v5497, 3
        %v5960 = vrot.slane %v5498, 3
        %v5961 = vrot.slane %v5499, 3
        %v5962 = vrot.slane %v5500, 3
        %v5963 = vrot.slane %v5501, 3
        %v5964 = vrot.slane %v5502, 3
        %v5965 = vrot.slane %v5503, 3
        %v5966 = vrot.slane %v5504, 3
        %v5967 = vrot.slane %v5505, 3
        %v5968 = vrot.slane %v5506, 3
        %v5969 = vrot.slane %v5507, 3
        %v5970 = vrot.slane %v5508, 3
        %v5971 = vrot.slane %v5509, 3
        %v5972 = vrot.slane %v5510, 3
        %v5973 = vrot.slane %v5511, 3
        %v5974 = vrot.slane %v5512, 3
        %v5975 = vrot.slane %v5513, 3
        %v5976 = vrot.slane %v5514, 3
        %v5977 = vrot.slane %v5515, 3
        %v5978 = vrot.slane %v5516, 3
        %v5979 = vrot.slane %v5517, 3
        %v5980 = vrot.slane %v5518, 3
        %v5981 = vrot.slane %v5519, 3
        %v5982 = vrot.slane %v5520, 3
        %v5983 = vrot.slane %v5521, 3
        %v5984 = vrot.slane %v5522, 3
        %v5985 = vrot.slane %v5523, 3
        %v5986 = vrot.slane %v5524, 3
        %v5987 = vrot.slane %v5525, 3
        %v5988 = vrot.slane %v5526, 3
        %v5989 = vrot.slane %v5527, 3
        %v5990 = vrot.slane %v5528, 3
        %v5991 = vsel %vm1134, %v5989, %v5990
        %v5992 = vsel %vm1134, %v5988, %v5989
        %v5993 = vsel %vm1134, %v5987, %v5988
        %v5994 = vsel %vm1134, %v5986, %v5987
        %v5995 = vsel %vm1134, %v5985, %v5986
        %v5996 = vsel %vm1134, %v5984, %v5985
        %v5997 = vsel %vm1134, %v5983, %v5984
        %v5998 = vsel %vm1134, %v5982, %v5983
        %v5999 = vsel %vm1134, %v5981, %v5982
        %v6000 = vsel %vm1134, %v5980, %v5981
        %v6001 = vsel %vm1134, %v5979, %v5980
        %v6002 = vsel %vm1134, %v5978, %v5979
        %v6003 = vsel %vm1134, %v5977, %v5978
        %v6004 = vsel %vm1134, %v5976, %v5977
        %v6005 = vsel %vm1134, %v5975, %v5976
        %v6006 = vsel %vm1134, %v5974, %v5975
        %v6007 = vsel %vm1134, %v5973, %v5974
        %v6008 = vsel %vm1134, %v5972, %v5973
        %v6009 = vsel %vm1134, %v5971, %v5972
        %v6010 = vsel %vm1134, %v5970, %v5971
        %v6011 = vsel %vm1134, %v5969, %v5970
        %v6012 = vsel %vm1134, %v5968, %v5969
        %v6013 = vsel %vm1134, %v5967, %v5968
        %v6014 = vsel %vm1134, %v5966, %v5967
        %v6015 = vsel %vm1134, %v5965, %v5966
        %v6016 = vsel %vm1134, %v5964, %v5965
        %v6017 = vsel %vm1134, %v5963, %v5964
        %v6018 = vsel %vm1134, %v5962, %v5963
        %v6019 = vsel %vm1134, %v5961, %v5962
        %v6020 = vsel %vm1134, %v5960, %v5961
        %v6021 = vsel %vm1134, %v5959, %v5960
        %v6022 = vsel %vm1134, %v5958, %v5959
        %v6023 = vsel %vm1134, %v5957, %v5958
        %v6024 = vsel %vm1134, %v5956, %v5957
        %v6025 = vsel %vm1134, %v5955, %v5956
        %v6026 = vsel %vm1134, %v5954, %v5955
        %v6027 = vsel %vm1134, %v5953, %v5954
        %v6028 = vsel %vm1134, %v5952, %v5953
        %v6029 = vsel %vm1134, %v5951, %v5952
        %v6030 = vsel %vm1134, %v5950, %v5951
        %v6031 = vsel %vm1134, %v5949, %v5950
        %v6032 = vsel %vm1134, %v5990, %v5949
        %v6033 = vpack.c.bf16 %v5571, %v5572
        %v6034 = vpack.c.bf16 %v5655, %v5656
        %v6035 = vpack.c.bf16 %v5739, %v5740
        %v6036 = vpack.c.bf16 %v5779, %v5780
        %v6037 = vpack.c.bf16 %v5488, %v5487
        %v6038 = vpack.c.bf16 %v5862, %v5863
        %v6039 = vpack.c.bf16 %v5860, %v5861
        %v6040 = vpack.c.bf16 %v5944, %v5945
        %v6041 = vpack.c.bf16 %v6028, %v6029
        %v6042 = vpack.c.bf16 %v5611, %v5612
        %v6043 = vpack.c.bf16 %v5695, %v5696
        %v6044 = vpack.c.bf16 %v5777, %v5778
        %v6045 = vpack.c.bf16 %v5490, %v5489
        %v6046 = vpack.c.bf16 %v5858, %v5859
        %v6047 = vpack.c.bf16 %v5942, %v5943
        %v6048 = vpack.c.bf16 %v6026, %v6027
        %v6049 = vpack.c.bf16 %v5609, %v5610
        %v6050 = vpack.c.bf16 %v5693, %v5694
        %v6051 = vpack.c.bf16 %v5775, %v5776
        %v6052 = vpack.c.bf16 %v5492, %v5491
        %v6053 = vpack.c.bf16 %v5856, %v5857
        %v6054 = vpack.c.bf16 %v5940, %v5941
        %v6055 = vpack.c.bf16 %v6024, %v6025
        %v6056 = vpack.c.bf16 %v5607, %v5608
        %v6057 = vpack.c.bf16 %v5691, %v5692
        %v6058 = vpack.c.bf16 %v5773, %v5774
        %v6059 = vpack.c.bf16 %v5494, %v5493
        %v6060 = vpack.c.bf16 %v5854, %v5855
        %v6061 = vpack.c.bf16 %v5938, %v5939
        %v6062 = vpack.c.bf16 %v6022, %v6023
        %v6063 = vpack.c.bf16 %v5605, %v5606
        %v6064 = vpack.c.bf16 %v5689, %v5690
        %v6065 = vpack.c.bf16 %v5771, %v5772
        %v6066 = vpack.c.bf16 %v5496, %v5495
        %v6067 = vpack.c.bf16 %v5852, %v5853
        %v6068 = vpack.c.bf16 %v5936, %v5937
        %v6069 = vpack.c.bf16 %v6020, %v6021
        %v6070 = vpack.c.bf16 %v5603, %v5604
        %v6071 = vpack.c.bf16 %v5687, %v5688
        %v6072 = vpack.c.bf16 %v5769, %v5770
        %v6073 = vpack.c.bf16 %v5498, %v5497
        %v6074 = vpack.c.bf16 %v5850, %v5851
        %v6075 = vpack.c.bf16 %v5934, %v5935
        %v6076 = vpack.c.bf16 %v6018, %v6019
        %v6077 = vpack.c.bf16 %v5601, %v5602
        %v6078 = vpack.c.bf16 %v5685, %v5686
        %v6079 = vpack.c.bf16 %v5767, %v5768
        %v6080 = vpack.c.bf16 %v5500, %v5499
        %v6081 = vpack.c.bf16 %v5848, %v5849
        %v6082 = vpack.c.bf16 %v5932, %v5933
        %v6083 = vpack.c.bf16 %v6016, %v6017
        %v6084 = vpack.c.bf16 %v5599, %v5600
        %v6085 = vpack.c.bf16 %v5683, %v5684
        %v6086 = vpack.c.bf16 %v5765, %v5766
        %v6087 = vpack.c.bf16 %v5502, %v5501
        %v6088 = vpack.c.bf16 %v5846, %v5847
        %v6089 = vpack.c.bf16 %v5930, %v5931
        %v6090 = vpack.c.bf16 %v6014, %v6015
        %v6091 = vpack.c.bf16 %v5597, %v5598
        %v6092 = vpack.c.bf16 %v5681, %v5682
        %v6093 = vpack.c.bf16 %v5763, %v5764
        %v6094 = vpack.c.bf16 %v5504, %v5503
        %v6095 = vpack.c.bf16 %v5844, %v5845
        %v6096 = vpack.c.bf16 %v5928, %v5929
        %v6097 = vpack.c.bf16 %v6012, %v6013
        %v6098 = vpack.c.bf16 %v5595, %v5596
        %v6099 = vpack.c.bf16 %v5679, %v5680
        %v6100 = vpack.c.bf16 %v5761, %v5762
        %v6101 = vpack.c.bf16 %v5506, %v5505
        %v6102 = vpack.c.bf16 %v5842, %v5843
        %v6103 = vpack.c.bf16 %v5926, %v5927
        %v6104 = vpack.c.bf16 %v6010, %v6011
        %v6105 = vpack.c.bf16 %v5593, %v5594
        %v6106 = vpack.c.bf16 %v5677, %v5678
        %v6107 = vpack.c.bf16 %v5759, %v5760
        %v6108 = vpack.c.bf16 %v5508, %v5507
        %v6109 = vpack.c.bf16 %v5840, %v5841
        %v6110 = vpack.c.bf16 %v5924, %v5925
        %v6111 = vpack.c.bf16 %v6008, %v6009
        %v6112 = vpack.c.bf16 %v5591, %v5592
        %v6113 = vpack.c.bf16 %v5675, %v5676
        %v6114 = vpack.c.bf16 %v5757, %v5758
        %v6115 = vpack.c.bf16 %v5510, %v5509
        %v6116 = vpack.c.bf16 %v5838, %v5839
        %v6117 = vpack.c.bf16 %v5922, %v5923
        %v6118 = vpack.c.bf16 %v6006, %v6007
        %v6119 = vpack.c.bf16 %v5589, %v5590
        %v6120 = vpack.c.bf16 %v5673, %v5674
        %v6121 = vpack.c.bf16 %v5755, %v5756
        %v6122 = vpack.c.bf16 %v5512, %v5511
        %v6123 = vpack.c.bf16 %v5836, %v5837
        %v6124 = vpack.c.bf16 %v5920, %v5921
        %v6125 = vpack.c.bf16 %v6004, %v6005
        %v6126 = vpack.c.bf16 %v5587, %v5588
        %v6127 = vpack.c.bf16 %v5671, %v5672
        %v6128 = vpack.c.bf16 %v5753, %v5754
        %v6129 = vpack.c.bf16 %v5514, %v5513
        %v6130 = vpack.c.bf16 %v5834, %v5835
        %v6131 = vpack.c.bf16 %v5918, %v5919
        %v6132 = vpack.c.bf16 %v6002, %v6003
        %v6133 = vpack.c.bf16 %v5585, %v5586
        %v6134 = vpack.c.bf16 %v5669, %v5670
        %v6135 = vpack.c.bf16 %v5751, %v5752
        %v6136 = vpack.c.bf16 %v5516, %v5515
        %v6137 = vpack.c.bf16 %v5832, %v5833
        %v6138 = vpack.c.bf16 %v5916, %v5917
        %v6139 = vpack.c.bf16 %v6000, %v6001
        %v6140 = vpack.c.bf16 %v5583, %v5584
        %v6141 = vpack.c.bf16 %v5667, %v5668
        %v6142 = vpack.c.bf16 %v5749, %v5750
        %v6143 = vpack.c.bf16 %v5518, %v5517
        %v6144 = vpack.c.bf16 %v5830, %v5831
        %v6145 = vpack.c.bf16 %v5914, %v5915
        %v6146 = vpack.c.bf16 %v5998, %v5999
        %v6147 = vpack.c.bf16 %v5581, %v5582
        %v6148 = vpack.c.bf16 %v5665, %v5666
        %v6149 = vpack.c.bf16 %v5747, %v5748
        %v6150 = vpack.c.bf16 %v5520, %v5519
        %v6151 = vpack.c.bf16 %v5828, %v5829
        %v6152 = vpack.c.bf16 %v5912, %v5913
        %v6153 = vpack.c.bf16 %v5996, %v5997
        %v6154 = vpack.c.bf16 %v5579, %v5580
        %v6155 = vpack.c.bf16 %v5663, %v5664
        %v6156 = vpack.c.bf16 %v5745, %v5746
        %v6157 = vpack.c.bf16 %v5522, %v5521
        %v6158 = vpack.c.bf16 %v5826, %v5827
        %v6159 = vpack.c.bf16 %v5910, %v5911
        %v6160 = vpack.c.bf16 %v5994, %v5995
        %v6161 = vpack.c.bf16 %v5577, %v5578
        %v6162 = vpack.c.bf16 %v5661, %v5662
        %v6163 = vpack.c.bf16 %v5743, %v5744
        %v6164 = vpack.c.bf16 %v5524, %v5523
        %v6165 = vpack.c.bf16 %v5824, %v5825
        %v6166 = vpack.c.bf16 %v5908, %v5909
        %v6167 = vpack.c.bf16 %v5992, %v5993
        %v6168 = vpack.c.bf16 %v5575, %v5576
        %v6169 = vpack.c.bf16 %v5659, %v5660
        %v6170 = vpack.c.bf16 %v5741, %v5742
        %v6171 = vpack.c.bf16 %v5526, %v5525
        %v6172 = vpack.c.bf16 %v5864, %v5823
        %v6173 = vpack.c.bf16 %v5948, %v5907
        %v6174 = vpack.c.bf16 %v6032, %v5991
        %v6175 = vpack.c.bf16 %v5573, %v5574
        %v6176 = vpack.c.bf16 %v5657, %v5658
        %v6177 = vpack.c.bf16 %v5528, %v5527
        %v6178 = vpack.c.bf16 %v5946, %v5947
        %v6179 = vpack.c.bf16 %v6030, %v6031
        %v6180 = vld [vmem:[#allocation14] sm:$0xf]
        %v6181 = vld [vmem:[#allocation14 + $0x4] sm:$0xf]
        %v6182 = vld [vmem:[#allocation14 + $0x8] sm:$0xf]
        %v6183 = vld [vmem:[#allocation14 + $0xc] sm:$0xf]
        %v6184 = vld [vmem:[#allocation14 + $0x10] sm:$0xf]
        %v6185 = vld [vmem:[#allocation14 + $0x14] sm:$0xf]
        %v6186 = vld [vmem:[#allocation14 + $0x18] sm:$0xf]
        %v6187 = vld [vmem:[#allocation14 + $0x1c] sm:$0xf]
        %v6188 = vld [vmem:[#allocation14 + $0x20] sm:$0xf]
        %v6189 = vld [vmem:[#allocation14 + $0x24] sm:$0xf]
        %v6190 = vld [vmem:[#allocation14 + $0x28] sm:$0xf]
        %v6191 = vld [vmem:[#allocation14 + $0x2c] sm:$0xf]
        %v6192 = vld [vmem:[#allocation14 + $0x30] sm:$0xf]
        %v6193 = vld [vmem:[#allocation14 + $0x34] sm:$0xf]
        %v6194 = vld [vmem:[#allocation14 + $0x38] sm:$0xf]
        %v6195 = vld [vmem:[#allocation14 + $0x3c] sm:$0xf]
        %v6196 = vld [vmem:[#allocation14 + $0x40] sm:$0xf]
        %v6197 = vld [vmem:[#allocation14 + $0x44] sm:$0xf]
        %v6198 = vld [vmem:[#allocation14 + $0x48] sm:$0xf]
        %v6199 = vld [vmem:[#allocation14 + $0x4c] sm:$0xf]
        %v6200 = vld [vmem:[#allocation14 + $0x50] sm:$0xf]
        %v6201 = vld [vmem:[#allocation14 + $0x54] sm:$0xf]
        %v6202 = vld [vmem:[#allocation14 + $0x58] sm:$0xf]
        %v6203 = vld [vmem:[#allocation14 + $0x5c] sm:$0xf]
        %v6204 = vld [vmem:[#allocation14 + $0x60] sm:$0xf]
        %v6205 = vld [vmem:[#allocation14 + $0x64] sm:$0xf]
        %v6206 = vld [vmem:[#allocation14 + $0x68] sm:$0xf]
        %v6207 = vld [vmem:[#allocation14 + $0x6c] sm:$0xf]
        %v6208 = vld [vmem:[#allocation14 + $0x70] sm:$0xf]
        %v6209 = vld [vmem:[#allocation14 + $0x74] sm:$0xf]
        %v6210 = vld [vmem:[#allocation14 + $0x78] sm:$0xf]
        %v6211 = vld [vmem:[#allocation14 + $0x7c] sm:$0xf]
        %v6212 = vld [vmem:[#allocation14 + $0x80] sm:$0xf]
        %v6213 = vld [vmem:[#allocation14 + $0x84] sm:$0xf]
        %v6214 = vld [vmem:[#allocation14 + $0x88] sm:$0xf]
        %v6215 = vld [vmem:[#allocation14 + $0x8c] sm:$0xf]
        %v6216 = vld [vmem:[#allocation14 + $0x90] sm:$0xf]
        %v6217 = vld [vmem:[#allocation14 + $0x94] sm:$0xf]
        %v6218 = vld [vmem:[#allocation14 + $0x98] sm:$0xf]
        %v6219 = vld [vmem:[#allocation14 + $0x9c] sm:$0xf]
        %v6220 = vld [vmem:[#allocation14 + $0xa0] sm:$0xf]
        %v6221 = vld [vmem:[#allocation14 + $0xa4] sm:$0xf]
        %v6222 = vld [vmem:[#allocation14 + $0xa8] sm:$0xf]
        %v6223 = vld [vmem:[#allocation14 + $0xac] sm:$0xf]
        %v6224 = vld [vmem:[#allocation14 + $0xb0] sm:$0xf]
        %v6225 = vld [vmem:[#allocation14 + $0xb4] sm:$0xf]
        %v6226 = vld [vmem:[#allocation14 + $0xb8] sm:$0xf]
        %v6227 = vld [vmem:[#allocation14 + $0xbc] sm:$0xf]
        %v6228 = vld [vmem:[#allocation14 + $0xc0] sm:$0xf]
        %v6229 = vld [vmem:[#allocation14 + $0xc4] sm:$0xf]
        %v6230 = vld [vmem:[#allocation14 + $0xc8] sm:$0xf]
        %v6231 = vld [vmem:[#allocation14 + $0xcc] sm:$0xf]
        %v6232 = vld [vmem:[#allocation14 + $0xd0] sm:$0xf]
        %v6233 = vld [vmem:[#allocation14 + $0xd4] sm:$0xf]
        %v6234 = vld [vmem:[#allocation14 + $0xd8] sm:$0xf]
        %v6235 = vld [vmem:[#allocation14 + $0xdc] sm:$0xf]
        %v6236 = vld [vmem:[#allocation14 + $0xe0] sm:$0xf]
        %v6237 = vld [vmem:[#allocation14 + $0xe4] sm:$0xf]
        %v6238 = vld [vmem:[#allocation14 + $0xe8] sm:$0xf]
        %v6239 = vld [vmem:[#allocation14 + $0xec] sm:$0xf]
        %v6240 = vld [vmem:[#allocation14 + $0xf0] sm:$0xf]
        %v6241 = vld [vmem:[#allocation14 + $0xf4] sm:$0xf]
        %v6242 = vld [vmem:[#allocation14 + $0xf8] sm:$0xf]
        %v6243 = vld [vmem:[#allocation14 + $0xfc] sm:$0xf]
        %v6244 = vld [vmem:[#allocation14 + $0x100] sm:$0xf]
        %v6245 = vld [vmem:[#allocation14 + $0x104] sm:$0xf]
        %v6246 = vld [vmem:[#allocation14 + $0x108] sm:$0xf]
        %v6247 = vld [vmem:[#allocation14 + $0x10c] sm:$0xf]
        %v6248 = vld [vmem:[#allocation14 + $0x110] sm:$0xf]
        %v6249 = vld [vmem:[#allocation14 + $0x114] sm:$0xf]
        %v6250 = vld [vmem:[#allocation14 + $0x118] sm:$0xf]
        %v6251 = vld [vmem:[#allocation14 + $0x11c] sm:$0xf]
        %v6252 = vld [vmem:[#allocation14 + $0x120] sm:$0xf]
        %v6253 = vld [vmem:[#allocation14 + $0x124] sm:$0xf]
        %v6254 = vld [vmem:[#allocation14 + $0x128] sm:$0xf]
        %v6255 = vld [vmem:[#allocation14 + $0x12c] sm:$0xf]
        %v6256 = vld [vmem:[#allocation14 + $0x130] sm:$0xf]
        %v6257 = vld [vmem:[#allocation14 + $0x134] sm:$0xf]
        %v6258 = vld [vmem:[#allocation14 + $0x138] sm:$0xf]
        %v6259 = vld [vmem:[#allocation14 + $0x13c] sm:$0xf]
        %v6260 = vld [vmem:[#allocation14 + $0x140] sm:$0xf]
        %v6261 = vld [vmem:[#allocation14 + $0x144] sm:$0xf]
        %v6262 = vld [vmem:[#allocation14 + $0x148] sm:$0xf]
        %v6263 = vld [vmem:[#allocation14 + $0x14c] sm:$0xf]
        %v6264 = vld [vmem:[#allocation14 + $0x150] sm:$0xf]
        %v6265 = vld [vmem:[#allocation14 + $0x154] sm:$0xf]
        %v6266 = vld [vmem:[#allocation14 + $0x158] sm:$0xf]
        %v6267 = vld [vmem:[#allocation14 + $0x15c] sm:$0xf]
        %v6268 = vld [vmem:[#allocation14 + $0x160] sm:$0xf]
        %v6269 = vld [vmem:[#allocation14 + $0x164] sm:$0xf]
        %v6270 = vld [vmem:[#allocation14 + $0x168] sm:$0xf]
        %v6271 = vld [vmem:[#allocation14 + $0x16c] sm:$0xf]
        %v6272 = vld [vmem:[#allocation14 + $0x170] sm:$0xf]
        %v6273 = vld [vmem:[#allocation14 + $0x174] sm:$0xf]
        %v6274 = vld [vmem:[#allocation14 + $0x178] sm:$0xf]
        %v6275 = vld [vmem:[#allocation14 + $0x17c] sm:$0xf]
        %v6276 = vld [vmem:[#allocation14 + $0x180] sm:$0xf]
        %v6277 = vld [vmem:[#allocation14 + $0x184] sm:$0xf]
        %v6278 = vld [vmem:[#allocation14 + $0x188] sm:$0xf]
        %v6279 = vld [vmem:[#allocation14 + $0x18c] sm:$0xf]
        %v6280 = vld [vmem:[#allocation14 + $0x190] sm:$0xf]
        %v6281 = vld [vmem:[#allocation14 + $0x194] sm:$0xf]
        %v6282 = vld [vmem:[#allocation14 + $0x198] sm:$0xf]
        %v6283 = vld [vmem:[#allocation14 + $0x19c] sm:$0xf]
        %v6284 = vld [vmem:[#allocation14 + $0x1a0] sm:$0xf]
        %v6285 = vld [vmem:[#allocation14 + $0x1a4] sm:$0xf]
        %v6286 = vld [vmem:[#allocation14 + $0x1a8] sm:$0xf]
        %v6287 = vld [vmem:[#allocation14 + $0x1ac] sm:$0xf]
        %v6288 = vld [vmem:[#allocation14 + $0x1b0] sm:$0xf]
        %v6289 = vld [vmem:[#allocation14 + $0x1b4] sm:$0xf]
        %v6290 = vld [vmem:[#allocation14 + $0x1b8] sm:$0xf]
        %v6291 = vld [vmem:[#allocation14 + $0x1bc] sm:$0xf]
        %v6292 = vld [vmem:[#allocation14 + $0x1c0] sm:$0xf]
        %v6293 = vld [vmem:[#allocation14 + $0x1c4] sm:$0xf]
        %v6294 = vld [vmem:[#allocation14 + $0x1c8] sm:$0xf]
        %v6295 = vld [vmem:[#allocation14 + $0x1cc] sm:$0xf]
        %v6296 = vld [vmem:[#allocation14 + $0x1d0] sm:$0xf]
        %v6297 = vld [vmem:[#allocation14 + $0x1d4] sm:$0xf]
        %v6298 = vld [vmem:[#allocation14 + $0x1d8] sm:$0xf]
        %v6299 = vld [vmem:[#allocation14 + $0x1dc] sm:$0xf]
        %v6300 = vld [vmem:[#allocation14 + $0x1e0] sm:$0xf]
        %v6301 = vld [vmem:[#allocation14 + $0x1e4] sm:$0xf]
        %v6302 = vld [vmem:[#allocation14 + $0x1e8] sm:$0xf]
        %v6303 = vld [vmem:[#allocation14 + $0x1ec] sm:$0xf]
        %v6304 = vld [vmem:[#allocation14 + $0x1f0] sm:$0xf]
        %v6305 = vld [vmem:[#allocation14 + $0x1f4] sm:$0xf]
        %v6306 = vld [vmem:[#allocation14 + $0x1f8] sm:$0xf]
        %v6307 = vld [vmem:[#allocation14 + $0x1fc] sm:$0xf]
        %v6308 = vld [vmem:[#allocation14 + $0x200] sm:$0xf]
        %v6309 = vld [vmem:[#allocation14 + $0x204] sm:$0xf]
        %v6310 = vld [vmem:[#allocation14 + $0x208] sm:$0xf]
        %v6311 = vld [vmem:[#allocation14 + $0x20c] sm:$0xf]
        %v6312 = vld [vmem:[#allocation14 + $0x210] sm:$0xf]
        %v6313 = vld [vmem:[#allocation14 + $0x214] sm:$0xf]
        %v6314 = vld [vmem:[#allocation14 + $0x218] sm:$0xf]
        %v6315 = vld [vmem:[#allocation14 + $0x21c] sm:$0xf]
        %v6316 = vld [vmem:[#allocation14 + $0x220] sm:$0xf]
        %v6317 = vld [vmem:[#allocation14 + $0x224] sm:$0xf]
        %v6318 = vld [vmem:[#allocation14 + $0x228] sm:$0xf]
        %v6319 = vld [vmem:[#allocation14 + $0x22c] sm:$0xf]
        %v6320 = vld [vmem:[#allocation14 + $0x230] sm:$0xf]
        %v6321 = vld [vmem:[#allocation14 + $0x234] sm:$0xf]
        %v6322 = vld [vmem:[#allocation14 + $0x238] sm:$0xf]
        %v6323 = vld [vmem:[#allocation14 + $0x23c] sm:$0xf]
        %v6324 = vld [vmem:[#allocation16] sm:$0x1]
        %v6326 = vlaneseq
        %v6327 = vshrl.u32 %v6326, 7
        %v6328 = vsub.s32 0, %v6327
        %v6329 = vrot.slane %v6324, %v6328
        %v6475 = vunpack.c.l.b16 %v6180
        %v6476 = vunpack.c.l.b16 %v6181
        %v6477 = vunpack.c.l.b16 %v6182
        %v6478 = vunpack.c.l.b16 %v6183
        %v6479 = vunpack.c.l.b16 %v6184
        %v6480 = vunpack.c.l.b16 %v6185
        %v6481 = vunpack.c.l.b16 %v6186
        %v6482 = vunpack.c.l.b16 %v6187
        %v6483 = vunpack.c.l.b16 %v6188
        %v6484 = vunpack.c.l.b16 %v6189
        %v6485 = vunpack.c.l.b16 %v6190
        %v6486 = vunpack.c.l.b16 %v6191
        %v6487 = vunpack.c.l.b16 %v6192
        %v6488 = vunpack.c.l.b16 %v6193
        %v6489 = vunpack.c.l.b16 %v6194
        %v6490 = vunpack.c.l.b16 %v6195
        %v6491 = vunpack.c.l.b16 %v6196
        %v6492 = vunpack.c.l.b16 %v6197
        %v6493 = vunpack.c.l.b16 %v6198
        %v6494 = vunpack.c.l.b16 %v6199
        %v6495 = vunpack.c.l.b16 %v6200
        %v6496 = vunpack.c.l.b16 %v6201
        %v6497 = vunpack.c.l.b16 %v6202
        %v6498 = vunpack.c.l.b16 %v6203
        %v6499 = vunpack.c.l.b16 %v6204
        %v6500 = vunpack.c.l.b16 %v6205
        %v6501 = vunpack.c.l.b16 %v6206
        %v6502 = vunpack.c.l.b16 %v6207
        %v6503 = vunpack.c.l.b16 %v6208
        %v6504 = vunpack.c.l.b16 %v6209
        %v6505 = vunpack.c.l.b16 %v6210
        %v6506 = vunpack.c.l.b16 %v6211
        %v6507 = vunpack.c.l.b16 %v6212
        %v6508 = vunpack.c.l.b16 %v6213
        %v6509 = vunpack.c.l.b16 %v6214
        %v6510 = vunpack.c.l.b16 %v6215
        %v6511 = vunpack.c.l.b16 %v6216
        %v6512 = vunpack.c.l.b16 %v6217
        %v6513 = vunpack.c.l.b16 %v6218
        %v6514 = vunpack.c.l.b16 %v6219
        %v6515 = vunpack.c.l.b16 %v6220
        %v6516 = vunpack.c.l.b16 %v6221
        %v6517 = vunpack.c.l.b16 %v6222
        %v6518 = vunpack.c.l.b16 %v6223
        %v6519 = vunpack.c.l.b16 %v6224
        %v6520 = vunpack.c.l.b16 %v6225
        %v6521 = vunpack.c.l.b16 %v6226
        %v6522 = vunpack.c.l.b16 %v6227
        %v6523 = vunpack.c.l.b16 %v6228
        %v6524 = vunpack.c.l.b16 %v6229
        %v6525 = vunpack.c.l.b16 %v6230
        %v6526 = vunpack.c.l.b16 %v6231
        %v6527 = vunpack.c.l.b16 %v6232
        %v6528 = vunpack.c.l.b16 %v6233
        %v6529 = vunpack.c.l.b16 %v6234
        %v6530 = vunpack.c.l.b16 %v6235
        %v6531 = vunpack.c.l.b16 %v6236
        %v6532 = vunpack.c.l.b16 %v6237
        %v6533 = vunpack.c.l.b16 %v6238
        %v6534 = vunpack.c.l.b16 %v6239
        %v6535 = vunpack.c.l.b16 %v6240
        %v6536 = vunpack.c.l.b16 %v6241
        %v6537 = vunpack.c.l.b16 %v6242
        %v6538 = vunpack.c.l.b16 %v6243
        %v6539 = vunpack.c.l.b16 %v6244
        %v6540 = vunpack.c.l.b16 %v6245
        %v6541 = vunpack.c.l.b16 %v6246
        %v6542 = vunpack.c.l.b16 %v6247
        %v6543 = vunpack.c.l.b16 %v6248
        %v6544 = vunpack.c.l.b16 %v6249
        %v6545 = vunpack.c.l.b16 %v6250
        %v6546 = vunpack.c.l.b16 %v6251
        %v6547 = vunpack.c.l.b16 %v6252
        %v6548 = vunpack.c.l.b16 %v6253
        %v6549 = vunpack.c.l.b16 %v6254
        %v6550 = vunpack.c.l.b16 %v6255
        %v6551 = vunpack.c.l.b16 %v6256
        %v6552 = vunpack.c.l.b16 %v6257
        %v6553 = vunpack.c.l.b16 %v6258
        %v6554 = vunpack.c.l.b16 %v6259
        %v6555 = vunpack.c.l.b16 %v6260
        %v6556 = vunpack.c.l.b16 %v6261
        %v6557 = vunpack.c.l.b16 %v6262
        %v6558 = vunpack.c.l.b16 %v6263
        %v6559 = vunpack.c.l.b16 %v6264
        %v6560 = vunpack.c.l.b16 %v6265
        %v6561 = vunpack.c.l.b16 %v6266
        %v6562 = vunpack.c.l.b16 %v6267
        %v6563 = vunpack.c.l.b16 %v6268
        %v6564 = vunpack.c.l.b16 %v6269
        %v6565 = vunpack.c.l.b16 %v6270
        %v6566 = vunpack.c.l.b16 %v6271
        %v6567 = vunpack.c.l.b16 %v6272
        %v6568 = vunpack.c.l.b16 %v6273
        %v6569 = vunpack.c.l.b16 %v6274
        %v6570 = vunpack.c.l.b16 %v6275
        %v6571 = vunpack.c.l.b16 %v6276
        %v6572 = vunpack.c.l.b16 %v6277
        %v6573 = vunpack.c.l.b16 %v6278
        %v6574 = vunpack.c.l.b16 %v6279
        %v6575 = vunpack.c.l.b16 %v6280
        %v6576 = vunpack.c.l.b16 %v6281
        %v6577 = vunpack.c.l.b16 %v6282
        %v6578 = vunpack.c.l.b16 %v6283
        %v6579 = vunpack.c.l.b16 %v6284
        %v6580 = vunpack.c.l.b16 %v6285
        %v6581 = vunpack.c.l.b16 %v6286
        %v6582 = vunpack.c.l.b16 %v6287
        %v6583 = vunpack.c.l.b16 %v6288
        %v6584 = vunpack.c.l.b16 %v6289
        %v6585 = vunpack.c.l.b16 %v6290
        %v6586 = vunpack.c.l.b16 %v6291
        %v6587 = vunpack.c.l.b16 %v6292
        %v6588 = vunpack.c.l.b16 %v6293
        %v6589 = vunpack.c.l.b16 %v6294
        %v6590 = vunpack.c.l.b16 %v6295
        %v6591 = vunpack.c.l.b16 %v6296
        %v6592 = vunpack.c.l.b16 %v6297
        %v6593 = vunpack.c.l.b16 %v6298
        %v6594 = vunpack.c.l.b16 %v6299
        %v6595 = vunpack.c.l.b16 %v6300
        %v6596 = vunpack.c.l.b16 %v6301
        %v6597 = vunpack.c.l.b16 %v6302
        %v6598 = vunpack.c.l.b16 %v6303
        %v6599 = vunpack.c.l.b16 %v6304
        %v6600 = vunpack.c.l.b16 %v6305
        %v6601 = vunpack.c.l.b16 %v6306
        %v6602 = vunpack.c.l.b16 %v6307
        %v6603 = vunpack.c.l.b16 %v6308
        %v6604 = vunpack.c.l.b16 %v6309
        %v6605 = vunpack.c.l.b16 %v6310
        %v6606 = vunpack.c.l.b16 %v6311
        %v6607 = vunpack.c.l.b16 %v6312
        %v6608 = vunpack.c.l.b16 %v6313
        %v6609 = vunpack.c.l.b16 %v6314
        %v6610 = vunpack.c.l.b16 %v6315
        %v6611 = vunpack.c.l.b16 %v6316
        %v6612 = vunpack.c.l.b16 %v6317
        %v6613 = vunpack.c.l.b16 %v6318
        %v6614 = vunpack.c.l.b16 %v6319
        %v6615 = vunpack.c.l.b16 %v6320
        %v6616 = vunpack.c.l.b16 %v6321
        %v6617 = vunpack.c.l.b16 %v6322
        %v6618 = vunpack.c.l.b16 %v6323
        %v6619 = vpack.c.b16 %v6476, %v6475
        %v6620 = vpack.c.b16 %v6478, %v6477
        %v6621 = vpack.c.b16 %v6480, %v6479
        %v6622 = vpack.c.b16 %v6482, %v6481
        %v6623 = vpack.c.b16 %v6484, %v6483
        %v6624 = vpack.c.b16 %v6486, %v6485
        %v6625 = vpack.c.b16 %v6488, %v6487
        %v6626 = vpack.c.b16 %v6490, %v6489
        %v6627 = vpack.c.b16 %v6492, %v6491
        %v6628 = vpack.c.b16 %v6494, %v6493
        %v6629 = vpack.c.b16 %v6496, %v6495
        %v6630 = vpack.c.b16 %v6498, %v6497
        %v6631 = vpack.c.b16 %v6500, %v6499
        %v6632 = vpack.c.b16 %v6502, %v6501
        %v6633 = vpack.c.b16 %v6504, %v6503
        %v6634 = vpack.c.b16 %v6506, %v6505
        %v6635 = vpack.c.b16 %v6508, %v6507
        %v6636 = vpack.c.b16 %v6510, %v6509
        %v6637 = vpack.c.b16 %v6512, %v6511
        %v6638 = vpack.c.b16 %v6514, %v6513
        %v6639 = vpack.c.b16 %v6516, %v6515
        %v6640 = vpack.c.b16 %v6518, %v6517
        %v6641 = vpack.c.b16 %v6520, %v6519
        %v6642 = vpack.c.b16 %v6522, %v6521
        %v6643 = vpack.c.b16 %v6524, %v6523
        %v6644 = vpack.c.b16 %v6526, %v6525
        %v6645 = vpack.c.b16 %v6528, %v6527
        %v6646 = vpack.c.b16 %v6530, %v6529
        %v6647 = vpack.c.b16 %v6532, %v6531
        %v6648 = vpack.c.b16 %v6534, %v6533
        %v6649 = vpack.c.b16 %v6536, %v6535
        %v6650 = vpack.c.b16 %v6538, %v6537
        %v6651 = vpack.c.b16 %v6540, %v6539
        %v6652 = vpack.c.b16 %v6542, %v6541
        %v6653 = vpack.c.b16 %v6544, %v6543
        %v6654 = vpack.c.b16 %v6546, %v6545
        %v6655 = vpack.c.b16 %v6548, %v6547
        %v6656 = vpack.c.b16 %v6550, %v6549
        %v6657 = vpack.c.b16 %v6552, %v6551
        %v6658 = vpack.c.b16 %v6554, %v6553
        %v6659 = vpack.c.b16 %v6556, %v6555
        %v6660 = vpack.c.b16 %v6558, %v6557
        %v6661 = vpack.c.b16 %v6560, %v6559
        %v6662 = vpack.c.b16 %v6562, %v6561
        %v6663 = vpack.c.b16 %v6564, %v6563
        %v6664 = vpack.c.b16 %v6566, %v6565
        %v6665 = vpack.c.b16 %v6568, %v6567
        %v6666 = vpack.c.b16 %v6570, %v6569
        %v6667 = vpack.c.b16 %v6572, %v6571
        %v6668 = vpack.c.b16 %v6574, %v6573
        %v6669 = vpack.c.b16 %v6576, %v6575
        %v6670 = vpack.c.b16 %v6578, %v6577
        %v6671 = vpack.c.b16 %v6580, %v6579
        %v6672 = vpack.c.b16 %v6582, %v6581
        %v6673 = vpack.c.b16 %v6584, %v6583
        %v6674 = vpack.c.b16 %v6586, %v6585
        %v6675 = vpack.c.b16 %v6588, %v6587
        %v6676 = vpack.c.b16 %v6590, %v6589
        %v6677 = vpack.c.b16 %v6592, %v6591
        %v6678 = vpack.c.b16 %v6594, %v6593
        %v6679 = vpack.c.b16 %v6596, %v6595
        %v6680 = vpack.c.b16 %v6598, %v6597
        %v6681 = vpack.c.b16 %v6600, %v6599
        %v6682 = vpack.c.b16 %v6602, %v6601
        %v6683 = vpack.c.b16 %v6604, %v6603
        %v6684 = vpack.c.b16 %v6606, %v6605
        %v6685 = vpack.c.b16 %v6608, %v6607
        %v6686 = vpack.c.b16 %v6610, %v6609
        %v6687 = vpack.c.b16 %v6612, %v6611
        %v6688 = vpack.c.b16 %v6614, %v6613
        %v6689 = vpack.c.b16 %v6616, %v6615
        %v6690 = vpack.c.b16 %v6618, %v6617
        %6763 = vmatprep.subr.bf16.mxu0 0
        %6764 = vmatpush1.bf16.msra.mxu0 %v6619
        %6765 = vmatprep.subr.bf16.mxu0 0
        %6766 = vmatpush1.bf16.msra.mxu0 %v6620
        %6767 = vmatprep.subr.bf16.mxu0 0
        %6768 = vmatpush1.bf16.msra.mxu0 %v6621
        %6769 = vmatprep.subr.bf16.mxu0 0
        %6770 = vmatpush1.bf16.msra.mxu0 %v6622
        %6771 = vmatprep.subr.bf16.mxu0 0
        %6772 = vmatpush1.bf16.msra.mxu0 %v6623
        %6773 = vmatprep.subr.bf16.mxu0 0
        %6774 = vmatpush1.bf16.msra.mxu0 %v6624
        %6775 = vmatprep.subr.bf16.mxu0 0
        %6776 = vmatpush1.bf16.msra.mxu0 %v6625
        %6777 = vmatprep.subr.bf16.mxu0 0
        %6778 = vmatpush1.bf16.msra.mxu0 %v6626
        %6779 = vmatprep.subr.bf16.mxu0 0
        %6780 = vmatpush1.bf16.msra.mxu0 %v6627
        %6781 = vmatprep.subr.bf16.mxu0 0
        %6782 = vmatpush1.bf16.msra.mxu0 %v6628
        %6783 = vmatprep.subr.bf16.mxu0 0
        %6784 = vmatpush1.bf16.msra.mxu0 %v6629
        %6785 = vmatprep.subr.bf16.mxu0 0
        %6786 = vmatpush1.bf16.msra.mxu0 %v6630
        %6787 = vmatprep.subr.bf16.mxu0 0
        %6788 = vmatpush1.bf16.msra.mxu0 %v6631
        %6789 = vmatprep.subr.bf16.mxu0 0
        %6790 = vmatpush1.bf16.msra.mxu0 %v6632
        %6791 = vmatprep.subr.bf16.mxu0 0
        %6792 = vmatpush1.bf16.msra.mxu0 %v6633
        %6793 = vmatprep.subr.bf16.mxu0 0
        %6794 = vmatpush1.bf16.msra.mxu0 %v6634
        %6795 = vmatprep.mubr.bf16.mxu0 %v6034
        %6796 = vmatmul.mubr.bf16.gmra.mrb[0].mxu0 %v6033
        %v6797 = vpop.f32.mrb[0].mxu0
        %v6798 = vadd.f32 %v6329, %v6797
        %v6799 = vpop.f32.mrb[0].mxu0
        %v6800 = vpop.f32.mrb[0].mxu0
        %v6801 = vadd.f32 %v6329, %v6800
        %v6802 = vpop.f32.mrb[0].mxu0
        %6803 = vmatprep.mubr.bf16.mxu0 %v6043
        %6804 = vmatmul.mubr.bf16.gmra.mrb[0].mxu0 %v6042
        %v6805 = vpop.f32.mrb[0].mxu0
        %v6806 = vadd.f32 %v6329, %v6805
        %v6807 = vpop.f32.mrb[0].mxu0
        %v6808 = vpop.f32.mrb[0].mxu0
        %v6809 = vadd.f32 %v6329, %v6808
        %v6810 = vpop.f32.mrb[0].mxu0
        %6811 = vmatprep.mubr.bf16.mxu0 %v6050
        %6812 = vmatmul.mubr.bf16.gmra.mrb[0].mxu0 %v6049
        %v6813 = vpop.f32.mrb[0].mxu0
        %v6814 = vadd.f32 %v6329, %v6813
        %v6815 = vpop.f32.mrb[0].mxu0
        %v6816 = vpop.f32.mrb[0].mxu0
        %v6817 = vadd.f32 %v6329, %v6816
        %v6818 = vpop.f32.mrb[0].mxu0
        %6819 = vmatprep.mubr.bf16.mxu0 %v6057
        %6820 = vmatmul.mubr.bf16.gmra.mrb[0].mxu0 %v6056
        %v6821 = vpop.f32.mrb[0].mxu0
        %v6822 = vadd.f32 %v6329, %v6821
        %v6823 = vpop.f32.mrb[0].mxu0
        %v6824 = vpop.f32.mrb[0].mxu0
        %v6825 = vadd.f32 %v6329, %v6824
        %v6826 = vpop.f32.mrb[0].mxu0
        %6827 = vmatprep.mubr.bf16.mxu0 %v6064
        %6828 = vmatmul.mubr.bf16.gmra.mrb[0].mxu0 %v6063
        %v6829 = vpop.f32.mrb[0].mxu0
        %v6830 = vadd.f32 %v6329, %v6829
        %v6831 = vpop.f32.mrb[0].mxu0
        %v6832 = vpop.f32.mrb[0].mxu0
        %v6833 = vadd.f32 %v6329, %v6832
        %v6834 = vpop.f32.mrb[0].mxu0
        %6835 = vmatprep.mubr.bf16.mxu0 %v6071
        %6836 = vmatmul.mubr.bf16.gmra.mrb[0].mxu0 %v6070
        %v6837 = vpop.f32.mrb[0].mxu0
        %v6838 = vadd.f32 %v6329, %v6837
        %v6839 = vpop.f32.mrb[0].mxu0
        %v6840 = vpop.f32.mrb[0].mxu0
        %v6841 = vadd.f32 %v6329, %v6840
        %v6842 = vpop.f32.mrb[0].mxu0
        %6843 = vmatprep.mubr.bf16.mxu0 %v6078
        %6844 = vmatmul.mubr.bf16.gmra.mrb[0].mxu0 %v6077
        %v6845 = vpop.f32.mrb[0].mxu0
        %v6846 = vadd.f32 %v6329, %v6845
        %v6847 = vpop.f32.mrb[0].mxu0
        %v6848 = vpop.f32.mrb[0].mxu0
        %v6849 = vadd.f32 %v6329, %v6848
        %v6850 = vpop.f32.mrb[0].mxu0
        %6851 = vmatprep.mubr.bf16.mxu0 %v6085
        %6852 = vmatmul.mubr.bf16.gmra.mrb[0].mxu0 %v6084
        %v6853 = vpop.f32.mrb[0].mxu0
        %v6854 = vadd.f32 %v6329, %v6853
        %v6855 = vpop.f32.mrb[0].mxu0
        %v6856 = vpop.f32.mrb[0].mxu0
        %v6857 = vadd.f32 %v6329, %v6856
        %v6858 = vpop.f32.mrb[0].mxu0
        %6859 = vmatprep.mubr.bf16.mxu0 %v6092
        %6860 = vmatmul.mubr.bf16.gmra.mrb[0].mxu0 %v6091
        %v6861 = vpop.f32.mrb[0].mxu0
        %v6862 = vadd.f32 %v6329, %v6861
        %v6863 = vpop.f32.mrb[0].mxu0
        %v6864 = vpop.f32.mrb[0].mxu0
        %v6865 = vadd.f32 %v6329, %v6864
        %v6866 = vpop.f32.mrb[0].mxu0
        %6867 = vmatprep.mubr.bf16.mxu0 %v6099
        %6868 = vmatmul.mubr.bf16.gmra.mrb[0].mxu0 %v6098
        %v6869 = vpop.f32.mrb[0].mxu0
        %v6870 = vadd.f32 %v6329, %v6869
        %v6871 = vpop.f32.mrb[0].mxu0
        %v6872 = vpop.f32.mrb[0].mxu0
        %v6873 = vadd.f32 %v6329, %v6872
        %v6874 = vpop.f32.mrb[0].mxu0
        %6875 = vmatprep.mubr.bf16.mxu0 %v6106
        %6876 = vmatmul.mubr.bf16.gmra.mrb[0].mxu0 %v6105
        %v6877 = vpop.f32.mrb[0].mxu0
        %v6878 = vadd.f32 %v6329, %v6877
        %v6879 = vpop.f32.mrb[0].mxu0
        %v6880 = vpop.f32.mrb[0].mxu0
        %v6881 = vadd.f32 %v6329, %v6880
        %v6882 = vpop.f32.mrb[0].mxu0
        %6883 = vmatprep.mubr.bf16.mxu0 %v6113
        %6884 = vmatmul.mubr.bf16.gmra.mrb[0].mxu0 %v6112
        %v6885 = vpop.f32.mrb[0].mxu0
        %v6886 = vadd.f32 %v6329, %v6885
        %v6887 = vpop.f32.mrb[0].mxu0
        %v6888 = vpop.f32.mrb[0].mxu0
        %v6889 = vadd.f32 %v6329, %v6888
        %v6890 = vpop.f32.mrb[0].mxu0
        %6891 = vmatprep.mubr.bf16.mxu0 %v6120
        %6892 = vmatmul.mubr.bf16.gmra.mrb[0].mxu0 %v6119
        %v6893 = vpop.f32.mrb[0].mxu0
        %v6894 = vadd.f32 %v6329, %v6893
        %v6895 = vpop.f32.mrb[0].mxu0
        %v6896 = vpop.f32.mrb[0].mxu0
        %v6897 = vadd.f32 %v6329, %v6896
        %v6898 = vpop.f32.mrb[0].mxu0
        %6899 = vmatprep.mubr.bf16.mxu0 %v6127
        %6900 = vmatmul.mubr.bf16.gmra.mrb[0].mxu0 %v6126
        %v6901 = vpop.f32.mrb[0].mxu0
        %v6902 = vadd.f32 %v6329, %v6901
        %v6903 = vpop.f32.mrb[0].mxu0
        %v6904 = vpop.f32.mrb[0].mxu0
        %v6905 = vadd.f32 %v6329, %v6904
        %v6906 = vpop.f32.mrb[0].mxu0
        %6907 = vmatprep.mubr.bf16.mxu0 %v6134
        %6908 = vmatmul.mubr.bf16.gmra.mrb[0].mxu0 %v6133
        %v6909 = vpop.f32.mrb[0].mxu0
        %v6910 = vadd.f32 %v6329, %v6909
        %v6911 = vpop.f32.mrb[0].mxu0
        %v6912 = vpop.f32.mrb[0].mxu0
        %v6913 = vadd.f32 %v6329, %v6912
        %v6914 = vpop.f32.mrb[0].mxu0
        %6915 = vmatprep.mubr.bf16.mxu0 %v6141
        %6916 = vmatmul.mubr.bf16.gmra.mrb[0].mxu0 %v6140
        %v6917 = vpop.f32.mrb[0].mxu0
        %v6918 = vadd.f32 %v6329, %v6917
        %v6919 = vpop.f32.mrb[0].mxu0
        %v6920 = vpop.f32.mrb[0].mxu0
        %v6921 = vadd.f32 %v6329, %v6920
        %v6922 = vpop.f32.mrb[0].mxu0
        %6923 = vmatprep.mubr.bf16.mxu0 %v6148
        %6924 = vmatmul.mubr.bf16.gmra.mrb[0].mxu0 %v6147
        %v6925 = vpop.f32.mrb[0].mxu0
        %v6926 = vadd.f32 %v6329, %v6925
        %v6927 = vpop.f32.mrb[0].mxu0
        %v6928 = vpop.f32.mrb[0].mxu0
        %v6929 = vadd.f32 %v6329, %v6928
        %v6930 = vpop.f32.mrb[0].mxu0
        %6931 = vmatprep.mubr.bf16.mxu0 %v6155
        %6932 = vmatmul.mubr.bf16.gmra.mrb[0].mxu0 %v6154
        %v6933 = vpop.f32.mrb[0].mxu0
        %v6934 = vadd.f32 %v6329, %v6933
        %v6935 = vpop.f32.mrb[0].mxu0
        %v6936 = vpop.f32.mrb[0].mxu0
        %v6937 = vadd.f32 %v6329, %v6936
        %v6938 = vpop.f32.mrb[0].mxu0
        %6939 = vmatprep.mubr.bf16.mxu0 %v6162
        %6940 = vmatmul.mubr.bf16.gmra.mrb[0].mxu0 %v6161
        %v6941 = vpop.f32.mrb[0].mxu0
        %v6942 = vadd.f32 %v6329, %v6941
        %v6943 = vpop.f32.mrb[0].mxu0
        %v6944 = vpop.f32.mrb[0].mxu0
        %v6945 = vadd.f32 %v6329, %v6944
        %v6946 = vpop.f32.mrb[0].mxu0
        %6947 = vmatprep.mubr.bf16.mxu0 %v6169
        %6948 = vmatmul.mubr.bf16.gmra.mrb[0].mxu0 %v6168
        %v6949 = vpop.f32.mrb[0].mxu0
        %v6950 = vadd.f32 %v6329, %v6949
        %v6951 = vpop.f32.mrb[0].mxu0
        %v6952 = vpop.f32.mrb[0].mxu0
        %v6953 = vadd.f32 %v6329, %v6952
        %v6954 = vpop.f32.mrb[0].mxu0
        %6955 = vmatprep.mubr.bf16.mxu0 %v6176
        %6956 = vmatmul.mubr.bf16.gmra.mrb[0].mxu0 %v6175
        %v6957 = vpop.f32.mrb[0].mxu0
        %v6958 = vadd.f32 %v6329, %v6957
        %v6959 = vpop.f32.mrb[0].mxu0
        %v6960 = vpop.f32.mrb[0].mxu0
        %v6961 = vadd.f32 %v6329, %v6960
        %v6962 = vpop.f32.mrb[0].mxu0
        %6963 = vdwg.mxu0
        %6964 = vmatprep.subr.bf16.mxu0 0
        %6965 = vmatpush1.bf16.msra.mxu0 %v6635
        %6966 = vmatprep.subr.bf16.mxu0 0
        %6967 = vmatpush1.bf16.msra.mxu0 %v6636
        %6968 = vmatprep.subr.bf16.mxu0 0
        %6969 = vmatpush1.bf16.msra.mxu0 %v6637
        %6970 = vmatprep.subr.bf16.mxu0 0
        %6971 = vmatpush1.bf16.msra.mxu0 %v6638
        %6972 = vmatprep.subr.bf16.mxu0 0
        %6973 = vmatpush1.bf16.msra.mxu0 %v6639
        %6974 = vmatprep.subr.bf16.mxu0 0
        %6975 = vmatpush1.bf16.msra.mxu0 %v6640
        %6976 = vmatprep.subr.bf16.mxu0 0
        %6977 = vmatpush1.bf16.msra.mxu0 %v6641
        %6978 = vmatprep.subr.bf16.mxu0 0
        %6979 = vmatpush1.bf16.msra.mxu0 %v6642
        %6980 = vmatprep.subr.bf16.mxu0 0
        %6981 = vmatpush1.bf16.msra.mxu0 %v6643
        %6982 = vmatprep.subr.bf16.mxu0 0
        %6983 = vmatpush1.bf16.msra.mxu0 %v6644
        %6984 = vmatprep.subr.bf16.mxu0 0
        %6985 = vmatpush1.bf16.msra.mxu0 %v6645
        %6986 = vmatprep.subr.bf16.mxu0 0
        %6987 = vmatpush1.bf16.msra.mxu0 %v6646
        %6988 = vmatprep.subr.bf16.mxu0 0
        %6989 = vmatpush1.bf16.msra.mxu0 %v6647
        %6990 = vmatprep.subr.bf16.mxu0 0
        %6991 = vmatpush1.bf16.msra.mxu0 %v6648
        %6992 = vmatprep.subr.bf16.mxu0 0
        %6993 = vmatpush1.bf16.msra.mxu0 %v6649
        %6994 = vmatprep.subr.bf16.mxu0 0
        %6995 = vmatpush1.bf16.msra.mxu0 %v6650
        %6996 = vmatprep.mubr.bf16.mxu0 %v6036
        %6997 = vmatmul.mubr.bf16.gmra.mrb[0].mxu0 %v6035
        %v6998 = vpop.f32.mrb[0].mxu0
        %v6999 = vadd.f32 %v6798, %v6998
        %v7000 = vpop.f32.mrb[0].mxu0
        %v7001 = vpop.f32.mrb[0].mxu0
        %v7002 = vadd.f32 %v6801, %v7001
        %v7003 = vpop.f32.mrb[0].mxu0
        %7004 = vmatprep.mubr.bf16.mxu0 %v6044
        %7005 = vmatmul.mubr.bf16.gmra.mrb[0].mxu0 %v6036
        %v7006 = vpop.f32.mrb[0].mxu0
        %v7007 = vadd.f32 %v6806, %v7006
        %v7008 = vpop.f32.mrb[0].mxu0
        %v7009 = vpop.f32.mrb[0].mxu0
        %v7010 = vadd.f32 %v6809, %v7009
        %v7011 = vpop.f32.mrb[0].mxu0
        %7012 = vmatprep.mubr.bf16.mxu0 %v6051
        %7013 = vmatmul.mubr.bf16.gmra.mrb[0].mxu0 %v6044
        %v7014 = vpop.f32.mrb[0].mxu0
        %v7015 = vadd.f32 %v6814, %v7014
        %v7016 = vpop.f32.mrb[0].mxu0
        %v7017 = vpop.f32.mrb[0].mxu0
        %v7018 = vadd.f32 %v6817, %v7017
        %v7019 = vpop.f32.mrb[0].mxu0
        %7020 = vmatprep.mubr.bf16.mxu0 %v6058
        %7021 = vmatmul.mubr.bf16.gmra.mrb[0].mxu0 %v6051
        %v7022 = vpop.f32.mrb[0].mxu0
        %v7023 = vadd.f32 %v6822, %v7022
        %v7024 = vpop.f32.mrb[0].mxu0
        %v7025 = vpop.f32.mrb[0].mxu0
        %v7026 = vadd.f32 %v6825, %v7025
        %v7027 = vpop.f32.mrb[0].mxu0
        %7028 = vmatprep.mubr.bf16.mxu0 %v6065
        %7029 = vmatmul.mubr.bf16.gmra.mrb[0].mxu0 %v6058
        %v7030 = vpop.f32.mrb[0].mxu0
        %v7031 = vadd.f32 %v6830, %v7030
        %v7032 = vpop.f32.mrb[0].mxu0
        %v7033 = vpop.f32.mrb[0].mxu0
        %v7034 = vadd.f32 %v6833, %v7033
        %v7035 = vpop.f32.mrb[0].mxu0
        %7036 = vmatprep.mubr.bf16.mxu0 %v6072
        %7037 = vmatmul.mubr.bf16.gmra.mrb[0].mxu0 %v6065
        %v7038 = vpop.f32.mrb[0].mxu0
        %v7039 = vadd.f32 %v6838, %v7038
        %v7040 = vpop.f32.mrb[0].mxu0
        %v7041 = vpop.f32.mrb[0].mxu0
        %v7042 = vadd.f32 %v6841, %v7041
        %v7043 = vpop.f32.mrb[0].mxu0
        %7044 = vmatprep.mubr.bf16.mxu0 %v6079
        %7045 = vmatmul.mubr.bf16.gmra.mrb[0].mxu0 %v6072
        %v7046 = vpop.f32.mrb[0].mxu0
        %v7047 = vadd.f32 %v6846, %v7046
        %v7048 = vpop.f32.mrb[0].mxu0
        %v7049 = vpop.f32.mrb[0].mxu0
        %v7050 = vadd.f32 %v6849, %v7049
        %v7051 = vpop.f32.mrb[0].mxu0
        %7052 = vmatprep.mubr.bf16.mxu0 %v6086
        %7053 = vmatmul.mubr.bf16.gmra.mrb[0].mxu0 %v6079
        %v7054 = vpop.f32.mrb[0].mxu0
        %v7055 = vadd.f32 %v6854, %v7054
        %v7056 = vpop.f32.mrb[0].mxu0
        %v7057 = vpop.f32.mrb[0].mxu0
        %v7058 = vadd.f32 %v6857, %v7057
        %v7059 = vpop.f32.mrb[0].mxu0
        %7060 = vmatprep.mubr.bf16.mxu0 %v6093
        %7061 = vmatmul.mubr.bf16.gmra.mrb[0].mxu0 %v6086
        %v7062 = vpop.f32.mrb[0].mxu0
        %v7063 = vadd.f32 %v6862, %v7062
        %v7064 = vpop.f32.mrb[0].mxu0
        %v7065 = vpop.f32.mrb[0].mxu0
        %v7066 = vadd.f32 %v6865, %v7065
        %v7067 = vpop.f32.mrb[0].mxu0
        %7068 = vmatprep.mubr.bf16.mxu0 %v6100
        %7069 = vmatmul.mubr.bf16.gmra.mrb[0].mxu0 %v6093
        %v7070 = vpop.f32.mrb[0].mxu0
        %v7071 = vadd.f32 %v6870, %v7070
        %v7072 = vpop.f32.mrb[0].mxu0
        %v7073 = vpop.f32.mrb[0].mxu0
        %v7074 = vadd.f32 %v6873, %v7073
        %v7075 = vpop.f32.mrb[0].mxu0
        %7076 = vmatprep.mubr.bf16.mxu0 %v6107
        %7077 = vmatmul.mubr.bf16.gmra.mrb[0].mxu0 %v6100
        %v7078 = vpop.f32.mrb[0].mxu0
        %v7079 = vadd.f32 %v6878, %v7078
        %v7080 = vpop.f32.mrb[0].mxu0
        %v7081 = vpop.f32.mrb[0].mxu0
        %v7082 = vadd.f32 %v6881, %v7081
        %v7083 = vpop.f32.mrb[0].mxu0
        %7084 = vmatprep.mubr.bf16.mxu0 %v6114
        %7085 = vmatmul.mubr.bf16.gmra.mrb[0].mxu0 %v6107
        %v7086 = vpop.f32.mrb[0].mxu0
        %v7087 = vadd.f32 %v6886, %v7086
        %v7088 = vpop.f32.mrb[0].mxu0
        %v7089 = vpop.f32.mrb[0].mxu0
        %v7090 = vadd.f32 %v6889, %v7089
        %v7091 = vpop.f32.mrb[0].mxu0
        %7092 = vmatprep.mubr.bf16.mxu0 %v6121
        %7093 = vmatmul.mubr.bf16.gmra.mrb[0].mxu0 %v6114
        %v7094 = vpop.f32.mrb[0].mxu0
        %v7095 = vadd.f32 %v6894, %v7094
        %v7096 = vpop.f32.mrb[0].mxu0
        %v7097 = vpop.f32.mrb[0].mxu0
        %v7098 = vadd.f32 %v6897, %v7097
        %v7099 = vpop.f32.mrb[0].mxu0
        %7100 = vmatprep.mubr.bf16.mxu0 %v6128
        %7101 = vmatmul.mubr.bf16.gmra.mrb[0].mxu0 %v6121
        %v7102 = vpop.f32.mrb[0].mxu0
        %v7103 = vadd.f32 %v6902, %v7102
        %v7104 = vpop.f32.mrb[0].mxu0
        %v7105 = vpop.f32.mrb[0].mxu0
        %v7106 = vadd.f32 %v6905, %v7105
        %v7107 = vpop.f32.mrb[0].mxu0
        %7108 = vmatprep.mubr.bf16.mxu0 %v6135
        %7109 = vmatmul.mubr.bf16.gmra.mrb[0].mxu0 %v6128
        %v7110 = vpop.f32.mrb[0].mxu0
        %v7111 = vadd.f32 %v6910, %v7110
        %v7112 = vpop.f32.mrb[0].mxu0
        %v7113 = vpop.f32.mrb[0].mxu0
        %v7114 = vadd.f32 %v6913, %v7113
        %v7115 = vpop.f32.mrb[0].mxu0
        %7116 = vmatprep.mubr.bf16.mxu0 %v6142
        %7117 = vmatmul.mubr.bf16.gmra.mrb[0].mxu0 %v6135
        %v7118 = vpop.f32.mrb[0].mxu0
        %v7119 = vadd.f32 %v6918, %v7118
        %v7120 = vpop.f32.mrb[0].mxu0
        %v7121 = vpop.f32.mrb[0].mxu0
        %v7122 = vadd.f32 %v6921, %v7121
        %v7123 = vpop.f32.mrb[0].mxu0
        %7124 = vmatprep.mubr.bf16.mxu0 %v6149
        %7125 = vmatmul.mubr.bf16.gmra.mrb[0].mxu0 %v6142
        %v7126 = vpop.f32.mrb[0].mxu0
        %v7127 = vadd.f32 %v6926, %v7126
        %v7128 = vpop.f32.mrb[0].mxu0
        %v7129 = vpop.f32.mrb[0].mxu0
        %v7130 = vadd.f32 %v6929, %v7129
        %v7131 = vpop.f32.mrb[0].mxu0
        %7132 = vmatprep.mubr.bf16.mxu0 %v6156
        %7133 = vmatmul.mubr.bf16.gmra.mrb[0].mxu0 %v6149
        %v7134 = vpop.f32.mrb[0].mxu0
        %v7135 = vadd.f32 %v6934, %v7134
        %v7136 = vpop.f32.mrb[0].mxu0
        %v7137 = vpop.f32.mrb[0].mxu0
        %v7138 = vadd.f32 %v6937, %v7137
        %v7139 = vpop.f32.mrb[0].mxu0
        %7140 = vmatprep.mubr.bf16.mxu0 %v6163
        %7141 = vmatmul.mubr.bf16.gmra.mrb[0].mxu0 %v6156
        %v7142 = vpop.f32.mrb[0].mxu0
        %v7143 = vadd.f32 %v6942, %v7142
        %v7144 = vpop.f32.mrb[0].mxu0
        %v7145 = vpop.f32.mrb[0].mxu0
        %v7146 = vadd.f32 %v6945, %v7145
        %v7147 = vpop.f32.mrb[0].mxu0
        %7148 = vmatprep.mubr.bf16.mxu0 %v6170
        %7149 = vmatmul.mubr.bf16.gmra.mrb[0].mxu0 %v6163
        %v7150 = vpop.f32.mrb[0].mxu0
        %v7151 = vadd.f32 %v6950, %v7150
        %v7152 = vpop.f32.mrb[0].mxu0
        %v7153 = vpop.f32.mrb[0].mxu0
        %v7154 = vadd.f32 %v6953, %v7153
        %v7155 = vpop.f32.mrb[0].mxu0
        %7156 = vmatprep.mubr.bf16.mxu0 %v6035
        %7157 = vmatmul.mubr.bf16.gmra.mrb[0].mxu0 %v6170
        %v7158 = vpop.f32.mrb[0].mxu0
        %v7159 = vadd.f32 %v6958, %v7158
        %v7160 = vpop.f32.mrb[0].mxu0
        %v7161 = vpop.f32.mrb[0].mxu0
        %v7162 = vadd.f32 %v6961, %v7161
        %v7163 = vpop.f32.mrb[0].mxu0
        %7164 = vdwg.mxu0
        %7165 = vmatprep.subr.bf16.mxu0 0
        %7166 = vmatpush1.bf16.msra.mxu0 %v6651
        %7167 = vmatprep.subr.bf16.mxu0 0
        %7168 = vmatpush1.bf16.msra.mxu0 %v6652
        %7169 = vmatprep.subr.bf16.mxu0 0
        %7170 = vmatpush1.bf16.msra.mxu0 %v6653
        %7171 = vmatprep.subr.bf16.mxu0 0
        %7172 = vmatpush1.bf16.msra.mxu0 %v6654
        %7173 = vmatprep.subr.bf16.mxu0 0
        %7174 = vmatpush1.bf16.msra.mxu0 %v6655
        %7175 = vmatprep.subr.bf16.mxu0 0
        %7176 = vmatpush1.bf16.msra.mxu0 %v6656
        %7177 = vmatprep.subr.bf16.mxu0 0
        %7178 = vmatpush1.bf16.msra.mxu0 %v6657
        %7179 = vmatprep.subr.bf16.mxu0 0
        %7180 = vmatpush1.bf16.msra.mxu0 %v6658
        %7181 = vmatprep.subr.bf16.mxu0 0
        %7182 = vmatpush1.bf16.msra.mxu0 %v6659
        %7183 = vmatprep.subr.bf16.mxu0 0
        %7184 = vmatpush1.bf16.msra.mxu0 %v6660
        %7185 = vmatprep.subr.bf16.mxu0 0
        %7186 = vmatpush1.bf16.msra.mxu0 %v6661
        %7187 = vmatprep.subr.bf16.mxu0 0
        %7188 = vmatpush1.bf16.msra.mxu0 %v6662
        %7189 = vmatprep.subr.bf16.mxu0 0
        %7190 = vmatpush1.bf16.msra.mxu0 %v6663
        %7191 = vmatprep.subr.bf16.mxu0 0
        %7192 = vmatpush1.bf16.msra.mxu0 %v6664
        %7193 = vmatprep.subr.bf16.mxu0 0
        %7194 = vmatpush1.bf16.msra.mxu0 %v6665
        %7195 = vmatprep.subr.bf16.mxu0 0
        %7196 = vmatpush1.bf16.msra.mxu0 %v6666
        %7197 = vmatprep.mubr.bf16.mxu0 %v6038
        %7198 = vmatmul.mubr.bf16.gmra.mrb[0].mxu0 %v6037
        %v7199 = vpop.f32.mrb[0].mxu0
        %v7200 = vadd.f32 %v6999, %v7199
        %v7201 = vpop.f32.mrb[0].mxu0
        %v7202 = vpop.f32.mrb[0].mxu0
        %v7203 = vadd.f32 %v7002, %v7202
        %v7204 = vpop.f32.mrb[0].mxu0
        %7205 = vmatprep.mubr.bf16.mxu0 %v6039
        %7206 = vmatmul.mubr.bf16.gmra.mrb[0].mxu0 %v6045
        %v7207 = vpop.f32.mrb[0].mxu0
        %v7208 = vadd.f32 %v7007, %v7207
        %v7209 = vpop.f32.mrb[0].mxu0
        %v7210 = vpop.f32.mrb[0].mxu0
        %v7211 = vadd.f32 %v7010, %v7210
        %v7212 = vpop.f32.mrb[0].mxu0
        %7213 = vmatprep.mubr.bf16.mxu0 %v6046
        %7214 = vmatmul.mubr.bf16.gmra.mrb[0].mxu0 %v6052
        %v7215 = vpop.f32.mrb[0].mxu0
        %v7216 = vadd.f32 %v7015, %v7215
        %v7217 = vpop.f32.mrb[0].mxu0
        %v7218 = vpop.f32.mrb[0].mxu0
        %v7219 = vadd.f32 %v7018, %v7218
        %v7220 = vpop.f32.mrb[0].mxu0
        %7221 = vmatprep.mubr.bf16.mxu0 %v6053
        %7222 = vmatmul.mubr.bf16.gmra.mrb[0].mxu0 %v6059
        %v7223 = vpop.f32.mrb[0].mxu0
        %v7224 = vadd.f32 %v7023, %v7223
        %v7225 = vpop.f32.mrb[0].mxu0
        %v7226 = vpop.f32.mrb[0].mxu0
        %v7227 = vadd.f32 %v7026, %v7226
        %v7228 = vpop.f32.mrb[0].mxu0
        %7229 = vmatprep.mubr.bf16.mxu0 %v6060
        %7230 = vmatmul.mubr.bf16.gmra.mrb[0].mxu0 %v6066
        %v7231 = vpop.f32.mrb[0].mxu0
        %v7232 = vadd.f32 %v7031, %v7231
        %v7233 = vpop.f32.mrb[0].mxu0
        %v7234 = vpop.f32.mrb[0].mxu0
        %v7235 = vadd.f32 %v7034, %v7234
        %v7236 = vpop.f32.mrb[0].mxu0
        %7237 = vmatprep.mubr.bf16.mxu0 %v6067
        %7238 = vmatmul.mubr.bf16.gmra.mrb[0].mxu0 %v6073
        %v7239 = vpop.f32.mrb[0].mxu0
        %v7240 = vadd.f32 %v7039, %v7239
        %v7241 = vpop.f32.mrb[0].mxu0
        %v7242 = vpop.f32.mrb[0].mxu0
        %v7243 = vadd.f32 %v7042, %v7242
        %v7244 = vpop.f32.mrb[0].mxu0
        %7245 = vmatprep.mubr.bf16.mxu0 %v6074
        %7246 = vmatmul.mubr.bf16.gmra.mrb[0].mxu0 %v6080
        %v7247 = vpop.f32.mrb[0].mxu0
        %v7248 = vadd.f32 %v7047, %v7247
        %v7249 = vpop.f32.mrb[0].mxu0
        %v7250 = vpop.f32.mrb[0].mxu0
        %v7251 = vadd.f32 %v7050, %v7250
        %v7252 = vpop.f32.mrb[0].mxu0
        %7253 = vmatprep.mubr.bf16.mxu0 %v6081
        %7254 = vmatmul.mubr.bf16.gmra.mrb[0].mxu0 %v6087
        %v7255 = vpop.f32.mrb[0].mxu0
        %v7256 = vadd.f32 %v7055, %v7255
        %v7257 = vpop.f32.mrb[0].mxu0
        %v7258 = vpop.f32.mrb[0].mxu0
        %v7259 = vadd.f32 %v7058, %v7258
        %v7260 = vpop.f32.mrb[0].mxu0
        %7261 = vmatprep.mubr.bf16.mxu0 %v6088
        %7262 = vmatmul.mubr.bf16.gmra.mrb[0].mxu0 %v6094
        %v7263 = vpop.f32.mrb[0].mxu0
        %v7264 = vadd.f32 %v7063, %v7263
        %v7265 = vpop.f32.mrb[0].mxu0
        %v7266 = vpop.f32.mrb[0].mxu0
        %v7267 = vadd.f32 %v7066, %v7266
        %v7268 = vpop.f32.mrb[0].mxu0
        %7269 = vmatprep.mubr.bf16.mxu0 %v6095
        %7270 = vmatmul.mubr.bf16.gmra.mrb[0].mxu0 %v6101
        %v7271 = vpop.f32.mrb[0].mxu0
        %v7272 = vadd.f32 %v7071, %v7271
        %v7273 = vpop.f32.mrb[0].mxu0
        %v7274 = vpop.f32.mrb[0].mxu0
        %v7275 = vadd.f32 %v7074, %v7274
        %v7276 = vpop.f32.mrb[0].mxu0
        %7277 = vmatprep.mubr.bf16.mxu0 %v6102
        %7278 = vmatmul.mubr.bf16.gmra.mrb[0].mxu0 %v6108
        %v7279 = vpop.f32.mrb[0].mxu0
        %v7280 = vadd.f32 %v7079, %v7279
        %v7281 = vpop.f32.mrb[0].mxu0
        %v7282 = vpop.f32.mrb[0].mxu0
        %v7283 = vadd.f32 %v7082, %v7282
        %v7284 = vpop.f32.mrb[0].mxu0
        %7285 = vmatprep.mubr.bf16.mxu0 %v6109
        %7286 = vmatmul.mubr.bf16.gmra.mrb[0].mxu0 %v6115
        %v7287 = vpop.f32.mrb[0].mxu0
        %v7288 = vadd.f32 %v7087, %v7287
        %v7289 = vpop.f32.mrb[0].mxu0
        %v7290 = vpop.f32.mrb[0].mxu0
        %v7291 = vadd.f32 %v7090, %v7290
        %v7292 = vpop.f32.mrb[0].mxu0
        %7293 = vmatprep.mubr.bf16.mxu0 %v6116
        %7294 = vmatmul.mubr.bf16.gmra.mrb[0].mxu0 %v6122
        %v7295 = vpop.f32.mrb[0].mxu0
        %v7296 = vadd.f32 %v7095, %v7295
        %v7297 = vpop.f32.mrb[0].mxu0
        %v7298 = vpop.f32.mrb[0].mxu0
        %v7299 = vadd.f32 %v7098, %v7298
        %v7300 = vpop.f32.mrb[0].mxu0
        %7301 = vmatprep.mubr.bf16.mxu0 %v6123
        %7302 = vmatmul.mubr.bf16.gmra.mrb[0].mxu0 %v6129
        %v7303 = vpop.f32.mrb[0].mxu0
        %v7304 = vadd.f32 %v7103, %v7303
        %v7305 = vpop.f32.mrb[0].mxu0
        %v7306 = vpop.f32.mrb[0].mxu0
        %v7307 = vadd.f32 %v7106, %v7306
        %v7308 = vpop.f32.mrb[0].mxu0
        %7309 = vmatprep.mubr.bf16.mxu0 %v6130
        %7310 = vmatmul.mubr.bf16.gmra.mrb[0].mxu0 %v6136
        %v7311 = vpop.f32.mrb[0].mxu0
        %v7312 = vadd.f32 %v7111, %v7311
        %v7313 = vpop.f32.mrb[0].mxu0
        %v7314 = vpop.f32.mrb[0].mxu0
        %v7315 = vadd.f32 %v7114, %v7314
        %v7316 = vpop.f32.mrb[0].mxu0
        %7317 = vmatprep.mubr.bf16.mxu0 %v6137
        %7318 = vmatmul.mubr.bf16.gmra.mrb[0].mxu0 %v6143
        %v7319 = vpop.f32.mrb[0].mxu0
        %v7320 = vadd.f32 %v7119, %v7319
        %v7321 = vpop.f32.mrb[0].mxu0
        %v7322 = vpop.f32.mrb[0].mxu0
        %v7323 = vadd.f32 %v7122, %v7322
        %v7324 = vpop.f32.mrb[0].mxu0
        %7325 = vmatprep.mubr.bf16.mxu0 %v6144
        %7326 = vmatmul.mubr.bf16.gmra.mrb[0].mxu0 %v6150
        %v7327 = vpop.f32.mrb[0].mxu0
        %v7328 = vadd.f32 %v7127, %v7327
        %v7329 = vpop.f32.mrb[0].mxu0
        %v7330 = vpop.f32.mrb[0].mxu0
        %v7331 = vadd.f32 %v7130, %v7330
        %v7332 = vpop.f32.mrb[0].mxu0
        %7333 = vmatprep.mubr.bf16.mxu0 %v6151
        %7334 = vmatmul.mubr.bf16.gmra.mrb[0].mxu0 %v6157
        %v7335 = vpop.f32.mrb[0].mxu0
        %v7336 = vadd.f32 %v7135, %v7335
        %v7337 = vpop.f32.mrb[0].mxu0
        %v7338 = vpop.f32.mrb[0].mxu0
        %v7339 = vadd.f32 %v7138, %v7338
        %v7340 = vpop.f32.mrb[0].mxu0
        %7341 = vmatprep.mubr.bf16.mxu0 %v6158
        %7342 = vmatmul.mubr.bf16.gmra.mrb[0].mxu0 %v6164
        %v7343 = vpop.f32.mrb[0].mxu0
        %v7344 = vadd.f32 %v7143, %v7343
        %v7345 = vpop.f32.mrb[0].mxu0
        %v7346 = vpop.f32.mrb[0].mxu0
        %v7347 = vadd.f32 %v7146, %v7346
        %v7348 = vpop.f32.mrb[0].mxu0
        %7349 = vmatprep.mubr.bf16.mxu0 %v6165
        %7350 = vmatmul.mubr.bf16.gmra.mrb[0].mxu0 %v6171
        %v7351 = vpop.f32.mrb[0].mxu0
        %v7352 = vadd.f32 %v7151, %v7351
        %v7353 = vpop.f32.mrb[0].mxu0
        %v7354 = vpop.f32.mrb[0].mxu0
        %v7355 = vadd.f32 %v7154, %v7354
        %v7356 = vpop.f32.mrb[0].mxu0
        %7357 = vmatprep.mubr.bf16.mxu0 %v6172
        %7358 = vmatmul.mubr.bf16.gmra.mrb[0].mxu0 %v6177
        %v7359 = vpop.f32.mrb[0].mxu0
        %v7360 = vadd.f32 %v7159, %v7359
        %v7361 = vpop.f32.mrb[0].mxu0
        %v7362 = vpop.f32.mrb[0].mxu0
        %v7363 = vadd.f32 %v7162, %v7362
        %v7364 = vpop.f32.mrb[0].mxu0
        %7365 = vdwg.mxu0
        %7366 = vmatprep.subr.bf16.mxu0 0
        %7367 = vmatpush1.bf16.msra.mxu0 %v6667
        %7368 = vmatprep.subr.bf16.mxu0 0
        %7369 = vmatpush1.bf16.msra.mxu0 %v6668
        %7370 = vmatprep.subr.bf16.mxu0 0
        %7371 = vmatpush1.bf16.msra.mxu0 %v6669
        %7372 = vmatprep.subr.bf16.mxu0 0
        %7373 = vmatpush1.bf16.msra.mxu0 %v6670
        %7374 = vmatprep.subr.bf16.mxu0 0
        %7375 = vmatpush1.bf16.msra.mxu0 %v6671
        %7376 = vmatprep.subr.bf16.mxu0 0
        %7377 = vmatpush1.bf16.msra.mxu0 %v6672
        %7378 = vmatprep.subr.bf16.mxu0 0
        %7379 = vmatpush1.bf16.msra.mxu0 %v6673
        %7380 = vmatprep.subr.bf16.mxu0 0
        %7381 = vmatpush1.bf16.msra.mxu0 %v6674
        %7382 = vmatprep.subr.bf16.mxu0 0
        %7383 = vmatpush1.bf16.msra.mxu0 %v6675
        %7384 = vmatprep.subr.bf16.mxu0 0
        %7385 = vmatpush1.bf16.msra.mxu0 %v6676
        %7386 = vmatprep.subr.bf16.mxu0 0
        %7387 = vmatpush1.bf16.msra.mxu0 %v6677
        %7388 = vmatprep.subr.bf16.mxu0 0
        %7389 = vmatpush1.bf16.msra.mxu0 %v6678
        %7390 = vmatprep.subr.bf16.mxu0 0
        %7391 = vmatpush1.bf16.msra.mxu0 %v6679
        %7392 = vmatprep.subr.bf16.mxu0 0
        %7393 = vmatpush1.bf16.msra.mxu0 %v6680
        %7394 = vmatprep.subr.bf16.mxu0 0
        %7395 = vmatpush1.bf16.msra.mxu0 %v6681
        %7396 = vmatprep.subr.bf16.mxu0 0
        %7397 = vmatpush1.bf16.msra.mxu0 %v6682
        %7398 = vmatprep.mubr.bf16.mxu0 %v6040
        %7399 = vmatmul.mubr.bf16.gmra.mrb[0].mxu0 %v6039
        %v7400 = vpop.f32.mrb[0].mxu0
        %v7401 = vadd.f32 %v7200, %v7400
        %v7402 = vpop.f32.mrb[0].mxu0
        %v7403 = vpop.f32.mrb[0].mxu0
        %v7404 = vadd.f32 %v7203, %v7403
        %v7405 = vpop.f32.mrb[0].mxu0
        %7406 = vmatprep.mubr.bf16.mxu0 %v6047
        %7407 = vmatmul.mubr.bf16.gmra.mrb[0].mxu0 %v6046
        %v7408 = vpop.f32.mrb[0].mxu0
        %v7409 = vadd.f32 %v7208, %v7408
        %v7410 = vpop.f32.mrb[0].mxu0
        %v7411 = vpop.f32.mrb[0].mxu0
        %v7412 = vadd.f32 %v7211, %v7411
        %v7413 = vpop.f32.mrb[0].mxu0
        %7414 = vmatprep.mubr.bf16.mxu0 %v6054
        %7415 = vmatmul.mubr.bf16.gmra.mrb[0].mxu0 %v6053
        %v7416 = vpop.f32.mrb[0].mxu0
        %v7417 = vadd.f32 %v7216, %v7416
        %v7418 = vpop.f32.mrb[0].mxu0
        %v7419 = vpop.f32.mrb[0].mxu0
        %v7420 = vadd.f32 %v7219, %v7419
        %v7421 = vpop.f32.mrb[0].mxu0
        %7422 = vmatprep.mubr.bf16.mxu0 %v6061
        %7423 = vmatmul.mubr.bf16.gmra.mrb[0].mxu0 %v6060
        %v7424 = vpop.f32.mrb[0].mxu0
        %v7425 = vadd.f32 %v7224, %v7424
        %v7426 = vpop.f32.mrb[0].mxu0
        %v7427 = vpop.f32.mrb[0].mxu0
        %v7428 = vadd.f32 %v7227, %v7427
        %v7429 = vpop.f32.mrb[0].mxu0
        %7430 = vmatprep.mubr.bf16.mxu0 %v6068
        %7431 = vmatmul.mubr.bf16.gmra.mrb[0].mxu0 %v6067
        %v7432 = vpop.f32.mrb[0].mxu0
        %v7433 = vadd.f32 %v7232, %v7432
        %v7434 = vpop.f32.mrb[0].mxu0
        %v7435 = vpop.f32.mrb[0].mxu0
        %v7436 = vadd.f32 %v7235, %v7435
        %v7437 = vpop.f32.mrb[0].mxu0
        %7438 = vmatprep.mubr.bf16.mxu0 %v6075
        %7439 = vmatmul.mubr.bf16.gmra.mrb[0].mxu0 %v6074
        %v7440 = vpop.f32.mrb[0].mxu0
        %v7441 = vadd.f32 %v7240, %v7440
        %v7442 = vpop.f32.mrb[0].mxu0
        %v7443 = vpop.f32.mrb[0].mxu0
        %v7444 = vadd.f32 %v7243, %v7443
        %v7445 = vpop.f32.mrb[0].mxu0
        %7446 = vmatprep.mubr.bf16.mxu0 %v6082
        %7447 = vmatmul.mubr.bf16.gmra.mrb[0].mxu0 %v6081
        %v7448 = vpop.f32.mrb[0].mxu0
        %v7449 = vadd.f32 %v7248, %v7448
        %v7450 = vpop.f32.mrb[0].mxu0
        %v7451 = vpop.f32.mrb[0].mxu0
        %v7452 = vadd.f32 %v7251, %v7451
        %v7453 = vpop.f32.mrb[0].mxu0
        %7454 = vmatprep.mubr.bf16.mxu0 %v6089
        %7455 = vmatmul.mubr.bf16.gmra.mrb[0].mxu0 %v6088
        %v7456 = vpop.f32.mrb[0].mxu0
        %v7457 = vadd.f32 %v7256, %v7456
        %v7458 = vpop.f32.mrb[0].mxu0
        %v7459 = vpop.f32.mrb[0].mxu0
        %v7460 = vadd.f32 %v7259, %v7459
        %v7461 = vpop.f32.mrb[0].mxu0
        %7462 = vmatprep.mubr.bf16.mxu0 %v6096
        %7463 = vmatmul.mubr.bf16.gmra.mrb[0].mxu0 %v6095
        %v7464 = vpop.f32.mrb[0].mxu0
        %v7465 = vadd.f32 %v7264, %v7464
        %v7466 = vpop.f32.mrb[0].mxu0
        %v7467 = vpop.f32.mrb[0].mxu0
        %v7468 = vadd.f32 %v7267, %v7467
        %v7469 = vpop.f32.mrb[0].mxu0
        %7470 = vmatprep.mubr.bf16.mxu0 %v6103
        %7471 = vmatmul.mubr.bf16.gmra.mrb[0].mxu0 %v6102
        %v7472 = vpop.f32.mrb[0].mxu0
        %v7473 = vadd.f32 %v7272, %v7472
        %v7474 = vpop.f32.mrb[0].mxu0
        %v7475 = vpop.f32.mrb[0].mxu0
        %v7476 = vadd.f32 %v7275, %v7475
        %v7477 = vpop.f32.mrb[0].mxu0
        %7478 = vmatprep.mubr.bf16.mxu0 %v6110
        %7479 = vmatmul.mubr.bf16.gmra.mrb[0].mxu0 %v6109
        %v7480 = vpop.f32.mrb[0].mxu0
        %v7481 = vadd.f32 %v7280, %v7480
        %v7482 = vpop.f32.mrb[0].mxu0
        %v7483 = vpop.f32.mrb[0].mxu0
        %v7484 = vadd.f32 %v7283, %v7483
        %v7485 = vpop.f32.mrb[0].mxu0
        %7486 = vmatprep.mubr.bf16.mxu0 %v6117
        %7487 = vmatmul.mubr.bf16.gmra.mrb[0].mxu0 %v6116
        %v7488 = vpop.f32.mrb[0].mxu0
        %v7489 = vadd.f32 %v7288, %v7488
        %v7490 = vpop.f32.mrb[0].mxu0
        %v7491 = vpop.f32.mrb[0].mxu0
        %v7492 = vadd.f32 %v7291, %v7491
        %v7493 = vpop.f32.mrb[0].mxu0
        %7494 = vmatprep.mubr.bf16.mxu0 %v6124
        %7495 = vmatmul.mubr.bf16.gmra.mrb[0].mxu0 %v6123
        %v7496 = vpop.f32.mrb[0].mxu0
        %v7497 = vadd.f32 %v7296, %v7496
        %v7498 = vpop.f32.mrb[0].mxu0
        %v7499 = vpop.f32.mrb[0].mxu0
        %v7500 = vadd.f32 %v7299, %v7499
        %v7501 = vpop.f32.mrb[0].mxu0
        %7502 = vmatprep.mubr.bf16.mxu0 %v6131
        %7503 = vmatmul.mubr.bf16.gmra.mrb[0].mxu0 %v6130
        %v7504 = vpop.f32.mrb[0].mxu0
        %v7505 = vadd.f32 %v7304, %v7504
        %v7506 = vpop.f32.mrb[0].mxu0
        %v7507 = vpop.f32.mrb[0].mxu0
        %v7508 = vadd.f32 %v7307, %v7507
        %v7509 = vpop.f32.mrb[0].mxu0
        %7510 = vmatprep.mubr.bf16.mxu0 %v6138
        %7511 = vmatmul.mubr.bf16.gmra.mrb[0].mxu0 %v6137
        %v7512 = vpop.f32.mrb[0].mxu0
        %v7513 = vadd.f32 %v7312, %v7512
        %v7514 = vpop.f32.mrb[0].mxu0
        %v7515 = vpop.f32.mrb[0].mxu0
        %v7516 = vadd.f32 %v7315, %v7515
        %v7517 = vpop.f32.mrb[0].mxu0
        %7518 = vmatprep.mubr.bf16.mxu0 %v6145
        %7519 = vmatmul.mubr.bf16.gmra.mrb[0].mxu0 %v6144
        %v7520 = vpop.f32.mrb[0].mxu0
        %v7521 = vadd.f32 %v7320, %v7520
        %v7522 = vpop.f32.mrb[0].mxu0
        %v7523 = vpop.f32.mrb[0].mxu0
        %v7524 = vadd.f32 %v7323, %v7523
        %v7525 = vpop.f32.mrb[0].mxu0
        %7526 = vmatprep.mubr.bf16.mxu0 %v6152
        %7527 = vmatmul.mubr.bf16.gmra.mrb[0].mxu0 %v6151
        %v7528 = vpop.f32.mrb[0].mxu0
        %v7529 = vadd.f32 %v7328, %v7528
        %v7530 = vpop.f32.mrb[0].mxu0
        %v7531 = vpop.f32.mrb[0].mxu0
        %v7532 = vadd.f32 %v7331, %v7531
        %v7533 = vpop.f32.mrb[0].mxu0
        %7534 = vmatprep.mubr.bf16.mxu0 %v6159
        %7535 = vmatmul.mubr.bf16.gmra.mrb[0].mxu0 %v6158
        %v7536 = vpop.f32.mrb[0].mxu0
        %v7537 = vadd.f32 %v7336, %v7536
        %v7538 = vpop.f32.mrb[0].mxu0
        %v7539 = vpop.f32.mrb[0].mxu0
        %v7540 = vadd.f32 %v7339, %v7539
        %v7541 = vpop.f32.mrb[0].mxu0
        %7542 = vmatprep.mubr.bf16.mxu0 %v6166
        %7543 = vmatmul.mubr.bf16.gmra.mrb[0].mxu0 %v6165
        %v7544 = vpop.f32.mrb[0].mxu0
        %v7545 = vadd.f32 %v7344, %v7544
        %v7546 = vpop.f32.mrb[0].mxu0
        %v7547 = vpop.f32.mrb[0].mxu0
        %v7548 = vadd.f32 %v7347, %v7547
        %v7549 = vpop.f32.mrb[0].mxu0
        %7550 = vmatprep.mubr.bf16.mxu0 %v6173
        %7551 = vmatmul.mubr.bf16.gmra.mrb[0].mxu0 %v6172
        %v7552 = vpop.f32.mrb[0].mxu0
        %v7553 = vadd.f32 %v7352, %v7552
        %v7554 = vpop.f32.mrb[0].mxu0
        %v7555 = vpop.f32.mrb[0].mxu0
        %v7556 = vadd.f32 %v7355, %v7555
        %v7557 = vpop.f32.mrb[0].mxu0
        %7558 = vmatprep.mubr.bf16.mxu0 %v6178
        %7559 = vmatmul.mubr.bf16.gmra.mrb[0].mxu0 %v6038
        %v7560 = vpop.f32.mrb[0].mxu0
        %v7561 = vadd.f32 %v7360, %v7560
        %v7562 = vpop.f32.mrb[0].mxu0
        %v7563 = vpop.f32.mrb[0].mxu0
        %v7564 = vadd.f32 %v7363, %v7563
        %v7565 = vpop.f32.mrb[0].mxu0
        %7566 = vdwg.mxu0
        %7567 = vmatprep.subr.bf16.mxu0 0
        %7568 = vmatpush1.bf16.msra.mxu0 %v6683
        %7569 = vmatprep.subr.bf16.mxu0 0
        %7570 = vmatpush1.bf16.msra.mxu0 %v6684
        %7571 = vmatprep.subr.bf16.mxu0 0
        %7572 = vmatpush1.bf16.msra.mxu0 %v6685
        %7573 = vmatprep.subr.bf16.mxu0 0
        %7574 = vmatpush1.bf16.msra.mxu0 %v6686
        %7575 = vmatprep.subr.bf16.mxu0 0
        %7576 = vmatpush1.bf16.msra.mxu0 %v6687
        %7577 = vmatprep.subr.bf16.mxu0 0
        %7578 = vmatpush1.bf16.msra.mxu0 %v6688
        %7579 = vmatprep.subr.bf16.mxu0 0
        %7580 = vmatpush1.bf16.msra.mxu0 %v6689
        %7581 = vmatprep.subr.bf16.mxu0 0
        %7582 = vmatpush1.bf16.msra.mxu0 %v6690
        %7583 = vmatprep.subr.bf16.mxu0 0
        %7584 = vmatpush1.bf16.msra.mxu0 0
        %7585 = vmatprep.subr.bf16.mxu0 0
        %7586 = vmatpush1.bf16.msra.mxu0 0
        %7587 = vmatprep.subr.bf16.mxu0 0
        %7588 = vmatpush1.bf16.msra.mxu0 0
        %7589 = vmatprep.subr.bf16.mxu0 0
        %7590 = vmatpush1.bf16.msra.mxu0 0
        %7591 = vmatprep.subr.bf16.mxu0 0
        %7592 = vmatpush1.bf16.msra.mxu0 0
        %7593 = vmatprep.subr.bf16.mxu0 0
        %7594 = vmatpush1.bf16.msra.mxu0 0
        %7595 = vmatprep.subr.bf16.mxu0 0
        %7596 = vmatpush1.bf16.msra.mxu0 0
        %7597 = vmatprep.subr.bf16.mxu0 0
        %7598 = vmatpush1.bf16.msra.mxu0 0
        %7599 = vmatprep.mubr.bf16.mxu0 0
        %7600 = vmatmul.mubr.bf16.gmra.mrb[0].mxu0 %v6041
        %v7601 = vpop.f32.mrb[0].mxu0
        %v7602 = vadd.f32 %v7401, %v7601
        %v7603 = vpop.f32.mrb[0].mxu0
        %v7604 = vpop.f32.mrb[0].mxu0
        %v7605 = vadd.f32 %v7404, %v7604
        %v7606 = vpop.f32.mrb[0].mxu0
        %7607 = vmatprep.mubr.bf16.mxu0 0
        %7608 = vmatmul.mubr.bf16.gmra.mrb[0].mxu0 %v6048
        %v7609 = vpop.f32.mrb[0].mxu0
        %v7610 = vadd.f32 %v7409, %v7609
        %v7611 = vpop.f32.mrb[0].mxu0
        %v7612 = vpop.f32.mrb[0].mxu0
        %v7613 = vadd.f32 %v7412, %v7612
        %v7614 = vpop.f32.mrb[0].mxu0
        %7615 = vmatprep.mubr.bf16.mxu0 0
        %7616 = vmatmul.mubr.bf16.gmra.mrb[0].mxu0 %v6055
        %v7617 = vpop.f32.mrb[0].mxu0
        %v7618 = vadd.f32 %v7417, %v7617
        %v7619 = vpop.f32.mrb[0].mxu0
        %v7620 = vpop.f32.mrb[0].mxu0
        %v7621 = vadd.f32 %v7420, %v7620
        %v7622 = vpop.f32.mrb[0].mxu0
        %7623 = vmatprep.mubr.bf16.mxu0 0
        %7624 = vmatmul.mubr.bf16.gmra.mrb[0].mxu0 %v6062
        %v7625 = vpop.f32.mrb[0].mxu0
        %v7626 = vadd.f32 %v7425, %v7625
        %v7627 = vpop.f32.mrb[0].mxu0
        %v7628 = vpop.f32.mrb[0].mxu0
        %v7629 = vadd.f32 %v7428, %v7628
        %v7630 = vpop.f32.mrb[0].mxu0
        %7631 = vmatprep.mubr.bf16.mxu0 0
        %7632 = vmatmul.mubr.bf16.gmra.mrb[0].mxu0 %v6069
        %v7633 = vpop.f32.mrb[0].mxu0
        %v7634 = vadd.f32 %v7433, %v7633
        %v7635 = vpop.f32.mrb[0].mxu0
        %v7636 = vpop.f32.mrb[0].mxu0
        %v7637 = vadd.f32 %v7436, %v7636
        %v7638 = vpop.f32.mrb[0].mxu0
        %7639 = vmatprep.mubr.bf16.mxu0 0
        %7640 = vmatmul.mubr.bf16.gmra.mrb[0].mxu0 %v6076
        %v7641 = vpop.f32.mrb[0].mxu0
        %v7642 = vadd.f32 %v7441, %v7641
        %v7643 = vpop.f32.mrb[0].mxu0
        %v7644 = vpop.f32.mrb[0].mxu0
        %v7645 = vadd.f32 %v7444, %v7644
        %v7646 = vpop.f32.mrb[0].mxu0
        %7647 = vmatprep.mubr.bf16.mxu0 0
        %7648 = vmatmul.mubr.bf16.gmra.mrb[0].mxu0 %v6083
        %v7649 = vpop.f32.mrb[0].mxu0
        %v7650 = vadd.f32 %v7449, %v7649
        %v7651 = vpop.f32.mrb[0].mxu0
        %v7652 = vpop.f32.mrb[0].mxu0
        %v7653 = vadd.f32 %v7452, %v7652
        %v7654 = vpop.f32.mrb[0].mxu0
        %7655 = vmatprep.mubr.bf16.mxu0 0
        %7656 = vmatmul.mubr.bf16.gmra.mrb[0].mxu0 %v6090
        %v7657 = vpop.f32.mrb[0].mxu0
        %v7658 = vadd.f32 %v7457, %v7657
        %v7659 = vpop.f32.mrb[0].mxu0
        %v7660 = vpop.f32.mrb[0].mxu0
        %v7661 = vadd.f32 %v7460, %v7660
        %v7662 = vpop.f32.mrb[0].mxu0
        %7663 = vmatprep.mubr.bf16.mxu0 0
        %7664 = vmatmul.mubr.bf16.gmra.mrb[0].mxu0 %v6097
        %v7665 = vpop.f32.mrb[0].mxu0
        %v7666 = vadd.f32 %v7465, %v7665
        %v7667 = vpop.f32.mrb[0].mxu0
        %v7668 = vpop.f32.mrb[0].mxu0
        %v7669 = vadd.f32 %v7468, %v7668
        %v7670 = vpop.f32.mrb[0].mxu0
        %7671 = vmatprep.mubr.bf16.mxu0 0
        %7672 = vmatmul.mubr.bf16.gmra.mrb[0].mxu0 %v6104
        %v7673 = vpop.f32.mrb[0].mxu0
        %v7674 = vadd.f32 %v7473, %v7673
        %v7675 = vpop.f32.mrb[0].mxu0
        %v7676 = vpop.f32.mrb[0].mxu0
        %v7677 = vadd.f32 %v7476, %v7676
        %v7678 = vpop.f32.mrb[0].mxu0
        %7679 = vmatprep.mubr.bf16.mxu0 0
        %7680 = vmatmul.mubr.bf16.gmra.mrb[0].mxu0 %v6111
        %v7681 = vpop.f32.mrb[0].mxu0
        %v7682 = vadd.f32 %v7481, %v7681
        %v7683 = vpop.f32.mrb[0].mxu0
        %v7684 = vpop.f32.mrb[0].mxu0
        %v7685 = vadd.f32 %v7484, %v7684
        %v7686 = vpop.f32.mrb[0].mxu0
        %7687 = vmatprep.mubr.bf16.mxu0 0
        %7688 = vmatmul.mubr.bf16.gmra.mrb[0].mxu0 %v6118
        %v7689 = vpop.f32.mrb[0].mxu0
        %v7690 = vadd.f32 %v7489, %v7689
        %v7691 = vpop.f32.mrb[0].mxu0
        %v7692 = vpop.f32.mrb[0].mxu0
        %v7693 = vadd.f32 %v7492, %v7692
        %v7694 = vpop.f32.mrb[0].mxu0
        %7695 = vmatprep.mubr.bf16.mxu0 0
        %7696 = vmatmul.mubr.bf16.gmra.mrb[0].mxu0 %v6125
        %v7697 = vpop.f32.mrb[0].mxu0
        %v7698 = vadd.f32 %v7497, %v7697
        %v7699 = vpop.f32.mrb[0].mxu0
        %v7700 = vpop.f32.mrb[0].mxu0
        %v7701 = vadd.f32 %v7500, %v7700
        %v7702 = vpop.f32.mrb[0].mxu0
        %7703 = vmatprep.mubr.bf16.mxu0 0
        %7704 = vmatmul.mubr.bf16.gmra.mrb[0].mxu0 %v6132
        %v7705 = vpop.f32.mrb[0].mxu0
        %v7706 = vadd.f32 %v7505, %v7705
        %v7707 = vpop.f32.mrb[0].mxu0
        %v7708 = vpop.f32.mrb[0].mxu0
        %v7709 = vadd.f32 %v7508, %v7708
        %v7710 = vpop.f32.mrb[0].mxu0
        %7711 = vmatprep.mubr.bf16.mxu0 0
        %7712 = vmatmul.mubr.bf16.gmra.mrb[0].mxu0 %v6139
        %v7713 = vpop.f32.mrb[0].mxu0
        %v7714 = vadd.f32 %v7513, %v7713
        %v7715 = vpop.f32.mrb[0].mxu0
        %v7716 = vpop.f32.mrb[0].mxu0
        %v7717 = vadd.f32 %v7516, %v7716
        %v7718 = vpop.f32.mrb[0].mxu0
        %7719 = vmatprep.mubr.bf16.mxu0 0
        %7720 = vmatmul.mubr.bf16.gmra.mrb[0].mxu0 %v6146
        %v7721 = vpop.f32.mrb[0].mxu0
        %v7722 = vadd.f32 %v7521, %v7721
        %v7723 = vpop.f32.mrb[0].mxu0
        %v7724 = vpop.f32.mrb[0].mxu0
        %v7725 = vadd.f32 %v7524, %v7724
        %v7726 = vpop.f32.mrb[0].mxu0
        %7727 = vmatprep.mubr.bf16.mxu0 0
        %7728 = vmatmul.mubr.bf16.gmra.mrb[0].mxu0 %v6153
        %v7729 = vpop.f32.mrb[0].mxu0
        %v7730 = vadd.f32 %v7529, %v7729
        %v7731 = vpop.f32.mrb[0].mxu0
        %v7732 = vpop.f32.mrb[0].mxu0
        %v7733 = vadd.f32 %v7532, %v7732
        %v7734 = vpop.f32.mrb[0].mxu0
        %7735 = vmatprep.mubr.bf16.mxu0 0
        %7736 = vmatmul.mubr.bf16.gmra.mrb[0].mxu0 %v6160
        %v7737 = vpop.f32.mrb[0].mxu0
        %v7738 = vadd.f32 %v7537, %v7737
        %v7739 = vpop.f32.mrb[0].mxu0
        %v7740 = vpop.f32.mrb[0].mxu0
        %v7741 = vadd.f32 %v7540, %v7740
        %v7742 = vpop.f32.mrb[0].mxu0
        %7743 = vmatprep.mubr.bf16.mxu0 0
        %7744 = vmatmul.mubr.bf16.gmra.mrb[0].mxu0 %v6167
        %v7745 = vpop.f32.mrb[0].mxu0
        %v7746 = vadd.f32 %v7545, %v7745
        %v7747 = vpop.f32.mrb[0].mxu0
        %v7748 = vpop.f32.mrb[0].mxu0
        %v7749 = vadd.f32 %v7548, %v7748
        %v7750 = vpop.f32.mrb[0].mxu0
        %7751 = vmatprep.mubr.bf16.mxu0 0
        %7752 = vmatmul.mubr.bf16.gmra.mrb[0].mxu0 %v6174
        %v7753 = vpop.f32.mrb[0].mxu0
        %v7754 = vadd.f32 %v7553, %v7753
        %v7755 = vpop.f32.mrb[0].mxu0
        %v7756 = vpop.f32.mrb[0].mxu0
        %v7757 = vadd.f32 %v7556, %v7756
        %v7758 = vpop.f32.mrb[0].mxu0
        %7759 = vmatprep.mubr.bf16.mxu0 0
        %7760 = vmatmul.mubr.bf16.gmra.mrb[0].mxu0 %v6179
        %v7761 = vpop.f32.mrb[0].mxu0
        %v7762 = vadd.f32 %v7561, %v7761
        %v7763 = vpop.f32.mrb[0].mxu0
        %v7764 = vpop.f32.mrb[0].mxu0
        %v7765 = vadd.f32 %v7564, %v7764
        %v7766 = vpop.f32.mrb[0].mxu0
        %7767 = vdwg.mxu0
        %v7768 = vadd.f32 %v7602, %v3164
        %v7769 = vadd.f32 %v7605, %v3165
        %v7770 = vadd.f32 %v7610, %v3166
        %v7771 = vadd.f32 %v7613, %v3167
        %v7772 = vadd.f32 %v7618, %v3168
        %v7773 = vadd.f32 %v7621, %v3169
        %v7774 = vadd.f32 %v7626, %v3170
        %v7775 = vadd.f32 %v7629, %v3171
        %v7776 = vadd.f32 %v7634, %v3172
        %v7777 = vadd.f32 %v7637, %v3173
        %v7778 = vadd.f32 %v7642, %v3174
        %v7779 = vadd.f32 %v7645, %v3175
        %v7780 = vadd.f32 %v7650, %v3176
        %v7781 = vadd.f32 %v7653, %v3177
        %v7782 = vadd.f32 %v7658, %v3178
        %v7783 = vadd.f32 %v7661, %v3179
        %v7784 = vadd.f32 %v7666, %v3180
        %v7785 = vadd.f32 %v7669, %v3181
        %v7786 = vadd.f32 %v7674, %v3182
        %v7787 = vadd.f32 %v7677, %v3183
        %v7788 = vadd.f32 %v7682, %v3184
        %v7789 = vadd.f32 %v7685, %v3185
        %v7790 = vadd.f32 %v7690, %v3186
        %v7791 = vadd.f32 %v7693, %v3187
        %v7792 = vadd.f32 %v7698, %v3188
        %v7793 = vadd.f32 %v7701, %v3189
        %v7794 = vadd.f32 %v7706, %v3190
        %v7795 = vadd.f32 %v7709, %v3191
        %v7796 = vadd.f32 %v7714, %v3192
        %v7797 = vadd.f32 %v7717, %v3193
        %v7798 = vadd.f32 %v7722, %v3194
        %v7799 = vadd.f32 %v7725, %v3195
        %v7800 = vadd.f32 %v7730, %v3196
        %v7801 = vadd.f32 %v7733, %v3197
        %v7802 = vadd.f32 %v7738, %v3198
        %v7803 = vadd.f32 %v7741, %v3199
        %v7804 = vadd.f32 %v7746, %v3200
        %v7805 = vadd.f32 %v7749, %v3201
        %v7806 = vadd.f32 %v7754, %v3202
        %v7807 = vadd.f32 %v7757, %v3203
        %v7808 = vadd.f32 %v7762, %v3204
        %v7809 = vadd.f32 %v7765, %v3205
        %v7810 = vmax.f32 %v7768, 0.0
        %v7811 = vmax.f32 %v7769, 0.0
        %v7812 = vmax.f32 %v7770, 0.0
        %v7813 = vmax.f32 %v7771, 0.0
        %v7814 = vmax.f32 %v7772, 0.0
        %v7815 = vmax.f32 %v7773, 0.0
        %v7816 = vmax.f32 %v7774, 0.0
        %v7817 = vmax.f32 %v7775, 0.0
        %v7818 = vmax.f32 %v7776, 0.0
        %v7819 = vmax.f32 %v7777, 0.0
        %v7820 = vmax.f32 %v7778, 0.0
        %v7821 = vmax.f32 %v7779, 0.0
        %v7822 = vmax.f32 %v7780, 0.0
        %v7823 = vmax.f32 %v7781, 0.0
        %v7824 = vmax.f32 %v7782, 0.0
        %v7825 = vmax.f32 %v7783, 0.0
        %v7826 = vmax.f32 %v7784, 0.0
        %v7827 = vmax.f32 %v7785, 0.0
        %v7828 = vmax.f32 %v7786, 0.0
        %v7829 = vmax.f32 %v7787, 0.0
        %v7830 = vmax.f32 %v7788, 0.0
        %v7831 = vmax.f32 %v7789, 0.0
        %v7832 = vmax.f32 %v7790, 0.0
        %v7833 = vmax.f32 %v7791, 0.0
        %v7834 = vmax.f32 %v7792, 0.0
        %v7835 = vmax.f32 %v7793, 0.0
        %v7836 = vmax.f32 %v7794, 0.0
        %v7837 = vmax.f32 %v7795, 0.0
        %v7838 = vmax.f32 %v7796, 0.0
        %v7839 = vmax.f32 %v7797, 0.0
        %v7840 = vmax.f32 %v7798, 0.0
        %v7841 = vmax.f32 %v7799, 0.0
        %v7842 = vmax.f32 %v7800, 0.0
        %v7843 = vmax.f32 %v7801, 0.0
        %v7844 = vmax.f32 %v7802, 0.0
        %v7845 = vmax.f32 %v7803, 0.0
        %v7846 = vmax.f32 %v7804, 0.0
        %v7847 = vmax.f32 %v7805, 0.0
        %v7848 = vmax.f32 %v7806, 0.0
        %v7849 = vmax.f32 %v7807, 0.0
        %v7850 = vmax.f32 %v7808, 0.0
        %v7851 = vmax.f32 %v7809, 0.0
        %v7852 = vpack.c.bf16 %v7811, %v7810
        %v7853 = vpack.c.bf16 %v7813, %v7812
        %v7854 = vpack.c.bf16 %v7815, %v7814
        %v7855 = vpack.c.bf16 %v7817, %v7816
        %v7856 = vpack.c.bf16 %v7819, %v7818
        %v7857 = vpack.c.bf16 %v7821, %v7820
        %v7858 = vpack.c.bf16 %v7823, %v7822
        %v7859 = vpack.c.bf16 %v7825, %v7824
        %v7860 = vpack.c.bf16 %v7827, %v7826
        %v7861 = vpack.c.bf16 %v7829, %v7828
        %v7862 = vpack.c.bf16 %v7831, %v7830
        %v7863 = vpack.c.bf16 %v7833, %v7832
        %v7864 = vpack.c.bf16 %v7835, %v7834
        %v7865 = vpack.c.bf16 %v7837, %v7836
        %v7866 = vpack.c.bf16 %v7839, %v7838
        %v7867 = vpack.c.bf16 %v7841, %v7840
        %v7868 = vpack.c.bf16 %v7843, %v7842
        %v7869 = vpack.c.bf16 %v7845, %v7844
        %v7870 = vpack.c.bf16 %v7847, %v7846
        %v7871 = vpack.c.bf16 %v7849, %v7848
        %v7872 = vpack.c.bf16 %v7851, %v7850
        %v7875 = vunpack.c.l.b16 %v621
        %v7876 = vunpack.c.h.b16 %v621
        %v7877 = vunpack.c.l.b16 %v622
        %v7878 = vpack.c.b16 %v7875, %v7875
        %v7879 = vpack.c.b16 %v7876, %v7876
        %v7880 = vpack.c.b16 %v7877, %v7877
        %vm7883 = vcmask 654336
        %v7885 = vsel %vm7883, %v7880, 0
        %7887 = vmatprep.subr.bf16.mxu0 0
        %7888 = vmatpush1.bf16.msra.mxu0 %v7852
        %7889 = vmatprep.subr.bf16.mxu0 0
        %7890 = vmatpush1.bf16.msra.mxu0 %v7853
        %7891 = vmatprep.subr.bf16.mxu0 0
        %7892 = vmatpush1.bf16.msra.mxu0 %v7854
        %7893 = vmatprep.subr.bf16.mxu0 0
        %7894 = vmatpush1.bf16.msra.mxu0 %v7855
        %7895 = vmatprep.subr.bf16.mxu0 0
        %7896 = vmatpush1.bf16.msra.mxu0 %v7856
        %7897 = vmatprep.subr.bf16.mxu0 0
        %7898 = vmatpush1.bf16.msra.mxu0 %v7857
        %7899 = vmatprep.subr.bf16.mxu0 0
        %7900 = vmatpush1.bf16.msra.mxu0 %v7858
        %7901 = vmatprep.subr.bf16.mxu0 0
        %7902 = vmatpush1.bf16.msra.mxu0 %v7859
        %7903 = vmatprep.subr.bf16.mxu0 0
        %7904 = vmatpush1.bf16.msra.mxu0 %v7860
        %7905 = vmatprep.subr.bf16.mxu0 0
        %7906 = vmatpush1.bf16.msra.mxu0 %v7861
        %7907 = vmatprep.subr.bf16.mxu0 0
        %7908 = vmatpush1.bf16.msra.mxu0 %v7862
        %7909 = vmatprep.subr.bf16.mxu0 0
        %7910 = vmatpush1.bf16.msra.mxu0 %v7863
        %7911 = vmatprep.subr.bf16.mxu0 0
        %7912 = vmatpush1.bf16.msra.mxu0 %v7864
        %7913 = vmatprep.subr.bf16.mxu0 0
        %7914 = vmatpush1.bf16.msra.mxu0 %v7865
        %7915 = vmatprep.subr.bf16.mxu0 0
        %7916 = vmatpush1.bf16.msra.mxu0 %v7866
        %7917 = vmatprep.subr.bf16.mxu0 0
        %7918 = vmatpush1.bf16.msra.mxu0 %v7867
        %7919 = vmatprep.mubr.bf16.mxu0 %v7879
        %7920 = vmatmul.mubr.bf16.gmra.mrb[0].mxu0 %v7878
        %v7921 = vpop.f32.mrb[0].mxu0
        %v7922 = vadd.f32 0.0, %v7921
        %v7923 = vpop.f32.mrb[0].mxu0
        %v7924 = vpop.f32.mrb[0].mxu0
        %v7925 = vpop.f32.mrb[0].mxu0
        %7926 = vdwg.mxu0
        %7927 = vmatprep.subr.bf16.mxu0 0
        %7928 = vmatpush1.bf16.msra.mxu0 %v7868
        %7929 = vmatprep.subr.bf16.mxu0 0
        %7930 = vmatpush1.bf16.msra.mxu0 %v7869
        %7931 = vmatprep.subr.bf16.mxu0 0
        %7932 = vmatpush1.bf16.msra.mxu0 %v7870
        %7933 = vmatprep.subr.bf16.mxu0 0
        %7934 = vmatpush1.bf16.msra.mxu0 %v7871
        %7935 = vmatprep.subr.bf16.mxu0 0
        %7936 = vmatpush1.bf16.msra.mxu0 %v7872
        %7937 = vmatprep.subr.bf16.mxu0 0
        %7938 = vmatpush1.bf16.msra.mxu0 0
        %7939 = vmatprep.subr.bf16.mxu0 0
        %7940 = vmatpush1.bf16.msra.mxu0 0
        %7941 = vmatprep.subr.bf16.mxu0 0
        %7942 = vmatpush1.bf16.msra.mxu0 0
        %7943 = vmatprep.subr.bf16.mxu0 0
        %7944 = vmatpush1.bf16.msra.mxu0 0
        %7945 = vmatprep.subr.bf16.mxu0 0
        %7946 = vmatpush1.bf16.msra.mxu0 0
        %7947 = vmatprep.subr.bf16.mxu0 0
        %7948 = vmatpush1.bf16.msra.mxu0 0
        %7949 = vmatprep.subr.bf16.mxu0 0
        %7950 = vmatpush1.bf16.msra.mxu0 0
        %7951 = vmatprep.subr.bf16.mxu0 0
        %7952 = vmatpush1.bf16.msra.mxu0 0
        %7953 = vmatprep.subr.bf16.mxu0 0
        %7954 = vmatpush1.bf16.msra.mxu0 0
        %7955 = vmatprep.subr.bf16.mxu0 0
        %7956 = vmatpush1.bf16.msra.mxu0 0
        %7957 = vmatprep.subr.bf16.mxu0 0
        %7958 = vmatpush1.bf16.msra.mxu0 0
        %7959 = vmatprep.mubr.bf16.mxu0 0
        %7960 = vmatmul.mubr.bf16.gmra.mrb[0].mxu0 %v7885
        %v7961 = vpop.f32.mrb[0].mxu0
        %v7962 = vadd.f32 %v7922, %v7961
        %v7963 = vpop.f32.mrb[0].mxu0
        %v7964 = vpop.f32.mrb[0].mxu0
        %v7965 = vpop.f32.mrb[0].mxu0
        %7966 = vdwg.mxu0
        %v7967 = vmul.f32 %v7962, 0.00390625
        %v7968 = vmul.f32 %v7967, %v7967
        %7969 = vadd.xlane.f32.xlu0 %v7968
        %v7970 = vpop.xlane.xlu0 %7969
        %v7971 = vrsqrt.pop %v7970
        %v7972 = vmul.f32 %v7970, %v7971
        %vm7973 = vcmp.eq.f32.partialorder %v7970, inf
        %v7974 = vsel %vm7973, %v7970, %v7972
        %vm7975 = vcmp.eq.f32.partialorder %v7970, 0.0
        %v7976 = vand.u32 %v7970, 2147483648
        %v7977 = vsel %vm7975, %v7976, %v7974
        %v7978 = vmax.f32 %v7977, 1e-12
        %v7979 = vrcp.pop %v7978
        %v7980 = vmul.f32 %v7967, %v7979
        %7981 = vst [vmem:[%s570] sm:$0xff] %v7980
        %v7982 = vpack.c.bf16 %v7980, %v7980
        %v7983 = vld [vmem:[#allocation17] sm:$0xf]
        %v7984 = vld [vmem:[#allocation17 + $0x4] sm:$0xf]
        %v7985 = vld [vmem:[#allocation17 + $0x8] sm:$0xf]
        %v7986 = vld [vmem:[#allocation17 + $0xc] sm:$0xf]
        %v7987 = vld [vmem:[#allocation17 + $0x10] sm:$0xf]
        %v7988 = vld [vmem:[#allocation17 + $0x14] sm:$0xf]
        %v7989 = vld [vmem:[#allocation17 + $0x18] sm:$0xf]
        %v7990 = vld [vmem:[#allocation17 + $0x1c] sm:$0xf]
        %v7991 = vld [vmem:[#allocation17 + $0x20] sm:$0xf]
        %v7992 = vld [vmem:[#allocation17 + $0x24] sm:$0xf]
        %v7993 = vld [vmem:[#allocation17 + $0x28] sm:$0xf]
        %v7994 = vld [vmem:[#allocation17 + $0x2c] sm:$0xf]
        %v7995 = vld [vmem:[#allocation17 + $0x30] sm:$0xf]
        %v7996 = vld [vmem:[#allocation17 + $0x34] sm:$0xf]
        %v7997 = vld [vmem:[#allocation17 + $0x38] sm:$0xf]
        %v7998 = vld [vmem:[#allocation17 + $0x3c] sm:$0xf]
        %v7999 = vld [vmem:[#allocation19] sm:$0x1]
        %v8001 = vlaneseq
        %v8002 = vshrl.u32 %v8001, 7
        %v8003 = vsub.s32 0, %v8002
        %v8004 = vrot.slane %v7999, %v8003
        %v8022 = vunpack.c.l.b16 %v7983
        %v8023 = vunpack.c.l.b16 %v7984
        %v8024 = vunpack.c.l.b16 %v7985
        %v8025 = vunpack.c.l.b16 %v7986
        %v8026 = vunpack.c.l.b16 %v7987
        %v8027 = vunpack.c.l.b16 %v7988
        %v8028 = vunpack.c.l.b16 %v7989
        %v8029 = vunpack.c.l.b16 %v7990
        %v8030 = vunpack.c.l.b16 %v7991
        %v8031 = vunpack.c.l.b16 %v7992
        %v8032 = vunpack.c.l.b16 %v7993
        %v8033 = vunpack.c.l.b16 %v7994
        %v8034 = vunpack.c.l.b16 %v7995
        %v8035 = vunpack.c.l.b16 %v7996
        %v8036 = vunpack.c.l.b16 %v7997
        %v8037 = vunpack.c.l.b16 %v7998
        %v8038 = vpack.c.b16 %v8023, %v8022
        %v8039 = vpack.c.b16 %v8025, %v8024
        %v8040 = vpack.c.b16 %v8027, %v8026
        %v8041 = vpack.c.b16 %v8029, %v8028
        %v8042 = vpack.c.b16 %v8031, %v8030
        %v8043 = vpack.c.b16 %v8033, %v8032
        %v8044 = vpack.c.b16 %v8035, %v8034
        %v8045 = vpack.c.b16 %v8037, %v8036
        %8054 = vmatprep.subr.bf16.mxu0 0
        %8055 = vmatpush1.bf16.msra.mxu0 %v8038
        %8056 = vmatprep.subr.bf16.mxu0 0
        %8057 = vmatpush1.bf16.msra.mxu0 %v8039
        %8058 = vmatprep.subr.bf16.mxu0 0
        %8059 = vmatpush1.bf16.msra.mxu0 %v8040
        %8060 = vmatprep.subr.bf16.mxu0 0
        %8061 = vmatpush1.bf16.msra.mxu0 %v8041
        %8062 = vmatprep.subr.bf16.mxu0 0
        %8063 = vmatpush1.bf16.msra.mxu0 %v8042
        %8064 = vmatprep.subr.bf16.mxu0 0
        %8065 = vmatpush1.bf16.msra.mxu0 %v8043
        %8066 = vmatprep.subr.bf16.mxu0 0
        %8067 = vmatpush1.bf16.msra.mxu0 %v8044
        %8068 = vmatprep.subr.bf16.mxu0 0
        %8069 = vmatpush1.bf16.msra.mxu0 %v8045
        %8070 = vmatprep.subr.bf16.mxu0 0
        %8071 = vmatpush1.bf16.msra.mxu0 0
        %8072 = vmatprep.subr.bf16.mxu0 0
        %8073 = vmatpush1.bf16.msra.mxu0 0
        %8074 = vmatprep.subr.bf16.mxu0 0
        %8075 = vmatpush1.bf16.msra.mxu0 0
        %8076 = vmatprep.subr.bf16.mxu0 0
        %8077 = vmatpush1.bf16.msra.mxu0 0
        %8078 = vmatprep.subr.bf16.mxu0 0
        %8079 = vmatpush1.bf16.msra.mxu0 0
        %8080 = vmatprep.subr.bf16.mxu0 0
        %8081 = vmatpush1.bf16.msra.mxu0 0
        %8082 = vmatprep.subr.bf16.mxu0 0
        %8083 = vmatpush1.bf16.msra.mxu0 0
        %8084 = vmatprep.subr.bf16.mxu0 0
        %8085 = vmatpush1.bf16.msra.mxu0 0
        %8086 = vmatprep.mubr.bf16.mxu0 0
        %8087 = vmatmul.mubr.bf16.gmra.mrb[0].mxu0 %v7982
        %v8088 = vpop.f32.mrb[0].mxu0
        %v8089 = vadd.f32 %v8004, %v8088
        %v8090 = vpop.f32.mrb[0].mxu0
        %v8091 = vpop.f32.mrb[0].mxu0
        %v8092 = vpop.f32.mrb[0].mxu0
        %8093 = vdwg.mxu0
        %8094 = vst [vmem:[%s577] sm:$0xff] %v8089
        %s8095 = sand.u32 %s282, 1
        %s8096 = scalar_lea.sflag [#allocation4], %s8095
        %s8097 = sand.u32 %s282, 1
        %s8098 = smul.addr %s8097, 8
        %s8099 = scalar_lea.vmem [#allocation20], %s8098
        %s8100 = sand.u32 %s308, 1
        %s8101 = scalar_lea.sflag [#allocation22], %s8100
        %s8102 = sand.u32 %s308, 1
        %s8103 = smul.addr %s8102, 8
        %s8104 = scalar_lea.vmem [#allocation21], %s8103
        // Predicated region
        $region109: #{timm_resnet_wrapper_forward.1} parent=63 // pred_check
          %p8105 = pneg %p292
        $region110: #{timm_resnet_wrapper_forward.1} parent=63 // pred_check_branch
          %8107 = sbr.rel (%p8105) target = $region112
        $region111: #{timm_resnet_wrapper_forward.1} parent=63 // pred_region
          %s8109 = ssub.s32 128, 128
          %8110 = vsyncadd %s8096, %s8109
          %s8111 = smul.addr %s38, 128
          %s8112 = scalar_lea.hbm %s11, %s8111
          %s8114 = sshll.u32 %s8099, 4
          %s8115 = int_to_ptr.vmem [resolvable:$true] %s8114
          %8117 = dma.vmem_to_hbm [thread:$0]  %s8115, 128, %s8112, %s8096
        $region112: #{timm_resnet_wrapper_forward.1} parent=63 // pred_fallthru
          _
        // Predicated region
        $region113: #{timm_resnet_wrapper_forward.1} parent=63 // pred_check
          %p8118 = pneg %p318
        $region114: #{timm_resnet_wrapper_forward.1} parent=63 // pred_check_branch
          %8120 = sbr.rel (%p8118) target = $region116
        $region115: #{timm_resnet_wrapper_forward.1} parent=63 // pred_region
          %s8122 = ssub.s32 128, 128
          %8123 = vsyncadd %s8101, %s8122
          %s8124 = smul.addr %s38, 128
          %s8125 = scalar_lea.hbm %s12, %s8124
          %s8127 = sshll.u32 %s8104, 4
          %s8128 = int_to_ptr.vmem [resolvable:$true] %s8127
          %8130 = dma.vmem_to_hbm [thread:$0]  %s8128, 128, %s8125, %s8101
        $region116: #{timm_resnet_wrapper_forward.1} parent=63 // pred_fallthru
          _
      $region64: #{timm_resnet_wrapper_forward.1} parent=5 // pred_fallthru
        _
      %p8131 = scmp.le.s32.totalorder 2, %s33
      // Predicated region
      $region117: #{timm_resnet_wrapper_forward.1} parent=5 // pred_check
        %p8132 = pneg %p8131
      $region118: #{timm_resnet_wrapper_forward.1} parent=5 // pred_check_branch
        %8134 = sbr.rel (%p8132) target = $region120
      $region119: #{timm_resnet_wrapper_forward.1} parent=5 // pred_region
        %s8135 = ssub.s32 %s33, 2
        // Predicated region
        $region121: #{timm_resnet_wrapper_forward.1} parent=119 // pred_check
          %p8136 = pneg %p298
        $region122: #{timm_resnet_wrapper_forward.1} parent=119 // pred_check_branch
          %8138 = sbr.rel (%p8136) target = $region124
        $region123: #{timm_resnet_wrapper_forward.1} parent=119 // pred_region
          %s8139 = sand.u32 %s283, 1
          %s8140 = scalar_lea.sflag [#allocation4], %s8139
          %s8141 = sand.u32 %s283, 1
          %s8142 = smul.addr %s8141, 8
          %s8143 = scalar_lea.vmem [#allocation20], %s8142
          %8144 = dma.done %s8140, 128
        $region124: #{timm_resnet_wrapper_forward.1} parent=119 // pred_fallthru
          _
        // Predicated region
        $region125: #{timm_resnet_wrapper_forward.1} parent=119 // pred_check
          %p8145 = pneg %p324
        $region126: #{timm_resnet_wrapper_forward.1} parent=119 // pred_check_branch
          %8147 = sbr.rel (%p8145) target = $region128
        $region127: #{timm_resnet_wrapper_forward.1} parent=119 // pred_region
          %s8148 = sand.u32 %s309, 1
          %s8149 = scalar_lea.sflag [#allocation22], %s8148
          %s8150 = sand.u32 %s309, 1
          %s8151 = smul.addr %s8150, 8
          %s8152 = scalar_lea.vmem [#allocation21], %s8151
          %8153 = dma.done %s8149, 128
        $region128: #{timm_resnet_wrapper_forward.1} parent=119 // pred_fallthru
          _
      $region120: #{timm_resnet_wrapper_forward.1} parent=5 // pred_fallthru
        _
    $region6: #{timm_resnet_wrapper_forward.1} parent=1 // loop_footer
      %s37 = sadd.s32 1, %s33
    $region7: #{timm_resnet_wrapper_forward.1} parent=1 // loop_footer_branch
      %32 = sbr.rel target = $region3
    $region8: #{timm_resnet_wrapper_forward.1} parent=1 // loop_exit
      _
    %8154 = vsyncpa [#allocation3], 1
    %s8155 = scalar_lea.sflag [#allocation3], 1
    %8156 = vsyncpa %s8155, 1
    %8157 = vsyncpa [#allocation6], 1
    %8158 = vsyncpa [#allocation9], 1
    %8159 = vsyncpa [#allocation12], 1
    %8160 = vsyncpa [#allocation15], 1
    %8161 = vsyncpa [#allocation18], 1
    %8162 = vsyncpa [#allocation4], 1
    %s8163 = scalar_lea.sflag [#allocation4], 1
    %8164 = vsyncpa %s8163, 1
    %8165 = vsyncpa [#allocation22], 1
    %s8166 = scalar_lea.sflag [#allocation22], 1
    %8167 = vsyncpa %s8166, 1

</llo_original>
